<compile_context>
chip_gen: v6e
topology: v6e:2x2x1
jax: 0.10.0
libtpu: 0.0.40
codegen_flags: <defaults>
</compile_context>

<pallas_src>
import functools

import jax
import jax.numpy as jnp
import numpy as np
from jax.experimental import pallas as pl
from jax.experimental.pallas import tpu as pltpu

EPS = 1e-5
LANE = 128


# ------------------------------ chip detection ------------------------------

def _device_kind():
    try:
        return jax.devices()[0].device_kind.lower()
    except Exception:
        return ""


def _vmem_limit_bytes():
    # v7x: 64 MiB physical VMEM per TC -> stay <= ~48 MiB.
    # v5e/v6e: 128 MiB physical -> 64 MiB gives the pipeliner headroom.
    return (48 if "v7" in _device_kind() else 64) * 1024 * 1024


def _use_kw_stack():
    # v6e/v7x MXUs are 256 deep: stack the 3 kw taps along the contraction
    # axis (K = 3*cp) -> 3 deep matmuls instead of 9 shallow K=128 ones.
    # v5e (4x128 MXU) and unknown chips keep the native 9-tap form.
    kind = _device_kind()
    return ("v6" in kind) or ("v7" in kind)


# ------------------------------ small helpers ------------------------------

def _round_up(a, b):
    return ((a + b - 1) // b) * b


def _pad_channels(x, cp):
    c = x.shape[-1]
    if c == cp:
        return x
    pad = [(0, 0)] * (x.ndim - 1) + [(0, cp - c)]
    return jnp.pad(x, pad)


def _maybe_pad_rows(x, mp):
    m = x.shape[0]
    if m == mp:
        return x
    return jnp.pad(x, ((0, mp - m), (0, 0)))


def _choose_tile(m, cap=1024):
    """Largest multiple-of-8 divisor of m (<= cap) so no row padding is needed.

    Falls back to padded rows only when m has no suitable divisor.
    """
    start = min(cap, m)
    start -= start % 8
    for t in range(start, 0, -8):
        if m % t == 0:
            return t, m
    tm = min(cap, _round_up(max(m, 8), 8))
    return tm, _round_up(m, tm)


def _pack_w3x3(w, cp_in, cp_out, kw_stack):
    # torch (Cout, Cin, KH, KW) -> (KH, KW, Cin, Cout), zero padded, bf16,
    # then either (9, cp_in, cp_out) taps or (3, 3*cp_in, cp_out) kw-stacked.
    c_out, c_in = w.shape[0], w.shape[1]
    wt = jnp.transpose(w, (2, 3, 1, 0))
    wt = jnp.pad(wt, ((0, 0), (0, 0), (0, cp_in - c_in), (0, cp_out - c_out)))
    if kw_stack:
        wt = wt.reshape(3, 3 * cp_in, cp_out)
    else:
        wt = wt.reshape(9, cp_in, cp_out)
    return wt.astype(jnp.bfloat16)


def _pack_w1x1(w, cp_in, cp_out):
    c_out, c_in = w.shape[0], w.shape[1]
    wt = jnp.transpose(w[:, :, 0, 0], (1, 0))
    wt = jnp.pad(wt, ((0, cp_in - c_in), (0, cp_out - c_out)))
    return wt.astype(jnp.bfloat16)


def _finalize_bn(sum_parts, sq_parts, m_real, gamma, beta, cp):
    """Reduce per-tile partial sums -> per-channel (scale, shift) FMA params."""
    s = jnp.sum(sum_parts[:, 0, :], axis=0)
    q = jnp.sum(sq_parts[:, 0, :], axis=0)
    mean = s / m_real
    var = jnp.maximum(q / m_real - mean * mean, 0.0)
    g = jnp.pad(gamma.astype(jnp.float32), (0, cp - gamma.shape[0]))
    b = jnp.pad(beta.astype(jnp.float32), (0, cp - beta.shape[0]))
    scale = g * jax.lax.rsqrt(var + EPS)
    shift = b - mean * scale
    return scale.reshape(1, cp), shift.reshape(1, cp)


# ----------------------------- Pallas kernels -------------------------------

def _conv3x3_kernel(*refs, ho, wo, stride, fuse_bn_relu, kw_stack):
    """One NHWC image block: optional fused BN+relu on the input, in-kernel
    halo padding via VMEM scratch, 3x3 conv as MXU matmuls, BN partial stats.
    """
    if fuse_bn_relu:
        x_ref, w_ref, s_ref, b_ref, y_ref, sum_ref, sq_ref, xp_ref = refs
    else:
        x_ref, w_ref, y_ref, sum_ref, sq_ref, xp_ref = refs
        s_ref = b_ref = None

    h, w, cp = x_ref.shape[1], x_ref.shape[2], x_ref.shape[3]
    coutp = y_ref.shape[3]
    span_h = (ho - 1) * stride + 1
    span_w = (wo - 1) * stride + 1

    xv = x_ref[0]                                        # (h, w, cp) bf16
    if fuse_bn_relu:
        # Previous layer's BN + relu fused into this conv's input load.
        xv = jnp.maximum(xv.astype(jnp.float32) * s_ref[...] + b_ref[...],
                         0.0).astype(jnp.bfloat16)

    # In-kernel halo padding (replaces the jnp.pad HBM round-trip): zero the
    # scratch, write the interior at offset (1, 1).
    xp_ref[...] = jnp.zeros_like(xp_ref)
    xp_ref[1:1 + h, 1:1 + w, :] = xv
    xpad = xp_ref[...]                                   # (h+2, w+2, cp)

    acc = jnp.zeros((ho * wo, coutp), jnp.float32)
    if kw_stack:
        # v6e/v7x: stack the 3 kw taps along K -> 3 matmuls with K = 3*cp.
        for kh in range(3):
            rows = xpad[kh:kh + span_h:stride]           # (ho, w+2, cp)
            slabs = [rows[:, kw:kw + span_w:stride, :] for kw in range(3)]
            a = jnp.concatenate(slabs, axis=-1).reshape(ho * wo, 3 * cp)
            acc = acc + jnp.dot(a, w_ref[kh],
                                preferred_element_type=jnp.float32)
    else:
        # v5e: K = cp = 128 is already the native MXU contraction depth.
        for kh in range(3):
            for kw in range(3):
                a = xpad[kh:kh + span_h:stride, kw:kw + span_w:stride, :]
                acc = acc + jnp.dot(a.reshape(ho * wo, cp),
                                    w_ref[kh * 3 + kw],
                                    preferred_element_type=jnp.float32)

    # BN statistics from the f32 accumulator (before the bf16 demotion).
    sum_ref[0] = jnp.sum(acc, axis=0, keepdims=True)          # (1, coutp)
    sq_ref[0] = jnp.sum(acc * acc, axis=0, keepdims=True)     # (1, coutp)
    y_ref[0] = acc.reshape(ho, wo, coutp).astype(y_ref.dtype)


def _matmul_stats_kernel(a_ref, w_ref, y_ref, sum_ref, sq_ref):
    """1x1-conv shortcut: (tm, K) @ (K, Coutp) + BN partial stats."""
    y = jnp.dot(a_ref[...], w_ref[...], preferred_element_type=jnp.float32)
    sum_ref[0] = jnp.sum(y, axis=0, keepdims=True)
    sq_ref[0] = jnp.sum(y * y, axis=0, keepdims=True)
    y_ref[...] = y.astype(y_ref.dtype)


def _bn_dual_add_relu_kernel(y_ref, s1_ref, b1_ref, r_ref, s2_ref, b2_ref,
                             o_ref):
    """out = relu((y*s1 + b1) + (r*s2 + b2)); bn2 + shortcut-BN + add + relu."""
    main = y_ref[...].astype(jnp.float32) * s1_ref[...] + b1_ref[...]
    res = r_ref[...].astype(jnp.float32) * s2_ref[...] + b2_ref[...]
    o_ref[...] = jnp.maximum(main + res, 0.0).astype(o_ref.dtype)


# ----------------------------- kernel wrappers ------------------------------

def conv3x3_bn_stats(x_nhwc, w_packed, stride, bn_scale=None, bn_shift=None,
                     *, kw_stack, vmem_limit):
    """x_nhwc: (N,H,W,Cp) bf16 (channel padded, NOT spatially padded).

    If bn_scale/bn_shift are given, relu(x*scale + shift) is applied to the
    input block in-kernel (fused BN+relu of the previous layer).
    Returns bf16 conv output + per-image f32 BN partial statistics.
    """
    n, h, w, cp = x_nhwc.shape
    coutp = w_packed.shape[-1]
    ho = (h + 2 - 3) // stride + 1
    wo = (w + 2 - 3) // stride + 1
    hp, wp = h + 2, w + 2
    fuse = bn_scale is not None

    kernel = functools.partial(_conv3x3_kernel, ho=ho, wo=wo, stride=stride,
                               fuse_bn_relu=fuse, kw_stack=kw_stack)
    in_specs = [pl.BlockSpec((1, h, w, cp), lambda i: (i, 0, 0, 0)),
                pl.BlockSpec(w_packed.shape, lambda i: (0, 0, 0))]
    args = [x_nhwc, w_packed]
    if fuse:
        in_specs += [pl.BlockSpec((1, cp), lambda i: (0, 0)),
                     pl.BlockSpec((1, cp), lambda i: (0, 0))]
        args += [bn_scale, bn_shift]

    y, s, q = pl.pallas_call(
        kernel,
        out_shape=(jax.ShapeDtypeStruct((n, ho, wo, coutp), jnp.bfloat16),
                   jax.ShapeDtypeStruct((n, 1, coutp), jnp.float32),
                   jax.ShapeDtypeStruct((n, 1, coutp), jnp.float32)),
        grid=(n,),
        in_specs=in_specs,
        out_specs=(pl.BlockSpec((1, ho, wo, coutp), lambda i: (i, 0, 0, 0)),
                   pl.BlockSpec((1, 1, coutp), lambda i: (i, 0, 0)),
                   pl.BlockSpec((1, 1, coutp), lambda i: (i, 0, 0))),
        scratch_shapes=[pltpu.VMEM((hp, wp, cp), jnp.bfloat16)],
        compiler_params=pltpu.CompilerParams(
            dimension_semantics=("parallel",), vmem_limit_bytes=vmem_limit),
    )(*args)
    return y, s, q, ho, wo


def matmul_stats(a, w, tm, vmem_limit):
    """a: (Mp, K) bf16 (tm | Mp), w: (K, Coutp) bf16 -> bf16 y + f32 stats."""
    m, k = a.shape
    coutp = w.shape[-1]
    nt = m // tm
    return pl.pallas_call(
        _matmul_stats_kernel,
        out_shape=(jax.ShapeDtypeStruct((m, coutp), jnp.bfloat16),
                   jax.ShapeDtypeStruct((nt, 1, coutp), jnp.float32),
                   jax.ShapeDtypeStruct((nt, 1, coutp), jnp.float32)),
        grid=(nt,),
        in_specs=[pl.BlockSpec((tm, k), lambda i: (i, 0)),
                  pl.BlockSpec((k, coutp), lambda i: (0, 0))],
        out_specs=(pl.BlockSpec((tm, coutp), lambda i: (i, 0)),
                   pl.BlockSpec((1, 1, coutp), lambda i: (i, 0, 0)),
                   pl.BlockSpec((1, 1, coutp), lambda i: (i, 0, 0))),
        compiler_params=pltpu.CompilerParams(
            dimension_semantics=("parallel",), vmem_limit_bytes=vmem_limit),
    )(a, w)


def bn_dual_add_relu(y, s1, b1, r, s2, b2, tm, out_dtype, vmem_limit):
    m, cp = y.shape
    nt = m // tm
    return pl.pallas_call(
        _bn_dual_add_relu_kernel,
        out_shape=jax.ShapeDtypeStruct((m, cp), out_dtype),
        grid=(nt,),
        in_specs=[pl.BlockSpec((tm, cp), lambda i: (i, 0)),
                  pl.BlockSpec((1, cp), lambda i: (0, 0)),
                  pl.BlockSpec((1, cp), lambda i: (0, 0)),
                  pl.BlockSpec((tm, cp), lambda i: (i, 0)),
                  pl.BlockSpec((1, cp), lambda i: (0, 0)),
                  pl.BlockSpec((1, cp), lambda i: (0, 0))],
        out_specs=pl.BlockSpec((tm, cp), lambda i: (i, 0)),
        compiler_params=pltpu.CompilerParams(
            dimension_semantics=("parallel",), vmem_limit_bytes=vmem_limit),
    )(y, s1, b1, r, s2, b2)


# ------------------------------- forward pass -------------------------------

def basic_block_forward(x_nchw, params, stride=1, chain_output=False):
    kw_stack = _use_kw_stack()
    vmem_limit = _vmem_limit_bytes()

    x = jnp.transpose(x_nchw, (0, 2, 3, 1))                  # NHWC
    n, h, w, c_in = x.shape
    c_out = params["conv1_w"].shape[0]
    cp_in = _round_up(c_in, LANE)
    cp_out = _round_up(c_out, LANE)

    x_p = _pad_channels(x, cp_in).astype(jnp.bfloat16)       # bf16 MXU input

    # conv1 (+ fused BN1 partial stats); output stays bf16.
    w1 = _pack_w3x3(params["conv1_w"], cp_in, cp_out, kw_stack)
    y1, s1, q1, ho, wo = conv3x3_bn_stats(
        x_p, w1, stride, kw_stack=kw_stack, vmem_limit=vmem_limit)
    m = n * ho * wo
    sc1, sh1 = _finalize_bn(s1, q1, m, params["bn1_g"], params["bn1_b"], cp_out)

    # conv2 with bn1 + relu fused into its input load (+ fused BN2 stats).
    w2 = _pack_w3x3(params["conv2_w"], cp_out, cp_out, kw_stack)
    y2, s2, q2, _, _ = conv3x3_bn_stats(
        y1, w2, 1, bn_scale=sc1, bn_shift=sh1,
        kw_stack=kw_stack, vmem_limit=vmem_limit)
    sc2, sh2 = _finalize_bn(s2, q2, m, params["bn2_g"], params["bn2_b"], cp_out)

    tm, mp = _choose_tile(m)
    y2_flat = _maybe_pad_rows(y2.reshape(m, cp_out), mp)

    # shortcut branch
    if stride != 1 or c_in != c_out:
        xs = _maybe_pad_rows(
            x_p[:, ::stride, ::stride, :].reshape(m, cp_in), mp)
        ws = _pack_w1x1(params["sc_w"], cp_in, cp_out)
        r, ssc, qsc = matmul_stats(xs, ws, tm, vmem_limit)
        r_scale, r_shift = _finalize_bn(ssc, qsc, m,
                                        params["sc_g"], params["sc_b"], cp_out)
    else:
        # identity shortcut: raw x through the fused add with scale=1, shift=0
        assert cp_in == cp_out
        r = _maybe_pad_rows(x_p.reshape(m, cp_in), mp)
        r_scale = jnp.ones((1, cp_out), jnp.float32)
        r_shift = jnp.zeros((1, cp_out), jnp.float32)

    # bn2 + shortcut-BN + residual add + relu in a single fused pass.
    out_dtype = jnp.bfloat16 if chain_output else jnp.float32
    out = bn_dual_add_relu(y2_flat, sc2, sh2, r, r_scale, r_shift,
                           tm, out_dtype, vmem_limit)
    out = out[:m].reshape(n, ho, wo, cp_out)
    if chain_output:
        # bf16, channel-padded NHWC: feed the next BasicBlock directly.
        return out
    out = out[..., :c_out]
    return jnp.transpose(out, (0, 3, 1, 2)).astype(x_nchw.dtype)   # NCHW


# --------------------------- pure-JAX reference -----------------------------

def _ref_conv(x_nchw, w, stride):
    return jax.lax.conv_general_dilated(
        x_nchw, w, window_strides=(stride, stride),
        padding=[(w.shape[2] // 2, w.shape[2] // 2)] * 2,
        dimension_numbers=("NCHW", "OIHW", "NCHW"),
        precision=jax.lax.Precision.HIGHEST)


def _ref_bn(y_nchw, g, b):
    mean = jnp.mean(y_nchw, axis=(0, 2, 3), keepdims=True)
    var = jnp.mean((y_nchw - mean) ** 2, axis=(0, 2, 3), keepdims=True)
    return (y_nchw - mean) * jax.lax.rsqrt(var + EPS) * g.reshape(1, -1, 1, 1) \
        + b.reshape(1, -1, 1, 1)


def ref_forward(x, params, stride=1):
    c_in, c_out = x.shape[1], params["conv1_w"].shape[0]
    out = jnp.maximum(_ref_bn(_ref_conv(x, params["conv1_w"], stride),
                              params["bn1_g"], params["bn1_b"]), 0.0)
    out = _ref_bn(_ref_conv(out, params["conv2_w"], 1),
                  params["bn2_g"], params["bn2_b"])
    if stride != 1 or c_in != c_out:
        sc = _ref_bn(_ref_conv(x, params["sc_w"], stride),
                     params["sc_g"], params["sc_b"])
    else:
        sc = x
    return jnp.maximum(out + sc, 0.0)


# ----------------------------------- main ------------------------------------

if __name__ == "__main__":
    key = jax.random.PRNGKey(0)
    kx, k1, k2, k3, kx2, k4, k5 = jax.random.split(key, 7)

    # Pre-round test inputs/weights to bf16-representable values so the f32
    # reference and the bf16-input MXU path see identical operands.
    def bf(a):
        return a.astype(jnp.bfloat16).astype(jnp.float32)

    # Tolerance note: conv intermediates are stored in bf16 (perf review);
    # BN statistics stay f32, so the BN-normalized error is ~1e-3..1e-2 abs.
    RTOL, ATOL = 2e-2, 3e-2

    # ---- test 1: Cin != Cout -> projection (1x1-conv + BN) shortcut --------
    N, C_IN, C_OUT, H, W, STRIDE = 2, 4, 8, 16, 16, 1
    x = bf(jax.random.normal(kx, (N, C_IN, H, W), jnp.float32))
    params = {
        "conv1_w": bf(0.2 * jax.random.normal(k1, (C_OUT, C_IN, 3, 3),
                                              jnp.float32)),
        "bn1_g": jnp.ones((C_OUT,), jnp.float32),
        "bn1_b": jnp.zeros((C_OUT,), jnp.float32),
        "conv2_w": bf(0.2 * jax.random.normal(k2, (C_OUT, C_OUT, 3, 3),
                                              jnp.float32)),
        "bn2_g": jnp.ones((C_OUT,), jnp.float32),
        "bn2_b": jnp.zeros((C_OUT,), jnp.float32),
        "sc_w": bf(0.2 * jax.random.normal(k3, (C_OUT, C_IN, 1, 1),
                                           jnp.float32)),
        "sc_g": jnp.ones((C_OUT,), jnp.float32),
        "sc_b": jnp.zeros((C_OUT,), jnp.float32),
    }
    fwd = jax.jit(functools.partial(basic_block_forward, stride=STRIDE))
    out = jax.block_until_ready(fwd(x, params))
    ref = jax.block_until_ready(ref_forward(x, params, stride=STRIDE))
    assert out.shape == (N, C_OUT, H // STRIDE, W // STRIDE)
    np.testing.assert_allclose(np.asarray(out), np.asarray(ref),
                               rtol=RTOL, atol=ATOL)

    # ---- test 2: Cin == Cout, stride 1 -> identity shortcut ----------------
    C = 8
    x2 = bf(jax.random.normal(kx2, (N, C, H, W), jnp.float32))
    params2 = {
        "conv1_w": bf(0.2 * jax.random.normal(k4, (C, C, 3, 3), jnp.float32)),
        "bn1_g": jnp.ones((C,), jnp.float32),
        "bn1_b": jnp.zeros((C,), jnp.float32),
        "conv2_w": bf(0.2 * jax.random.normal(k5, (C, C, 3, 3), jnp.float32)),
        "bn2_g": jnp.ones((C,), jnp.float32),
        "bn2_b": jnp.zeros((C,), jnp.float32),
    }
    out2 = jax.block_until_ready(jax.jit(basic_block_forward)(x2, params2))
    ref2 = jax.block_until_ready(ref_forward(x2, params2, stride=1))
    np.testing.assert_allclose(np.asarray(out2), np.asarray(ref2),
                               rtol=RTOL, atol=ATOL)

    print("KERNEL_OK")
</pallas_src>

<mosaic_0001>
module attributes {stable_mosaic.version = 11 : i64} {
  func.func @_conv3x3_kernel(%arg0: i32, %arg1: memref<1x16x16x128xbf16, #tpu.memory_space<vmem>>, %arg2: memref<9x128x128xbf16, #tpu.memory_space<vmem>>, %arg3: memref<1x16x16x128xbf16, #tpu.memory_space<vmem>>, %arg4: memref<1x1x128xf32, #tpu.memory_space<vmem>>, %arg5: memref<1x1x128xf32, #tpu.memory_space<vmem>>, %arg6: memref<18x18x128xbf16, #tpu.memory_space<vmem>>) attributes {dimension_semantics = [#tpu.dimension_semantics<parallel>], iteration_bounds = array<i64: 2>, scalar_prefetch = 0 : i64, scratch_operands = 1 : i64, tpu.core_type = #tpu.core_type<tc>, window_params = [{transform_indices = @transform_0, window_bounds = array<i64: 1, 16, 16, 128>}, {pipeline_mode = #tpu.pipeline_mode<synchronous>, transform_indices = @transform_1, window_bounds = array<i64: 9, 128, 128>}, {transform_indices = @transform_2, window_bounds = array<i64: 1, 16, 16, 128>}, {transform_indices = @transform_3, window_bounds = array<i64: 1, 1, 128>}, {transform_indices = @transform_4, window_bounds = array<i64: 1, 1, 128>}]} {
    %c0 = arith.constant 0 : index
    %c0_0 = arith.constant 0 : index
    %c0_1 = arith.constant 0 : index
    %c0_2 = arith.constant 0 : index
    %0 = vector.load %arg1[%c0, %c0_0, %c0_1, %c0_2] : memref<1x16x16x128xbf16, #tpu.memory_space<vmem>>, vector<1x16x16x128xbf16>
    %1 = vector.shape_cast %0 : vector<1x16x16x128xbf16> to vector<16x16x128xbf16>
    %cst = arith.constant 0.000000e+00 : bf16
    %2 = vector.broadcast %cst : bf16 to vector<18x18x128xbf16>
    %c0_3 = arith.constant 0 : index
    %c0_4 = arith.constant 0 : index
    %c0_5 = arith.constant 0 : index
    %3 = vector.load %arg6[%c0_3, %c0_4, %c0_5] : memref<18x18x128xbf16, #tpu.memory_space<vmem>>, vector<18x18x128xbf16>
    tpu.vector_store %arg6[%c0_3, %c0_4, %c0_5], %2 {strides = array<i32>} : memref<18x18x128xbf16, #tpu.memory_space<vmem>>, vector<18x18x128xbf16>,
    %c1 = arith.constant 1 : index
    %c1_6 = arith.constant 1 : index
    %c0_7 = arith.constant 0 : index
    %4 = vector.load %arg6[%c1, %c1_6, %c0_7] : memref<18x18x128xbf16, #tpu.memory_space<vmem>>, vector<16x16x128xbf16>
    tpu.vector_store %arg6[%c1, %c1_6, %c0_7], %1 {strides = array<i32>} : memref<18x18x128xbf16, #tpu.memory_space<vmem>>, vector<16x16x128xbf16>,
    %c0_8 = arith.constant 0 : index
    %c0_9 = arith.constant 0 : index
    %c0_10 = arith.constant 0 : index
    %5 = vector.load %arg6[%c0_8, %c0_9, %c0_10] : memref<18x18x128xbf16, #tpu.memory_space<vmem>>, vector<18x18x128xbf16>
    %cst_11 = arith.constant 0.000000e+00 : f32
    %6 = vector.broadcast %cst_11 : f32 to vector<256x128xf32>
    %7 = vector.extract_strided_slice %5 {offsets = [0, 0, 0], sizes = [16, 16, 128], strides = [1, 1, 1]} : vector<18x18x128xbf16> to vector<16x16x128xbf16>
    %8 = vector.shape_cast %7 : vector<16x16x128xbf16> to vector<256x128xbf16>
    %c0_12 = arith.constant 0 : index
    %c0_13 = arith.constant 0 : index
    %c0_14 = arith.constant 0 : index
    %9 = vector.load %arg2[%c0_12, %c0_13, %c0_14] : memref<9x128x128xbf16, #tpu.memory_space<vmem>>, vector<1x128x128xbf16>
    %10 = vector.shape_cast %9 : vector<1x128x128xbf16> to vector<128x128xbf16>
    %cst_15 = arith.constant dense<0.000000e+00> : vector<256x128xf32>
    %11 = tpu.matmul %8, %10, %cst_15 {dimension_numbers = #tpu.dot_dimension_numbers<[1], [0], [0], [1], [0, 0, 1, 1], [], []>} : vector<256x128xbf16>, vector<128x128xbf16>, vector<256x128xf32> -> vector<256x128xf32>
    %12 = arith.addf %6, %11 : vector<256x128xf32>
    %13 = vector.extract_strided_slice %5 {offsets = [0, 1, 0], sizes = [16, 16, 128], strides = [1, 1, 1]} : vector<18x18x128xbf16> to vector<16x16x128xbf16>
    %14 = vector.shape_cast %13 : vector<16x16x128xbf16> to vector<256x128xbf16>
    %c1_16 = arith.constant 1 : index
    %c0_17 = arith.constant 0 : index
    %c0_18 = arith.constant 0 : index
    %15 = vector.load %arg2[%c1_16, %c0_17, %c0_18] : memref<9x128x128xbf16, #tpu.memory_space<vmem>>, vector<1x128x128xbf16>
    %16 = vector.shape_cast %15 : vector<1x128x128xbf16> to vector<128x128xbf16>
    %cst_19 = arith.constant dense<0.000000e+00> : vector<256x128xf32>
    %17 = tpu.matmul %14, %16, %cst_19 {dimension_numbers = #tpu.dot_dimension_numbers<[1], [0], [0], [1], [0, 0, 1, 1], [], []>} : vector<256x128xbf16>, vector<128x128xbf16>, vector<256x128xf32> -> vector<256x128xf32>
    %18 = arith.addf %12, %17 : vector<256x128xf32>
    %19 = vector.extract_strided_slice %5 {offsets = [0, 2, 0], sizes = [16, 16, 128], strides = [1, 1, 1]} : vector<18x18x128xbf16> to vector<16x16x128xbf16>
    %20 = vector.shape_cast %19 : vector<16x16x128xbf16> to vector<256x128xbf16>
    %c2 = arith.constant 2 : index
    %c0_20 = arith.constant 0 : index
    %c0_21 = arith.constant 0 : index
    %21 = vector.load %arg2[%c2, %c0_20, %c0_21] : memref<9x128x128xbf16, #tpu.memory_space<vmem>>, vector<1x128x128xbf16>
    %22 = vector.shape_cast %21 : vector<1x128x128xbf16> to vector<128x128xbf16>
    %cst_22 = arith.constant dense<0.000000e+00> : vector<256x128xf32>
    %23 = tpu.matmul %20, %22, %cst_22 {dimension_numbers = #tpu.dot_dimension_numbers<[1], [0], [0], [1], [0, 0, 1, 1], [], []>} : vector<256x128xbf16>, vector<128x128xbf16>, vector<256x128xf32> -> vector<256x128xf32>
    %24 = arith.addf %18, %23 : vector<256x128xf32>
    %25 = vector.extract_strided_slice %5 {offsets = [1, 0, 0], sizes = [16, 16, 128], strides = [1, 1, 1]} : vector<18x18x128xbf16> to vector<16x16x128xbf16>
    %26 = vector.shape_cast %25 : vector<16x16x128xbf16> to vector<256x128xbf16>
    %c3 = arith.constant 3 : index
    %c0_23 = arith.constant 0 : index
    %c0_24 = arith.constant 0 : index
    %27 = vector.load %arg2[%c3, %c0_23, %c0_24] : memref<9x128x128xbf16, #tpu.memory_space<vmem>>, vector<1x128x128xbf16>
    %28 = vector.shape_cast %27 : vector<1x128x128xbf16> to vector<128x128xbf16>
    %cst_25 = arith.constant dense<0.000000e+00> : vector<256x128xf32>
    %29 = tpu.matmul %26, %28, %cst_25 {dimension_numbers = #tpu.dot_dimension_numbers<[1], [0], [0], [1], [0, 0, 1, 1], [], []>} : vector<256x128xbf16>, vector<128x128xbf16>, vector<256x128xf32> -> vector<256x128xf32>
    %30 = arith.addf %24, %29 : vector<256x128xf32>
    %31 = vector.extract_strided_slice %5 {offsets = [1, 1, 0], sizes = [16, 16, 128], strides = [1, 1, 1]} : vector<18x18x128xbf16> to vector<16x16x128xbf16>
    %32 = vector.shape_cast %31 : vector<16x16x128xbf16> to vector<256x128xbf16>
    %c4 = arith.constant 4 : index
    %c0_26 = arith.constant 0 : index
    %c0_27 = arith.constant 0 : index
    %33 = vector.load %arg2[%c4, %c0_26, %c0_27] : memref<9x128x128xbf16, #tpu.memory_space<vmem>>, vector<1x128x128xbf16>
    %34 = vector.shape_cast %33 : vector<1x128x128xbf16> to vector<128x128xbf16>
    %cst_28 = arith.constant dense<0.000000e+00> : vector<256x128xf32>
    %35 = tpu.matmul %32, %34, %cst_28 {dimension_numbers = #tpu.dot_dimension_numbers<[1], [0], [0], [1], [0, 0, 1, 1], [], []>} : vector<256x128xbf16>, vector<128x128xbf16>, vector<256x128xf32> -> vector<256x128xf32>
    %36 = arith.addf %30, %35 : vector<256x128xf32>
    %37 = vector.extract_strided_slice %5 {offsets = [1, 2, 0], sizes = [16, 16, 128], strides = [1, 1, 1]} : vector<18x18x128xbf16> to vector<16x16x128xbf16>
    %38 = vector.shape_cast %37 : vector<16x16x128xbf16> to vector<256x128xbf16>
    %c5 = arith.constant 5 : index
    %c0_29 = arith.constant 0 : index
    %c0_30 = arith.constant 0 : index
    %39 = vector.load %arg2[%c5, %c0_29, %c0_30] : memref<9x128x128xbf16, #tpu.memory_space<vmem>>, vector<1x128x128xbf16>
    %40 = vector.shape_cast %39 : vector<1x128x128xbf16> to vector<128x128xbf16>
    %cst_31 = arith.constant dense<0.000000e+00> : vector<256x128xf32>
    %41 = tpu.matmul %38, %40, %cst_31 {dimension_numbers = #tpu.dot_dimension_numbers<[1], [0], [0], [1], [0, 0, 1, 1], [], []>} : vector<256x128xbf16>, vector<128x128xbf16>, vector<256x128xf32> -> vector<256x128xf32>
    %42 = arith.addf %36, %41 : vector<256x128xf32>
    %43 = vector.extract_strided_slice %5 {offsets = [2, 0, 0], sizes = [16, 16, 128], strides = [1, 1, 1]} : vector<18x18x128xbf16> to vector<16x16x128xbf16>
    %44 = vector.shape_cast %43 : vector<16x16x128xbf16> to vector<256x128xbf16>
    %c6 = arith.constant 6 : index
    %c0_32 = arith.constant 0 : index
    %c0_33 = arith.constant 0 : index
    %45 = vector.load %arg2[%c6, %c0_32, %c0_33] : memref<9x128x128xbf16, #tpu.memory_space<vmem>>, vector<1x128x128xbf16>
    %46 = vector.shape_cast %45 : vector<1x128x128xbf16> to vector<128x128xbf16>
    %cst_34 = arith.constant dense<0.000000e+00> : vector<256x128xf32>
    %47 = tpu.matmul %44, %46, %cst_34 {dimension_numbers = #tpu.dot_dimension_numbers<[1], [0], [0], [1], [0, 0, 1, 1], [], []>} : vector<256x128xbf16>, vector<128x128xbf16>, vector<256x128xf32> -> vector<256x128xf32>
    %48 = arith.addf %42, %47 : vector<256x128xf32>
    %49 = vector.extract_strided_slice %5 {offsets = [2, 1, 0], sizes = [16, 16, 128], strides = [1, 1, 1]} : vector<18x18x128xbf16> to vector<16x16x128xbf16>
    %50 = vector.shape_cast %49 : vector<16x16x128xbf16> to vector<256x128xbf16>
    %c7 = arith.constant 7 : index
    %c0_35 = arith.constant 0 : index
    %c0_36 = arith.constant 0 : index
    %51 = vector.load %arg2[%c7, %c0_35, %c0_36] : memref<9x128x128xbf16, #tpu.memory_space<vmem>>, vector<1x128x128xbf16>
    %52 = vector.shape_cast %51 : vector<1x128x128xbf16> to vector<128x128xbf16>
    %cst_37 = arith.constant dense<0.000000e+00> : vector<256x128xf32>
    %53 = tpu.matmul %50, %52, %cst_37 {dimension_numbers = #tpu.dot_dimension_numbers<[1], [0], [0], [1], [0, 0, 1, 1], [], []>} : vector<256x128xbf16>, vector<128x128xbf16>, vector<256x128xf32> -> vector<256x128xf32>
    %54 = arith.addf %48, %53 : vector<256x128xf32>
    %55 = vector.extract_strided_slice %5 {offsets = [2, 2, 0], sizes = [16, 16, 128], strides = [1, 1, 1]} : vector<18x18x128xbf16> to vector<16x16x128xbf16>
    %56 = vector.shape_cast %55 : vector<16x16x128xbf16> to vector<256x128xbf16>
    %c8 = arith.constant 8 : index
    %c0_38 = arith.constant 0 : index
    %c0_39 = arith.constant 0 : index
    %57 = vector.load %arg2[%c8, %c0_38, %c0_39] : memref<9x128x128xbf16, #tpu.memory_space<vmem>>, vector<1x128x128xbf16>
    %58 = vector.shape_cast %57 : vector<1x128x128xbf16> to vector<128x128xbf16>
    %cst_40 = arith.constant dense<0.000000e+00> : vector<256x128xf32>
    %59 = tpu.matmul %56, %58, %cst_40 {dimension_numbers = #tpu.dot_dimension_numbers<[1], [0], [0], [1], [0, 0, 1, 1], [], []>} : vector<256x128xbf16>, vector<128x128xbf16>, vector<256x128xf32> -> vector<256x128xf32>
    %60 = arith.addf %54, %59 : vector<256x128xf32>
    %cst_41 = arith.constant dense<0.000000e+00> : vector<128xf32>
    %61 = vector.multi_reduction <add>, %60, %cst_41 [0] : vector<256x128xf32> to vector<128xf32>
    %62 = vector.shape_cast %61 : vector<128xf32> to vector<1x128xf32>
    %c0_42 = arith.constant 0 : index
    %c0_43 = arith.constant 0 : index
    %c0_44 = arith.constant 0 : index
    %63 = vector.load %arg4[%c0_42, %c0_43, %c0_44] : memref<1x1x128xf32, #tpu.memory_space<vmem>>, vector<1x1x128xf32>
    %64 = vector.shape_cast %63 : vector<1x1x128xf32> to vector<1x128xf32>
    %65 = vector.shape_cast %62 : vector<1x128xf32> to vector<1x1x128xf32>
    tpu.vector_store %arg4[%c0_42, %c0_43, %c0_44], %65 {strides = array<i32>} : memref<1x1x128xf32, #tpu.memory_space<vmem>>, vector<1x1x128xf32>,
    %66 = arith.mulf %60, %60 : vector<256x128xf32>
    %cst_45 = arith.constant dense<0.000000e+00> : vector<128xf32>
    %67 = vector.multi_reduction <add>, %66, %cst_45 [0] : vector<256x128xf32> to vector<128xf32>
    %68 = vector.shape_cast %67 : vector<128xf32> to vector<1x128xf32>
    %c0_46 = arith.constant 0 : index
    %c0_47 = arith.constant 0 : index
    %c0_48 = arith.constant 0 : index
    %69 = vector.load %arg5[%c0_46, %c0_47, %c0_48] : memref<1x1x128xf32, #tpu.memory_space<vmem>>, vector<1x1x128xf32>
    %70 = vector.shape_cast %69 : vector<1x1x128xf32> to vector<1x128xf32>
    %71 = vector.shape_cast %68 : vector<1x128xf32> to vector<1x1x128xf32>
    tpu.vector_store %arg5[%c0_46, %c0_47, %c0_48], %71 {strides = array<i32>} : memref<1x1x128xf32, #tpu.memory_space<vmem>>, vector<1x1x128xf32>,
    %72 = vector.shape_cast %60 : vector<256x128xf32> to vector<16x16x128xf32>
    %73 = arith.truncf %72 : vector<16x16x128xf32> to vector<16x16x128xbf16>
    %c0_49 = arith.constant 0 : index
    %c0_50 = arith.constant 0 : index
    %c0_51 = arith.constant 0 : index
    %c0_52 = arith.constant 0 : index
    %74 = vector.load %arg3[%c0_49, %c0_50, %c0_51, %c0_52] : memref<1x16x16x128xbf16, #tpu.memory_space<vmem>>, vector<1x16x16x128xbf16>
    %75 = vector.shape_cast %74 : vector<1x16x16x128xbf16> to vector<16x16x128xbf16>
    %76 = vector.shape_cast %73 : vector<16x16x128xbf16> to vector<1x16x16x128xbf16>
    tpu.vector_store %arg3[%c0_49, %c0_50, %c0_51, %c0_52], %76 {strides = array<i32>} : memref<1x16x16x128xbf16, #tpu.memory_space<vmem>>, vector<1x16x16x128xbf16>,
    return
  }
  func.func @transform_0(%arg0: i32) -> (i32, i32, i32, i32) {
    %c0_i32 = arith.constant 0 : i32
    %c0_i32_0 = arith.constant 0 : i32
    %c0_i32_1 = arith.constant 0 : i32
    %c0_i32_2 = arith.constant 0 : i32
    return %arg0, %c0_i32, %c0_i32_0, %c0_i32_1 : i32, i32, i32, i32
  }
  func.func @transform_1(%arg0: i32) -> (i32, i32, i32) {
    %c0_i32 = arith.constant 0 : i32
    %c0_i32_0 = arith.constant 0 : i32
    %c0_i32_1 = arith.constant 0 : i32
    %c0_i32_2 = arith.constant 0 : i32
    return %c0_i32, %c0_i32_0, %c0_i32_1 : i32, i32, i32
  }
  func.func @transform_2(%arg0: i32) -> (i32, i32, i32, i32) {
    %c0_i32 = arith.constant 0 : i32
    %c0_i32_0 = arith.constant 0 : i32
    %c0_i32_1 = arith.constant 0 : i32
    %c0_i32_2 = arith.constant 0 : i32
    return %arg0, %c0_i32, %c0_i32_0, %c0_i32_1 : i32, i32, i32, i32
  }
  func.func @transform_3(%arg0: i32) -> (i32, i32, i32) {
    %c0_i32 = arith.constant 0 : i32
    %c0_i32_0 = arith.constant 0 : i32
    %c0_i32_1 = arith.constant 0 : i32
    return %arg0, %c0_i32, %c0_i32_0 : i32, i32, i32
  }
  func.func @transform_4(%arg0: i32) -> (i32, i32, i32) {
    %c0_i32 = arith.constant 0 : i32
    %c0_i32_0 = arith.constant 0 : i32
    %c0_i32_1 = arith.constant 0 : i32
    return %arg0, %c0_i32, %c0_i32_0 : i32, i32, i32
  }
}

module attributes {stable_mosaic.version = 11 : i64} {
  func.func @_conv3x3_kernel(%arg0: i32, %arg1: memref<1x16x16x128xbf16, #tpu.memory_space<vmem>>, %arg2: memref<9x128x128xbf16, #tpu.memory_space<vmem>>, %arg3: memref<1x128xf32, #tpu.memory_space<vmem>>, %arg4: memref<1x128xf32, #tpu.memory_space<vmem>>, %arg5: memref<1x16x16x128xbf16, #tpu.memory_space<vmem>>, %arg6: memref<1x1x128xf32, #tpu.memory_space<vmem>>, %arg7: memref<1x1x128xf32, #tpu.memory_space<vmem>>, %arg8: memref<18x18x128xbf16, #tpu.memory_space<vmem>>) attributes {dimension_semantics = [#tpu.dimension_semantics<parallel>], iteration_bounds = array<i64: 2>, scalar_prefetch = 0 : i64, scratch_operands = 1 : i64, tpu.core_type = #tpu.core_type<tc>, window_params = [{transform_indices = @transform_0, window_bounds = array<i64: 1, 16, 16, 128>}, {pipeline_mode = #tpu.pipeline_mode<synchronous>, transform_indices = @transform_1, window_bounds = array<i64: 9, 128, 128>}, {pipeline_mode = #tpu.pipeline_mode<synchronous>, transform_indices = @transform_2, window_bounds = array<i64: 1, 128>}, {pipeline_mode = #tpu.pipeline_mode<synchronous>, transform_indices = @transform_3, window_bounds = array<i64: 1, 128>}, {transform_indices = @transform_4, window_bounds = array<i64: 1, 16, 16, 128>}, {transform_indices = @transform_5, window_bounds = array<i64: 1, 1, 128>}, {transform_indices = @transform_6, window_bounds = array<i64: 1, 1, 128>}]} {
    %c0 = arith.constant 0 : index
    %c0_0 = arith.constant 0 : index
    %c0_1 = arith.constant 0 : index
    %c0_2 = arith.constant 0 : index
    %0 = vector.load %arg1[%c0, %c0_0, %c0_1, %c0_2] : memref<1x16x16x128xbf16, #tpu.memory_space<vmem>>, vector<1x16x16x128xbf16>
    %1 = vector.shape_cast %0 : vector<1x16x16x128xbf16> to vector<16x16x128xbf16>
    %2 = arith.extf %1 : vector<16x16x128xbf16> to vector<16x16x128xf32>
    %c0_3 = arith.constant 0 : index
    %c0_4 = arith.constant 0 : index
    %3 = vector.load %arg3[%c0_3, %c0_4] : memref<1x128xf32, #tpu.memory_space<vmem>>, vector<1x128xf32>
    %4 = vector.shape_cast %3 : vector<1x128xf32> to vector<1x1x128xf32>
    %5 = vector.broadcast %4 : vector<1x1x128xf32> to vector<16x16x128xf32>
    %6 = arith.mulf %2, %5 : vector<16x16x128xf32>
    %c0_5 = arith.constant 0 : index
    %c0_6 = arith.constant 0 : index
    %7 = vector.load %arg4[%c0_5, %c0_6] : memref<1x128xf32, #tpu.memory_space<vmem>>, vector<1x128xf32>
    %8 = vector.shape_cast %7 : vector<1x128xf32> to vector<1x1x128xf32>
    %9 = vector.broadcast %8 : vector<1x1x128xf32> to vector<16x16x128xf32>
    %10 = arith.addf %6, %9 : vector<16x16x128xf32>
    %cst = arith.constant 0.000000e+00 : f32
    %11 = vector.broadcast %cst : f32 to vector<16x16x128xf32>
    %12 = arith.maximumf %10, %11 : vector<16x16x128xf32>
    %13 = arith.truncf %12 : vector<16x16x128xf32> to vector<16x16x128xbf16>
    %cst_7 = arith.constant 0.000000e+00 : bf16
    %14 = vector.broadcast %cst_7 : bf16 to vector<18x18x128xbf16>
    %c0_8 = arith.constant 0 : index
    %c0_9 = arith.constant 0 : index
    %c0_10 = arith.constant 0 : index
    %15 = vector.load %arg8[%c0_8, %c0_9, %c0_10] : memref<18x18x128xbf16, #tpu.memory_space<vmem>>, vector<18x18x128xbf16>
    tpu.vector_store %arg8[%c0_8, %c0_9, %c0_10], %14 {strides = array<i32>} : memref<18x18x128xbf16, #tpu.memory_space<vmem>>, vector<18x18x128xbf16>,
    %c1 = arith.constant 1 : index
    %c1_11 = arith.constant 1 : index
    %c0_12 = arith.constant 0 : index
    %16 = vector.load %arg8[%c1, %c1_11, %c0_12] : memref<18x18x128xbf16, #tpu.memory_space<vmem>>, vector<16x16x128xbf16>
    tpu.vector_store %arg8[%c1, %c1_11, %c0_12], %13 {strides = array<i32>} : memref<18x18x128xbf16, #tpu.memory_space<vmem>>, vector<16x16x128xbf16>,
    %c0_13 = arith.constant 0 : index
    %c0_14 = arith.constant 0 : index
    %c0_15 = arith.constant 0 : index
    %17 = vector.load %arg8[%c0_13, %c0_14, %c0_15] : memref<18x18x128xbf16, #tpu.memory_space<vmem>>, vector<18x18x128xbf16>
    %cst_16 = arith.constant 0.000000e+00 : f32
    %18 = vector.broadcast %cst_16 : f32 to vector<256x128xf32>
    %19 = vector.extract_strided_slice %17 {offsets = [0, 0, 0], sizes = [16, 16, 128], strides = [1, 1, 1]} : vector<18x18x128xbf16> to vector<16x16x128xbf16>
    %20 = vector.shape_cast %19 : vector<16x16x128xbf16> to vector<256x128xbf16>
    %c0_17 = arith.constant 0 : index
    %c0_18 = arith.constant 0 : index
    %c0_19 = arith.constant 0 : index
    %21 = vector.load %arg2[%c0_17, %c0_18, %c0_19] : memref<9x128x128xbf16, #tpu.memory_space<vmem>>, vector<1x128x128xbf16>
    %22 = vector.shape_cast %21 : vector<1x128x128xbf16> to vector<128x128xbf16>
    %cst_20 = arith.constant dense<0.000000e+00> : vector<256x128xf32>
    %23 = tpu.matmul %20, %22, %cst_20 {dimension_numbers = #tpu.dot_dimension_numbers<[1], [0], [0], [1], [0, 0, 1, 1], [], []>} : vector<256x128xbf16>, vector<128x128xbf16>, vector<256x128xf32> -> vector<256x128xf32>
    %24 = arith.addf %18, %23 : vector<256x128xf32>
    %25 = vector.extract_strided_slice %17 {offsets = [0, 1, 0], sizes = [16, 16, 128], strides = [1, 1, 1]} : vector<18x18x128xbf16> to vector<16x16x128xbf16>
    %26 = vector.shape_cast %25 : vector<16x16x128xbf16> to vector<256x128xbf16>
    %c1_21 = arith.constant 1 : index
    %c0_22 = arith.constant 0 : index
    %c0_23 = arith.constant 0 : index
    %27 = vector.load %arg2[%c1_21, %c0_22, %c0_23] : memref<9x128x128xbf16, #tpu.memory_space<vmem>>, vector<1x128x128xbf16>
    %28 = vector.shape_cast %27 : vector<1x128x128xbf16> to vector<128x128xbf16>
    %cst_24 = arith.constant dense<0.000000e+00> : vector<256x128xf32>
    %29 = tpu.matmul %26, %28, %cst_24 {dimension_numbers = #tpu.dot_dimension_numbers<[1], [0], [0], [1], [0, 0, 1, 1], [], []>} : vector<256x128xbf16>, vector<128x128xbf16>, vector<256x128xf32> -> vector<256x128xf32>
    %30 = arith.addf %24, %29 : vector<256x128xf32>
    %31 = vector.extract_strided_slice %17 {offsets = [0, 2, 0], sizes = [16, 16, 128], strides = [1, 1, 1]} : vector<18x18x128xbf16> to vector<16x16x128xbf16>
    %32 = vector.shape_cast %31 : vector<16x16x128xbf16> to vector<256x128xbf16>
    %c2 = arith.constant 2 : index
    %c0_25 = arith.constant 0 : index
    %c0_26 = arith.constant 0 : index
    %33 = vector.load %arg2[%c2, %c0_25, %c0_26] : memref<9x128x128xbf16, #tpu.memory_space<vmem>>, vector<1x128x128xbf16>
    %34 = vector.shape_cast %33 : vector<1x128x128xbf16> to vector<128x128xbf16>
    %cst_27 = arith.constant dense<0.000000e+00> : vector<256x128xf32>
    %35 = tpu.matmul %32, %34, %cst_27 {dimension_numbers = #tpu.dot_dimension_numbers<[1], [0], [0], [1], [0, 0, 1, 1], [], []>} : vector<256x128xbf16>, vector<128x128xbf16>, vector<256x128xf32> -> vector<256x128xf32>
    %36 = arith.addf %30, %35 : vector<256x128xf32>
    %37 = vector.extract_strided_slice %17 {offsets = [1, 0, 0], sizes = [16, 16, 128], strides = [1, 1, 1]} : vector<18x18x128xbf16> to vector<16x16x128xbf16>
    %38 = vector.shape_cast %37 : vector<16x16x128xbf16> to vector<256x128xbf16>
    %c3 = arith.constant 3 : index
    %c0_28 = arith.constant 0 : index
    %c0_29 = arith.constant 0 : index
    %39 = vector.load %arg2[%c3, %c0_28, %c0_29] : memref<9x128x128xbf16, #tpu.memory_space<vmem>>, vector<1x128x128xbf16>
    %40 = vector.shape_cast %39 : vector<1x128x128xbf16> to vector<128x128xbf16>
    %cst_30 = arith.constant dense<0.000000e+00> : vector<256x128xf32>
    %41 = tpu.matmul %38, %40, %cst_30 {dimension_numbers = #tpu.dot_dimension_numbers<[1], [0], [0], [1], [0, 0, 1, 1], [], []>} : vector<256x128xbf16>, vector<128x128xbf16>, vector<256x128xf32> -> vector<256x128xf32>
    %42 = arith.addf %36, %41 : vector<256x128xf32>
    %43 = vector.extract_strided_slice %17 {offsets = [1, 1, 0], sizes = [16, 16, 128], strides = [1, 1, 1]} : vector<18x18x128xbf16> to vector<16x16x128xbf16>
    %44 = vector.shape_cast %43 : vector<16x16x128xbf16> to vector<256x128xbf16>
    %c4 = arith.constant 4 : index
    %c0_31 = arith.constant 0 : index
    %c0_32 = arith.constant 0 : index
    %45 = vector.load %arg2[%c4, %c0_31, %c0_32] : memref<9x128x128xbf16, #tpu.memory_space<vmem>>, vector<1x128x128xbf16>
    %46 = vector.shape_cast %45 : vector<1x128x128xbf16> to vector<128x128xbf16>
    %cst_33 = arith.constant dense<0.000000e+00> : vector<256x128xf32>
    %47 = tpu.matmul %44, %46, %cst_33 {dimension_numbers = #tpu.dot_dimension_numbers<[1], [0], [0], [1], [0, 0, 1, 1], [], []>} : vector<256x128xbf16>, vector<128x128xbf16>, vector<256x128xf32> -> vector<256x128xf32>
    %48 = arith.addf %42, %47 : vector<256x128xf32>
    %49 = vector.extract_strided_slice %17 {offsets = [1, 2, 0], sizes = [16, 16, 128], strides = [1, 1, 1]} : vector<18x18x128xbf16> to vector<16x16x128xbf16>
    %50 = vector.shape_cast %49 : vector<16x16x128xbf16> to vector<256x128xbf16>
    %c5 = arith.constant 5 : index
    %c0_34 = arith.constant 0 : index
    %c0_35 = arith.constant 0 : index
    %51 = vector.load %arg2[%c5, %c0_34, %c0_35] : memref<9x128x128xbf16, #tpu.memory_space<vmem>>, vector<1x128x128xbf16>
    %52 = vector.shape_cast %51 : vector<1x128x128xbf16> to vector<128x128xbf16>
    %cst_36 = arith.constant dense<0.000000e+00> : vector<256x128xf32>
    %53 = tpu.matmul %50, %52, %cst_36 {dimension_numbers = #tpu.dot_dimension_numbers<[1], [0], [0], [1], [0, 0, 1, 1], [], []>} : vector<256x128xbf16>, vector<128x128xbf16>, vector<256x128xf32> -> vector<256x128xf32>
    %54 = arith.addf %48, %53 : vector<256x128xf32>
    %55 = vector.extract_strided_slice %17 {offsets = [2, 0, 0], sizes = [16, 16, 128], strides = [1, 1, 1]} : vector<18x18x128xbf16> to vector<16x16x128xbf16>
    %56 = vector.shape_cast %55 : vector<16x16x128xbf16> to vector<256x128xbf16>
    %c6 = arith.constant 6 : index
    %c0_37 = arith.constant 0 : index
    %c0_38 = arith.constant 0 : index
    %57 = vector.load %arg2[%c6, %c0_37, %c0_38] : memref<9x128x128xbf16, #tpu.memory_space<vmem>>, vector<1x128x128xbf16>
    %58 = vector.shape_cast %57 : vector<1x128x128xbf16> to vector<128x128xbf16>
    %cst_39 = arith.constant dense<0.000000e+00> : vector<256x128xf32>
    %59 = tpu.matmul %56, %58, %cst_39 {dimension_numbers = #tpu.dot_dimension_numbers<[1], [0], [0], [1], [0, 0, 1, 1], [], []>} : vector<256x128xbf16>, vector<128x128xbf16>, vector<256x128xf32> -> vector<256x128xf32>
    %60 = arith.addf %54, %59 : vector<256x128xf32>
    %61 = vector.extract_strided_slice %17 {offsets = [2, 1, 0], sizes = [16, 16, 128], strides = [1, 1, 1]} : vector<18x18x128xbf16> to vector<16x16x128xbf16>
    %62 = vector.shape_cast %61 : vector<16x16x128xbf16> to vector<256x128xbf16>
    %c7 = arith.constant 7 : index
    %c0_40 = arith.constant 0 : index
    %c0_41 = arith.constant 0 : index
    %63 = vector.load %arg2[%c7, %c0_40, %c0_41] : memref<9x128x128xbf16, #tpu.memory_space<vmem>>, vector<1x128x128xbf16>
    %64 = vector.shape_cast %63 : vector<1x128x128xbf16> to vector<128x128xbf16>
    %cst_42 = arith.constant dense<0.000000e+00> : vector<256x128xf32>
    %65 = tpu.matmul %62, %64, %cst_42 {dimension_numbers = #tpu.dot_dimension_numbers<[1], [0], [0], [1], [0, 0, 1, 1], [], []>} : vector<256x128xbf16>, vector<128x128xbf16>, vector<256x128xf32> -> vector<256x128xf32>
    %66 = arith.addf %60, %65 : vector<256x128xf32>
    %67 = vector.extract_strided_slice %17 {offsets = [2, 2, 0], sizes = [16, 16, 128], strides = [1, 1, 1]} : vector<18x18x128xbf16> to vector<16x16x128xbf16>
    %68 = vector.shape_cast %67 : vector<16x16x128xbf16> to vector<256x128xbf16>
    %c8 = arith.constant 8 : index
    %c0_43 = arith.constant 0 : index
    %c0_44 = arith.constant 0 : index
    %69 = vector.load %arg2[%c8, %c0_43, %c0_44] : memref<9x128x128xbf16, #tpu.memory_space<vmem>>, vector<1x128x128xbf16>
    %70 = vector.shape_cast %69 : vector<1x128x128xbf16> to vector<128x128xbf16>
    %cst_45 = arith.constant dense<0.000000e+00> : vector<256x128xf32>
    %71 = tpu.matmul %68, %70, %cst_45 {dimension_numbers = #tpu.dot_dimension_numbers<[1], [0], [0], [1], [0, 0, 1, 1], [], []>} : vector<256x128xbf16>, vector<128x128xbf16>, vector<256x128xf32> -> vector<256x128xf32>
    %72 = arith.addf %66, %71 : vector<256x128xf32>
    %cst_46 = arith.constant dense<0.000000e+00> : vector<128xf32>
    %73 = vector.multi_reduction <add>, %72, %cst_46 [0] : vector<256x128xf32> to vector<128xf32>
    %74 = vector.shape_cast %73 : vector<128xf32> to vector<1x128xf32>
    %c0_47 = arith.constant 0 : index
    %c0_48 = arith.constant 0 : index
    %c0_49 = arith.constant 0 : index
    %75 = vector.load %arg6[%c0_47, %c0_48, %c0_49] : memref<1x1x128xf32, #tpu.memory_space<vmem>>, vector<1x1x128xf32>
    %76 = vector.shape_cast %75 : vector<1x1x128xf32> to vector<1x128xf32>
    %77 = vector.shape_cast %74 : vector<1x128xf32> to vector<1x1x128xf32>
    tpu.vector_store %arg6[%c0_47, %c0_48, %c0_49], %77 {strides = array<i32>} : memref<1x1x128xf32, #tpu.memory_space<vmem>>, vector<1x1x128xf32>,
    %78 = arith.mulf %72, %72 : vector<256x128xf32>
    %cst_50 = arith.constant dense<0.000000e+00> : vector<128xf32>
    %79 = vector.multi_reduction <add>, %78, %cst_50 [0] : vector<256x128xf32> to vector<128xf32>
    %80 = vector.shape_cast %79 : vector<128xf32> to vector<1x128xf32>
    %c0_51 = arith.constant 0 : index
    %c0_52 = arith.constant 0 : index
    %c0_53 = arith.constant 0 : index
    %81 = vector.load %arg7[%c0_51, %c0_52, %c0_53] : memref<1x1x128xf32, #tpu.memory_space<vmem>>, vector<1x1x128xf32>
    %82 = vector.shape_cast %81 : vector<1x1x128xf32> to vector<1x128xf32>
    %83 = vector.shape_cast %80 : vector<1x128xf32> to vector<1x1x128xf32>
    tpu.vector_store %arg7[%c0_51, %c0_52, %c0_53], %83 {strides = array<i32>} : memref<1x1x128xf32, #tpu.memory_space<vmem>>, vector<1x1x128xf32>,
    %84 = vector.shape_cast %72 : vector<256x128xf32> to vector<16x16x128xf32>
    %85 = arith.truncf %84 : vector<16x16x128xf32> to vector<16x16x128xbf16>
    %c0_54 = arith.constant 0 : index
    %c0_55 = arith.constant 0 : index
    %c0_56 = arith.constant 0 : index
    %c0_57 = arith.constant 0 : index
    %86 = vector.load %arg5[%c0_54, %c0_55, %c0_56, %c0_57] : memref<1x16x16x128xbf16, #tpu.memory_space<vmem>>, vector<1x16x16x128xbf16>
    %87 = vector.shape_cast %86 : vector<1x16x16x128xbf16> to vector<16x16x128xbf16>
    %88 = vector.shape_cast %85 : vector<16x16x128xbf16> to vector<1x16x16x128xbf16>
    tpu.vector_store %arg5[%c0_54, %c0_55, %c0_56, %c0_57], %88 {strides = array<i32>} : memref<1x16x16x128xbf16, #tpu.memory_space<vmem>>, vector<1x16x16x128xbf16>,
    return
  }
  func.func @transform_0(%arg0: i32) -> (i32, i32, i32, i32) {
    %c0_i32 = arith.constant 0 : i32
    %c0_i32_0 = arith.constant 0 : i32
    %c0_i32_1 = arith.constant 0 : i32
    %c0_i32_2 = arith.constant 0 : i32
    return %arg0, %c0_i32, %c0_i32_0, %c0_i32_1 : i32, i32, i32, i32
  }
  func.func @transform_1(%arg0: i32) -> (i32, i32, i32) {
    %c0_i32 = arith.constant 0 : i32
    %c0_i32_0 = arith.constant 0 : i32
    %c0_i32_1 = arith.constant 0 : i32
    %c0_i32_2 = arith.constant 0 : i32
    return %c0_i32, %c0_i32_0, %c0_i32_1 : i32, i32, i32
  }
  func.func @transform_2(%arg0: i32) -> (i32, i32) {
    %c0_i32 = arith.constant 0 : i32
    %c0_i32_0 = arith.constant 0 : i32
    %c0_i32_1 = arith.constant 0 : i32
    return %c0_i32, %c0_i32_0 : i32, i32
  }
  func.func @transform_3(%arg0: i32) -> (i32, i32) {
    %c0_i32 = arith.constant 0 : i32
    %c0_i32_0 = arith.constant 0 : i32
    %c0_i32_1 = arith.constant 0 : i32
    return %c0_i32, %c0_i32_0 : i32, i32
  }
  func.func @transform_4(%arg0: i32) -> (i32, i32, i32, i32) {
    %c0_i32 = arith.constant 0 : i32
    %c0_i32_0 = arith.constant 0 : i32
    %c0_i32_1 = arith.constant 0 : i32
    %c0_i32_2 = arith.constant 0 : i32
    return %arg0, %c0_i32, %c0_i32_0, %c0_i32_1 : i32, i32, i32, i32
  }
  func.func @transform_5(%arg0: i32) -> (i32, i32, i32) {
    %c0_i32 = arith.constant 0 : i32
    %c0_i32_0 = arith.constant 0 : i32
    %c0_i32_1 = arith.constant 0 : i32
    return %arg0, %c0_i32, %c0_i32_0 : i32, i32, i32
  }
  func.func @transform_6(%arg0: i32) -> (i32, i32, i32) {
    %c0_i32 = arith.constant 0 : i32
    %c0_i32_0 = arith.constant 0 : i32
    %c0_i32_1 = arith.constant 0 : i32
    return %arg0, %c0_i32, %c0_i32_0 : i32, i32, i32
  }
}

module attributes {stable_mosaic.version = 11 : i64} {
  func.func @_matmul_stats_kernel(%arg0: i32, %arg1: memref<512x128xbf16, #tpu.memory_space<vmem>>, %arg2: memref<128x128xbf16, #tpu.memory_space<vmem>>, %arg3: memref<512x128xbf16, #tpu.memory_space<vmem>>, %arg4: memref<1x1x128xf32, #tpu.memory_space<vmem>>, %arg5: memref<1x1x128xf32, #tpu.memory_space<vmem>>) attributes {dimension_semantics = [#tpu.dimension_semantics<parallel>], iteration_bounds = array<i64: 1>, scalar_prefetch = 0 : i64, scratch_operands = 0 : i64, tpu.core_type = #tpu.core_type<tc>, window_params = [{transform_indices = @transform_0, window_bounds = array<i64: 512, 128>}, {pipeline_mode = #tpu.pipeline_mode<synchronous>, transform_indices = @transform_1, window_bounds = array<i64: 128, 128>}, {transform_indices = @transform_2, window_bounds = array<i64: 512, 128>}, {transform_indices = @transform_3, window_bounds = array<i64: 1, 1, 128>}, {transform_indices = @transform_4, window_bounds = array<i64: 1, 1, 128>}]} {
    %c0 = arith.constant 0 : index
    %c0_0 = arith.constant 0 : index
    %0 = vector.load %arg1[%c0, %c0_0] : memref<512x128xbf16, #tpu.memory_space<vmem>>, vector<512x128xbf16>
    %c0_1 = arith.constant 0 : index
    %c0_2 = arith.constant 0 : index
    %1 = vector.load %arg2[%c0_1, %c0_2] : memref<128x128xbf16, #tpu.memory_space<vmem>>, vector<128x128xbf16>
    %cst = arith.constant dense<0.000000e+00> : vector<512x128xf32>
    %2 = tpu.matmul %0, %1, %cst {dimension_numbers = #tpu.dot_dimension_numbers<[1], [0], [0], [1], [0, 0, 1, 1], [], []>} : vector<512x128xbf16>, vector<128x128xbf16>, vector<512x128xf32> -> vector<512x128xf32>
    %cst_3 = arith.constant dense<0.000000e+00> : vector<128xf32>
    %3 = vector.multi_reduction <add>, %2, %cst_3 [0] : vector<512x128xf32> to vector<128xf32>
    %4 = vector.shape_cast %3 : vector<128xf32> to vector<1x128xf32>
    %c0_4 = arith.constant 0 : index
    %c0_5 = arith.constant 0 : index
    %c0_6 = arith.constant 0 : index
    %5 = vector.load %arg4[%c0_4, %c0_5, %c0_6] : memref<1x1x128xf32, #tpu.memory_space<vmem>>, vector<1x1x128xf32>
    %6 = vector.shape_cast %5 : vector<1x1x128xf32> to vector<1x128xf32>
    %7 = vector.shape_cast %4 : vector<1x128xf32> to vector<1x1x128xf32>
    tpu.vector_store %arg4[%c0_4, %c0_5, %c0_6], %7 {strides = array<i32>} : memref<1x1x128xf32, #tpu.memory_space<vmem>>, vector<1x1x128xf32>,
    %8 = arith.mulf %2, %2 : vector<512x128xf32>
    %cst_7 = arith.constant dense<0.000000e+00> : vector<128xf32>
    %9 = vector.multi_reduction <add>, %8, %cst_7 [0] : vector<512x128xf32> to vector<128xf32>
    %10 = vector.shape_cast %9 : vector<128xf32> to vector<1x128xf32>
    %c0_8 = arith.constant 0 : index
    %c0_9 = arith.constant 0 : index
    %c0_10 = arith.constant 0 : index
    %11 = vector.load %arg5[%c0_8, %c0_9, %c0_10] : memref<1x1x128xf32, #tpu.memory_space<vmem>>, vector<1x1x128xf32>
    %12 = vector.shape_cast %11 : vector<1x1x128xf32> to vector<1x128xf32>
    %13 = vector.shape_cast %10 : vector<1x128xf32> to vector<1x1x128xf32>
    tpu.vector_store %arg5[%c0_8, %c0_9, %c0_10], %13 {strides = array<i32>} : memref<1x1x128xf32, #tpu.memory_space<vmem>>, vector<1x1x128xf32>,
    %14 = arith.truncf %2 : vector<512x128xf32> to vector<512x128xbf16>
    %c0_11 = arith.constant 0 : index
    %c0_12 = arith.constant 0 : index
    %15 = vector.load %arg3[%c0_11, %c0_12] : memref<512x128xbf16, #tpu.memory_space<vmem>>, vector<512x128xbf16>
    tpu.vector_store %arg3[%c0_11, %c0_12], %14 {strides = array<i32>} : memref<512x128xbf16, #tpu.memory_space<vmem>>, vector<512x128xbf16>,
    return
  }
  func.func @transform_0(%arg0: i32) -> (i32, i32) {
    %c0_i32 = arith.constant 0 : i32
    %c0_i32_0 = arith.constant 0 : i32
    return %arg0, %c0_i32 : i32, i32
  }
  func.func @transform_1(%arg0: i32) -> (i32, i32) {
    %c0_i32 = arith.constant 0 : i32
    %c0_i32_0 = arith.constant 0 : i32
    %c0_i32_1 = arith.constant 0 : i32
    return %c0_i32, %c0_i32_0 : i32, i32
  }
  func.func @transform_2(%arg0: i32) -> (i32, i32) {
    %c0_i32 = arith.constant 0 : i32
    %c0_i32_0 = arith.constant 0 : i32
    return %arg0, %c0_i32 : i32, i32
  }
  func.func @transform_3(%arg0: i32) -> (i32, i32, i32) {
    %c0_i32 = arith.constant 0 : i32
    %c0_i32_0 = arith.constant 0 : i32
    %c0_i32_1 = arith.constant 0 : i32
    return %arg0, %c0_i32, %c0_i32_0 : i32, i32, i32
  }
  func.func @transform_4(%arg0: i32) -> (i32, i32, i32) {
    %c0_i32 = arith.constant 0 : i32
    %c0_i32_0 = arith.constant 0 : i32
    %c0_i32_1 = arith.constant 0 : i32
    return %arg0, %c0_i32, %c0_i32_0 : i32, i32, i32
  }
}

module attributes {stable_mosaic.version = 11 : i64} {
  func.func @_bn_dual_add_relu_kernel(%arg0: i32, %arg1: memref<512x128xbf16, #tpu.memory_space<vmem>>, %arg2: memref<1x128xf32, #tpu.memory_space<vmem>>, %arg3: memref<1x128xf32, #tpu.memory_space<vmem>>, %arg4: memref<512x128xbf16, #tpu.memory_space<vmem>>, %arg5: memref<1x128xf32, #tpu.memory_space<vmem>>, %arg6: memref<1x128xf32, #tpu.memory_space<vmem>>, %arg7: memref<512x128xf32, #tpu.memory_space<vmem>>) attributes {dimension_semantics = [#tpu.dimension_semantics<parallel>], iteration_bounds = array<i64: 1>, scalar_prefetch = 0 : i64, scratch_operands = 0 : i64, tpu.core_type = #tpu.core_type<tc>, window_params = [{transform_indices = @transform_0, window_bounds = array<i64: 512, 128>}, {pipeline_mode = #tpu.pipeline_mode<synchronous>, transform_indices = @transform_1, window_bounds = array<i64: 1, 128>}, {pipeline_mode = #tpu.pipeline_mode<synchronous>, transform_indices = @transform_2, window_bounds = array<i64: 1, 128>}, {transform_indices = @transform_3, window_bounds = array<i64: 512, 128>}, {pipeline_mode = #tpu.pipeline_mode<synchronous>, transform_indices = @transform_4, window_bounds = array<i64: 1, 128>}, {pipeline_mode = #tpu.pipeline_mode<synchronous>, transform_indices = @transform_5, window_bounds = array<i64: 1, 128>}, {transform_indices = @transform_6, window_bounds = array<i64: 512, 128>}]} {
    %c0 = arith.constant 0 : index
    %c0_0 = arith.constant 0 : index
    %0 = vector.load %arg1[%c0, %c0_0] : memref<512x128xbf16, #tpu.memory_space<vmem>>, vector<512x128xbf16>
    %1 = arith.extf %0 : vector<512x128xbf16> to vector<512x128xf32>
    %c0_1 = arith.constant 0 : index
    %c0_2 = arith.constant 0 : index
    %2 = vector.load %arg2[%c0_1, %c0_2] : memref<1x128xf32, #tpu.memory_space<vmem>>, vector<1x128xf32>
    %3 = vector.broadcast %2 : vector<1x128xf32> to vector<512x128xf32>
    %4 = arith.mulf %1, %3 : vector<512x128xf32>
    %c0_3 = arith.constant 0 : index
    %c0_4 = arith.constant 0 : index
    %5 = vector.load %arg3[%c0_3, %c0_4] : memref<1x128xf32, #tpu.memory_space<vmem>>, vector<1x128xf32>
    %6 = vector.broadcast %5 : vector<1x128xf32> to vector<512x128xf32>
    %7 = arith.addf %4, %6 : vector<512x128xf32>
    %c0_5 = arith.constant 0 : index
    %c0_6 = arith.constant 0 : index
    %8 = vector.load %arg4[%c0_5, %c0_6] : memref<512x128xbf16, #tpu.memory_space<vmem>>, vector<512x128xbf16>
    %9 = arith.extf %8 : vector<512x128xbf16> to vector<512x128xf32>
    %c0_7 = arith.constant 0 : index
    %c0_8 = arith.constant 0 : index
    %10 = vector.load %arg5[%c0_7, %c0_8] : memref<1x128xf32, #tpu.memory_space<vmem>>, vector<1x128xf32>
    %11 = vector.broadcast %10 : vector<1x128xf32> to vector<512x128xf32>
    %12 = arith.mulf %9, %11 : vector<512x128xf32>
    %c0_9 = arith.constant 0 : index
    %c0_10 = arith.constant 0 : index
    %13 = vector.load %arg6[%c0_9, %c0_10] : memref<1x128xf32, #tpu.memory_space<vmem>>, vector<1x128xf32>
    %14 = vector.broadcast %13 : vector<1x128xf32> to vector<512x128xf32>
    %15 = arith.addf %12, %14 : vector<512x128xf32>
    %16 = arith.addf %7, %15 : vector<512x128xf32>
    %cst = arith.constant 0.000000e+00 : f32
    %17 = vector.broadcast %cst : f32 to vector<512x128xf32>
    %18 = arith.maximumf %16, %17 : vector<512x128xf32>
    %c0_11 = arith.constant 0 : index
    %c0_12 = arith.constant 0 : index
    %19 = vector.load %arg7[%c0_11, %c0_12] : memref<512x128xf32, #tpu.memory_space<vmem>>, vector<512x128xf32>
    tpu.vector_store %arg7[%c0_11, %c0_12], %18 {strides = array<i32>} : memref<512x128xf32, #tpu.memory_space<vmem>>, vector<512x128xf32>,
    return
  }
  func.func @transform_0(%arg0: i32) -> (i32, i32) {
    %c0_i32 = arith.constant 0 : i32
    %c0_i32_0 = arith.constant 0 : i32
    return %arg0, %c0_i32 : i32, i32
  }
  func.func @transform_1(%arg0: i32) -> (i32, i32) {
    %c0_i32 = arith.constant 0 : i32
    %c0_i32_0 = arith.constant 0 : i32
    %c0_i32_1 = arith.constant 0 : i32
    return %c0_i32, %c0_i32_0 : i32, i32
  }
  func.func @transform_2(%arg0: i32) -> (i32, i32) {
    %c0_i32 = arith.constant 0 : i32
    %c0_i32_0 = arith.constant 0 : i32
    %c0_i32_1 = arith.constant 0 : i32
    return %c0_i32, %c0_i32_0 : i32, i32
  }
  func.func @transform_3(%arg0: i32) -> (i32, i32) {
    %c0_i32 = arith.constant 0 : i32
    %c0_i32_0 = arith.constant 0 : i32
    return %arg0, %c0_i32 : i32, i32
  }
  func.func @transform_4(%arg0: i32) -> (i32, i32) {
    %c0_i32 = arith.constant 0 : i32
    %c0_i32_0 = arith.constant 0 : i32
    %c0_i32_1 = arith.constant 0 : i32
    return %c0_i32, %c0_i32_0 : i32, i32
  }
  func.func @transform_5(%arg0: i32) -> (i32, i32) {
    %c0_i32 = arith.constant 0 : i32
    %c0_i32_0 = arith.constant 0 : i32
    %c0_i32_1 = arith.constant 0 : i32
    return %c0_i32, %c0_i32_0 : i32, i32
  }
  func.func @transform_6(%arg0: i32) -> (i32, i32) {
    %c0_i32 = arith.constant 0 : i32
    %c0_i32_0 = arith.constant 0 : i32
    return %arg0, %c0_i32 : i32, i32
  }
}

</mosaic_0001>

<llo_original>
// kernel: basic_block_forward.7
$region0: #{basic_block_forward.7}
  #allocation0 [shape = 'u32[]', space=smem, size = 0x4, offset = 0x4, fixed_abs, tag = 'smem constant byte address 0x4 - core index']
  #allocation1 [shape = 'u32[144,128]{1,0:T(1,128)}', space=vmem, size = 0x12000, scoped, tag = 'internal scratch']
  %s0 = inlined_call_operand.vmem [shape: bf16[512,128], index: 0, kind: input, shape index: {}]
  %s1 = inlined_call_operand.vmem [shape: f32[1,128], index: 1, kind: input, shape index: {}]
  %s2 = inlined_call_operand.vmem [shape: f32[1,128], index: 2, kind: input, shape index: {}]
  %s3 = inlined_call_operand.vmem [shape: bf16[512,128], index: 3, kind: input, shape index: {}]
  %s4 = inlined_call_operand.vmem [shape: f32[1,128], index: 4, kind: input, shape index: {}]
  %s5 = inlined_call_operand.vmem [shape: f32[1,128], index: 5, kind: input, shape index: {}]
  %s6 = inlined_call_operand.vmem [shape: f32[512,128], index: 6, kind: output, shape index: {}]
  %s7 = sld [smem:[#allocation0]]
  $region34: #{basic_block_forward.7} parent=0
    _
  %s9 = ssub.s32 1, %s7
  %s10 = scalar_select 0, %s9, %s7
  // Predicated region
  $region2: #{basic_block_forward.7} parent=0 // pred_check
    _
  $region3: #{basic_block_forward.7} parent=0 // pred_check_branch
    %12 = sbr.rel (0) target = $region5
  $region4: #{basic_block_forward.7} parent=0 // pred_region
    _
  $region5: #{basic_block_forward.7} parent=0 // pred_fallthru
    _
  // Predicated region
  $region6: #{basic_block_forward.7} parent=0 // pred_check
    _
  $region7: #{basic_block_forward.7} parent=0 // pred_check_branch
    %14 = sbr.rel (0) target = $region9
  $region8: #{basic_block_forward.7} parent=0 // pred_region
    _
  $region9: #{basic_block_forward.7} parent=0 // pred_fallthru
    _
  // Predicated region
  $region10: #{basic_block_forward.7} parent=0 // pred_check
    _
  $region11: #{basic_block_forward.7} parent=0 // pred_check_branch
    %16 = sbr.rel (0) target = $region13
  $region12: #{basic_block_forward.7} parent=0 // pred_region
    _
  $region13: #{basic_block_forward.7} parent=0 // pred_fallthru
    _
  // Predicated region
  $region14: #{basic_block_forward.7} parent=0 // pred_check
    _
  $region15: #{basic_block_forward.7} parent=0 // pred_check_branch
    %18 = sbr.rel (0) target = $region17
  $region16: #{basic_block_forward.7} parent=0 // pred_region
    _
  $region17: #{basic_block_forward.7} parent=0 // pred_fallthru
    _
  // Predicated region
  $region18: #{basic_block_forward.7} parent=0 // pred_check
    _
  $region19: #{basic_block_forward.7} parent=0 // pred_check_branch
    %20 = sbr.rel (0) target = $region21
  $region20: #{basic_block_forward.7} parent=0 // pred_region
    _
  $region21: #{basic_block_forward.7} parent=0 // pred_fallthru
    _
  // Predicated region
  $region22: #{basic_block_forward.7} parent=0 // pred_check
    _
  $region23: #{basic_block_forward.7} parent=0 // pred_check_branch
    %22 = sbr.rel (0) target = $region25
  $region24: #{basic_block_forward.7} parent=0 // pred_region
    _
  $region25: #{basic_block_forward.7} parent=0 // pred_fallthru
    _
  %v23 = vld [vmem:[%s0] sm:$0xf]
  %v24 = vld [vmem:[%s0 + $0x4] sm:$0xf]
  %v25 = vld [vmem:[%s0 + $0x8] sm:$0xf]
  %v26 = vld [vmem:[%s0 + $0xc] sm:$0xf]
  %v27 = vld [vmem:[%s0 + $0x10] sm:$0xf]
  %v28 = vld [vmem:[%s0 + $0x14] sm:$0xf]
  %v29 = vld [vmem:[%s0 + $0x18] sm:$0xf]
  %v30 = vld [vmem:[%s0 + $0x1c] sm:$0xf]
  %v31 = vld [vmem:[%s0 + $0x20] sm:$0xf]
  %v32 = vld [vmem:[%s0 + $0x24] sm:$0xf]
  %v33 = vld [vmem:[%s0 + $0x28] sm:$0xf]
  %v34 = vld [vmem:[%s0 + $0x2c] sm:$0xf]
  %v35 = vld [vmem:[%s0 + $0x30] sm:$0xf]
  %v36 = vld [vmem:[%s0 + $0x34] sm:$0xf]
  %v37 = vld [vmem:[%s0 + $0x38] sm:$0xf]
  %v38 = vld [vmem:[%s0 + $0x3c] sm:$0xf]
  %v39 = vld [vmem:[%s0 + $0x40] sm:$0xf]
  %v40 = vld [vmem:[%s0 + $0x44] sm:$0xf]
  %v41 = vld [vmem:[%s0 + $0x48] sm:$0xf]
  %v42 = vld [vmem:[%s0 + $0x4c] sm:$0xf]
  %v43 = vld [vmem:[%s0 + $0x50] sm:$0xf]
  %v44 = vld [vmem:[%s0 + $0x54] sm:$0xf]
  %v45 = vld [vmem:[%s0 + $0x58] sm:$0xf]
  %v46 = vld [vmem:[%s0 + $0x5c] sm:$0xf]
  %v47 = vld [vmem:[%s0 + $0x60] sm:$0xf]
  %v48 = vld [vmem:[%s0 + $0x64] sm:$0xf]
  %v49 = vld [vmem:[%s0 + $0x68] sm:$0xf]
  %v50 = vld [vmem:[%s0 + $0x6c] sm:$0xf]
  %v51 = vld [vmem:[%s0 + $0x70] sm:$0xf]
  %v52 = vld [vmem:[%s0 + $0x74] sm:$0xf]
  %v53 = vld [vmem:[%s0 + $0x78] sm:$0xf]
  %v54 = vld [vmem:[%s0 + $0x7c] sm:$0xf]
  %v55 = vld [vmem:[%s0 + $0x80] sm:$0xf]
  %v56 = vld [vmem:[%s0 + $0x84] sm:$0xf]
  %v57 = vld [vmem:[%s0 + $0x88] sm:$0xf]
  %v58 = vld [vmem:[%s0 + $0x8c] sm:$0xf]
  %v59 = vld [vmem:[%s0 + $0x90] sm:$0xf]
  %v60 = vld [vmem:[%s0 + $0x94] sm:$0xf]
  %v61 = vld [vmem:[%s0 + $0x98] sm:$0xf]
  %v62 = vld [vmem:[%s0 + $0x9c] sm:$0xf]
  %v63 = vld [vmem:[%s0 + $0xa0] sm:$0xf]
  %v64 = vld [vmem:[%s0 + $0xa4] sm:$0xf]
  %v65 = vld [vmem:[%s0 + $0xa8] sm:$0xf]
  %v66 = vld [vmem:[%s0 + $0xac] sm:$0xf]
  %v67 = vld [vmem:[%s0 + $0xb0] sm:$0xf]
  %v68 = vld [vmem:[%s0 + $0xb4] sm:$0xf]
  %v69 = vld [vmem:[%s0 + $0xb8] sm:$0xf]
  %v70 = vld [vmem:[%s0 + $0xbc] sm:$0xf]
  %v71 = vld [vmem:[%s0 + $0xc0] sm:$0xf]
  %v72 = vld [vmem:[%s0 + $0xc4] sm:$0xf]
  %v73 = vld [vmem:[%s0 + $0xc8] sm:$0xf]
  %v74 = vld [vmem:[%s0 + $0xcc] sm:$0xf]
  %v75 = vld [vmem:[%s0 + $0xd0] sm:$0xf]
  %v76 = vld [vmem:[%s0 + $0xd4] sm:$0xf]
  %v77 = vld [vmem:[%s0 + $0xd8] sm:$0xf]
  %v78 = vld [vmem:[%s0 + $0xdc] sm:$0xf]
  %v79 = vld [vmem:[%s0 + $0xe0] sm:$0xf]
  %v80 = vld [vmem:[%s0 + $0xe4] sm:$0xf]
  %v81 = vld [vmem:[%s0 + $0xe8] sm:$0xf]
  %v82 = vld [vmem:[%s0 + $0xec] sm:$0xf]
  %v83 = vld [vmem:[%s0 + $0xf0] sm:$0xf]
  %v84 = vld [vmem:[%s0 + $0xf4] sm:$0xf]
  %v85 = vld [vmem:[%s0 + $0xf8] sm:$0xf]
  %v86 = vld [vmem:[%s0 + $0xfc] sm:$0xf]
  %v87 = vunpack.c.l.bf16 %v23
  %v88 = vunpack.c.l.bf16 %v24
  %v89 = vunpack.c.l.bf16 %v25
  %v90 = vunpack.c.l.bf16 %v26
  %v91 = vunpack.c.l.bf16 %v27
  %v92 = vunpack.c.l.bf16 %v28
  %v93 = vunpack.c.l.bf16 %v29
  %v94 = vunpack.c.l.bf16 %v30
  %v95 = vunpack.c.l.bf16 %v31
  %v96 = vunpack.c.l.bf16 %v32
  %v97 = vunpack.c.l.bf16 %v33
  %v98 = vunpack.c.l.bf16 %v34
  %v99 = vunpack.c.l.bf16 %v35
  %v100 = vunpack.c.l.bf16 %v36
  %v101 = vunpack.c.l.bf16 %v37
  %v102 = vunpack.c.l.bf16 %v38
  %v103 = vunpack.c.l.bf16 %v39
  %v104 = vunpack.c.l.bf16 %v40
  %v105 = vunpack.c.l.bf16 %v41
  %v106 = vunpack.c.l.bf16 %v42
  %v107 = vunpack.c.l.bf16 %v43
  %v108 = vunpack.c.l.bf16 %v44
  %v109 = vunpack.c.l.bf16 %v45
  %v110 = vunpack.c.l.bf16 %v46
  %v111 = vunpack.c.l.bf16 %v47
  %v112 = vunpack.c.l.bf16 %v48
  %v113 = vunpack.c.l.bf16 %v49
  %v114 = vunpack.c.l.bf16 %v50
  %v115 = vunpack.c.l.bf16 %v51
  %v116 = vunpack.c.l.bf16 %v52
  %v117 = vunpack.c.l.bf16 %v53
  %v118 = vunpack.c.l.bf16 %v54
  %v119 = vunpack.c.l.bf16 %v55
  %v120 = vunpack.c.l.bf16 %v56
  %v121 = vunpack.c.l.bf16 %v57
  %v122 = vunpack.c.l.bf16 %v58
  %v123 = vunpack.c.l.bf16 %v59
  %v124 = vunpack.c.l.bf16 %v60
  %v125 = vunpack.c.l.bf16 %v61
  %v126 = vunpack.c.l.bf16 %v62
  %v127 = vunpack.c.l.bf16 %v63
  %v128 = vunpack.c.l.bf16 %v64
  %v129 = vunpack.c.l.bf16 %v65
  %v130 = vunpack.c.l.bf16 %v66
  %v131 = vunpack.c.l.bf16 %v67
  %v132 = vunpack.c.l.bf16 %v68
  %v133 = vunpack.c.l.bf16 %v69
  %v134 = vunpack.c.l.bf16 %v70
  %v135 = vunpack.c.l.bf16 %v71
  %v136 = vunpack.c.l.bf16 %v72
  %v137 = vunpack.c.l.bf16 %v73
  %v138 = vunpack.c.l.bf16 %v74
  %v139 = vunpack.c.l.bf16 %v75
  %v140 = vunpack.c.l.bf16 %v76
  %v141 = vunpack.c.l.bf16 %v77
  %v142 = vunpack.c.l.bf16 %v78
  %v143 = vunpack.c.l.bf16 %v79
  %v144 = vunpack.c.l.bf16 %v80
  %v145 = vunpack.c.l.bf16 %v81
  %v146 = vunpack.c.l.bf16 %v82
  %v147 = vunpack.c.l.bf16 %v83
  %v148 = vunpack.c.l.bf16 %v84
  %v149 = vunpack.c.l.bf16 %v85
  %v150 = vunpack.c.l.bf16 %v86
  %v151 = vld [vmem:[%s1] sm:$0x1]
  %v153 = vlaneseq
  %v154 = vshrl.u32 %v153, 7
  %v155 = vsub.s32 0, %v154
  %v156 = vrot.slane %v151, %v155
  %v158 = vmul.f32 %v87, %v156
  %v159 = vmul.f32 %v88, %v156
  %v160 = vmul.f32 %v89, %v156
  %v161 = vmul.f32 %v90, %v156
  %v162 = vmul.f32 %v91, %v156
  %v163 = vmul.f32 %v92, %v156
  %v164 = vmul.f32 %v93, %v156
  %v165 = vmul.f32 %v94, %v156
  %v166 = vmul.f32 %v95, %v156
  %v167 = vmul.f32 %v96, %v156
  %v168 = vmul.f32 %v97, %v156
  %v169 = vmul.f32 %v98, %v156
  %v170 = vmul.f32 %v99, %v156
  %v171 = vmul.f32 %v100, %v156
  %v172 = vmul.f32 %v101, %v156
  %v173 = vmul.f32 %v102, %v156
  %v174 = vmul.f32 %v103, %v156
  %v175 = vmul.f32 %v104, %v156
  %v176 = vmul.f32 %v105, %v156
  %v177 = vmul.f32 %v106, %v156
  %v178 = vmul.f32 %v107, %v156
  %v179 = vmul.f32 %v108, %v156
  %v180 = vmul.f32 %v109, %v156
  %v181 = vmul.f32 %v110, %v156
  %v182 = vmul.f32 %v111, %v156
  %v183 = vmul.f32 %v112, %v156
  %v184 = vmul.f32 %v113, %v156
  %v185 = vmul.f32 %v114, %v156
  %v186 = vmul.f32 %v115, %v156
  %v187 = vmul.f32 %v116, %v156
  %v188 = vmul.f32 %v117, %v156
  %v189 = vmul.f32 %v118, %v156
  %v190 = vmul.f32 %v119, %v156
  %v191 = vmul.f32 %v120, %v156
  %v192 = vmul.f32 %v121, %v156
  %v193 = vmul.f32 %v122, %v156
  %v194 = vmul.f32 %v123, %v156
  %v195 = vmul.f32 %v124, %v156
  %v196 = vmul.f32 %v125, %v156
  %v197 = vmul.f32 %v126, %v156
  %v198 = vmul.f32 %v127, %v156
  %v199 = vmul.f32 %v128, %v156
  %v200 = vmul.f32 %v129, %v156
  %v201 = vmul.f32 %v130, %v156
  %v202 = vmul.f32 %v131, %v156
  %v203 = vmul.f32 %v132, %v156
  %v204 = vmul.f32 %v133, %v156
  %v205 = vmul.f32 %v134, %v156
  %v206 = vmul.f32 %v135, %v156
  %v207 = vmul.f32 %v136, %v156
  %v208 = vmul.f32 %v137, %v156
  %v209 = vmul.f32 %v138, %v156
  %v210 = vmul.f32 %v139, %v156
  %v211 = vmul.f32 %v140, %v156
  %v212 = vmul.f32 %v141, %v156
  %v213 = vmul.f32 %v142, %v156
  %v214 = vmul.f32 %v143, %v156
  %v215 = vmul.f32 %v144, %v156
  %v216 = vmul.f32 %v145, %v156
  %v217 = vmul.f32 %v146, %v156
  %v218 = vmul.f32 %v147, %v156
  %v219 = vmul.f32 %v148, %v156
  %v220 = vmul.f32 %v149, %v156
  %v221 = vmul.f32 %v150, %v156
  %v222 = vld [vmem:[%s2] sm:$0x1]
  %v224 = vlaneseq
  %v225 = vshrl.u32 %v224, 7
  %v226 = vsub.s32 0, %v225
  %v227 = vrot.slane %v222, %v226
  %v229 = vadd.f32 %v158, %v227
  %v230 = vadd.f32 %v159, %v227
  %v231 = vadd.f32 %v160, %v227
  %v232 = vadd.f32 %v161, %v227
  %v233 = vadd.f32 %v162, %v227
  %v234 = vadd.f32 %v163, %v227
  %v235 = vadd.f32 %v164, %v227
  %v236 = vadd.f32 %v165, %v227
  %v237 = vadd.f32 %v166, %v227
  %v238 = vadd.f32 %v167, %v227
  %v239 = vadd.f32 %v168, %v227
  %v240 = vadd.f32 %v169, %v227
  %v241 = vadd.f32 %v170, %v227
  %v242 = vadd.f32 %v171, %v227
  %v243 = vadd.f32 %v172, %v227
  %v244 = vadd.f32 %v173, %v227
  %v245 = vadd.f32 %v174, %v227
  %v246 = vadd.f32 %v175, %v227
  %v247 = vadd.f32 %v176, %v227
  %v248 = vadd.f32 %v177, %v227
  %v249 = vadd.f32 %v178, %v227
  %v250 = vadd.f32 %v179, %v227
  %v251 = vadd.f32 %v180, %v227
  %v252 = vadd.f32 %v181, %v227
  %v253 = vadd.f32 %v182, %v227
  %v254 = vadd.f32 %v183, %v227
  %v255 = vadd.f32 %v184, %v227
  %v256 = vadd.f32 %v185, %v227
  %v257 = vadd.f32 %v186, %v227
  %v258 = vadd.f32 %v187, %v227
  %v259 = vadd.f32 %v188, %v227
  %v260 = vadd.f32 %v189, %v227
  %v261 = vadd.f32 %v190, %v227
  %v262 = vadd.f32 %v191, %v227
  %v263 = vadd.f32 %v192, %v227
  %v264 = vadd.f32 %v193, %v227
  %v265 = vadd.f32 %v194, %v227
  %v266 = vadd.f32 %v195, %v227
  %v267 = vadd.f32 %v196, %v227
  %v268 = vadd.f32 %v197, %v227
  %v269 = vadd.f32 %v198, %v227
  %v270 = vadd.f32 %v199, %v227
  %v271 = vadd.f32 %v200, %v227
  %v272 = vadd.f32 %v201, %v227
  %v273 = vadd.f32 %v202, %v227
  %v274 = vadd.f32 %v203, %v227
  %v275 = vadd.f32 %v204, %v227
  %v276 = vadd.f32 %v205, %v227
  %v277 = vadd.f32 %v206, %v227
  %v278 = vadd.f32 %v207, %v227
  %v279 = vadd.f32 %v208, %v227
  %v280 = vadd.f32 %v209, %v227
  %v281 = vadd.f32 %v210, %v227
  %v282 = vadd.f32 %v211, %v227
  %v283 = vadd.f32 %v212, %v227
  %v284 = vadd.f32 %v213, %v227
  %v285 = vadd.f32 %v214, %v227
  %v286 = vadd.f32 %v215, %v227
  %v287 = vadd.f32 %v216, %v227
  %v288 = vadd.f32 %v217, %v227
  %v289 = vadd.f32 %v218, %v227
  %v290 = vadd.f32 %v219, %v227
  %v291 = vadd.f32 %v220, %v227
  %v292 = vadd.f32 %v221, %v227
  %v293 = vld [vmem:[%s3] sm:$0xf]
  %v294 = vld [vmem:[%s3 + $0x4] sm:$0xf]
  %v295 = vld [vmem:[%s3 + $0x8] sm:$0xf]
  %v296 = vld [vmem:[%s3 + $0xc] sm:$0xf]
  %v297 = vld [vmem:[%s3 + $0x10] sm:$0xf]
  %v298 = vld [vmem:[%s3 + $0x14] sm:$0xf]
  %v299 = vld [vmem:[%s3 + $0x18] sm:$0xf]
  %v300 = vld [vmem:[%s3 + $0x1c] sm:$0xf]
  %v301 = vld [vmem:[%s3 + $0x20] sm:$0xf]
  %v302 = vld [vmem:[%s3 + $0x24] sm:$0xf]
  %v303 = vld [vmem:[%s3 + $0x28] sm:$0xf]
  %v304 = vld [vmem:[%s3 + $0x2c] sm:$0xf]
  %v305 = vld [vmem:[%s3 + $0x30] sm:$0xf]
  %v306 = vld [vmem:[%s3 + $0x34] sm:$0xf]
  %v307 = vld [vmem:[%s3 + $0x38] sm:$0xf]
  %v308 = vld [vmem:[%s3 + $0x3c] sm:$0xf]
  %v309 = vld [vmem:[%s3 + $0x40] sm:$0xf]
  %v310 = vld [vmem:[%s3 + $0x44] sm:$0xf]
  %v311 = vld [vmem:[%s3 + $0x48] sm:$0xf]
  %v312 = vld [vmem:[%s3 + $0x4c] sm:$0xf]
  %v313 = vld [vmem:[%s3 + $0x50] sm:$0xf]
  %v314 = vld [vmem:[%s3 + $0x54] sm:$0xf]
  %v315 = vld [vmem:[%s3 + $0x58] sm:$0xf]
  %v316 = vld [vmem:[%s3 + $0x5c] sm:$0xf]
  %v317 = vld [vmem:[%s3 + $0x60] sm:$0xf]
  %v318 = vld [vmem:[%s3 + $0x64] sm:$0xf]
  %v319 = vld [vmem:[%s3 + $0x68] sm:$0xf]
  %v320 = vld [vmem:[%s3 + $0x6c] sm:$0xf]
  %v321 = vld [vmem:[%s3 + $0x70] sm:$0xf]
  %v322 = vld [vmem:[%s3 + $0x74] sm:$0xf]
  %v323 = vld [vmem:[%s3 + $0x78] sm:$0xf]
  %v324 = vld [vmem:[%s3 + $0x7c] sm:$0xf]
  %v325 = vld [vmem:[%s3 + $0x80] sm:$0xf]
  %v326 = vld [vmem:[%s3 + $0x84] sm:$0xf]
  %v327 = vld [vmem:[%s3 + $0x88] sm:$0xf]
  %v328 = vld [vmem:[%s3 + $0x8c] sm:$0xf]
  %v329 = vld [vmem:[%s3 + $0x90] sm:$0xf]
  %v330 = vld [vmem:[%s3 + $0x94] sm:$0xf]
  %v331 = vld [vmem:[%s3 + $0x98] sm:$0xf]
  %v332 = vld [vmem:[%s3 + $0x9c] sm:$0xf]
  %v333 = vld [vmem:[%s3 + $0xa0] sm:$0xf]
  %v334 = vld [vmem:[%s3 + $0xa4] sm:$0xf]
  %v335 = vld [vmem:[%s3 + $0xa8] sm:$0xf]
  %v336 = vld [vmem:[%s3 + $0xac] sm:$0xf]
  %v337 = vld [vmem:[%s3 + $0xb0] sm:$0xf]
  %v338 = vld [vmem:[%s3 + $0xb4] sm:$0xf]
  %v339 = vld [vmem:[%s3 + $0xb8] sm:$0xf]
  %v340 = vld [vmem:[%s3 + $0xbc] sm:$0xf]
  %v341 = vld [vmem:[%s3 + $0xc0] sm:$0xf]
  %v342 = vld [vmem:[%s3 + $0xc4] sm:$0xf]
  %v343 = vld [vmem:[%s3 + $0xc8] sm:$0xf]
  %v344 = vld [vmem:[%s3 + $0xcc] sm:$0xf]
  %v345 = vld [vmem:[%s3 + $0xd0] sm:$0xf]
  %v346 = vld [vmem:[%s3 + $0xd4] sm:$0xf]
  %v347 = vld [vmem:[%s3 + $0xd8] sm:$0xf]
  %v348 = vld [vmem:[%s3 + $0xdc] sm:$0xf]
  %v349 = vld [vmem:[%s3 + $0xe0] sm:$0xf]
  %v350 = vld [vmem:[%s3 + $0xe4] sm:$0xf]
  %v351 = vld [vmem:[%s3 + $0xe8] sm:$0xf]
  %v352 = vld [vmem:[%s3 + $0xec] sm:$0xf]
  %v353 = vld [vmem:[%s3 + $0xf0] sm:$0xf]
  %v354 = vld [vmem:[%s3 + $0xf4] sm:$0xf]
  %v355 = vld [vmem:[%s3 + $0xf8] sm:$0xf]
  %v356 = vld [vmem:[%s3 + $0xfc] sm:$0xf]
  %v357 = vunpack.c.l.bf16 %v293
  %v358 = vunpack.c.l.bf16 %v294
  %v359 = vunpack.c.l.bf16 %v295
  %v360 = vunpack.c.l.bf16 %v296
  %v361 = vunpack.c.l.bf16 %v297
  %v362 = vunpack.c.l.bf16 %v298
  %v363 = vunpack.c.l.bf16 %v299
  %v364 = vunpack.c.l.bf16 %v300
  %v365 = vunpack.c.l.bf16 %v301
  %v366 = vunpack.c.l.bf16 %v302
  %v367 = vunpack.c.l.bf16 %v303
  %v368 = vunpack.c.l.bf16 %v304
  %v369 = vunpack.c.l.bf16 %v305
  %v370 = vunpack.c.l.bf16 %v306
  %v371 = vunpack.c.l.bf16 %v307
  %v372 = vunpack.c.l.bf16 %v308
  %v373 = vunpack.c.l.bf16 %v309
  %v374 = vunpack.c.l.bf16 %v310
  %v375 = vunpack.c.l.bf16 %v311
  %v376 = vunpack.c.l.bf16 %v312
  %v377 = vunpack.c.l.bf16 %v313
  %v378 = vunpack.c.l.bf16 %v314
  %v379 = vunpack.c.l.bf16 %v315
  %v380 = vunpack.c.l.bf16 %v316
  %v381 = vunpack.c.l.bf16 %v317
  %v382 = vunpack.c.l.bf16 %v318
  %v383 = vunpack.c.l.bf16 %v319
  %v384 = vunpack.c.l.bf16 %v320
  %v385 = vunpack.c.l.bf16 %v321
  %v386 = vunpack.c.l.bf16 %v322
  %v387 = vunpack.c.l.bf16 %v323
  %v388 = vunpack.c.l.bf16 %v324
  %v389 = vunpack.c.l.bf16 %v325
  %v390 = vunpack.c.l.bf16 %v326
  %v391 = vunpack.c.l.bf16 %v327
  %v392 = vunpack.c.l.bf16 %v328
  %v393 = vunpack.c.l.bf16 %v329
  %v394 = vunpack.c.l.bf16 %v330
  %v395 = vunpack.c.l.bf16 %v331
  %v396 = vunpack.c.l.bf16 %v332
  %v397 = vunpack.c.l.bf16 %v333
  %v398 = vunpack.c.l.bf16 %v334
  %v399 = vunpack.c.l.bf16 %v335
  %v400 = vunpack.c.l.bf16 %v336
  %v401 = vunpack.c.l.bf16 %v337
  %v402 = vunpack.c.l.bf16 %v338
  %v403 = vunpack.c.l.bf16 %v339
  %v404 = vunpack.c.l.bf16 %v340
  %v405 = vunpack.c.l.bf16 %v341
  %v406 = vunpack.c.l.bf16 %v342
  %v407 = vunpack.c.l.bf16 %v343
  %v408 = vunpack.c.l.bf16 %v344
  %v409 = vunpack.c.l.bf16 %v345
  %v410 = vunpack.c.l.bf16 %v346
  %v411 = vunpack.c.l.bf16 %v347
  %v412 = vunpack.c.l.bf16 %v348
  %v413 = vunpack.c.l.bf16 %v349
  %v414 = vunpack.c.l.bf16 %v350
  %v415 = vunpack.c.l.bf16 %v351
  %v416 = vunpack.c.l.bf16 %v352
  %v417 = vunpack.c.l.bf16 %v353
  %v418 = vunpack.c.l.bf16 %v354
  %v419 = vunpack.c.l.bf16 %v355
  %v420 = vunpack.c.l.bf16 %v356
  %v421 = vld [vmem:[%s4] sm:$0x1]
  %v423 = vlaneseq
  %v424 = vshrl.u32 %v423, 7
  %v425 = vsub.s32 0, %v424
  %v426 = vrot.slane %v421, %v425
  %v428 = vmul.f32 %v357, %v426
  %v429 = vmul.f32 %v358, %v426
  %v430 = vmul.f32 %v359, %v426
  %v431 = vmul.f32 %v360, %v426
  %v432 = vmul.f32 %v361, %v426
  %v433 = vmul.f32 %v362, %v426
  %v434 = vmul.f32 %v363, %v426
  %v435 = vmul.f32 %v364, %v426
  %v436 = vmul.f32 %v365, %v426
  %v437 = vmul.f32 %v366, %v426
  %v438 = vmul.f32 %v367, %v426
  %v439 = vmul.f32 %v368, %v426
  %v440 = vmul.f32 %v369, %v426
  %v441 = vmul.f32 %v370, %v426
  %v442 = vmul.f32 %v371, %v426
  %v443 = vmul.f32 %v372, %v426
  %v444 = vmul.f32 %v373, %v426
  %v445 = vmul.f32 %v374, %v426
  %v446 = vmul.f32 %v375, %v426
  %v447 = vmul.f32 %v376, %v426
  %v448 = vmul.f32 %v377, %v426
  %v449 = vmul.f32 %v378, %v426
  %v450 = vmul.f32 %v379, %v426
  %v451 = vmul.f32 %v380, %v426
  %v452 = vmul.f32 %v381, %v426
  %v453 = vmul.f32 %v382, %v426
  %v454 = vmul.f32 %v383, %v426
  %v455 = vmul.f32 %v384, %v426
  %v456 = vmul.f32 %v385, %v426
  %v457 = vmul.f32 %v386, %v426
  %v458 = vmul.f32 %v387, %v426
  %v459 = vmul.f32 %v388, %v426
  %v460 = vmul.f32 %v389, %v426
  %v461 = vmul.f32 %v390, %v426
  %v462 = vmul.f32 %v391, %v426
  %v463 = vmul.f32 %v392, %v426
  %v464 = vmul.f32 %v393, %v426
  %v465 = vmul.f32 %v394, %v426
  %v466 = vmul.f32 %v395, %v426
  %v467 = vmul.f32 %v396, %v426
  %v468 = vmul.f32 %v397, %v426
  %v469 = vmul.f32 %v398, %v426
  %v470 = vmul.f32 %v399, %v426
  %v471 = vmul.f32 %v400, %v426
  %v472 = vmul.f32 %v401, %v426
  %v473 = vmul.f32 %v402, %v426
  %v474 = vmul.f32 %v403, %v426
  %v475 = vmul.f32 %v404, %v426
  %v476 = vmul.f32 %v405, %v426
  %v477 = vmul.f32 %v406, %v426
  %v478 = vmul.f32 %v407, %v426
  %v479 = vmul.f32 %v408, %v426
  %v480 = vmul.f32 %v409, %v426
  %v481 = vmul.f32 %v410, %v426
  %v482 = vmul.f32 %v411, %v426
  %v483 = vmul.f32 %v412, %v426
  %v484 = vmul.f32 %v413, %v426
  %v485 = vmul.f32 %v414, %v426
  %v486 = vmul.f32 %v415, %v426
  %v487 = vmul.f32 %v416, %v426
  %v488 = vmul.f32 %v417, %v426
  %v489 = vmul.f32 %v418, %v426
  %v490 = vmul.f32 %v419, %v426
  %v491 = vmul.f32 %v420, %v426
  %v492 = vld [vmem:[%s5] sm:$0x1]
  %v494 = vlaneseq
  %v495 = vshrl.u32 %v494, 7
  %v496 = vsub.s32 0, %v495
  %v497 = vrot.slane %v492, %v496
  %v499 = vadd.f32 %v428, %v497
  %v500 = vadd.f32 %v429, %v497
  %v501 = vadd.f32 %v430, %v497
  %v502 = vadd.f32 %v431, %v497
  %v503 = vadd.f32 %v432, %v497
  %v504 = vadd.f32 %v433, %v497
  %v505 = vadd.f32 %v434, %v497
  %v506 = vadd.f32 %v435, %v497
  %v507 = vadd.f32 %v436, %v497
  %v508 = vadd.f32 %v437, %v497
  %v509 = vadd.f32 %v438, %v497
  %v510 = vadd.f32 %v439, %v497
  %v511 = vadd.f32 %v440, %v497
  %v512 = vadd.f32 %v441, %v497
  %v513 = vadd.f32 %v442, %v497
  %v514 = vadd.f32 %v443, %v497
  %v515 = vadd.f32 %v444, %v497
  %v516 = vadd.f32 %v445, %v497
  %v517 = vadd.f32 %v446, %v497
  %v518 = vadd.f32 %v447, %v497
  %v519 = vadd.f32 %v448, %v497
  %v520 = vadd.f32 %v449, %v497
  %v521 = vadd.f32 %v450, %v497
  %v522 = vadd.f32 %v451, %v497
  %v523 = vadd.f32 %v452, %v497
  %v524 = vadd.f32 %v453, %v497
  %v525 = vadd.f32 %v454, %v497
  %v526 = vadd.f32 %v455, %v497
  %v527 = vadd.f32 %v456, %v497
  %v528 = vadd.f32 %v457, %v497
  %v529 = vadd.f32 %v458, %v497
  %v530 = vadd.f32 %v459, %v497
  %v531 = vadd.f32 %v460, %v497
  %v532 = vadd.f32 %v461, %v497
  %v533 = vadd.f32 %v462, %v497
  %v534 = vadd.f32 %v463, %v497
  %v535 = vadd.f32 %v464, %v497
  %v536 = vadd.f32 %v465, %v497
  %v537 = vadd.f32 %v466, %v497
  %v538 = vadd.f32 %v467, %v497
  %v539 = vadd.f32 %v468, %v497
  %v540 = vadd.f32 %v469, %v497
  %v541 = vadd.f32 %v470, %v497
  %v542 = vadd.f32 %v471, %v497
  %v543 = vadd.f32 %v472, %v497
  %v544 = vadd.f32 %v473, %v497
  %v545 = vadd.f32 %v474, %v497
  %v546 = vadd.f32 %v475, %v497
  %v547 = vadd.f32 %v476, %v497
  %v548 = vadd.f32 %v477, %v497
  %v549 = vadd.f32 %v478, %v497
  %v550 = vadd.f32 %v479, %v497
  %v551 = vadd.f32 %v480, %v497
  %v552 = vadd.f32 %v481, %v497
  %v553 = vadd.f32 %v482, %v497
  %v554 = vadd.f32 %v483, %v497
  %v555 = vadd.f32 %v484, %v497
  %v556 = vadd.f32 %v485, %v497
  %v557 = vadd.f32 %v486, %v497
  %v558 = vadd.f32 %v487, %v497
  %v559 = vadd.f32 %v488, %v497
  %v560 = vadd.f32 %v489, %v497
  %v561 = vadd.f32 %v490, %v497
  %v562 = vadd.f32 %v491, %v497
  %v563 = vadd.f32 %v229, %v499
  %v564 = vadd.f32 %v230, %v500
  %v565 = vadd.f32 %v231, %v501
  %v566 = vadd.f32 %v232, %v502
  %v567 = vadd.f32 %v233, %v503
  %v568 = vadd.f32 %v234, %v504
  %v569 = vadd.f32 %v235, %v505
  %v570 = vadd.f32 %v236, %v506
  %v571 = vadd.f32 %v237, %v507
  %v572 = vadd.f32 %v238, %v508
  %v573 = vadd.f32 %v239, %v509
  %v574 = vadd.f32 %v240, %v510
  %v575 = vadd.f32 %v241, %v511
  %v576 = vadd.f32 %v242, %v512
  %v577 = vadd.f32 %v243, %v513
  %v578 = vadd.f32 %v244, %v514
  %v579 = vadd.f32 %v245, %v515
  %v580 = vadd.f32 %v246, %v516
  %v581 = vadd.f32 %v247, %v517
  %v582 = vadd.f32 %v248, %v518
  %v583 = vadd.f32 %v249, %v519
  %v584 = vadd.f32 %v250, %v520
  %v585 = vadd.f32 %v251, %v521
  %v586 = vadd.f32 %v252, %v522
  %v587 = vadd.f32 %v253, %v523
  %v588 = vadd.f32 %v254, %v524
  %v589 = vadd.f32 %v255, %v525
  %v590 = vadd.f32 %v256, %v526
  %v591 = vadd.f32 %v257, %v527
  %v592 = vadd.f32 %v258, %v528
  %v593 = vadd.f32 %v259, %v529
  %v594 = vadd.f32 %v260, %v530
  %v595 = vadd.f32 %v261, %v531
  %v596 = vadd.f32 %v262, %v532
  %v597 = vadd.f32 %v263, %v533
  %v598 = vadd.f32 %v264, %v534
  %v599 = vadd.f32 %v265, %v535
  %v600 = vadd.f32 %v266, %v536
  %v601 = vadd.f32 %v267, %v537
  %v602 = vadd.f32 %v268, %v538
  %v603 = vadd.f32 %v269, %v539
  %v604 = vadd.f32 %v270, %v540
  %v605 = vadd.f32 %v271, %v541
  %v606 = vadd.f32 %v272, %v542
  %v607 = vadd.f32 %v273, %v543
  %v608 = vadd.f32 %v274, %v544
  %v609 = vadd.f32 %v275, %v545
  %v610 = vadd.f32 %v276, %v546
  %v611 = vadd.f32 %v277, %v547
  %v612 = vadd.f32 %v278, %v548
  %v613 = vadd.f32 %v279, %v549
  %v614 = vadd.f32 %v280, %v550
  %v615 = vadd.f32 %v281, %v551
  %v616 = vadd.f32 %v282, %v552
  %v617 = vadd.f32 %v283, %v553
  %v618 = vadd.f32 %v284, %v554
  %v619 = vadd.f32 %v285, %v555
  %v620 = vadd.f32 %v286, %v556
  %v621 = vadd.f32 %v287, %v557
  %v622 = vadd.f32 %v288, %v558
  %v623 = vadd.f32 %v289, %v559
  %v624 = vadd.f32 %v290, %v560
  %v625 = vadd.f32 %v291, %v561
  %v626 = vadd.f32 %v292, %v562
  %v627 = vmax.f32 %v563, 0.0
  %v628 = vmax.f32 %v564, 0.0
  %v629 = vmax.f32 %v565, 0.0
  %v630 = vmax.f32 %v566, 0.0
  %v631 = vmax.f32 %v567, 0.0
  %v632 = vmax.f32 %v568, 0.0
  %v633 = vmax.f32 %v569, 0.0
  %v634 = vmax.f32 %v570, 0.0
  %v635 = vmax.f32 %v571, 0.0
  %v636 = vmax.f32 %v572, 0.0
  %v637 = vmax.f32 %v573, 0.0
  %v638 = vmax.f32 %v574, 0.0
  %v639 = vmax.f32 %v575, 0.0
  %v640 = vmax.f32 %v576, 0.0
  %v641 = vmax.f32 %v577, 0.0
  %v642 = vmax.f32 %v578, 0.0
  %v643 = vmax.f32 %v579, 0.0
  %v644 = vmax.f32 %v580, 0.0
  %v645 = vmax.f32 %v581, 0.0
  %v646 = vmax.f32 %v582, 0.0
  %v647 = vmax.f32 %v583, 0.0
  %v648 = vmax.f32 %v584, 0.0
  %v649 = vmax.f32 %v585, 0.0
  %v650 = vmax.f32 %v586, 0.0
  %v651 = vmax.f32 %v587, 0.0
  %v652 = vmax.f32 %v588, 0.0
  %v653 = vmax.f32 %v589, 0.0
  %v654 = vmax.f32 %v590, 0.0
  %v655 = vmax.f32 %v591, 0.0
  %v656 = vmax.f32 %v592, 0.0
  %v657 = vmax.f32 %v593, 0.0
  %v658 = vmax.f32 %v594, 0.0
  %v659 = vmax.f32 %v595, 0.0
  %v660 = vmax.f32 %v596, 0.0
  %v661 = vmax.f32 %v597, 0.0
  %v662 = vmax.f32 %v598, 0.0
  %v663 = vmax.f32 %v599, 0.0
  %v664 = vmax.f32 %v600, 0.0
  %v665 = vmax.f32 %v601, 0.0
  %v666 = vmax.f32 %v602, 0.0
  %v667 = vmax.f32 %v603, 0.0
  %v668 = vmax.f32 %v604, 0.0
  %v669 = vmax.f32 %v605, 0.0
  %v670 = vmax.f32 %v606, 0.0
  %v671 = vmax.f32 %v607, 0.0
  %v672 = vmax.f32 %v608, 0.0
  %v673 = vmax.f32 %v609, 0.0
  %v674 = vmax.f32 %v610, 0.0
  %v675 = vmax.f32 %v611, 0.0
  %v676 = vmax.f32 %v612, 0.0
  %v677 = vmax.f32 %v613, 0.0
  %v678 = vmax.f32 %v614, 0.0
  %v679 = vmax.f32 %v615, 0.0
  %v680 = vmax.f32 %v616, 0.0
  %v681 = vmax.f32 %v617, 0.0
  %v682 = vmax.f32 %v618, 0.0
  %v683 = vmax.f32 %v619, 0.0
  %v684 = vmax.f32 %v620, 0.0
  %v685 = vmax.f32 %v621, 0.0
  %v686 = vmax.f32 %v622, 0.0
  %v687 = vmax.f32 %v623, 0.0
  %v688 = vmax.f32 %v624, 0.0
  %v689 = vmax.f32 %v625, 0.0
  %v690 = vmax.f32 %v626, 0.0
  %691 = vst [vmem:[%s6] sm:$0xff] %v627
  %692 = vst [vmem:[%s6 + $0x8] sm:$0xff] %v628
  %693 = vst [vmem:[%s6 + $0x10] sm:$0xff] %v629
  %694 = vst [vmem:[%s6 + $0x18] sm:$0xff] %v630
  %695 = vst [vmem:[%s6 + $0x20] sm:$0xff] %v631
  %696 = vst [vmem:[%s6 + $0x28] sm:$0xff] %v632
  %697 = vst [vmem:[%s6 + $0x30] sm:$0xff] %v633
  %698 = vst [vmem:[%s6 + $0x38] sm:$0xff] %v634
  %699 = vst [vmem:[%s6 + $0x40] sm:$0xff] %v635
  %700 = vst [vmem:[%s6 + $0x48] sm:$0xff] %v636
  %701 = vst [vmem:[%s6 + $0x50] sm:$0xff] %v637
  %702 = vst [vmem:[%s6 + $0x58] sm:$0xff] %v638
  %703 = vst [vmem:[%s6 + $0x60] sm:$0xff] %v639
  %704 = vst [vmem:[%s6 + $0x68] sm:$0xff] %v640
  %705 = vst [vmem:[%s6 + $0x70] sm:$0xff] %v641
  %706 = vst [vmem:[%s6 + $0x78] sm:$0xff] %v642
  %707 = vst [vmem:[%s6 + $0x80] sm:$0xff] %v643
  %708 = vst [vmem:[%s6 + $0x88] sm:$0xff] %v644
  %709 = vst [vmem:[%s6 + $0x90] sm:$0xff] %v645
  %710 = vst [vmem:[%s6 + $0x98] sm:$0xff] %v646
  %711 = vst [vmem:[%s6 + $0xa0] sm:$0xff] %v647
  %712 = vst [vmem:[%s6 + $0xa8] sm:$0xff] %v648
  %713 = vst [vmem:[%s6 + $0xb0] sm:$0xff] %v649
  %714 = vst [vmem:[%s6 + $0xb8] sm:$0xff] %v650
  %715 = vst [vmem:[%s6 + $0xc0] sm:$0xff] %v651
  %716 = vst [vmem:[%s6 + $0xc8] sm:$0xff] %v652
  %717 = vst [vmem:[%s6 + $0xd0] sm:$0xff] %v653
  %718 = vst [vmem:[%s6 + $0xd8] sm:$0xff] %v654
  %719 = vst [vmem:[%s6 + $0xe0] sm:$0xff] %v655
  %720 = vst [vmem:[%s6 + $0xe8] sm:$0xff] %v656
  %721 = vst [vmem:[%s6 + $0xf0] sm:$0xff] %v657
  %722 = vst [vmem:[%s6 + $0xf8] sm:$0xff] %v658
  %723 = vst [vmem:[%s6 + $0x100] sm:$0xff] %v659
  %724 = vst [vmem:[%s6 + $0x108] sm:$0xff] %v660
  %725 = vst [vmem:[%s6 + $0x110] sm:$0xff] %v661
  %726 = vst [vmem:[%s6 + $0x118] sm:$0xff] %v662
  %727 = vst [vmem:[%s6 + $0x120] sm:$0xff] %v663
  %728 = vst [vmem:[%s6 + $0x128] sm:$0xff] %v664
  %729 = vst [vmem:[%s6 + $0x130] sm:$0xff] %v665
  %730 = vst [vmem:[%s6 + $0x138] sm:$0xff] %v666
  %731 = vst [vmem:[%s6 + $0x140] sm:$0xff] %v667
  %732 = vst [vmem:[%s6 + $0x148] sm:$0xff] %v668
  %733 = vst [vmem:[%s6 + $0x150] sm:$0xff] %v669
  %734 = vst [vmem:[%s6 + $0x158] sm:$0xff] %v670
  %735 = vst [vmem:[%s6 + $0x160] sm:$0xff] %v671
  %736 = vst [vmem:[%s6 + $0x168] sm:$0xff] %v672
  %737 = vst [vmem:[%s6 + $0x170] sm:$0xff] %v673
  %738 = vst [vmem:[%s6 + $0x178] sm:$0xff] %v674
  %739 = vst [vmem:[%s6 + $0x180] sm:$0xff] %v675
  %740 = vst [vmem:[%s6 + $0x188] sm:$0xff] %v676
  %741 = vst [vmem:[%s6 + $0x190] sm:$0xff] %v677
  %742 = vst [vmem:[%s6 + $0x198] sm:$0xff] %v678
  %743 = vst [vmem:[%s6 + $0x1a0] sm:$0xff] %v679
  %744 = vst [vmem:[%s6 + $0x1a8] sm:$0xff] %v680
  %745 = vst [vmem:[%s6 + $0x1b0] sm:$0xff] %v681
  %746 = vst [vmem:[%s6 + $0x1b8] sm:$0xff] %v682
  %747 = vst [vmem:[%s6 + $0x1c0] sm:$0xff] %v683
  %748 = vst [vmem:[%s6 + $0x1c8] sm:$0xff] %v684
  %749 = vst [vmem:[%s6 + $0x1d0] sm:$0xff] %v685
  %750 = vst [vmem:[%s6 + $0x1d8] sm:$0xff] %v686
  %751 = vst [vmem:[%s6 + $0x1e0] sm:$0xff] %v687
  %752 = vst [vmem:[%s6 + $0x1e8] sm:$0xff] %v688
  %753 = vst [vmem:[%s6 + $0x1f0] sm:$0xff] %v689
  %754 = vst [vmem:[%s6 + $0x1f8] sm:$0xff] %v690
  // Predicated region
  $region26: #{basic_block_forward.7} parent=0 // pred_check
    _
  $region27: #{basic_block_forward.7} parent=0 // pred_check_branch
    %756 = sbr.rel (0) target = $region29
  $region28: #{basic_block_forward.7} parent=0 // pred_region
    _
  $region29: #{basic_block_forward.7} parent=0 // pred_fallthru
    _
  // Predicated region
  $region30: #{basic_block_forward.7} parent=0 // pred_check
    _
  $region31: #{basic_block_forward.7} parent=0 // pred_check_branch
    %758 = sbr.rel (0) target = $region33
  $region32: #{basic_block_forward.7} parent=0 // pred_region
    _
  $region33: #{basic_block_forward.7} parent=0 // pred_fallthru
    _

// kernel: basic_block_forward.6
$region0: #{basic_block_forward.6}
  #allocation0 [shape = 'u32[]', space=smem, size = 0x4, offset = 0x4, fixed_abs, tag = 'smem constant byte address 0x4 - core index']
  #allocation1 [shape = 'u32[144,128]{1,0:T(1,128)}', space=vmem, size = 0x12000, scoped, tag = 'internal scratch']
  %s0 = inlined_call_operand.vmem [shape: bf16[512,128], index: 0, kind: input, shape index: {}]
  %s1 = inlined_call_operand.vmem [shape: bf16[128,128], index: 1, kind: input, shape index: {}]
  %s2 = inlined_call_operand.vmem [shape: bf16[512,128], index: 2, kind: output, shape index: {0}]
  %s3 = inlined_call_operand.vmem [shape: f32[1,1,128], index: 3, kind: output, shape index: {1}]
  %s4 = inlined_call_operand.vmem [shape: f32[1,1,128], index: 4, kind: output, shape index: {2}]
  %5 = xla_tuple %s2, %s3, %s4
  %s6 = sld [smem:[#allocation0]]
  $region34: #{basic_block_forward.6} parent=0
    _
  %s8 = ssub.s32 1, %s6
  %s9 = scalar_select 0, %s8, %s6
  // Predicated region
  $region2: #{basic_block_forward.6} parent=0 // pred_check
    _
  $region3: #{basic_block_forward.6} parent=0 // pred_check_branch
    %11 = sbr.rel (0) target = $region5
  $region4: #{basic_block_forward.6} parent=0 // pred_region
    _
  $region5: #{basic_block_forward.6} parent=0 // pred_fallthru
    _
  // Predicated region
  $region6: #{basic_block_forward.6} parent=0 // pred_check
    _
  $region7: #{basic_block_forward.6} parent=0 // pred_check_branch
    %13 = sbr.rel (0) target = $region9
  $region8: #{basic_block_forward.6} parent=0 // pred_region
    _
  $region9: #{basic_block_forward.6} parent=0 // pred_fallthru
    _
  %v15 = vld [vmem:[%s0] sm:$0xf]
  %v16 = vld [vmem:[%s0 + $0x4] sm:$0xf]
  %v17 = vld [vmem:[%s0 + $0x8] sm:$0xf]
  %v18 = vld [vmem:[%s0 + $0xc] sm:$0xf]
  %v19 = vld [vmem:[%s0 + $0x10] sm:$0xf]
  %v20 = vld [vmem:[%s0 + $0x14] sm:$0xf]
  %v21 = vld [vmem:[%s0 + $0x18] sm:$0xf]
  %v22 = vld [vmem:[%s0 + $0x1c] sm:$0xf]
  %v23 = vld [vmem:[%s0 + $0x20] sm:$0xf]
  %v24 = vld [vmem:[%s0 + $0x24] sm:$0xf]
  %v25 = vld [vmem:[%s0 + $0x28] sm:$0xf]
  %v26 = vld [vmem:[%s0 + $0x2c] sm:$0xf]
  %v27 = vld [vmem:[%s0 + $0x30] sm:$0xf]
  %v28 = vld [vmem:[%s0 + $0x34] sm:$0xf]
  %v29 = vld [vmem:[%s0 + $0x38] sm:$0xf]
  %v30 = vld [vmem:[%s0 + $0x3c] sm:$0xf]
  %v31 = vld [vmem:[%s0 + $0x40] sm:$0xf]
  %v32 = vld [vmem:[%s0 + $0x44] sm:$0xf]
  %v33 = vld [vmem:[%s0 + $0x48] sm:$0xf]
  %v34 = vld [vmem:[%s0 + $0x4c] sm:$0xf]
  %v35 = vld [vmem:[%s0 + $0x50] sm:$0xf]
  %v36 = vld [vmem:[%s0 + $0x54] sm:$0xf]
  %v37 = vld [vmem:[%s0 + $0x58] sm:$0xf]
  %v38 = vld [vmem:[%s0 + $0x5c] sm:$0xf]
  %v39 = vld [vmem:[%s0 + $0x60] sm:$0xf]
  %v40 = vld [vmem:[%s0 + $0x64] sm:$0xf]
  %v41 = vld [vmem:[%s0 + $0x68] sm:$0xf]
  %v42 = vld [vmem:[%s0 + $0x6c] sm:$0xf]
  %v43 = vld [vmem:[%s0 + $0x70] sm:$0xf]
  %v44 = vld [vmem:[%s0 + $0x74] sm:$0xf]
  %v45 = vld [vmem:[%s0 + $0x78] sm:$0xf]
  %v46 = vld [vmem:[%s0 + $0x7c] sm:$0xf]
  %v47 = vld [vmem:[%s0 + $0x80] sm:$0xf]
  %v48 = vld [vmem:[%s0 + $0x84] sm:$0xf]
  %v49 = vld [vmem:[%s0 + $0x88] sm:$0xf]
  %v50 = vld [vmem:[%s0 + $0x8c] sm:$0xf]
  %v51 = vld [vmem:[%s0 + $0x90] sm:$0xf]
  %v52 = vld [vmem:[%s0 + $0x94] sm:$0xf]
  %v53 = vld [vmem:[%s0 + $0x98] sm:$0xf]
  %v54 = vld [vmem:[%s0 + $0x9c] sm:$0xf]
  %v55 = vld [vmem:[%s0 + $0xa0] sm:$0xf]
  %v56 = vld [vmem:[%s0 + $0xa4] sm:$0xf]
  %v57 = vld [vmem:[%s0 + $0xa8] sm:$0xf]
  %v58 = vld [vmem:[%s0 + $0xac] sm:$0xf]
  %v59 = vld [vmem:[%s0 + $0xb0] sm:$0xf]
  %v60 = vld [vmem:[%s0 + $0xb4] sm:$0xf]
  %v61 = vld [vmem:[%s0 + $0xb8] sm:$0xf]
  %v62 = vld [vmem:[%s0 + $0xbc] sm:$0xf]
  %v63 = vld [vmem:[%s0 + $0xc0] sm:$0xf]
  %v64 = vld [vmem:[%s0 + $0xc4] sm:$0xf]
  %v65 = vld [vmem:[%s0 + $0xc8] sm:$0xf]
  %v66 = vld [vmem:[%s0 + $0xcc] sm:$0xf]
  %v67 = vld [vmem:[%s0 + $0xd0] sm:$0xf]
  %v68 = vld [vmem:[%s0 + $0xd4] sm:$0xf]
  %v69 = vld [vmem:[%s0 + $0xd8] sm:$0xf]
  %v70 = vld [vmem:[%s0 + $0xdc] sm:$0xf]
  %v71 = vld [vmem:[%s0 + $0xe0] sm:$0xf]
  %v72 = vld [vmem:[%s0 + $0xe4] sm:$0xf]
  %v73 = vld [vmem:[%s0 + $0xe8] sm:$0xf]
  %v74 = vld [vmem:[%s0 + $0xec] sm:$0xf]
  %v75 = vld [vmem:[%s0 + $0xf0] sm:$0xf]
  %v76 = vld [vmem:[%s0 + $0xf4] sm:$0xf]
  %v77 = vld [vmem:[%s0 + $0xf8] sm:$0xf]
  %v78 = vld [vmem:[%s0 + $0xfc] sm:$0xf]
  %v79 = vld [vmem:[%s1] sm:$0xf]
  %v80 = vld [vmem:[%s1 + $0x4] sm:$0xf]
  %v81 = vld [vmem:[%s1 + $0x8] sm:$0xf]
  %v82 = vld [vmem:[%s1 + $0xc] sm:$0xf]
  %v83 = vld [vmem:[%s1 + $0x10] sm:$0xf]
  %v84 = vld [vmem:[%s1 + $0x14] sm:$0xf]
  %v85 = vld [vmem:[%s1 + $0x18] sm:$0xf]
  %v86 = vld [vmem:[%s1 + $0x1c] sm:$0xf]
  %v87 = vld [vmem:[%s1 + $0x20] sm:$0xf]
  %v88 = vld [vmem:[%s1 + $0x24] sm:$0xf]
  %v89 = vld [vmem:[%s1 + $0x28] sm:$0xf]
  %v90 = vld [vmem:[%s1 + $0x2c] sm:$0xf]
  %v91 = vld [vmem:[%s1 + $0x30] sm:$0xf]
  %v92 = vld [vmem:[%s1 + $0x34] sm:$0xf]
  %v93 = vld [vmem:[%s1 + $0x38] sm:$0xf]
  %v94 = vld [vmem:[%s1 + $0x3c] sm:$0xf]
  %v159 = vunpack.c.l.b16 %v15
  %v160 = vunpack.c.l.b16 %v16
  %v161 = vunpack.c.l.b16 %v17
  %v162 = vunpack.c.l.b16 %v18
  %v163 = vunpack.c.l.b16 %v19
  %v164 = vunpack.c.l.b16 %v20
  %v165 = vunpack.c.l.b16 %v21
  %v166 = vunpack.c.l.b16 %v22
  %v167 = vunpack.c.l.b16 %v23
  %v168 = vunpack.c.l.b16 %v24
  %v169 = vunpack.c.l.b16 %v25
  %v170 = vunpack.c.l.b16 %v26
  %v171 = vunpack.c.l.b16 %v27
  %v172 = vunpack.c.l.b16 %v28
  %v173 = vunpack.c.l.b16 %v29
  %v174 = vunpack.c.l.b16 %v30
  %v175 = vunpack.c.l.b16 %v31
  %v176 = vunpack.c.l.b16 %v32
  %v177 = vunpack.c.l.b16 %v33
  %v178 = vunpack.c.l.b16 %v34
  %v179 = vunpack.c.l.b16 %v35
  %v180 = vunpack.c.l.b16 %v36
  %v181 = vunpack.c.l.b16 %v37
  %v182 = vunpack.c.l.b16 %v38
  %v183 = vunpack.c.l.b16 %v39
  %v184 = vunpack.c.l.b16 %v40
  %v185 = vunpack.c.l.b16 %v41
  %v186 = vunpack.c.l.b16 %v42
  %v187 = vunpack.c.l.b16 %v43
  %v188 = vunpack.c.l.b16 %v44
  %v189 = vunpack.c.l.b16 %v45
  %v190 = vunpack.c.l.b16 %v46
  %v191 = vunpack.c.l.b16 %v47
  %v192 = vunpack.c.l.b16 %v48
  %v193 = vunpack.c.l.b16 %v49
  %v194 = vunpack.c.l.b16 %v50
  %v195 = vunpack.c.l.b16 %v51
  %v196 = vunpack.c.l.b16 %v52
  %v197 = vunpack.c.l.b16 %v53
  %v198 = vunpack.c.l.b16 %v54
  %v199 = vunpack.c.l.b16 %v55
  %v200 = vunpack.c.l.b16 %v56
  %v201 = vunpack.c.l.b16 %v57
  %v202 = vunpack.c.l.b16 %v58
  %v203 = vunpack.c.l.b16 %v59
  %v204 = vunpack.c.l.b16 %v60
  %v205 = vunpack.c.l.b16 %v61
  %v206 = vunpack.c.l.b16 %v62
  %v207 = vunpack.c.l.b16 %v63
  %v208 = vunpack.c.l.b16 %v64
  %v209 = vunpack.c.l.b16 %v65
  %v210 = vunpack.c.l.b16 %v66
  %v211 = vunpack.c.l.b16 %v67
  %v212 = vunpack.c.l.b16 %v68
  %v213 = vunpack.c.l.b16 %v69
  %v214 = vunpack.c.l.b16 %v70
  %v215 = vunpack.c.l.b16 %v71
  %v216 = vunpack.c.l.b16 %v72
  %v217 = vunpack.c.l.b16 %v73
  %v218 = vunpack.c.l.b16 %v74
  %v219 = vunpack.c.l.b16 %v75
  %v220 = vunpack.c.l.b16 %v76
  %v221 = vunpack.c.l.b16 %v77
  %v222 = vunpack.c.l.b16 %v78
  %v223 = vpack.c.b16 %v160, %v159
  %v224 = vpack.c.b16 %v162, %v161
  %v225 = vpack.c.b16 %v164, %v163
  %v226 = vpack.c.b16 %v166, %v165
  %v227 = vpack.c.b16 %v168, %v167
  %v228 = vpack.c.b16 %v170, %v169
  %v229 = vpack.c.b16 %v172, %v171
  %v230 = vpack.c.b16 %v174, %v173
  %v231 = vpack.c.b16 %v176, %v175
  %v232 = vpack.c.b16 %v178, %v177
  %v233 = vpack.c.b16 %v180, %v179
  %v234 = vpack.c.b16 %v182, %v181
  %v235 = vpack.c.b16 %v184, %v183
  %v236 = vpack.c.b16 %v186, %v185
  %v237 = vpack.c.b16 %v188, %v187
  %v238 = vpack.c.b16 %v190, %v189
  %v239 = vpack.c.b16 %v192, %v191
  %v240 = vpack.c.b16 %v194, %v193
  %v241 = vpack.c.b16 %v196, %v195
  %v242 = vpack.c.b16 %v198, %v197
  %v243 = vpack.c.b16 %v200, %v199
  %v244 = vpack.c.b16 %v202, %v201
  %v245 = vpack.c.b16 %v204, %v203
  %v246 = vpack.c.b16 %v206, %v205
  %v247 = vpack.c.b16 %v208, %v207
  %v248 = vpack.c.b16 %v210, %v209
  %v249 = vpack.c.b16 %v212, %v211
  %v250 = vpack.c.b16 %v214, %v213
  %v251 = vpack.c.b16 %v216, %v215
  %v252 = vpack.c.b16 %v218, %v217
  %v253 = vpack.c.b16 %v220, %v219
  %v254 = vpack.c.b16 %v222, %v221
  %v303 = vunpack.c.l.b16 %v79
  %v304 = vunpack.c.l.b16 %v80
  %v305 = vunpack.c.l.b16 %v81
  %v306 = vunpack.c.l.b16 %v82
  %v307 = vunpack.c.l.b16 %v83
  %v308 = vunpack.c.l.b16 %v84
  %v309 = vunpack.c.l.b16 %v85
  %v310 = vunpack.c.l.b16 %v86
  %v311 = vunpack.c.l.b16 %v87
  %v312 = vunpack.c.l.b16 %v88
  %v313 = vunpack.c.l.b16 %v89
  %v314 = vunpack.c.l.b16 %v90
  %v315 = vunpack.c.l.b16 %v91
  %v316 = vunpack.c.l.b16 %v92
  %v317 = vunpack.c.l.b16 %v93
  %v318 = vunpack.c.l.b16 %v94
  %v319 = vpack.c.b16 %v304, %v303
  %v320 = vpack.c.b16 %v306, %v305
  %v321 = vpack.c.b16 %v308, %v307
  %v322 = vpack.c.b16 %v310, %v309
  %v323 = vpack.c.b16 %v312, %v311
  %v324 = vpack.c.b16 %v314, %v313
  %v325 = vpack.c.b16 %v316, %v315
  %v326 = vpack.c.b16 %v318, %v317
  %335 = vmatprep.subr.bf16.mxu0 0
  %336 = vmatpush1.bf16.msra.mxu0 %v326
  %337 = vmatprep.subr.bf16.mxu0 0
  %338 = vmatpush1.bf16.msra.mxu0 %v325
  %339 = vmatprep.subr.bf16.mxu0 0
  %340 = vmatpush1.bf16.msra.mxu0 %v324
  %341 = vmatprep.subr.bf16.mxu0 0
  %342 = vmatpush1.bf16.msra.mxu0 %v323
  %343 = vmatprep.subr.bf16.mxu0 0
  %344 = vmatpush1.bf16.msra.mxu0 %v322
  %345 = vmatprep.subr.bf16.mxu0 0
  %346 = vmatpush1.bf16.msra.mxu0 %v321
  %347 = vmatprep.subr.bf16.mxu0 0
  %348 = vmatpush1.bf16.msra.mxu0 %v320
  %349 = vmatprep.subr.bf16.mxu0 0
  %350 = vmatpush1.bf16.msra.mxu0 %v319
  %351 = vmatprep.subr.bf16.mxu0 0
  %352 = vmatpush2.bf16.msra.mxu0 0
  %353 = vmatprep.subr.bf16.mxu0 0
  %354 = vmatpush2.bf16.msra.mxu0 0
  %355 = vmatprep.subr.bf16.mxu0 0
  %356 = vmatpush2.bf16.msra.mxu0 0
  %357 = vmatprep.subr.bf16.mxu0 0
  %358 = vmatpush2.bf16.msra.mxu0 0
  %359 = vmatprep.subr.bf16.mxu0 0
  %360 = vmatpush2.bf16.msra.mxu0 0
  %361 = vmatprep.subr.bf16.mxu0 0
  %362 = vmatpush2.bf16.msra.mxu0 0
  %363 = vmatprep.subr.bf16.mxu0 0
  %364 = vmatpush2.bf16.msra.mxu0 0
  %365 = vmatprep.subr.bf16.mxu0 0
  %366 = vmatpush2.bf16.msra.mxu0 0
  %367 = vmatprep.mubr.bf16.mxu0 0
  %368 = vmatmul.mubr.bf16.gmra.mxu0 %v223
  %v369 = vpop.f32.mrf.mxu0
  %v370 = vadd.f32 0.0, %v369
  %v371 = vpop.f32.mrf.mxu0
  %v372 = vpop.f32.mrf.mxu0
  %v373 = vadd.f32 0.0, %v372
  %v374 = vpop.f32.mrf.mxu0
  %375 = vmatprep.mubr.bf16.mxu0 0
  %376 = vmatmul.mubr.bf16.gmra.mxu0 %v224
  %v377 = vpop.f32.mrf.mxu0
  %v378 = vadd.f32 0.0, %v377
  %v379 = vpop.f32.mrf.mxu0
  %v380 = vpop.f32.mrf.mxu0
  %v381 = vadd.f32 0.0, %v380
  %v382 = vpop.f32.mrf.mxu0
  %383 = vmatprep.mubr.bf16.mxu0 0
  %384 = vmatmul.mubr.bf16.gmra.mxu0 %v225
  %v385 = vpop.f32.mrf.mxu0
  %v386 = vadd.f32 0.0, %v385
  %v387 = vpop.f32.mrf.mxu0
  %v388 = vpop.f32.mrf.mxu0
  %v389 = vadd.f32 0.0, %v388
  %v390 = vpop.f32.mrf.mxu0
  %391 = vmatprep.mubr.bf16.mxu0 0
  %392 = vmatmul.mubr.bf16.gmra.mxu0 %v226
  %v393 = vpop.f32.mrf.mxu0
  %v394 = vadd.f32 0.0, %v393
  %v395 = vpop.f32.mrf.mxu0
  %v396 = vpop.f32.mrf.mxu0
  %v397 = vadd.f32 0.0, %v396
  %v398 = vpop.f32.mrf.mxu0
  %399 = vmatprep.mubr.bf16.mxu0 0
  %400 = vmatmul.mubr.bf16.gmra.mxu0 %v227
  %v401 = vpop.f32.mrf.mxu0
  %v402 = vadd.f32 0.0, %v401
  %v403 = vpop.f32.mrf.mxu0
  %v404 = vpop.f32.mrf.mxu0
  %v405 = vadd.f32 0.0, %v404
  %v406 = vpop.f32.mrf.mxu0
  %407 = vmatprep.mubr.bf16.mxu0 0
  %408 = vmatmul.mubr.bf16.gmra.mxu0 %v228
  %v409 = vpop.f32.mrf.mxu0
  %v410 = vadd.f32 0.0, %v409
  %v411 = vpop.f32.mrf.mxu0
  %v412 = vpop.f32.mrf.mxu0
  %v413 = vadd.f32 0.0, %v412
  %v414 = vpop.f32.mrf.mxu0
  %415 = vmatprep.mubr.bf16.mxu0 0
  %416 = vmatmul.mubr.bf16.gmra.mxu0 %v229
  %v417 = vpop.f32.mrf.mxu0
  %v418 = vadd.f32 0.0, %v417
  %v419 = vpop.f32.mrf.mxu0
  %v420 = vpop.f32.mrf.mxu0
  %v421 = vadd.f32 0.0, %v420
  %v422 = vpop.f32.mrf.mxu0
  %423 = vmatprep.mubr.bf16.mxu0 0
  %424 = vmatmul.mubr.bf16.gmra.mxu0 %v230
  %v425 = vpop.f32.mrf.mxu0
  %v426 = vadd.f32 0.0, %v425
  %v427 = vpop.f32.mrf.mxu0
  %v428 = vpop.f32.mrf.mxu0
  %v429 = vadd.f32 0.0, %v428
  %v430 = vpop.f32.mrf.mxu0
  %431 = vmatprep.mubr.bf16.mxu0 0
  %432 = vmatmul.mubr.bf16.gmra.mxu0 %v231
  %v433 = vpop.f32.mrf.mxu0
  %v434 = vadd.f32 0.0, %v433
  %v435 = vpop.f32.mrf.mxu0
  %v436 = vpop.f32.mrf.mxu0
  %v437 = vadd.f32 0.0, %v436
  %v438 = vpop.f32.mrf.mxu0
  %439 = vmatprep.mubr.bf16.mxu0 0
  %440 = vmatmul.mubr.bf16.gmra.mxu0 %v232
  %v441 = vpop.f32.mrf.mxu0
  %v442 = vadd.f32 0.0, %v441
  %v443 = vpop.f32.mrf.mxu0
  %v444 = vpop.f32.mrf.mxu0
  %v445 = vadd.f32 0.0, %v444
  %v446 = vpop.f32.mrf.mxu0
  %447 = vmatprep.mubr.bf16.mxu0 0
  %448 = vmatmul.mubr.bf16.gmra.mxu0 %v233
  %v449 = vpop.f32.mrf.mxu0
  %v450 = vadd.f32 0.0, %v449
  %v451 = vpop.f32.mrf.mxu0
  %v452 = vpop.f32.mrf.mxu0
  %v453 = vadd.f32 0.0, %v452
  %v454 = vpop.f32.mrf.mxu0
  %455 = vmatprep.mubr.bf16.mxu0 0
  %456 = vmatmul.mubr.bf16.gmra.mxu0 %v234
  %v457 = vpop.f32.mrf.mxu0
  %v458 = vadd.f32 0.0, %v457
  %v459 = vpop.f32.mrf.mxu0
  %v460 = vpop.f32.mrf.mxu0
  %v461 = vadd.f32 0.0, %v460
  %v462 = vpop.f32.mrf.mxu0
  %463 = vmatprep.mubr.bf16.mxu0 0
  %464 = vmatmul.mubr.bf16.gmra.mxu0 %v235
  %v465 = vpop.f32.mrf.mxu0
  %v466 = vadd.f32 0.0, %v465
  %v467 = vpop.f32.mrf.mxu0
  %v468 = vpop.f32.mrf.mxu0
  %v469 = vadd.f32 0.0, %v468
  %v470 = vpop.f32.mrf.mxu0
  %471 = vmatprep.mubr.bf16.mxu0 0
  %472 = vmatmul.mubr.bf16.gmra.mxu0 %v236
  %v473 = vpop.f32.mrf.mxu0
  %v474 = vadd.f32 0.0, %v473
  %v475 = vpop.f32.mrf.mxu0
  %v476 = vpop.f32.mrf.mxu0
  %v477 = vadd.f32 0.0, %v476
  %v478 = vpop.f32.mrf.mxu0
  %479 = vmatprep.mubr.bf16.mxu0 0
  %480 = vmatmul.mubr.bf16.gmra.mxu0 %v237
  %v481 = vpop.f32.mrf.mxu0
  %v482 = vadd.f32 0.0, %v481
  %v483 = vpop.f32.mrf.mxu0
  %v484 = vpop.f32.mrf.mxu0
  %v485 = vadd.f32 0.0, %v484
  %v486 = vpop.f32.mrf.mxu0
  %487 = vmatprep.mubr.bf16.mxu0 0
  %488 = vmatmul.mubr.bf16.gmra.mxu0 %v238
  %v489 = vpop.f32.mrf.mxu0
  %v490 = vadd.f32 0.0, %v489
  %v491 = vpop.f32.mrf.mxu0
  %v492 = vpop.f32.mrf.mxu0
  %v493 = vadd.f32 0.0, %v492
  %v494 = vpop.f32.mrf.mxu0
  %495 = vmatprep.mubr.bf16.mxu0 0
  %496 = vmatmul.mubr.bf16.gmra.mxu0 %v239
  %v497 = vpop.f32.mrf.mxu0
  %v498 = vadd.f32 0.0, %v497
  %v499 = vpop.f32.mrf.mxu0
  %v500 = vpop.f32.mrf.mxu0
  %v501 = vadd.f32 0.0, %v500
  %v502 = vpop.f32.mrf.mxu0
  %503 = vmatprep.mubr.bf16.mxu0 0
  %504 = vmatmul.mubr.bf16.gmra.mxu0 %v240
  %v505 = vpop.f32.mrf.mxu0
  %v506 = vadd.f32 0.0, %v505
  %v507 = vpop.f32.mrf.mxu0
  %v508 = vpop.f32.mrf.mxu0
  %v509 = vadd.f32 0.0, %v508
  %v510 = vpop.f32.mrf.mxu0
  %511 = vmatprep.mubr.bf16.mxu0 0
  %512 = vmatmul.mubr.bf16.gmra.mxu0 %v241
  %v513 = vpop.f32.mrf.mxu0
  %v514 = vadd.f32 0.0, %v513
  %v515 = vpop.f32.mrf.mxu0
  %v516 = vpop.f32.mrf.mxu0
  %v517 = vadd.f32 0.0, %v516
  %v518 = vpop.f32.mrf.mxu0
  %519 = vmatprep.mubr.bf16.mxu0 0
  %520 = vmatmul.mubr.bf16.gmra.mxu0 %v242
  %v521 = vpop.f32.mrf.mxu0
  %v522 = vadd.f32 0.0, %v521
  %v523 = vpop.f32.mrf.mxu0
  %v524 = vpop.f32.mrf.mxu0
  %v525 = vadd.f32 0.0, %v524
  %v526 = vpop.f32.mrf.mxu0
  %527 = vmatprep.mubr.bf16.mxu0 0
  %528 = vmatmul.mubr.bf16.gmra.mxu0 %v243
  %v529 = vpop.f32.mrf.mxu0
  %v530 = vadd.f32 0.0, %v529
  %v531 = vpop.f32.mrf.mxu0
  %v532 = vpop.f32.mrf.mxu0
  %v533 = vadd.f32 0.0, %v532
  %v534 = vpop.f32.mrf.mxu0
  %535 = vmatprep.mubr.bf16.mxu0 0
  %536 = vmatmul.mubr.bf16.gmra.mxu0 %v244
  %v537 = vpop.f32.mrf.mxu0
  %v538 = vadd.f32 0.0, %v537
  %v539 = vpop.f32.mrf.mxu0
  %v540 = vpop.f32.mrf.mxu0
  %v541 = vadd.f32 0.0, %v540
  %v542 = vpop.f32.mrf.mxu0
  %543 = vmatprep.mubr.bf16.mxu0 0
  %544 = vmatmul.mubr.bf16.gmra.mxu0 %v245
  %v545 = vpop.f32.mrf.mxu0
  %v546 = vadd.f32 0.0, %v545
  %v547 = vpop.f32.mrf.mxu0
  %v548 = vpop.f32.mrf.mxu0
  %v549 = vadd.f32 0.0, %v548
  %v550 = vpop.f32.mrf.mxu0
  %551 = vmatprep.mubr.bf16.mxu0 0
  %552 = vmatmul.mubr.bf16.gmra.mxu0 %v246
  %v553 = vpop.f32.mrf.mxu0
  %v554 = vadd.f32 0.0, %v553
  %v555 = vpop.f32.mrf.mxu0
  %v556 = vpop.f32.mrf.mxu0
  %v557 = vadd.f32 0.0, %v556
  %v558 = vpop.f32.mrf.mxu0
  %559 = vmatprep.mubr.bf16.mxu0 0
  %560 = vmatmul.mubr.bf16.gmra.mxu0 %v247
  %v561 = vpop.f32.mrf.mxu0
  %v562 = vadd.f32 0.0, %v561
  %v563 = vpop.f32.mrf.mxu0
  %v564 = vpop.f32.mrf.mxu0
  %v565 = vadd.f32 0.0, %v564
  %v566 = vpop.f32.mrf.mxu0
  %567 = vmatprep.mubr.bf16.mxu0 0
  %568 = vmatmul.mubr.bf16.gmra.mxu0 %v248
  %v569 = vpop.f32.mrf.mxu0
  %v570 = vadd.f32 0.0, %v569
  %v571 = vpop.f32.mrf.mxu0
  %v572 = vpop.f32.mrf.mxu0
  %v573 = vadd.f32 0.0, %v572
  %v574 = vpop.f32.mrf.mxu0
  %575 = vmatprep.mubr.bf16.mxu0 0
  %576 = vmatmul.mubr.bf16.gmra.mxu0 %v249
  %v577 = vpop.f32.mrf.mxu0
  %v578 = vadd.f32 0.0, %v577
  %v579 = vpop.f32.mrf.mxu0
  %v580 = vpop.f32.mrf.mxu0
  %v581 = vadd.f32 0.0, %v580
  %v582 = vpop.f32.mrf.mxu0
  %583 = vmatprep.mubr.bf16.mxu0 0
  %584 = vmatmul.mubr.bf16.gmra.mxu0 %v250
  %v585 = vpop.f32.mrf.mxu0
  %v586 = vadd.f32 0.0, %v585
  %v587 = vpop.f32.mrf.mxu0
  %v588 = vpop.f32.mrf.mxu0
  %v589 = vadd.f32 0.0, %v588
  %v590 = vpop.f32.mrf.mxu0
  %591 = vmatprep.mubr.bf16.mxu0 0
  %592 = vmatmul.mubr.bf16.gmra.mxu0 %v251
  %v593 = vpop.f32.mrf.mxu0
  %v594 = vadd.f32 0.0, %v593
  %v595 = vpop.f32.mrf.mxu0
  %v596 = vpop.f32.mrf.mxu0
  %v597 = vadd.f32 0.0, %v596
  %v598 = vpop.f32.mrf.mxu0
  %599 = vmatprep.mubr.bf16.mxu0 0
  %600 = vmatmul.mubr.bf16.gmra.mxu0 %v252
  %v601 = vpop.f32.mrf.mxu0
  %v602 = vadd.f32 0.0, %v601
  %v603 = vpop.f32.mrf.mxu0
  %v604 = vpop.f32.mrf.mxu0
  %v605 = vadd.f32 0.0, %v604
  %v606 = vpop.f32.mrf.mxu0
  %607 = vmatprep.mubr.bf16.mxu0 0
  %608 = vmatmul.mubr.bf16.gmra.mxu0 %v253
  %v609 = vpop.f32.mrf.mxu0
  %v610 = vadd.f32 0.0, %v609
  %v611 = vpop.f32.mrf.mxu0
  %v612 = vpop.f32.mrf.mxu0
  %v613 = vadd.f32 0.0, %v612
  %v614 = vpop.f32.mrf.mxu0
  %615 = vmatprep.mubr.bf16.mxu0 0
  %616 = vmatmul.mubr.bf16.gmra.mxu0 %v254
  %v617 = vpop.f32.mrf.mxu0
  %v618 = vadd.f32 0.0, %v617
  %v619 = vpop.f32.mrf.mxu0
  %v620 = vpop.f32.mrf.mxu0
  %v621 = vadd.f32 0.0, %v620
  %v622 = vpop.f32.mrf.mxu0
  %623 = vdwg.mxu0
  %v624 = vadd.f32 %v370, %v373
  %v625 = vadd.f32 %v624, %v378
  %v626 = vadd.f32 %v625, %v381
  %v627 = vadd.f32 %v626, %v386
  %v628 = vadd.f32 %v627, %v389
  %v629 = vadd.f32 %v628, %v394
  %v630 = vadd.f32 %v629, %v397
  %v631 = vadd.f32 %v630, %v402
  %v632 = vadd.f32 %v631, %v405
  %v633 = vadd.f32 %v632, %v410
  %v634 = vadd.f32 %v633, %v413
  %v635 = vadd.f32 %v634, %v418
  %v636 = vadd.f32 %v635, %v421
  %v637 = vadd.f32 %v636, %v426
  %v638 = vadd.f32 %v637, %v429
  %v639 = vadd.f32 %v638, %v434
  %v640 = vadd.f32 %v639, %v437
  %v641 = vadd.f32 %v640, %v442
  %v642 = vadd.f32 %v641, %v445
  %v643 = vadd.f32 %v642, %v450
  %v644 = vadd.f32 %v643, %v453
  %v645 = vadd.f32 %v644, %v458
  %v646 = vadd.f32 %v645, %v461
  %v647 = vadd.f32 %v646, %v466
  %v648 = vadd.f32 %v647, %v469
  %v649 = vadd.f32 %v648, %v474
  %v650 = vadd.f32 %v649, %v477
  %v651 = vadd.f32 %v650, %v482
  %v652 = vadd.f32 %v651, %v485
  %v653 = vadd.f32 %v652, %v490
  %v654 = vadd.f32 %v653, %v493
  %v655 = vadd.f32 %v654, %v498
  %v656 = vadd.f32 %v655, %v501
  %v657 = vadd.f32 %v656, %v506
  %v658 = vadd.f32 %v657, %v509
  %v659 = vadd.f32 %v658, %v514
  %v660 = vadd.f32 %v659, %v517
  %v661 = vadd.f32 %v660, %v522
  %v662 = vadd.f32 %v661, %v525
  %v663 = vadd.f32 %v662, %v530
  %v664 = vadd.f32 %v663, %v533
  %v665 = vadd.f32 %v664, %v538
  %v666 = vadd.f32 %v665, %v541
  %v667 = vadd.f32 %v666, %v546
  %v668 = vadd.f32 %v667, %v549
  %v669 = vadd.f32 %v668, %v554
  %v670 = vadd.f32 %v669, %v557
  %v671 = vadd.f32 %v670, %v562
  %v672 = vadd.f32 %v671, %v565
  %v673 = vadd.f32 %v672, %v570
  %v674 = vadd.f32 %v673, %v573
  %v675 = vadd.f32 %v674, %v578
  %v676 = vadd.f32 %v675, %v581
  %v677 = vadd.f32 %v676, %v586
  %v678 = vadd.f32 %v677, %v589
  %v679 = vadd.f32 %v678, %v594
  %v680 = vadd.f32 %v679, %v597
  %v681 = vadd.f32 %v680, %v602
  %v682 = vadd.f32 %v681, %v605
  %v683 = vadd.f32 %v682, %v610
  %v684 = vadd.f32 %v683, %v613
  %v685 = vadd.f32 %v684, %v618
  %v686 = vadd.f32 %v685, %v621
  %v687 = vrot.slane %v686, 4
  %v688 = vadd.f32 %v686, %v687
  %v689 = vrot.slane %v688, 2
  %v690 = vadd.f32 %v688, %v689
  %v691 = vrot.slane %v690, 1
  %v692 = vadd.f32 %v690, %v691
  %693 = vst [vmem:[%s3] sm:$0x1] %v692
  %v694 = vmul.f32 %v370, %v370
  %v695 = vmul.f32 %v373, %v373
  %v696 = vmul.f32 %v378, %v378
  %v697 = vmul.f32 %v381, %v381
  %v698 = vmul.f32 %v386, %v386
  %v699 = vmul.f32 %v389, %v389
  %v700 = vmul.f32 %v394, %v394
  %v701 = vmul.f32 %v397, %v397
  %v702 = vmul.f32 %v402, %v402
  %v703 = vmul.f32 %v405, %v405
  %v704 = vmul.f32 %v410, %v410
  %v705 = vmul.f32 %v413, %v413
  %v706 = vmul.f32 %v418, %v418
  %v707 = vmul.f32 %v421, %v421
  %v708 = vmul.f32 %v426, %v426
  %v709 = vmul.f32 %v429, %v429
  %v710 = vmul.f32 %v434, %v434
  %v711 = vmul.f32 %v437, %v437
  %v712 = vmul.f32 %v442, %v442
  %v713 = vmul.f32 %v445, %v445
  %v714 = vmul.f32 %v450, %v450
  %v715 = vmul.f32 %v453, %v453
  %v716 = vmul.f32 %v458, %v458
  %v717 = vmul.f32 %v461, %v461
  %v718 = vmul.f32 %v466, %v466
  %v719 = vmul.f32 %v469, %v469
  %v720 = vmul.f32 %v474, %v474
  %v721 = vmul.f32 %v477, %v477
  %v722 = vmul.f32 %v482, %v482
  %v723 = vmul.f32 %v485, %v485
  %v724 = vmul.f32 %v490, %v490
  %v725 = vmul.f32 %v493, %v493
  %v726 = vmul.f32 %v498, %v498
  %v727 = vmul.f32 %v501, %v501
  %v728 = vmul.f32 %v506, %v506
  %v729 = vmul.f32 %v509, %v509
  %v730 = vmul.f32 %v514, %v514
  %v731 = vmul.f32 %v517, %v517
  %v732 = vmul.f32 %v522, %v522
  %v733 = vmul.f32 %v525, %v525
  %v734 = vmul.f32 %v530, %v530
  %v735 = vmul.f32 %v533, %v533
  %v736 = vmul.f32 %v538, %v538
  %v737 = vmul.f32 %v541, %v541
  %v738 = vmul.f32 %v546, %v546
  %v739 = vmul.f32 %v549, %v549
  %v740 = vmul.f32 %v554, %v554
  %v741 = vmul.f32 %v557, %v557
  %v742 = vmul.f32 %v562, %v562
  %v743 = vmul.f32 %v565, %v565
  %v744 = vmul.f32 %v570, %v570
  %v745 = vmul.f32 %v573, %v573
  %v746 = vmul.f32 %v578, %v578
  %v747 = vmul.f32 %v581, %v581
  %v748 = vmul.f32 %v586, %v586
  %v749 = vmul.f32 %v589, %v589
  %v750 = vmul.f32 %v594, %v594
  %v751 = vmul.f32 %v597, %v597
  %v752 = vmul.f32 %v602, %v602
  %v753 = vmul.f32 %v605, %v605
  %v754 = vmul.f32 %v610, %v610
  %v755 = vmul.f32 %v613, %v613
  %v756 = vmul.f32 %v618, %v618
  %v757 = vmul.f32 %v621, %v621
  %v758 = vadd.f32 %v694, %v695
  %v759 = vadd.f32 %v758, %v696
  %v760 = vadd.f32 %v759, %v697
  %v761 = vadd.f32 %v760, %v698
  %v762 = vadd.f32 %v761, %v699
  %v763 = vadd.f32 %v762, %v700
  %v764 = vadd.f32 %v763, %v701
  %v765 = vadd.f32 %v764, %v702
  %v766 = vadd.f32 %v765, %v703
  %v767 = vadd.f32 %v766, %v704
  %v768 = vadd.f32 %v767, %v705
  %v769 = vadd.f32 %v768, %v706
  %v770 = vadd.f32 %v769, %v707
  %v771 = vadd.f32 %v770, %v708
  %v772 = vadd.f32 %v771, %v709
  %v773 = vadd.f32 %v772, %v710
  %v774 = vadd.f32 %v773, %v711
  %v775 = vadd.f32 %v774, %v712
  %v776 = vadd.f32 %v775, %v713
  %v777 = vadd.f32 %v776, %v714
  %v778 = vadd.f32 %v777, %v715
  %v779 = vadd.f32 %v778, %v716
  %v780 = vadd.f32 %v779, %v717
  %v781 = vadd.f32 %v780, %v718
  %v782 = vadd.f32 %v781, %v719
  %v783 = vadd.f32 %v782, %v720
  %v784 = vadd.f32 %v783, %v721
  %v785 = vadd.f32 %v784, %v722
  %v786 = vadd.f32 %v785, %v723
  %v787 = vadd.f32 %v786, %v724
  %v788 = vadd.f32 %v787, %v725
  %v789 = vadd.f32 %v788, %v726
  %v790 = vadd.f32 %v789, %v727
  %v791 = vadd.f32 %v790, %v728
  %v792 = vadd.f32 %v791, %v729
  %v793 = vadd.f32 %v792, %v730
  %v794 = vadd.f32 %v793, %v731
  %v795 = vadd.f32 %v794, %v732
  %v796 = vadd.f32 %v795, %v733
  %v797 = vadd.f32 %v796, %v734
  %v798 = vadd.f32 %v797, %v735
  %v799 = vadd.f32 %v798, %v736
  %v800 = vadd.f32 %v799, %v737
  %v801 = vadd.f32 %v800, %v738
  %v802 = vadd.f32 %v801, %v739
  %v803 = vadd.f32 %v802, %v740
  %v804 = vadd.f32 %v803, %v741
  %v805 = vadd.f32 %v804, %v742
  %v806 = vadd.f32 %v805, %v743
  %v807 = vadd.f32 %v806, %v744
  %v808 = vadd.f32 %v807, %v745
  %v809 = vadd.f32 %v808, %v746
  %v810 = vadd.f32 %v809, %v747
  %v811 = vadd.f32 %v810, %v748
  %v812 = vadd.f32 %v811, %v749
  %v813 = vadd.f32 %v812, %v750
  %v814 = vadd.f32 %v813, %v751
  %v815 = vadd.f32 %v814, %v752
  %v816 = vadd.f32 %v815, %v753
  %v817 = vadd.f32 %v816, %v754
  %v818 = vadd.f32 %v817, %v755
  %v819 = vadd.f32 %v818, %v756
  %v820 = vadd.f32 %v819, %v757
  %v821 = vrot.slane %v820, 4
  %v822 = vadd.f32 %v820, %v821
  %v823 = vrot.slane %v822, 2
  %v824 = vadd.f32 %v822, %v823
  %v825 = vrot.slane %v824, 1
  %v826 = vadd.f32 %v824, %v825
  %827 = vst [vmem:[%s4] sm:$0x1] %v826
  %v828 = vpack.c.bf16 %v373, %v370
  %v829 = vpack.c.bf16 %v381, %v378
  %v830 = vpack.c.bf16 %v389, %v386
  %v831 = vpack.c.bf16 %v397, %v394
  %v832 = vpack.c.bf16 %v405, %v402
  %v833 = vpack.c.bf16 %v413, %v410
  %v834 = vpack.c.bf16 %v421, %v418
  %v835 = vpack.c.bf16 %v429, %v426
  %v836 = vpack.c.bf16 %v437, %v434
  %v837 = vpack.c.bf16 %v445, %v442
  %v838 = vpack.c.bf16 %v453, %v450
  %v839 = vpack.c.bf16 %v461, %v458
  %v840 = vpack.c.bf16 %v469, %v466
  %v841 = vpack.c.bf16 %v477, %v474
  %v842 = vpack.c.bf16 %v485, %v482
  %v843 = vpack.c.bf16 %v493, %v490
  %v844 = vpack.c.bf16 %v501, %v498
  %v845 = vpack.c.bf16 %v509, %v506
  %v846 = vpack.c.bf16 %v517, %v514
  %v847 = vpack.c.bf16 %v525, %v522
  %v848 = vpack.c.bf16 %v533, %v530
  %v849 = vpack.c.bf16 %v541, %v538
  %v850 = vpack.c.bf16 %v549, %v546
  %v851 = vpack.c.bf16 %v557, %v554
  %v852 = vpack.c.bf16 %v565, %v562
  %v853 = vpack.c.bf16 %v573, %v570
  %v854 = vpack.c.bf16 %v581, %v578
  %v855 = vpack.c.bf16 %v589, %v586
  %v856 = vpack.c.bf16 %v597, %v594
  %v857 = vpack.c.bf16 %v605, %v602
  %v858 = vpack.c.bf16 %v613, %v610
  %v859 = vpack.c.bf16 %v621, %v618
  %v892 = vunpack.c.l.b16 %v828
  %v893 = vunpack.c.h.b16 %v828
  %v894 = vunpack.c.l.b16 %v829
  %v895 = vunpack.c.h.b16 %v829
  %v896 = vunpack.c.l.b16 %v830
  %v897 = vunpack.c.h.b16 %v830
  %v898 = vunpack.c.l.b16 %v831
  %v899 = vunpack.c.h.b16 %v831
  %v900 = vunpack.c.l.b16 %v832
  %v901 = vunpack.c.h.b16 %v832
  %v902 = vunpack.c.l.b16 %v833
  %v903 = vunpack.c.h.b16 %v833
  %v904 = vunpack.c.l.b16 %v834
  %v905 = vunpack.c.h.b16 %v834
  %v906 = vunpack.c.l.b16 %v835
  %v907 = vunpack.c.h.b16 %v835
  %v908 = vunpack.c.l.b16 %v836
  %v909 = vunpack.c.h.b16 %v836
  %v910 = vunpack.c.l.b16 %v837
  %v911 = vunpack.c.h.b16 %v837
  %v912 = vunpack.c.l.b16 %v838
  %v913 = vunpack.c.h.b16 %v838
  %v914 = vunpack.c.l.b16 %v839
  %v915 = vunpack.c.h.b16 %v839
  %v916 = vunpack.c.l.b16 %v840
  %v917 = vunpack.c.h.b16 %v840
  %v918 = vunpack.c.l.b16 %v841
  %v919 = vunpack.c.h.b16 %v841
  %v920 = vunpack.c.l.b16 %v842
  %v921 = vunpack.c.h.b16 %v842
  %v922 = vunpack.c.l.b16 %v843
  %v923 = vunpack.c.h.b16 %v843
  %v924 = vunpack.c.l.b16 %v844
  %v925 = vunpack.c.h.b16 %v844
  %v926 = vunpack.c.l.b16 %v845
  %v927 = vunpack.c.h.b16 %v845
  %v928 = vunpack.c.l.b16 %v846
  %v929 = vunpack.c.h.b16 %v846
  %v930 = vunpack.c.l.b16 %v847
  %v931 = vunpack.c.h.b16 %v847
  %v932 = vunpack.c.l.b16 %v848
  %v933 = vunpack.c.h.b16 %v848
  %v934 = vunpack.c.l.b16 %v849
  %v935 = vunpack.c.h.b16 %v849
  %v936 = vunpack.c.l.b16 %v850
  %v937 = vunpack.c.h.b16 %v850
  %v938 = vunpack.c.l.b16 %v851
  %v939 = vunpack.c.h.b16 %v851
  %v940 = vunpack.c.l.b16 %v852
  %v941 = vunpack.c.h.b16 %v852
  %v942 = vunpack.c.l.b16 %v853
  %v943 = vunpack.c.h.b16 %v853
  %v944 = vunpack.c.l.b16 %v854
  %v945 = vunpack.c.h.b16 %v854
  %v946 = vunpack.c.l.b16 %v855
  %v947 = vunpack.c.h.b16 %v855
  %v948 = vunpack.c.l.b16 %v856
  %v949 = vunpack.c.h.b16 %v856
  %v950 = vunpack.c.l.b16 %v857
  %v951 = vunpack.c.h.b16 %v857
  %v952 = vunpack.c.l.b16 %v858
  %v953 = vunpack.c.h.b16 %v858
  %v954 = vunpack.c.l.b16 %v859
  %v955 = vunpack.c.h.b16 %v859
  %v956 = vpack.c.b16 %v892, %v892
  %v957 = vpack.c.b16 %v893, %v893
  %v958 = vpack.c.b16 %v894, %v894
  %v959 = vpack.c.b16 %v895, %v895
  %v960 = vpack.c.b16 %v896, %v896
  %v961 = vpack.c.b16 %v897, %v897
  %v962 = vpack.c.b16 %v898, %v898
  %v963 = vpack.c.b16 %v899, %v899
  %v964 = vpack.c.b16 %v900, %v900
  %v965 = vpack.c.b16 %v901, %v901
  %v966 = vpack.c.b16 %v902, %v902
  %v967 = vpack.c.b16 %v903, %v903
  %v968 = vpack.c.b16 %v904, %v904
  %v969 = vpack.c.b16 %v905, %v905
  %v970 = vpack.c.b16 %v906, %v906
  %v971 = vpack.c.b16 %v907, %v907
  %v972 = vpack.c.b16 %v908, %v908
  %v973 = vpack.c.b16 %v909, %v909
  %v974 = vpack.c.b16 %v910, %v910
  %v975 = vpack.c.b16 %v911, %v911
  %v976 = vpack.c.b16 %v912, %v912
  %v977 = vpack.c.b16 %v913, %v913
  %v978 = vpack.c.b16 %v914, %v914
  %v979 = vpack.c.b16 %v915, %v915
  %v980 = vpack.c.b16 %v916, %v916
  %v981 = vpack.c.b16 %v917, %v917
  %v982 = vpack.c.b16 %v918, %v918
  %v983 = vpack.c.b16 %v919, %v919
  %v984 = vpack.c.b16 %v920, %v920
  %v985 = vpack.c.b16 %v921, %v921
  %v986 = vpack.c.b16 %v922, %v922
  %v987 = vpack.c.b16 %v923, %v923
  %v988 = vpack.c.b16 %v924, %v924
  %v989 = vpack.c.b16 %v925, %v925
  %v990 = vpack.c.b16 %v926, %v926
  %v991 = vpack.c.b16 %v927, %v927
  %v992 = vpack.c.b16 %v928, %v928
  %v993 = vpack.c.b16 %v929, %v929
  %v994 = vpack.c.b16 %v930, %v930
  %v995 = vpack.c.b16 %v931, %v931
  %v996 = vpack.c.b16 %v932, %v932
  %v997 = vpack.c.b16 %v933, %v933
  %v998 = vpack.c.b16 %v934, %v934
  %v999 = vpack.c.b16 %v935, %v935
  %v1000 = vpack.c.b16 %v936, %v936
  %v1001 = vpack.c.b16 %v937, %v937
  %v1002 = vpack.c.b16 %v938, %v938
  %v1003 = vpack.c.b16 %v939, %v939
  %v1004 = vpack.c.b16 %v940, %v940
  %v1005 = vpack.c.b16 %v941, %v941
  %v1006 = vpack.c.b16 %v942, %v942
  %v1007 = vpack.c.b16 %v943, %v943
  %v1008 = vpack.c.b16 %v944, %v944
  %v1009 = vpack.c.b16 %v945, %v945
  %v1010 = vpack.c.b16 %v946, %v946
  %v1011 = vpack.c.b16 %v947, %v947
  %v1012 = vpack.c.b16 %v948, %v948
  %v1013 = vpack.c.b16 %v949, %v949
  %v1014 = vpack.c.b16 %v950, %v950
  %v1015 = vpack.c.b16 %v951, %v951
  %v1016 = vpack.c.b16 %v952, %v952
  %v1017 = vpack.c.b16 %v953, %v953
  %v1018 = vpack.c.b16 %v954, %v954
  %v1019 = vpack.c.b16 %v955, %v955
  %1084 = vst [vmem:[%s2] sm:$0xf] %v956
  %1085 = vst [vmem:[%s2 + $0x4] sm:$0xf] %v957
  %1086 = vst [vmem:[%s2 + $0x8] sm:$0xf] %v958
  %1087 = vst [vmem:[%s2 + $0xc] sm:$0xf] %v959
  %1088 = vst [vmem:[%s2 + $0x10] sm:$0xf] %v960
  %1089 = vst [vmem:[%s2 + $0x14] sm:$0xf] %v961
  %1090 = vst [vmem:[%s2 + $0x18] sm:$0xf] %v962
  %1091 = vst [vmem:[%s2 + $0x1c] sm:$0xf] %v963
  %1092 = vst [vmem:[%s2 + $0x20] sm:$0xf] %v964
  %1093 = vst [vmem:[%s2 + $0x24] sm:$0xf] %v965
  %1094 = vst [vmem:[%s2 + $0x28] sm:$0xf] %v966
  %1095 = vst [vmem:[%s2 + $0x2c] sm:$0xf] %v967
  %1096 = vst [vmem:[%s2 + $0x30] sm:$0xf] %v968
  %1097 = vst [vmem:[%s2 + $0x34] sm:$0xf] %v969
  %1098 = vst [vmem:[%s2 + $0x38] sm:$0xf] %v970
  %1099 = vst [vmem:[%s2 + $0x3c] sm:$0xf] %v971
  %1100 = vst [vmem:[%s2 + $0x40] sm:$0xf] %v972
  %1101 = vst [vmem:[%s2 + $0x44] sm:$0xf] %v973
  %1102 = vst [vmem:[%s2 + $0x48] sm:$0xf] %v974
  %1103 = vst [vmem:[%s2 + $0x4c] sm:$0xf] %v975
  %1104 = vst [vmem:[%s2 + $0x50] sm:$0xf] %v976
  %1105 = vst [vmem:[%s2 + $0x54] sm:$0xf] %v977
  %1106 = vst [vmem:[%s2 + $0x58] sm:$0xf] %v978
  %1107 = vst [vmem:[%s2 + $0x5c] sm:$0xf] %v979
  %1108 = vst [vmem:[%s2 + $0x60] sm:$0xf] %v980
  %1109 = vst [vmem:[%s2 + $0x64] sm:$0xf] %v981
  %1110 = vst [vmem:[%s2 + $0x68] sm:$0xf] %v982
  %1111 = vst [vmem:[%s2 + $0x6c] sm:$0xf] %v983
  %1112 = vst [vmem:[%s2 + $0x70] sm:$0xf] %v984
  %1113 = vst [vmem:[%s2 + $0x74] sm:$0xf] %v985
  %1114 = vst [vmem:[%s2 + $0x78] sm:$0xf] %v986
  %1115 = vst [vmem:[%s2 + $0x7c] sm:$0xf] %v987
  %1116 = vst [vmem:[%s2 + $0x80] sm:$0xf] %v988
  %1117 = vst [vmem:[%s2 + $0x84] sm:$0xf] %v989
  %1118 = vst [vmem:[%s2 + $0x88] sm:$0xf] %v990
  %1119 = vst [vmem:[%s2 + $0x8c] sm:$0xf] %v991
  %1120 = vst [vmem:[%s2 + $0x90] sm:$0xf] %v992
  %1121 = vst [vmem:[%s2 + $0x94] sm:$0xf] %v993
  %1122 = vst [vmem:[%s2 + $0x98] sm:$0xf] %v994
  %1123 = vst [vmem:[%s2 + $0x9c] sm:$0xf] %v995
  %1124 = vst [vmem:[%s2 + $0xa0] sm:$0xf] %v996
  %1125 = vst [vmem:[%s2 + $0xa4] sm:$0xf] %v997
  %1126 = vst [vmem:[%s2 + $0xa8] sm:$0xf] %v998
  %1127 = vst [vmem:[%s2 + $0xac] sm:$0xf] %v999
  %1128 = vst [vmem:[%s2 + $0xb0] sm:$0xf] %v1000
  %1129 = vst [vmem:[%s2 + $0xb4] sm:$0xf] %v1001
  %1130 = vst [vmem:[%s2 + $0xb8] sm:$0xf] %v1002
  %1131 = vst [vmem:[%s2 + $0xbc] sm:$0xf] %v1003
  %1132 = vst [vmem:[%s2 + $0xc0] sm:$0xf] %v1004
  %1133 = vst [vmem:[%s2 + $0xc4] sm:$0xf] %v1005
  %1134 = vst [vmem:[%s2 + $0xc8] sm:$0xf] %v1006
  %1135 = vst [vmem:[%s2 + $0xcc] sm:$0xf] %v1007
  %1136 = vst [vmem:[%s2 + $0xd0] sm:$0xf] %v1008
  %1137 = vst [vmem:[%s2 + $0xd4] sm:$0xf] %v1009
  %1138 = vst [vmem:[%s2 + $0xd8] sm:$0xf] %v1010
  %1139 = vst [vmem:[%s2 + $0xdc] sm:$0xf] %v1011
  %1140 = vst [vmem:[%s2 + $0xe0] sm:$0xf] %v1012
  %1141 = vst [vmem:[%s2 + $0xe4] sm:$0xf] %v1013
  %1142 = vst [vmem:[%s2 + $0xe8] sm:$0xf] %v1014
  %1143 = vst [vmem:[%s2 + $0xec] sm:$0xf] %v1015
  %1144 = vst [vmem:[%s2 + $0xf0] sm:$0xf] %v1016
  %1145 = vst [vmem:[%s2 + $0xf4] sm:$0xf] %v1017
  %1146 = vst [vmem:[%s2 + $0xf8] sm:$0xf] %v1018
  %1147 = vst [vmem:[%s2 + $0xfc] sm:$0xf] %v1019
  // Predicated region
  $region10: #{basic_block_forward.6} parent=0 // pred_check
    _
  $region11: #{basic_block_forward.6} parent=0 // pred_check_branch
    %1149 = sbr.rel (0) target = $region13
  $region12: #{basic_block_forward.6} parent=0 // pred_region
    _
  $region13: #{basic_block_forward.6} parent=0 // pred_fallthru
    _
  // Predicated region
  $region14: #{basic_block_forward.6} parent=0 // pred_check
    _
  $region15: #{basic_block_forward.6} parent=0 // pred_check_branch
    %1151 = sbr.rel (0) target = $region17
  $region16: #{basic_block_forward.6} parent=0 // pred_region
    _
  $region17: #{basic_block_forward.6} parent=0 // pred_fallthru
    _
  // Predicated region
  $region18: #{basic_block_forward.6} parent=0 // pred_check
    _
  $region19: #{basic_block_forward.6} parent=0 // pred_check_branch
    %1153 = sbr.rel (0) target = $region21
  $region20: #{basic_block_forward.6} parent=0 // pred_region
    _
  $region21: #{basic_block_forward.6} parent=0 // pred_fallthru
    _
  // Predicated region
  $region22: #{basic_block_forward.6} parent=0 // pred_check
    _
  $region23: #{basic_block_forward.6} parent=0 // pred_check_branch
    %1155 = sbr.rel (0) target = $region25
  $region24: #{basic_block_forward.6} parent=0 // pred_region
    _
  $region25: #{basic_block_forward.6} parent=0 // pred_fallthru
    _
  // Predicated region
  $region26: #{basic_block_forward.6} parent=0 // pred_check
    _
  $region27: #{basic_block_forward.6} parent=0 // pred_check_branch
    %1157 = sbr.rel (0) target = $region29
  $region28: #{basic_block_forward.6} parent=0 // pred_region
    _
  $region29: #{basic_block_forward.6} parent=0 // pred_fallthru
    _
  // Predicated region
  $region30: #{basic_block_forward.6} parent=0 // pred_check
    _
  $region31: #{basic_block_forward.6} parent=0 // pred_check_branch
    %1159 = sbr.rel (0) target = $region33
  $region32: #{basic_block_forward.6} parent=0 // pred_region
    _
  $region33: #{basic_block_forward.6} parent=0 // pred_fallthru
    _

// kernel: basic_block_forward.4
$region0: #{basic_block_forward.4}
  #allocation0 [shape = 'u32[]', space=smem, size = 0x4, offset = 0x4, fixed_abs, tag = 'smem constant byte address 0x4 - core index']
  #allocation1 [shape = 'u32[144,128]{1,0:T(1,128)}', space=vmem, size = 0x12000, scoped, tag = 'internal scratch']
  #allocation2 [shape = 'bf16[18,18,128]{2,1,0:T(8,128)(2,1)}', space=vmem, size = 0x1b000, scoped, tag = 'scratch operand']
  %s0 = inlined_call_operand.vmem [shape: bf16[2,16,16,128], index: 0, kind: input, shape index: {}]
  %s1 = inlined_call_operand.vmem [shape: bf16[9,128,128], index: 1, kind: input, shape index: {}]
  %s2 = inlined_call_operand.vmem [shape: bf16[2,16,16,128], index: 2, kind: output, shape index: {0}]
  %s3 = inlined_call_operand.vmem [shape: f32[2,1,128], index: 3, kind: output, shape index: {1}]
  %s4 = inlined_call_operand.vmem [shape: f32[2,1,128], index: 4, kind: output, shape index: {2}]
  %5 = xla_tuple %s2, %s3, %s4
  %s6 = sld [smem:[#allocation0]]
  $region57: #{basic_block_forward.4} parent=0
    _
  %s8 = ssub.s32 1, %s6
  %s9 = scalar_select 0, %s8, %s6
  loop: start=0, step=1, limit=4
  $region2: #{basic_block_forward.4} parent=0 // loop_pre_header
    _
  $region3: #{basic_block_forward.4} parent=0 // loop_header
    %s11 = sphi 0, %s15
    %p12 = scmp.ge.s32.totalorder %s11, 4
    %s21 = sphi 0, %s23
    %s24 = sphi 0, %s21
    %s25 = sphi 0, %s24
    %s41 = sphi 0, %s25
    %s45 = sphi 0, %s45
    %s47 = sphi 0, %s45
    %s48 = sphi 0, %s47
    %s62 = sphi 0, %s48
    %s68 = sphi 0, %s70
    %s71 = sphi 0, %s68
    %s72 = sphi 0, %s71
    %s88 = sphi 0, %s72
    %s94 = sphi 0, %s96
    %s97 = sphi 0, %s94
    %s98 = sphi 0, %s97
    %s114 = sphi 0, %s98
    %s120 = sphi 0, %s122
    %s123 = sphi 0, %s120
    %s124 = sphi 0, %s123
    %s140 = sphi 0, %s124
  $region4: #{basic_block_forward.4} parent=0 // loop_header_branch
    %14 = sbr.rel (%p12) target = $region8
  $region5: #{basic_block_forward.4} parent=0 // loop_body
    %s16 = ssub.s32 %s11, 1
    %s17 = ssub.s32 %s11, 2
    %s18 = sadd.s32 %s11, 1
    %s19 = ssub.s32 %s11, %s18
    %p20 = scmp.eq.s32.totalorder %s19, 0
    %s22 = sadd.s32 %s21, 1
    %s23 = scalar_select %p20, %s21, %s22
    %p26 = pneg %p20
    %p27 = scmp.eq.s32.totalorder %s11, 1
    %p28 = por %p26, %p27
    %p29 = scmp.ne.s32.totalorder %s21, %s24
    %p30 = scmp.eq.s32.totalorder %s11, 0
    %p31 = por %p29, %p30
    %p32 = scmp.ne.s32.totalorder %s21, %s24
    %p33 = scmp.eq.s32.totalorder %s16, 1
    %p34 = por %p32, %p33
    %p35 = scmp.ne.s32.totalorder %s24, %s25
    %p36 = scmp.eq.s32.totalorder %s16, 0
    %p37 = por %p35, %p36
    %p38 = scmp.ne.s32.totalorder %s24, %s25
    %p39 = scmp.eq.s32.totalorder %s17, 1
    %p40 = por %p38, %p39
    %p42 = scmp.ne.s32.totalorder %s25, %s41
    %p43 = scmp.eq.s32.totalorder %s17, 0
    %p44 = por %p42, %p43
    %s46 = sadd.s32 %s45, 1
    %p49 = scmp.eq.s32.totalorder %s11, 1
    %p50 = scmp.ne.s32.totalorder %s45, %s47
    %p51 = scmp.eq.s32.totalorder %s11, 0
    %p52 = por %p50, %p51
    %p53 = scmp.ne.s32.totalorder %s45, %s47
    %p54 = scmp.eq.s32.totalorder %s16, 1
    %p55 = por %p53, %p54
    %p56 = scmp.ne.s32.totalorder %s47, %s48
    %p57 = scmp.eq.s32.totalorder %s16, 0
    %p58 = por %p56, %p57
    %p59 = scmp.ne.s32.totalorder %s47, %s48
    %p60 = scmp.eq.s32.totalorder %s17, 1
    %p61 = por %p59, %p60
    %p63 = scmp.ne.s32.totalorder %s48, %s62
    %p64 = scmp.eq.s32.totalorder %s17, 0
    %p65 = por %p63, %p64
    %s66 = ssub.s32 %s11, %s18
    %p67 = scmp.eq.s32.totalorder %s66, 0
    %s69 = sadd.s32 %s68, 1
    %s70 = scalar_select %p67, %s68, %s69
    %p73 = pneg %p67
    %p74 = scmp.eq.s32.totalorder %s11, 1
    %p75 = por %p73, %p74
    %p76 = scmp.ne.s32.totalorder %s68, %s71
    %p77 = scmp.eq.s32.totalorder %s11, 0
    %p78 = por %p76, %p77
    %p79 = scmp.ne.s32.totalorder %s68, %s71
    %p80 = scmp.eq.s32.totalorder %s16, 1
    %p81 = por %p79, %p80
    %p82 = scmp.ne.s32.totalorder %s71, %s72
    %p83 = scmp.eq.s32.totalorder %s16, 0
    %p84 = por %p82, %p83
    %p85 = scmp.ne.s32.totalorder %s71, %s72
    %p86 = scmp.eq.s32.totalorder %s17, 1
    %p87 = por %p85, %p86
    %p89 = scmp.ne.s32.totalorder %s72, %s88
    %p90 = scmp.eq.s32.totalorder %s17, 0
    %p91 = por %p89, %p90
    %s92 = ssub.s32 %s11, %s18
    %p93 = scmp.eq.s32.totalorder %s92, 0
    %s95 = sadd.s32 %s94, 1
    %s96 = scalar_select %p93, %s94, %s95
    %p99 = pneg %p93
    %p100 = scmp.eq.s32.totalorder %s11, 1
    %p101 = por %p99, %p100
    %p102 = scmp.ne.s32.totalorder %s94, %s97
    %p103 = scmp.eq.s32.totalorder %s11, 0
    %p104 = por %p102, %p103
    %p105 = scmp.ne.s32.totalorder %s94, %s97
    %p106 = scmp.eq.s32.totalorder %s16, 1
    %p107 = por %p105, %p106
    %p108 = scmp.ne.s32.totalorder %s97, %s98
    %p109 = scmp.eq.s32.totalorder %s16, 0
    %p110 = por %p108, %p109
    %p111 = scmp.ne.s32.totalorder %s97, %s98
    %p112 = scmp.eq.s32.totalorder %s17, 1
    %p113 = por %p111, %p112
    %p115 = scmp.ne.s32.totalorder %s98, %s114
    %p116 = scmp.eq.s32.totalorder %s17, 0
    %p117 = por %p115, %p116
    %s118 = ssub.s32 %s11, %s18
    %p119 = scmp.eq.s32.totalorder %s118, 0
    %s121 = sadd.s32 %s120, 1
    %s122 = scalar_select %p119, %s120, %s121
    %p125 = pneg %p119
    %p126 = scmp.eq.s32.totalorder %s11, 1
    %p127 = por %p125, %p126
    %p128 = scmp.ne.s32.totalorder %s120, %s123
    %p129 = scmp.eq.s32.totalorder %s11, 0
    %p130 = por %p128, %p129
    %p131 = scmp.ne.s32.totalorder %s120, %s123
    %p132 = scmp.eq.s32.totalorder %s16, 1
    %p133 = por %p131, %p132
    %p134 = scmp.ne.s32.totalorder %s123, %s124
    %p135 = scmp.eq.s32.totalorder %s16, 0
    %p136 = por %p134, %p135
    %p137 = scmp.ne.s32.totalorder %s123, %s124
    %p138 = scmp.eq.s32.totalorder %s17, 1
    %p139 = por %p137, %p138
    %p141 = scmp.ne.s32.totalorder %s124, %s140
    %p142 = scmp.eq.s32.totalorder %s17, 0
    %p143 = por %p141, %p142
    %p144 = scmp.le.s32.totalorder 1, %s11
    %p145 = scmp.lt.s32.totalorder %s11, 3
    %p146 = pnand %p144, %p145
    %p147 = pneg %p146
    // Predicated region
    $region9: #{basic_block_forward.4} parent=5 // pred_check
      _
    $region10: #{basic_block_forward.4} parent=5 // pred_check_branch
      %149 = sbr.rel (%p146) target = $region12
    $region11: #{basic_block_forward.4} parent=5 // pred_region
      %s150 = ssub.s32 %s11, 1
      // Predicated region
      $region13: #{basic_block_forward.4} parent=11 // pred_check
        %p151 = pneg %p58
      $region14: #{basic_block_forward.4} parent=11 // pred_check_branch
        %153 = sbr.rel (%p151) target = $region16
      $region15: #{basic_block_forward.4} parent=11 // pred_region
        _
      $region16: #{basic_block_forward.4} parent=11 // pred_fallthru
        _
    $region12: #{basic_block_forward.4} parent=5 // pred_fallthru
      _
    %p154 = scmp.lt.s32.totalorder %s11, 2
    // Predicated region
    $region17: #{basic_block_forward.4} parent=5 // pred_check
      %p155 = pneg %p154
    $region18: #{basic_block_forward.4} parent=5 // pred_check_branch
      %157 = sbr.rel (%p155) target = $region20
    $region19: #{basic_block_forward.4} parent=5 // pred_region
      // Predicated region
      $region21: #{basic_block_forward.4} parent=19 // pred_check
        %p158 = pneg %p31
      $region22: #{basic_block_forward.4} parent=19 // pred_check_branch
        %160 = sbr.rel (%p158) target = $region24
      $region23: #{basic_block_forward.4} parent=19 // pred_region
        %p161 = scmp.lt.s32.totalorder %s11, 1
        %s162 = scalar_select %p161, %s11, 1
        %s163 = smul.addr %s162, 32
        %s164 = smul.addr %s163, 4
        %s165 = scalar_lea.vmem %s0, %s164
      $region24: #{basic_block_forward.4} parent=19 // pred_fallthru
        _
    $region20: #{basic_block_forward.4} parent=5 // pred_fallthru
      _
    %p166 = scmp.le.s32.totalorder 1, %s11
    %p167 = scmp.lt.s32.totalorder %s11, 3
    %p168 = pnand %p166, %p167
    %p169 = pneg %p168
    // Predicated region
    $region25: #{basic_block_forward.4} parent=5 // pred_check
      _
    $region26: #{basic_block_forward.4} parent=5 // pred_check_branch
      %171 = sbr.rel (%p168) target = $region28
    $region27: #{basic_block_forward.4} parent=5 // pred_region
      %s172 = ssub.s32 %s11, 1
      %p173 = scmp.lt.s32.totalorder %s16, 1
      %s174 = scalar_select %p173, %s16, 1
      %s175 = smul.addr %s174, 32
      %s176 = smul.addr %s175, 4
      %s177 = scalar_lea.vmem %s0, %s176
      %p178 = pneg %p37
      %p179 = pneg %p34
      %p180 = pneg %p58
      %p181 = pneg %p55
      %p182 = pneg %p84
      %p183 = pneg %p81
      %p184 = scmp.lt.s32.totalorder %s16, 1
      %s185 = scalar_select %p184, %s16, 1
      %s186 = smul.addr %s185, 32
      %s187 = smul.addr %s186, 4
      %s188 = scalar_lea.vmem %s2, %s187
      %p189 = pneg %p110
      %p190 = pneg %p107
      %p191 = scmp.lt.s32.totalorder %s16, 1
      %s192 = scalar_select %p191, %s16, 1
      %s193 = scalar_lea.vmem %s3, %s192
      %p194 = pneg %p136
      %p195 = pneg %p133
      %p196 = scmp.lt.s32.totalorder %s16, 1
      %s197 = scalar_select %p196, %s16, 1
      %s198 = scalar_lea.vmem %s4, %s197
      %p199 = scmp.lt.s32.totalorder %s16, 1
      %s200 = scalar_select %p199, %s16, 1
      %s201 = smul.addr %s200, 32
      %s202 = smul.addr %s201, 4
      %s203 = scalar_lea.vmem %s0, %s202
      %p204 = scmp.lt.s32.totalorder %s16, 1
      %s205 = scalar_select %p204, %s16, 1
      %s206 = smul.addr %s205, 32
      %s207 = smul.addr %s206, 4
      %s208 = scalar_lea.vmem %s2, %s207
      %p209 = scmp.lt.s32.totalorder %s16, 1
      %s210 = scalar_select %p209, %s16, 1
      %s211 = scalar_lea.vmem %s3, %s210
      %p212 = scmp.lt.s32.totalorder %s16, 1
      %s213 = scalar_select %p212, %s16, 1
      %s214 = scalar_lea.vmem %s4, %s213
      %v216 = vld [vmem:[%s203] sm:$0xf]
      %v217 = vld [vmem:[%s203 + $0x4] sm:$0xf]
      %v218 = vld [vmem:[%s203 + $0x8] sm:$0xf]
      %v219 = vld [vmem:[%s203 + $0xc] sm:$0xf]
      %v220 = vld [vmem:[%s203 + $0x10] sm:$0xf]
      %v221 = vld [vmem:[%s203 + $0x14] sm:$0xf]
      %v222 = vld [vmem:[%s203 + $0x18] sm:$0xf]
      %v223 = vld [vmem:[%s203 + $0x1c] sm:$0xf]
      %v224 = vld [vmem:[%s203 + $0x20] sm:$0xf]
      %v225 = vld [vmem:[%s203 + $0x24] sm:$0xf]
      %v226 = vld [vmem:[%s203 + $0x28] sm:$0xf]
      %v227 = vld [vmem:[%s203 + $0x2c] sm:$0xf]
      %v228 = vld [vmem:[%s203 + $0x30] sm:$0xf]
      %v229 = vld [vmem:[%s203 + $0x34] sm:$0xf]
      %v230 = vld [vmem:[%s203 + $0x38] sm:$0xf]
      %v231 = vld [vmem:[%s203 + $0x3c] sm:$0xf]
      %v232 = vld [vmem:[%s203 + $0x40] sm:$0xf]
      %v233 = vld [vmem:[%s203 + $0x44] sm:$0xf]
      %v234 = vld [vmem:[%s203 + $0x48] sm:$0xf]
      %v235 = vld [vmem:[%s203 + $0x4c] sm:$0xf]
      %v236 = vld [vmem:[%s203 + $0x50] sm:$0xf]
      %v237 = vld [vmem:[%s203 + $0x54] sm:$0xf]
      %v238 = vld [vmem:[%s203 + $0x58] sm:$0xf]
      %v239 = vld [vmem:[%s203 + $0x5c] sm:$0xf]
      %v240 = vld [vmem:[%s203 + $0x60] sm:$0xf]
      %v241 = vld [vmem:[%s203 + $0x64] sm:$0xf]
      %v242 = vld [vmem:[%s203 + $0x68] sm:$0xf]
      %v243 = vld [vmem:[%s203 + $0x6c] sm:$0xf]
      %v244 = vld [vmem:[%s203 + $0x70] sm:$0xf]
      %v245 = vld [vmem:[%s203 + $0x74] sm:$0xf]
      %v246 = vld [vmem:[%s203 + $0x78] sm:$0xf]
      %v247 = vld [vmem:[%s203 + $0x7c] sm:$0xf]
      %248 = vst [vmem:[#allocation2] sm:$0xf] 0
      %249 = vst [vmem:[#allocation2 + $0x4] sm:$0xf] 0
      %250 = vst [vmem:[#allocation2 + $0x8] sm:$0x1] 0
      %251 = vst [vmem:[#allocation2 + $0xc] sm:$0xf] 0
      %252 = vst [vmem:[#allocation2 + $0x10] sm:$0xf] 0
      %253 = vst [vmem:[#allocation2 + $0x14] sm:$0x1] 0
      %254 = vst [vmem:[#allocation2 + $0x18] sm:$0xf] 0
      %255 = vst [vmem:[#allocation2 + $0x1c] sm:$0xf] 0
      %256 = vst [vmem:[#allocation2 + $0x20] sm:$0x1] 0
      %257 = vst [vmem:[#allocation2 + $0x24] sm:$0xf] 0
      %258 = vst [vmem:[#allocation2 + $0x28] sm:$0xf] 0
      %259 = vst [vmem:[#allocation2 + $0x2c] sm:$0x1] 0
      %260 = vst [vmem:[#allocation2 + $0x30] sm:$0xf] 0
      %261 = vst [vmem:[#allocation2 + $0x34] sm:$0xf] 0
      %262 = vst [vmem:[#allocation2 + $0x38] sm:$0x1] 0
      %263 = vst [vmem:[#allocation2 + $0x3c] sm:$0xf] 0
      %264 = vst [vmem:[#allocation2 + $0x40] sm:$0xf] 0
      %265 = vst [vmem:[#allocation2 + $0x44] sm:$0x1] 0
      %266 = vst [vmem:[#allocation2 + $0x48] sm:$0xf] 0
      %267 = vst [vmem:[#allocation2 + $0x4c] sm:$0xf] 0
      %268 = vst [vmem:[#allocation2 + $0x50] sm:$0x1] 0
      %269 = vst [vmem:[#allocation2 + $0x54] sm:$0xf] 0
      %270 = vst [vmem:[#allocation2 + $0x58] sm:$0xf] 0
      %271 = vst [vmem:[#allocation2 + $0x5c] sm:$0x1] 0
      %272 = vst [vmem:[#allocation2 + $0x60] sm:$0xf] 0
      %273 = vst [vmem:[#allocation2 + $0x64] sm:$0xf] 0
      %274 = vst [vmem:[#allocation2 + $0x68] sm:$0x1] 0
      %275 = vst [vmem:[#allocation2 + $0x6c] sm:$0xf] 0
      %276 = vst [vmem:[#allocation2 + $0x70] sm:$0xf] 0
      %277 = vst [vmem:[#allocation2 + $0x74] sm:$0x1] 0
      %278 = vst [vmem:[#allocation2 + $0x78] sm:$0xf] 0
      %279 = vst [vmem:[#allocation2 + $0x7c] sm:$0xf] 0
      %280 = vst [vmem:[#allocation2 + $0x80] sm:$0x1] 0
      %281 = vst [vmem:[#allocation2 + $0x84] sm:$0xf] 0
      %282 = vst [vmem:[#allocation2 + $0x88] sm:$0xf] 0
      %283 = vst [vmem:[#allocation2 + $0x8c] sm:$0x1] 0
      %284 = vst [vmem:[#allocation2 + $0x90] sm:$0xf] 0
      %285 = vst [vmem:[#allocation2 + $0x94] sm:$0xf] 0
      %286 = vst [vmem:[#allocation2 + $0x98] sm:$0x1] 0
      %287 = vst [vmem:[#allocation2 + $0x9c] sm:$0xf] 0
      %288 = vst [vmem:[#allocation2 + $0xa0] sm:$0xf] 0
      %289 = vst [vmem:[#allocation2 + $0xa4] sm:$0x1] 0
      %290 = vst [vmem:[#allocation2 + $0xa8] sm:$0xf] 0
      %291 = vst [vmem:[#allocation2 + $0xac] sm:$0xf] 0
      %292 = vst [vmem:[#allocation2 + $0xb0] sm:$0x1] 0
      %293 = vst [vmem:[#allocation2 + $0xb4] sm:$0xf] 0
      %294 = vst [vmem:[#allocation2 + $0xb8] sm:$0xf] 0
      %295 = vst [vmem:[#allocation2 + $0xbc] sm:$0x1] 0
      %296 = vst [vmem:[#allocation2 + $0xc0] sm:$0xf] 0
      %297 = vst [vmem:[#allocation2 + $0xc4] sm:$0xf] 0
      %298 = vst [vmem:[#allocation2 + $0xc8] sm:$0x1] 0
      %299 = vst [vmem:[#allocation2 + $0xcc] sm:$0xf] 0
      %300 = vst [vmem:[#allocation2 + $0xd0] sm:$0xf] 0
      %301 = vst [vmem:[#allocation2 + $0xd4] sm:$0x1] 0
      %vm302 = vsmask.f32 256
      %vm303 = vsmask.f32 4368
      %vm304 = vmor %vm302, %vm303
      %v306 = vshrl.u32 %v216, 16
      %v308 = vrot.slane %v306, 7
      %v309 = vshll.u32 %v216, 16
      %v311 = vor.u32 %v308, %v309
      %v312 = vrot.slane %v308, 4
      %v314 = vshrl.u32 %v217, 16
      %v316 = vrot.slane %v314, 7
      %v317 = vshll.u32 %v217, 16
      %v319 = vor.u32 %v316, %v317
      %v320 = vsel %vm304, %v312, %v319
      %v321 = vrot.slane %v316, 4
      %v323 = vshrl.u32 %v218, 16
      %v325 = vrot.slane %v323, 7
      %v326 = vshll.u32 %v218, 16
      %v328 = vor.u32 %v325, %v326
      %v329 = vrot.slane %v325, 4
      %v331 = vshrl.u32 %v219, 16
      %v333 = vrot.slane %v331, 7
      %v334 = vshll.u32 %v219, 16
      %v336 = vor.u32 %v333, %v334
      %v337 = vsel %vm304, %v329, %v336
      %v338 = vrot.slane %v333, 4
      %v340 = vshrl.u32 %v220, 16
      %v342 = vrot.slane %v340, 7
      %v343 = vshll.u32 %v220, 16
      %v345 = vor.u32 %v342, %v343
      %v346 = vrot.slane %v342, 4
      %v348 = vshrl.u32 %v221, 16
      %v350 = vrot.slane %v348, 7
      %v351 = vshll.u32 %v221, 16
      %v353 = vor.u32 %v350, %v351
      %v354 = vsel %vm304, %v346, %v353
      %v355 = vrot.slane %v350, 4
      %v357 = vshrl.u32 %v222, 16
      %v359 = vrot.slane %v357, 7
      %v360 = vshll.u32 %v222, 16
      %v362 = vor.u32 %v359, %v360
      %v363 = vrot.slane %v359, 4
      %v365 = vshrl.u32 %v223, 16
      %v367 = vrot.slane %v365, 7
      %v368 = vshll.u32 %v223, 16
      %v370 = vor.u32 %v367, %v368
      %v371 = vsel %vm304, %v363, %v370
      %v372 = vrot.slane %v367, 4
      %v374 = vshrl.u32 %v224, 16
      %v376 = vrot.slane %v374, 7
      %v377 = vshll.u32 %v224, 16
      %v379 = vor.u32 %v376, %v377
      %v380 = vrot.slane %v376, 4
      %v382 = vshrl.u32 %v225, 16
      %v384 = vrot.slane %v382, 7
      %v385 = vshll.u32 %v225, 16
      %v387 = vor.u32 %v384, %v385
      %v388 = vsel %vm304, %v380, %v387
      %v389 = vrot.slane %v384, 4
      %v391 = vshrl.u32 %v226, 16
      %v393 = vrot.slane %v391, 7
      %v394 = vshll.u32 %v226, 16
      %v396 = vor.u32 %v393, %v394
      %v397 = vrot.slane %v393, 4
      %v399 = vshrl.u32 %v227, 16
      %v401 = vrot.slane %v399, 7
      %v402 = vshll.u32 %v227, 16
      %v404 = vor.u32 %v401, %v402
      %v405 = vsel %vm304, %v397, %v404
      %v406 = vrot.slane %v401, 4
      %v408 = vshrl.u32 %v228, 16
      %v410 = vrot.slane %v408, 7
      %v411 = vshll.u32 %v228, 16
      %v413 = vor.u32 %v410, %v411
      %v414 = vrot.slane %v410, 4
      %v416 = vshrl.u32 %v229, 16
      %v418 = vrot.slane %v416, 7
      %v419 = vshll.u32 %v229, 16
      %v421 = vor.u32 %v418, %v419
      %v422 = vsel %vm304, %v414, %v421
      %v423 = vrot.slane %v418, 4
      %v425 = vshrl.u32 %v230, 16
      %v427 = vrot.slane %v425, 7
      %v428 = vshll.u32 %v230, 16
      %v430 = vor.u32 %v427, %v428
      %v431 = vrot.slane %v427, 4
      %v433 = vshrl.u32 %v231, 16
      %v435 = vrot.slane %v433, 7
      %v436 = vshll.u32 %v231, 16
      %v438 = vor.u32 %v435, %v436
      %v439 = vsel %vm304, %v431, %v438
      %v440 = vrot.slane %v435, 4
      %v442 = vshrl.u32 %v232, 16
      %v444 = vrot.slane %v442, 7
      %v445 = vshll.u32 %v232, 16
      %v447 = vor.u32 %v444, %v445
      %v448 = vrot.slane %v444, 4
      %v450 = vshrl.u32 %v233, 16
      %v452 = vrot.slane %v450, 7
      %v453 = vshll.u32 %v233, 16
      %v455 = vor.u32 %v452, %v453
      %v456 = vsel %vm304, %v448, %v455
      %v457 = vrot.slane %v452, 4
      %v459 = vshrl.u32 %v234, 16
      %v461 = vrot.slane %v459, 7
      %v462 = vshll.u32 %v234, 16
      %v464 = vor.u32 %v461, %v462
      %v465 = vrot.slane %v461, 4
      %v467 = vshrl.u32 %v235, 16
      %v469 = vrot.slane %v467, 7
      %v470 = vshll.u32 %v235, 16
      %v472 = vor.u32 %v469, %v470
      %v473 = vsel %vm304, %v465, %v472
      %v474 = vrot.slane %v469, 4
      %v476 = vshrl.u32 %v236, 16
      %v478 = vrot.slane %v476, 7
      %v479 = vshll.u32 %v236, 16
      %v481 = vor.u32 %v478, %v479
      %v482 = vrot.slane %v478, 4
      %v484 = vshrl.u32 %v237, 16
      %v486 = vrot.slane %v484, 7
      %v487 = vshll.u32 %v237, 16
      %v489 = vor.u32 %v486, %v487
      %v490 = vsel %vm304, %v482, %v489
      %v491 = vrot.slane %v486, 4
      %v493 = vshrl.u32 %v238, 16
      %v495 = vrot.slane %v493, 7
      %v496 = vshll.u32 %v238, 16
      %v498 = vor.u32 %v495, %v496
      %v499 = vrot.slane %v495, 4
      %v501 = vshrl.u32 %v239, 16
      %v503 = vrot.slane %v501, 7
      %v504 = vshll.u32 %v239, 16
      %v506 = vor.u32 %v503, %v504
      %v507 = vsel %vm304, %v499, %v506
      %v508 = vrot.slane %v503, 4
      %v510 = vshrl.u32 %v240, 16
      %v512 = vrot.slane %v510, 7
      %v513 = vshll.u32 %v240, 16
      %v515 = vor.u32 %v512, %v513
      %v516 = vrot.slane %v512, 4
      %v518 = vshrl.u32 %v241, 16
      %v520 = vrot.slane %v518, 7
      %v521 = vshll.u32 %v241, 16
      %v523 = vor.u32 %v520, %v521
      %v524 = vsel %vm304, %v516, %v523
      %v525 = vrot.slane %v520, 4
      %v527 = vshrl.u32 %v242, 16
      %v529 = vrot.slane %v527, 7
      %v530 = vshll.u32 %v242, 16
      %v532 = vor.u32 %v529, %v530
      %v533 = vrot.slane %v529, 4
      %v535 = vshrl.u32 %v243, 16
      %v537 = vrot.slane %v535, 7
      %v538 = vshll.u32 %v243, 16
      %v540 = vor.u32 %v537, %v538
      %v541 = vsel %vm304, %v533, %v540
      %v542 = vrot.slane %v537, 4
      %v544 = vshrl.u32 %v244, 16
      %v546 = vrot.slane %v544, 7
      %v547 = vshll.u32 %v244, 16
      %v549 = vor.u32 %v546, %v547
      %v550 = vrot.slane %v546, 4
      %v552 = vshrl.u32 %v245, 16
      %v554 = vrot.slane %v552, 7
      %v555 = vshll.u32 %v245, 16
      %v557 = vor.u32 %v554, %v555
      %v558 = vsel %vm304, %v550, %v557
      %v559 = vrot.slane %v554, 4
      %v561 = vshrl.u32 %v246, 16
      %v563 = vrot.slane %v561, 7
      %v564 = vshll.u32 %v246, 16
      %v566 = vor.u32 %v563, %v564
      %v567 = vrot.slane %v563, 4
      %v569 = vshrl.u32 %v247, 16
      %v571 = vrot.slane %v569, 7
      %v572 = vshll.u32 %v247, 16
      %v574 = vor.u32 %v571, %v572
      %v575 = vsel %vm304, %v567, %v574
      %v576 = vrot.slane %v571, 4
      %s625 = scalar_lea.vmem [#allocation2], 12
      %vm626 = vcmask 1043456
      %vm627 = vsmask.f32 7938
      %vm628 = vmand %vm626, %vm627
      %v629 = vld [vmem:[%s625] sm:$0xf]
      %v630 = vsel %vm628, %v311, %v629
      %631 = vst [vmem:[%s625] sm:$0xf] %v630
      %632 = vst [vmem:[%s625 + $0x4] sm:$0xf] %v320
      %vm633 = vcmask 1040384
      %vm634 = vmand %vm633, %vm302
      %v635 = vld [vmem:[%s625 + $0x8] sm:$0x1]
      %v636 = vsel %vm634, %v321, %v635
      %637 = vst [vmem:[%s625 + $0x8] sm:$0x1] %v636
      %v638 = vld [vmem:[%s625 + $0xc] sm:$0xf]
      %v639 = vsel %vm628, %v328, %v638
      %640 = vst [vmem:[%s625 + $0xc] sm:$0xf] %v639
      %641 = vst [vmem:[%s625 + $0x10] sm:$0xf] %v337
      %v642 = vld [vmem:[%s625 + $0x14] sm:$0x1]
      %v643 = vsel %vm634, %v338, %v642
      %644 = vst [vmem:[%s625 + $0x14] sm:$0x1] %v643
      %v645 = vld [vmem:[%s625 + $0x18] sm:$0xf]
      %v646 = vsel %vm628, %v345, %v645
      %647 = vst [vmem:[%s625 + $0x18] sm:$0xf] %v646
      %648 = vst [vmem:[%s625 + $0x1c] sm:$0xf] %v354
      %v649 = vld [vmem:[%s625 + $0x20] sm:$0x1]
      %v650 = vsel %vm634, %v355, %v649
      %651 = vst [vmem:[%s625 + $0x20] sm:$0x1] %v650
      %v652 = vld [vmem:[%s625 + $0x24] sm:$0xf]
      %v653 = vsel %vm628, %v362, %v652
      %654 = vst [vmem:[%s625 + $0x24] sm:$0xf] %v653
      %655 = vst [vmem:[%s625 + $0x28] sm:$0xf] %v371
      %v656 = vld [vmem:[%s625 + $0x2c] sm:$0x1]
      %v657 = vsel %vm634, %v372, %v656
      %658 = vst [vmem:[%s625 + $0x2c] sm:$0x1] %v657
      %v659 = vld [vmem:[%s625 + $0x30] sm:$0xf]
      %v660 = vsel %vm628, %v379, %v659
      %661 = vst [vmem:[%s625 + $0x30] sm:$0xf] %v660
      %662 = vst [vmem:[%s625 + $0x34] sm:$0xf] %v388
      %v663 = vld [vmem:[%s625 + $0x38] sm:$0x1]
      %v664 = vsel %vm634, %v389, %v663
      %665 = vst [vmem:[%s625 + $0x38] sm:$0x1] %v664
      %v666 = vld [vmem:[%s625 + $0x3c] sm:$0xf]
      %v667 = vsel %vm628, %v396, %v666
      %668 = vst [vmem:[%s625 + $0x3c] sm:$0xf] %v667
      %669 = vst [vmem:[%s625 + $0x40] sm:$0xf] %v405
      %v670 = vld [vmem:[%s625 + $0x44] sm:$0x1]
      %v671 = vsel %vm634, %v406, %v670
      %672 = vst [vmem:[%s625 + $0x44] sm:$0x1] %v671
      %v673 = vld [vmem:[%s625 + $0x48] sm:$0xf]
      %v674 = vsel %vm628, %v413, %v673
      %675 = vst [vmem:[%s625 + $0x48] sm:$0xf] %v674
      %676 = vst [vmem:[%s625 + $0x4c] sm:$0xf] %v422
      %v677 = vld [vmem:[%s625 + $0x50] sm:$0x1]
      %v678 = vsel %vm634, %v423, %v677
      %679 = vst [vmem:[%s625 + $0x50] sm:$0x1] %v678
      %v680 = vld [vmem:[%s625 + $0x54] sm:$0xf]
      %v681 = vsel %vm628, %v430, %v680
      %682 = vst [vmem:[%s625 + $0x54] sm:$0xf] %v681
      %683 = vst [vmem:[%s625 + $0x58] sm:$0xf] %v439
      %v684 = vld [vmem:[%s625 + $0x5c] sm:$0x1]
      %v685 = vsel %vm634, %v440, %v684
      %686 = vst [vmem:[%s625 + $0x5c] sm:$0x1] %v685
      %v687 = vld [vmem:[%s625 + $0x60] sm:$0xf]
      %v688 = vsel %vm628, %v447, %v687
      %689 = vst [vmem:[%s625 + $0x60] sm:$0xf] %v688
      %690 = vst [vmem:[%s625 + $0x64] sm:$0xf] %v456
      %v691 = vld [vmem:[%s625 + $0x68] sm:$0x1]
      %v692 = vsel %vm634, %v457, %v691
      %693 = vst [vmem:[%s625 + $0x68] sm:$0x1] %v692
      %v694 = vld [vmem:[%s625 + $0x6c] sm:$0xf]
      %v695 = vsel %vm628, %v464, %v694
      %696 = vst [vmem:[%s625 + $0x6c] sm:$0xf] %v695
      %697 = vst [vmem:[%s625 + $0x70] sm:$0xf] %v473
      %v698 = vld [vmem:[%s625 + $0x74] sm:$0x1]
      %v699 = vsel %vm634, %v474, %v698
      %700 = vst [vmem:[%s625 + $0x74] sm:$0x1] %v699
      %v701 = vld [vmem:[%s625 + $0x78] sm:$0xf]
      %v702 = vsel %vm628, %v481, %v701
      %703 = vst [vmem:[%s625 + $0x78] sm:$0xf] %v702
      %704 = vst [vmem:[%s625 + $0x7c] sm:$0xf] %v490
      %v705 = vld [vmem:[%s625 + $0x80] sm:$0x1]
      %v706 = vsel %vm634, %v491, %v705
      %707 = vst [vmem:[%s625 + $0x80] sm:$0x1] %v706
      %v708 = vld [vmem:[%s625 + $0x84] sm:$0xf]
      %v709 = vsel %vm628, %v498, %v708
      %710 = vst [vmem:[%s625 + $0x84] sm:$0xf] %v709
      %711 = vst [vmem:[%s625 + $0x88] sm:$0xf] %v507
      %v712 = vld [vmem:[%s625 + $0x8c] sm:$0x1]
      %v713 = vsel %vm634, %v508, %v712
      %714 = vst [vmem:[%s625 + $0x8c] sm:$0x1] %v713
      %v715 = vld [vmem:[%s625 + $0x90] sm:$0xf]
      %v716 = vsel %vm628, %v515, %v715
      %717 = vst [vmem:[%s625 + $0x90] sm:$0xf] %v716
      %718 = vst [vmem:[%s625 + $0x94] sm:$0xf] %v524
      %v719 = vld [vmem:[%s625 + $0x98] sm:$0x1]
      %v720 = vsel %vm634, %v525, %v719
      %721 = vst [vmem:[%s625 + $0x98] sm:$0x1] %v720
      %v722 = vld [vmem:[%s625 + $0x9c] sm:$0xf]
      %v723 = vsel %vm628, %v532, %v722
      %724 = vst [vmem:[%s625 + $0x9c] sm:$0xf] %v723
      %725 = vst [vmem:[%s625 + $0xa0] sm:$0xf] %v541
      %v726 = vld [vmem:[%s625 + $0xa4] sm:$0x1]
      %v727 = vsel %vm634, %v542, %v726
      %728 = vst [vmem:[%s625 + $0xa4] sm:$0x1] %v727
      %v729 = vld [vmem:[%s625 + $0xa8] sm:$0xf]
      %v730 = vsel %vm628, %v549, %v729
      %731 = vst [vmem:[%s625 + $0xa8] sm:$0xf] %v730
      %732 = vst [vmem:[%s625 + $0xac] sm:$0xf] %v558
      %v733 = vld [vmem:[%s625 + $0xb0] sm:$0x1]
      %v734 = vsel %vm634, %v559, %v733
      %735 = vst [vmem:[%s625 + $0xb0] sm:$0x1] %v734
      %v736 = vld [vmem:[%s625 + $0xb4] sm:$0xf]
      %v737 = vsel %vm628, %v566, %v736
      %738 = vst [vmem:[%s625 + $0xb4] sm:$0xf] %v737
      %739 = vst [vmem:[%s625 + $0xb8] sm:$0xf] %v575
      %v740 = vld [vmem:[%s625 + $0xbc] sm:$0x1]
      %v741 = vsel %vm634, %v576, %v740
      %742 = vst [vmem:[%s625 + $0xbc] sm:$0x1] %v741
      %v743 = vld [vmem:[#allocation2] sm:$0xf]
      %v744 = vld [vmem:[#allocation2 + $0x4] sm:$0xf]
      %v745 = vld [vmem:[#allocation2 + $0x8] sm:$0x1]
      %v746 = vld [vmem:[#allocation2 + $0xc] sm:$0xf]
      %v747 = vld [vmem:[#allocation2 + $0x10] sm:$0xf]
      %v748 = vld [vmem:[#allocation2 + $0x14] sm:$0x1]
      %v749 = vld [vmem:[#allocation2 + $0x18] sm:$0xf]
      %v750 = vld [vmem:[#allocation2 + $0x1c] sm:$0xf]
      %v751 = vld [vmem:[#allocation2 + $0x20] sm:$0x1]
      %v752 = vld [vmem:[#allocation2 + $0x24] sm:$0xf]
      %v753 = vld [vmem:[#allocation2 + $0x28] sm:$0xf]
      %v754 = vld [vmem:[#allocation2 + $0x2c] sm:$0x1]
      %v755 = vld [vmem:[#allocation2 + $0x30] sm:$0xf]
      %v756 = vld [vmem:[#allocation2 + $0x34] sm:$0xf]
      %v757 = vld [vmem:[#allocation2 + $0x38] sm:$0x1]
      %v758 = vld [vmem:[#allocation2 + $0x3c] sm:$0xf]
      %v759 = vld [vmem:[#allocation2 + $0x40] sm:$0xf]
      %v760 = vld [vmem:[#allocation2 + $0x44] sm:$0x1]
      %v761 = vld [vmem:[#allocation2 + $0x48] sm:$0xf]
      %v762 = vld [vmem:[#allocation2 + $0x4c] sm:$0xf]
      %v763 = vld [vmem:[#allocation2 + $0x50] sm:$0x1]
      %v764 = vld [vmem:[#allocation2 + $0x54] sm:$0xf]
      %v765 = vld [vmem:[#allocation2 + $0x58] sm:$0xf]
      %v766 = vld [vmem:[#allocation2 + $0x5c] sm:$0x1]
      %v767 = vld [vmem:[#allocation2 + $0x60] sm:$0xf]
      %v768 = vld [vmem:[#allocation2 + $0x64] sm:$0xf]
      %v769 = vld [vmem:[#allocation2 + $0x68] sm:$0x1]
      %v770 = vld [vmem:[#allocation2 + $0x6c] sm:$0xf]
      %v771 = vld [vmem:[#allocation2 + $0x70] sm:$0xf]
      %v772 = vld [vmem:[#allocation2 + $0x74] sm:$0x1]
      %v773 = vld [vmem:[#allocation2 + $0x78] sm:$0xf]
      %v774 = vld [vmem:[#allocation2 + $0x7c] sm:$0xf]
      %v775 = vld [vmem:[#allocation2 + $0x80] sm:$0x1]
      %v776 = vld [vmem:[#allocation2 + $0x84] sm:$0xf]
      %v777 = vld [vmem:[#allocation2 + $0x88] sm:$0xf]
      %v778 = vld [vmem:[#allocation2 + $0x8c] sm:$0x1]
      %v779 = vld [vmem:[#allocation2 + $0x90] sm:$0xf]
      %v780 = vld [vmem:[#allocation2 + $0x94] sm:$0xf]
      %v781 = vld [vmem:[#allocation2 + $0x98] sm:$0x1]
      %v782 = vld [vmem:[#allocation2 + $0x9c] sm:$0xf]
      %v783 = vld [vmem:[#allocation2 + $0xa0] sm:$0xf]
      %v784 = vld [vmem:[#allocation2 + $0xa4] sm:$0x1]
      %v785 = vld [vmem:[#allocation2 + $0xa8] sm:$0xf]
      %v786 = vld [vmem:[#allocation2 + $0xac] sm:$0xf]
      %v787 = vld [vmem:[#allocation2 + $0xb0] sm:$0x1]
      %v788 = vld [vmem:[#allocation2 + $0xb4] sm:$0xf]
      %v789 = vld [vmem:[#allocation2 + $0xb8] sm:$0xf]
      %v790 = vld [vmem:[#allocation2 + $0xbc] sm:$0x1]
      %v791 = vld [vmem:[#allocation2 + $0xc0] sm:$0xf]
      %v792 = vld [vmem:[#allocation2 + $0xc4] sm:$0xf]
      %v793 = vld [vmem:[#allocation2 + $0xc8] sm:$0x1]
      %v794 = vld [vmem:[#allocation2 + $0xcc] sm:$0xf]
      %v795 = vld [vmem:[#allocation2 + $0xd0] sm:$0xf]
      %v796 = vld [vmem:[#allocation2 + $0xd4] sm:$0x1]
      %v797 = vld [vmem:[%s1] sm:$0xf]
      %v798 = vld [vmem:[%s1 + $0x4] sm:$0xf]
      %v799 = vld [vmem:[%s1 + $0x8] sm:$0xf]
      %v800 = vld [vmem:[%s1 + $0xc] sm:$0xf]
      %v801 = vld [vmem:[%s1 + $0x10] sm:$0xf]
      %v802 = vld [vmem:[%s1 + $0x14] sm:$0xf]
      %v803 = vld [vmem:[%s1 + $0x18] sm:$0xf]
      %v804 = vld [vmem:[%s1 + $0x1c] sm:$0xf]
      %v805 = vld [vmem:[%s1 + $0x20] sm:$0xf]
      %v806 = vld [vmem:[%s1 + $0x24] sm:$0xf]
      %v807 = vld [vmem:[%s1 + $0x28] sm:$0xf]
      %v808 = vld [vmem:[%s1 + $0x2c] sm:$0xf]
      %v809 = vld [vmem:[%s1 + $0x30] sm:$0xf]
      %v810 = vld [vmem:[%s1 + $0x34] sm:$0xf]
      %v811 = vld [vmem:[%s1 + $0x38] sm:$0xf]
      %v812 = vld [vmem:[%s1 + $0x3c] sm:$0xf]
      %vm813 = vsmask.f32 3328
      %vm814 = vsmask.f32 7440
      %vm815 = vmor %vm813, %vm814
      %v817 = vshrl.u32 %v743, 16
      %v819 = vrot.slane %v817, 4
      %v820 = vshll.u32 %v743, 16
      %v822 = vrot.slane %v820, 5
      %v823 = vor.u32 %v819, %v822
      %v824 = vrot.slane %v823, 4
      %v826 = vshll.u32 %v744, 16
      %v828 = vrot.slane %v826, 5
      %v829 = vsel %vm815, %v824, %v828
      %v830 = vshrl.u32 %v744, 16
      %v832 = vrot.slane %v830, 4
      %v833 = vor.u32 %v832, %v828
      %v834 = vrot.slane %v833, 4
      %v836 = vshll.u32 %v745, 16
      %v838 = vrot.slane %v836, 5
      %v839 = vsel %vm815, %v834, %v838
      %v841 = vshrl.u32 %v746, 16
      %v843 = vrot.slane %v841, 4
      %v844 = vshll.u32 %v746, 16
      %v846 = vrot.slane %v844, 5
      %v847 = vor.u32 %v843, %v846
      %v848 = vrot.slane %v847, 4
      %v850 = vshll.u32 %v747, 16
      %v852 = vrot.slane %v850, 5
      %v853 = vsel %vm815, %v848, %v852
      %v854 = vshrl.u32 %v747, 16
      %v856 = vrot.slane %v854, 4
      %v857 = vor.u32 %v856, %v852
      %v858 = vrot.slane %v857, 4
      %v860 = vshll.u32 %v748, 16
      %v862 = vrot.slane %v860, 5
      %v863 = vsel %vm815, %v858, %v862
      %v865 = vshrl.u32 %v749, 16
      %v867 = vrot.slane %v865, 4
      %v868 = vshll.u32 %v749, 16
      %v870 = vrot.slane %v868, 5
      %v871 = vor.u32 %v867, %v870
      %v872 = vrot.slane %v871, 4
      %v874 = vshll.u32 %v750, 16
      %v876 = vrot.slane %v874, 5
      %v877 = vsel %vm815, %v872, %v876
      %v878 = vshrl.u32 %v750, 16
      %v880 = vrot.slane %v878, 4
      %v881 = vor.u32 %v880, %v876
      %v882 = vrot.slane %v881, 4
      %v884 = vshll.u32 %v751, 16
      %v886 = vrot.slane %v884, 5
      %v887 = vsel %vm815, %v882, %v886
      %v889 = vshrl.u32 %v752, 16
      %v891 = vrot.slane %v889, 4
      %v892 = vshll.u32 %v752, 16
      %v894 = vrot.slane %v892, 5
      %v895 = vor.u32 %v891, %v894
      %v896 = vrot.slane %v895, 4
      %v898 = vshll.u32 %v753, 16
      %v900 = vrot.slane %v898, 5
      %v901 = vsel %vm815, %v896, %v900
      %v902 = vshrl.u32 %v753, 16
      %v904 = vrot.slane %v902, 4
      %v905 = vor.u32 %v904, %v900
      %v906 = vrot.slane %v905, 4
      %v908 = vshll.u32 %v754, 16
      %v910 = vrot.slane %v908, 5
      %v911 = vsel %vm815, %v906, %v910
      %v913 = vshrl.u32 %v755, 16
      %v915 = vrot.slane %v913, 4
      %v916 = vshll.u32 %v755, 16
      %v918 = vrot.slane %v916, 5
      %v919 = vor.u32 %v915, %v918
      %v920 = vrot.slane %v919, 4
      %v922 = vshll.u32 %v756, 16
      %v924 = vrot.slane %v922, 5
      %v925 = vsel %vm815, %v920, %v924
      %v926 = vshrl.u32 %v756, 16
      %v928 = vrot.slane %v926, 4
      %v929 = vor.u32 %v928, %v924
      %v930 = vrot.slane %v929, 4
      %v932 = vshll.u32 %v757, 16
      %v934 = vrot.slane %v932, 5
      %v935 = vsel %vm815, %v930, %v934
      %v937 = vshrl.u32 %v758, 16
      %v939 = vrot.slane %v937, 4
      %v940 = vshll.u32 %v758, 16
      %v942 = vrot.slane %v940, 5
      %v943 = vor.u32 %v939, %v942
      %v944 = vrot.slane %v943, 4
      %v946 = vshll.u32 %v759, 16
      %v948 = vrot.slane %v946, 5
      %v949 = vsel %vm815, %v944, %v948
      %v950 = vshrl.u32 %v759, 16
      %v952 = vrot.slane %v950, 4
      %v953 = vor.u32 %v952, %v948
      %v954 = vrot.slane %v953, 4
      %v956 = vshll.u32 %v760, 16
      %v958 = vrot.slane %v956, 5
      %v959 = vsel %vm815, %v954, %v958
      %v961 = vshrl.u32 %v761, 16
      %v963 = vrot.slane %v961, 4
      %v964 = vshll.u32 %v761, 16
      %v966 = vrot.slane %v964, 5
      %v967 = vor.u32 %v963, %v966
      %v968 = vrot.slane %v967, 4
      %v970 = vshll.u32 %v762, 16
      %v972 = vrot.slane %v970, 5
      %v973 = vsel %vm815, %v968, %v972
      %v974 = vshrl.u32 %v762, 16
      %v976 = vrot.slane %v974, 4
      %v977 = vor.u32 %v976, %v972
      %v978 = vrot.slane %v977, 4
      %v980 = vshll.u32 %v763, 16
      %v982 = vrot.slane %v980, 5
      %v983 = vsel %vm815, %v978, %v982
      %v985 = vshrl.u32 %v764, 16
      %v987 = vrot.slane %v985, 4
      %v988 = vshll.u32 %v764, 16
      %v990 = vrot.slane %v988, 5
      %v991 = vor.u32 %v987, %v990
      %v992 = vrot.slane %v991, 4
      %v994 = vshll.u32 %v765, 16
      %v996 = vrot.slane %v994, 5
      %v997 = vsel %vm815, %v992, %v996
      %v998 = vshrl.u32 %v765, 16
      %v1000 = vrot.slane %v998, 4
      %v1001 = vor.u32 %v1000, %v996
      %v1002 = vrot.slane %v1001, 4
      %v1004 = vshll.u32 %v766, 16
      %v1006 = vrot.slane %v1004, 5
      %v1007 = vsel %vm815, %v1002, %v1006
      %v1009 = vshrl.u32 %v767, 16
      %v1011 = vrot.slane %v1009, 4
      %v1012 = vshll.u32 %v767, 16
      %v1014 = vrot.slane %v1012, 5
      %v1015 = vor.u32 %v1011, %v1014
      %v1016 = vrot.slane %v1015, 4
      %v1018 = vshll.u32 %v768, 16
      %v1020 = vrot.slane %v1018, 5
      %v1021 = vsel %vm815, %v1016, %v1020
      %v1022 = vshrl.u32 %v768, 16
      %v1024 = vrot.slane %v1022, 4
      %v1025 = vor.u32 %v1024, %v1020
      %v1026 = vrot.slane %v1025, 4
      %v1028 = vshll.u32 %v769, 16
      %v1030 = vrot.slane %v1028, 5
      %v1031 = vsel %vm815, %v1026, %v1030
      %v1033 = vshrl.u32 %v770, 16
      %v1035 = vrot.slane %v1033, 4
      %v1036 = vshll.u32 %v770, 16
      %v1038 = vrot.slane %v1036, 5
      %v1039 = vor.u32 %v1035, %v1038
      %v1040 = vrot.slane %v1039, 4
      %v1042 = vshll.u32 %v771, 16
      %v1044 = vrot.slane %v1042, 5
      %v1045 = vsel %vm815, %v1040, %v1044
      %v1046 = vshrl.u32 %v771, 16
      %v1048 = vrot.slane %v1046, 4
      %v1049 = vor.u32 %v1048, %v1044
      %v1050 = vrot.slane %v1049, 4
      %v1052 = vshll.u32 %v772, 16
      %v1054 = vrot.slane %v1052, 5
      %v1055 = vsel %vm815, %v1050, %v1054
      %v1057 = vshrl.u32 %v773, 16
      %v1059 = vrot.slane %v1057, 4
      %v1060 = vshll.u32 %v773, 16
      %v1062 = vrot.slane %v1060, 5
      %v1063 = vor.u32 %v1059, %v1062
      %v1064 = vrot.slane %v1063, 4
      %v1066 = vshll.u32 %v774, 16
      %v1068 = vrot.slane %v1066, 5
      %v1069 = vsel %vm815, %v1064, %v1068
      %v1070 = vshrl.u32 %v774, 16
      %v1072 = vrot.slane %v1070, 4
      %v1073 = vor.u32 %v1072, %v1068
      %v1074 = vrot.slane %v1073, 4
      %v1076 = vshll.u32 %v775, 16
      %v1078 = vrot.slane %v1076, 5
      %v1079 = vsel %vm815, %v1074, %v1078
      %v1081 = vshrl.u32 %v776, 16
      %v1083 = vrot.slane %v1081, 4
      %v1084 = vshll.u32 %v776, 16
      %v1086 = vrot.slane %v1084, 5
      %v1087 = vor.u32 %v1083, %v1086
      %v1088 = vrot.slane %v1087, 4
      %v1090 = vshll.u32 %v777, 16
      %v1092 = vrot.slane %v1090, 5
      %v1093 = vsel %vm815, %v1088, %v1092
      %v1094 = vshrl.u32 %v777, 16
      %v1096 = vrot.slane %v1094, 4
      %v1097 = vor.u32 %v1096, %v1092
      %v1098 = vrot.slane %v1097, 4
      %v1100 = vshll.u32 %v778, 16
      %v1102 = vrot.slane %v1100, 5
      %v1103 = vsel %vm815, %v1098, %v1102
      %v1105 = vshrl.u32 %v779, 16
      %v1107 = vrot.slane %v1105, 4
      %v1108 = vshll.u32 %v779, 16
      %v1110 = vrot.slane %v1108, 5
      %v1111 = vor.u32 %v1107, %v1110
      %v1112 = vrot.slane %v1111, 4
      %v1114 = vshll.u32 %v780, 16
      %v1116 = vrot.slane %v1114, 5
      %v1117 = vsel %vm815, %v1112, %v1116
      %v1118 = vshrl.u32 %v780, 16
      %v1120 = vrot.slane %v1118, 4
      %v1121 = vor.u32 %v1120, %v1116
      %v1122 = vrot.slane %v1121, 4
      %v1124 = vshll.u32 %v781, 16
      %v1126 = vrot.slane %v1124, 5
      %v1127 = vsel %vm815, %v1122, %v1126
      %v1129 = vshrl.u32 %v782, 16
      %v1131 = vrot.slane %v1129, 4
      %v1132 = vshll.u32 %v782, 16
      %v1134 = vrot.slane %v1132, 5
      %v1135 = vor.u32 %v1131, %v1134
      %v1136 = vrot.slane %v1135, 4
      %v1138 = vshll.u32 %v783, 16
      %v1140 = vrot.slane %v1138, 5
      %v1141 = vsel %vm815, %v1136, %v1140
      %v1142 = vshrl.u32 %v783, 16
      %v1144 = vrot.slane %v1142, 4
      %v1145 = vor.u32 %v1144, %v1140
      %v1146 = vrot.slane %v1145, 4
      %v1148 = vshll.u32 %v784, 16
      %v1150 = vrot.slane %v1148, 5
      %v1151 = vsel %vm815, %v1146, %v1150
      %v1153 = vshrl.u32 %v785, 16
      %v1155 = vrot.slane %v1153, 4
      %v1156 = vshll.u32 %v785, 16
      %v1158 = vrot.slane %v1156, 5
      %v1159 = vor.u32 %v1155, %v1158
      %v1160 = vrot.slane %v1159, 4
      %v1162 = vshll.u32 %v786, 16
      %v1164 = vrot.slane %v1162, 5
      %v1165 = vsel %vm815, %v1160, %v1164
      %v1166 = vshrl.u32 %v786, 16
      %v1168 = vrot.slane %v1166, 4
      %v1169 = vor.u32 %v1168, %v1164
      %v1170 = vrot.slane %v1169, 4
      %v1172 = vshll.u32 %v787, 16
      %v1174 = vrot.slane %v1172, 5
      %v1175 = vsel %vm815, %v1170, %v1174
      %v1177 = vshrl.u32 %v788, 16
      %v1179 = vrot.slane %v1177, 4
      %v1180 = vshll.u32 %v788, 16
      %v1182 = vrot.slane %v1180, 5
      %v1183 = vor.u32 %v1179, %v1182
      %v1184 = vrot.slane %v1183, 4
      %v1186 = vshll.u32 %v789, 16
      %v1188 = vrot.slane %v1186, 5
      %v1189 = vsel %vm815, %v1184, %v1188
      %v1190 = vshrl.u32 %v789, 16
      %v1192 = vrot.slane %v1190, 4
      %v1193 = vor.u32 %v1192, %v1188
      %v1194 = vrot.slane %v1193, 4
      %v1196 = vshll.u32 %v790, 16
      %v1198 = vrot.slane %v1196, 5
      %v1199 = vsel %vm815, %v1194, %v1198
      %s1200 = scalar_lea.vmem %s1, 64
      %v1201 = vld [vmem:[%s1200] sm:$0xf]
      %v1202 = vld [vmem:[%s1200 + $0x4] sm:$0xf]
      %v1203 = vld [vmem:[%s1200 + $0x8] sm:$0xf]
      %v1204 = vld [vmem:[%s1200 + $0xc] sm:$0xf]
      %v1205 = vld [vmem:[%s1200 + $0x10] sm:$0xf]
      %v1206 = vld [vmem:[%s1200 + $0x14] sm:$0xf]
      %v1207 = vld [vmem:[%s1200 + $0x18] sm:$0xf]
      %v1208 = vld [vmem:[%s1200 + $0x1c] sm:$0xf]
      %v1209 = vld [vmem:[%s1200 + $0x20] sm:$0xf]
      %v1210 = vld [vmem:[%s1200 + $0x24] sm:$0xf]
      %v1211 = vld [vmem:[%s1200 + $0x28] sm:$0xf]
      %v1212 = vld [vmem:[%s1200 + $0x2c] sm:$0xf]
      %v1213 = vld [vmem:[%s1200 + $0x30] sm:$0xf]
      %v1214 = vld [vmem:[%s1200 + $0x34] sm:$0xf]
      %v1215 = vld [vmem:[%s1200 + $0x38] sm:$0xf]
      %v1216 = vld [vmem:[%s1200 + $0x3c] sm:$0xf]
      %v1217 = vunpack.c.l.b16 %v829
      %v1218 = vunpack.c.l.b16 %v839
      %v1219 = vunpack.c.l.b16 %v853
      %v1220 = vunpack.c.l.b16 %v863
      %v1221 = vunpack.c.l.b16 %v877
      %v1222 = vunpack.c.l.b16 %v887
      %v1223 = vunpack.c.l.b16 %v901
      %v1224 = vunpack.c.l.b16 %v911
      %v1225 = vunpack.c.l.b16 %v925
      %v1226 = vunpack.c.l.b16 %v935
      %v1227 = vunpack.c.l.b16 %v949
      %v1228 = vunpack.c.l.b16 %v959
      %v1229 = vunpack.c.l.b16 %v973
      %v1230 = vunpack.c.l.b16 %v983
      %v1231 = vunpack.c.l.b16 %v997
      %v1232 = vunpack.c.l.b16 %v1007
      %v1233 = vunpack.c.l.b16 %v1021
      %v1234 = vunpack.c.l.b16 %v1031
      %v1235 = vunpack.c.l.b16 %v1045
      %v1236 = vunpack.c.l.b16 %v1055
      %v1237 = vunpack.c.l.b16 %v1069
      %v1238 = vunpack.c.l.b16 %v1079
      %v1239 = vunpack.c.l.b16 %v1093
      %v1240 = vunpack.c.l.b16 %v1103
      %v1241 = vunpack.c.l.b16 %v1117
      %v1242 = vunpack.c.l.b16 %v1127
      %v1243 = vunpack.c.l.b16 %v1141
      %v1244 = vunpack.c.l.b16 %v1151
      %v1245 = vunpack.c.l.b16 %v1165
      %v1246 = vunpack.c.l.b16 %v1175
      %v1247 = vunpack.c.l.b16 %v1189
      %v1248 = vunpack.c.l.b16 %v1199
      %v1249 = vpack.c.b16 %v1218, %v1217
      %v1250 = vpack.c.b16 %v1220, %v1219
      %v1251 = vpack.c.b16 %v1222, %v1221
      %v1252 = vpack.c.b16 %v1224, %v1223
      %v1253 = vpack.c.b16 %v1226, %v1225
      %v1254 = vpack.c.b16 %v1228, %v1227
      %v1255 = vpack.c.b16 %v1230, %v1229
      %v1256 = vpack.c.b16 %v1232, %v1231
      %v1257 = vpack.c.b16 %v1234, %v1233
      %v1258 = vpack.c.b16 %v1236, %v1235
      %v1259 = vpack.c.b16 %v1238, %v1237
      %v1260 = vpack.c.b16 %v1240, %v1239
      %v1261 = vpack.c.b16 %v1242, %v1241
      %v1262 = vpack.c.b16 %v1244, %v1243
      %v1263 = vpack.c.b16 %v1246, %v1245
      %v1264 = vpack.c.b16 %v1248, %v1247
      %v1297 = vunpack.c.l.b16 %v1201
      %v1298 = vunpack.c.l.b16 %v1202
      %v1299 = vunpack.c.l.b16 %v1203
      %v1300 = vunpack.c.l.b16 %v1204
      %v1301 = vunpack.c.l.b16 %v1205
      %v1302 = vunpack.c.l.b16 %v1206
      %v1303 = vunpack.c.l.b16 %v1207
      %v1304 = vunpack.c.l.b16 %v1208
      %v1305 = vunpack.c.l.b16 %v1209
      %v1306 = vunpack.c.l.b16 %v1210
      %v1307 = vunpack.c.l.b16 %v1211
      %v1308 = vunpack.c.l.b16 %v1212
      %v1309 = vunpack.c.l.b16 %v1213
      %v1310 = vunpack.c.l.b16 %v1214
      %v1311 = vunpack.c.l.b16 %v1215
      %v1312 = vunpack.c.l.b16 %v1216
      %v1313 = vpack.c.b16 %v1298, %v1297
      %v1314 = vpack.c.b16 %v1300, %v1299
      %v1315 = vpack.c.b16 %v1302, %v1301
      %v1316 = vpack.c.b16 %v1304, %v1303
      %v1317 = vpack.c.b16 %v1306, %v1305
      %v1318 = vpack.c.b16 %v1308, %v1307
      %v1319 = vpack.c.b16 %v1310, %v1309
      %v1320 = vpack.c.b16 %v1312, %v1311
      %1329 = vmatprep.subr.bf16.mxu0 0
      %1330 = vmatpush1.bf16.msra.mxu0 %v1320
      %1331 = vmatprep.subr.bf16.mxu0 0
      %1332 = vmatpush1.bf16.msra.mxu0 %v1319
      %1333 = vmatprep.subr.bf16.mxu0 0
      %1334 = vmatpush1.bf16.msra.mxu0 %v1318
      %1335 = vmatprep.subr.bf16.mxu0 0
      %1336 = vmatpush1.bf16.msra.mxu0 %v1317
      %1337 = vmatprep.subr.bf16.mxu0 0
      %1338 = vmatpush1.bf16.msra.mxu0 %v1316
      %1339 = vmatprep.subr.bf16.mxu0 0
      %1340 = vmatpush1.bf16.msra.mxu0 %v1315
      %1341 = vmatprep.subr.bf16.mxu0 0
      %1342 = vmatpush1.bf16.msra.mxu0 %v1314
      %1343 = vmatprep.subr.bf16.mxu0 0
      %1344 = vmatpush1.bf16.msra.mxu0 %v1313
      %1345 = vmatprep.subr.bf16.mxu0 0
      %1346 = vmatpush2.bf16.msra.mxu0 0
      %1347 = vmatprep.subr.bf16.mxu0 0
      %1348 = vmatpush2.bf16.msra.mxu0 0
      %1349 = vmatprep.subr.bf16.mxu0 0
      %1350 = vmatpush2.bf16.msra.mxu0 0
      %1351 = vmatprep.subr.bf16.mxu0 0
      %1352 = vmatpush2.bf16.msra.mxu0 0
      %1353 = vmatprep.subr.bf16.mxu0 0
      %1354 = vmatpush2.bf16.msra.mxu0 0
      %1355 = vmatprep.subr.bf16.mxu0 0
      %1356 = vmatpush2.bf16.msra.mxu0 0
      %1357 = vmatprep.subr.bf16.mxu0 0
      %1358 = vmatpush2.bf16.msra.mxu0 0
      %1359 = vmatprep.subr.bf16.mxu0 0
      %1360 = vmatpush2.bf16.msra.mxu0 0
      %1361 = vmatprep.mubr.bf16.mxu0 0
      %1362 = vmatmul.mubr.bf16.gmra.mxu0 %v1249
      %v1363 = vpop.f32.mrf.mxu0
      %v1364 = vadd.f32 0.0, %v1363
      %v1365 = vpop.f32.mrf.mxu0
      %v1366 = vpop.f32.mrf.mxu0
      %v1367 = vadd.f32 0.0, %v1366
      %v1368 = vpop.f32.mrf.mxu0
      %1369 = vmatprep.mubr.bf16.mxu0 0
      %1370 = vmatmul.mubr.bf16.gmra.mxu0 %v1250
      %v1371 = vpop.f32.mrf.mxu0
      %v1372 = vadd.f32 0.0, %v1371
      %v1373 = vpop.f32.mrf.mxu0
      %v1374 = vpop.f32.mrf.mxu0
      %v1375 = vadd.f32 0.0, %v1374
      %v1376 = vpop.f32.mrf.mxu0
      %1377 = vmatprep.mubr.bf16.mxu0 0
      %1378 = vmatmul.mubr.bf16.gmra.mxu0 %v1251
      %v1379 = vpop.f32.mrf.mxu0
      %v1380 = vadd.f32 0.0, %v1379
      %v1381 = vpop.f32.mrf.mxu0
      %v1382 = vpop.f32.mrf.mxu0
      %v1383 = vadd.f32 0.0, %v1382
      %v1384 = vpop.f32.mrf.mxu0
      %1385 = vmatprep.mubr.bf16.mxu0 0
      %1386 = vmatmul.mubr.bf16.gmra.mxu0 %v1252
      %v1387 = vpop.f32.mrf.mxu0
      %v1388 = vadd.f32 0.0, %v1387
      %v1389 = vpop.f32.mrf.mxu0
      %v1390 = vpop.f32.mrf.mxu0
      %v1391 = vadd.f32 0.0, %v1390
      %v1392 = vpop.f32.mrf.mxu0
      %1393 = vmatprep.mubr.bf16.mxu0 0
      %1394 = vmatmul.mubr.bf16.gmra.mxu0 %v1253
      %v1395 = vpop.f32.mrf.mxu0
      %v1396 = vadd.f32 0.0, %v1395
      %v1397 = vpop.f32.mrf.mxu0
      %v1398 = vpop.f32.mrf.mxu0
      %v1399 = vadd.f32 0.0, %v1398
      %v1400 = vpop.f32.mrf.mxu0
      %1401 = vmatprep.mubr.bf16.mxu0 0
      %1402 = vmatmul.mubr.bf16.gmra.mxu0 %v1254
      %v1403 = vpop.f32.mrf.mxu0
      %v1404 = vadd.f32 0.0, %v1403
      %v1405 = vpop.f32.mrf.mxu0
      %v1406 = vpop.f32.mrf.mxu0
      %v1407 = vadd.f32 0.0, %v1406
      %v1408 = vpop.f32.mrf.mxu0
      %1409 = vmatprep.mubr.bf16.mxu0 0
      %1410 = vmatmul.mubr.bf16.gmra.mxu0 %v1255
      %v1411 = vpop.f32.mrf.mxu0
      %v1412 = vadd.f32 0.0, %v1411
      %v1413 = vpop.f32.mrf.mxu0
      %v1414 = vpop.f32.mrf.mxu0
      %v1415 = vadd.f32 0.0, %v1414
      %v1416 = vpop.f32.mrf.mxu0
      %1417 = vmatprep.mubr.bf16.mxu0 0
      %1418 = vmatmul.mubr.bf16.gmra.mxu0 %v1256
      %v1419 = vpop.f32.mrf.mxu0
      %v1420 = vadd.f32 0.0, %v1419
      %v1421 = vpop.f32.mrf.mxu0
      %v1422 = vpop.f32.mrf.mxu0
      %v1423 = vadd.f32 0.0, %v1422
      %v1424 = vpop.f32.mrf.mxu0
      %1425 = vmatprep.mubr.bf16.mxu0 0
      %1426 = vmatmul.mubr.bf16.gmra.mxu0 %v1257
      %v1427 = vpop.f32.mrf.mxu0
      %v1428 = vadd.f32 0.0, %v1427
      %v1429 = vpop.f32.mrf.mxu0
      %v1430 = vpop.f32.mrf.mxu0
      %v1431 = vadd.f32 0.0, %v1430
      %v1432 = vpop.f32.mrf.mxu0
      %1433 = vmatprep.mubr.bf16.mxu0 0
      %1434 = vmatmul.mubr.bf16.gmra.mxu0 %v1258
      %v1435 = vpop.f32.mrf.mxu0
      %v1436 = vadd.f32 0.0, %v1435
      %v1437 = vpop.f32.mrf.mxu0
      %v1438 = vpop.f32.mrf.mxu0
      %v1439 = vadd.f32 0.0, %v1438
      %v1440 = vpop.f32.mrf.mxu0
      %1441 = vmatprep.mubr.bf16.mxu0 0
      %1442 = vmatmul.mubr.bf16.gmra.mxu0 %v1259
      %v1443 = vpop.f32.mrf.mxu0
      %v1444 = vadd.f32 0.0, %v1443
      %v1445 = vpop.f32.mrf.mxu0
      %v1446 = vpop.f32.mrf.mxu0
      %v1447 = vadd.f32 0.0, %v1446
      %v1448 = vpop.f32.mrf.mxu0
      %1449 = vmatprep.mubr.bf16.mxu0 0
      %1450 = vmatmul.mubr.bf16.gmra.mxu0 %v1260
      %v1451 = vpop.f32.mrf.mxu0
      %v1452 = vadd.f32 0.0, %v1451
      %v1453 = vpop.f32.mrf.mxu0
      %v1454 = vpop.f32.mrf.mxu0
      %v1455 = vadd.f32 0.0, %v1454
      %v1456 = vpop.f32.mrf.mxu0
      %1457 = vmatprep.mubr.bf16.mxu0 0
      %1458 = vmatmul.mubr.bf16.gmra.mxu0 %v1261
      %v1459 = vpop.f32.mrf.mxu0
      %v1460 = vadd.f32 0.0, %v1459
      %v1461 = vpop.f32.mrf.mxu0
      %v1462 = vpop.f32.mrf.mxu0
      %v1463 = vadd.f32 0.0, %v1462
      %v1464 = vpop.f32.mrf.mxu0
      %1465 = vmatprep.mubr.bf16.mxu0 0
      %1466 = vmatmul.mubr.bf16.gmra.mxu0 %v1262
      %v1467 = vpop.f32.mrf.mxu0
      %v1468 = vadd.f32 0.0, %v1467
      %v1469 = vpop.f32.mrf.mxu0
      %v1470 = vpop.f32.mrf.mxu0
      %v1471 = vadd.f32 0.0, %v1470
      %v1472 = vpop.f32.mrf.mxu0
      %1473 = vmatprep.mubr.bf16.mxu0 0
      %1474 = vmatmul.mubr.bf16.gmra.mxu0 %v1263
      %v1475 = vpop.f32.mrf.mxu0
      %v1476 = vadd.f32 0.0, %v1475
      %v1477 = vpop.f32.mrf.mxu0
      %v1478 = vpop.f32.mrf.mxu0
      %v1479 = vadd.f32 0.0, %v1478
      %v1480 = vpop.f32.mrf.mxu0
      %1481 = vmatprep.mubr.bf16.mxu0 0
      %1482 = vmatmul.mubr.bf16.gmra.mxu0 %v1264
      %v1483 = vpop.f32.mrf.mxu0
      %v1484 = vadd.f32 0.0, %v1483
      %v1485 = vpop.f32.mrf.mxu0
      %v1486 = vpop.f32.mrf.mxu0
      %v1487 = vadd.f32 0.0, %v1486
      %v1488 = vpop.f32.mrf.mxu0
      %1489 = vdwg.mxu0
      %v1522 = vunpack.c.l.b16 %v743
      %v1523 = vunpack.c.l.b16 %v744
      %v1524 = vunpack.c.l.b16 %v746
      %v1525 = vunpack.c.l.b16 %v747
      %v1526 = vunpack.c.l.b16 %v749
      %v1527 = vunpack.c.l.b16 %v750
      %v1528 = vunpack.c.l.b16 %v752
      %v1529 = vunpack.c.l.b16 %v753
      %v1530 = vunpack.c.l.b16 %v755
      %v1531 = vunpack.c.l.b16 %v756
      %v1532 = vunpack.c.l.b16 %v758
      %v1533 = vunpack.c.l.b16 %v759
      %v1534 = vunpack.c.l.b16 %v761
      %v1535 = vunpack.c.l.b16 %v762
      %v1536 = vunpack.c.l.b16 %v764
      %v1537 = vunpack.c.l.b16 %v765
      %v1538 = vunpack.c.l.b16 %v767
      %v1539 = vunpack.c.l.b16 %v768
      %v1540 = vunpack.c.l.b16 %v770
      %v1541 = vunpack.c.l.b16 %v771
      %v1542 = vunpack.c.l.b16 %v773
      %v1543 = vunpack.c.l.b16 %v774
      %v1544 = vunpack.c.l.b16 %v776
      %v1545 = vunpack.c.l.b16 %v777
      %v1546 = vunpack.c.l.b16 %v779
      %v1547 = vunpack.c.l.b16 %v780
      %v1548 = vunpack.c.l.b16 %v782
      %v1549 = vunpack.c.l.b16 %v783
      %v1550 = vunpack.c.l.b16 %v785
      %v1551 = vunpack.c.l.b16 %v786
      %v1552 = vunpack.c.l.b16 %v788
      %v1553 = vunpack.c.l.b16 %v789
      %v1554 = vpack.c.b16 %v1523, %v1522
      %v1555 = vpack.c.b16 %v1525, %v1524
      %v1556 = vpack.c.b16 %v1527, %v1526
      %v1557 = vpack.c.b16 %v1529, %v1528
      %v1558 = vpack.c.b16 %v1531, %v1530
      %v1559 = vpack.c.b16 %v1533, %v1532
      %v1560 = vpack.c.b16 %v1535, %v1534
      %v1561 = vpack.c.b16 %v1537, %v1536
      %v1562 = vpack.c.b16 %v1539, %v1538
      %v1563 = vpack.c.b16 %v1541, %v1540
      %v1564 = vpack.c.b16 %v1543, %v1542
      %v1565 = vpack.c.b16 %v1545, %v1544
      %v1566 = vpack.c.b16 %v1547, %v1546
      %v1567 = vpack.c.b16 %v1549, %v1548
      %v1568 = vpack.c.b16 %v1551, %v1550
      %v1569 = vpack.c.b16 %v1553, %v1552
      %v1602 = vunpack.c.l.b16 %v797
      %v1603 = vunpack.c.l.b16 %v798
      %v1604 = vunpack.c.l.b16 %v799
      %v1605 = vunpack.c.l.b16 %v800
      %v1606 = vunpack.c.l.b16 %v801
      %v1607 = vunpack.c.l.b16 %v802
      %v1608 = vunpack.c.l.b16 %v803
      %v1609 = vunpack.c.l.b16 %v804
      %v1610 = vunpack.c.l.b16 %v805
      %v1611 = vunpack.c.l.b16 %v806
      %v1612 = vunpack.c.l.b16 %v807
      %v1613 = vunpack.c.l.b16 %v808
      %v1614 = vunpack.c.l.b16 %v809
      %v1615 = vunpack.c.l.b16 %v810
      %v1616 = vunpack.c.l.b16 %v811
      %v1617 = vunpack.c.l.b16 %v812
      %v1618 = vpack.c.b16 %v1603, %v1602
      %v1619 = vpack.c.b16 %v1605, %v1604
      %v1620 = vpack.c.b16 %v1607, %v1606
      %v1621 = vpack.c.b16 %v1609, %v1608
      %v1622 = vpack.c.b16 %v1611, %v1610
      %v1623 = vpack.c.b16 %v1613, %v1612
      %v1624 = vpack.c.b16 %v1615, %v1614
      %v1625 = vpack.c.b16 %v1617, %v1616
      %1634 = vmatprep.subr.bf16.mxu0 0
      %1635 = vmatpush1.bf16.msra.mxu0 %v1625
      %1636 = vmatprep.subr.bf16.mxu0 0
      %1637 = vmatpush1.bf16.msra.mxu0 %v1624
      %1638 = vmatprep.subr.bf16.mxu0 0
      %1639 = vmatpush1.bf16.msra.mxu0 %v1623
      %1640 = vmatprep.subr.bf16.mxu0 0
      %1641 = vmatpush1.bf16.msra.mxu0 %v1622
      %1642 = vmatprep.subr.bf16.mxu0 0
      %1643 = vmatpush1.bf16.msra.mxu0 %v1621
      %1644 = vmatprep.subr.bf16.mxu0 0
      %1645 = vmatpush1.bf16.msra.mxu0 %v1620
      %1646 = vmatprep.subr.bf16.mxu0 0
      %1647 = vmatpush1.bf16.msra.mxu0 %v1619
      %1648 = vmatprep.subr.bf16.mxu0 0
      %1649 = vmatpush1.bf16.msra.mxu0 %v1618
      %1650 = vmatprep.subr.bf16.mxu0 0
      %1651 = vmatpush2.bf16.msra.mxu0 0
      %1652 = vmatprep.subr.bf16.mxu0 0
      %1653 = vmatpush2.bf16.msra.mxu0 0
      %1654 = vmatprep.subr.bf16.mxu0 0
      %1655 = vmatpush2.bf16.msra.mxu0 0
      %1656 = vmatprep.subr.bf16.mxu0 0
      %1657 = vmatpush2.bf16.msra.mxu0 0
      %1658 = vmatprep.subr.bf16.mxu0 0
      %1659 = vmatpush2.bf16.msra.mxu0 0
      %1660 = vmatprep.subr.bf16.mxu0 0
      %1661 = vmatpush2.bf16.msra.mxu0 0
      %1662 = vmatprep.subr.bf16.mxu0 0
      %1663 = vmatpush2.bf16.msra.mxu0 0
      %1664 = vmatprep.subr.bf16.mxu0 0
      %1665 = vmatpush2.bf16.msra.mxu0 0
      %1666 = vmatprep.mubr.bf16.mxu0 0
      %1667 = vmatmul.mubr.bf16.gmra.mxu0 %v1554
      %v1668 = vpop.f32.mrf.mxu0
      %v1669 = vadd.f32 %v1364, %v1668
      %v1670 = vpop.f32.mrf.mxu0
      %v1671 = vpop.f32.mrf.mxu0
      %v1672 = vadd.f32 %v1367, %v1671
      %v1673 = vpop.f32.mrf.mxu0
      %1674 = vmatprep.mubr.bf16.mxu0 0
      %1675 = vmatmul.mubr.bf16.gmra.mxu0 %v1555
      %v1676 = vpop.f32.mrf.mxu0
      %v1677 = vadd.f32 %v1372, %v1676
      %v1678 = vpop.f32.mrf.mxu0
      %v1679 = vpop.f32.mrf.mxu0
      %v1680 = vadd.f32 %v1375, %v1679
      %v1681 = vpop.f32.mrf.mxu0
      %1682 = vmatprep.mubr.bf16.mxu0 0
      %1683 = vmatmul.mubr.bf16.gmra.mxu0 %v1556
      %v1684 = vpop.f32.mrf.mxu0
      %v1685 = vadd.f32 %v1380, %v1684
      %v1686 = vpop.f32.mrf.mxu0
      %v1687 = vpop.f32.mrf.mxu0
      %v1688 = vadd.f32 %v1383, %v1687
      %v1689 = vpop.f32.mrf.mxu0
      %1690 = vmatprep.mubr.bf16.mxu0 0
      %1691 = vmatmul.mubr.bf16.gmra.mxu0 %v1557
      %v1692 = vpop.f32.mrf.mxu0
      %v1693 = vadd.f32 %v1388, %v1692
      %v1694 = vpop.f32.mrf.mxu0
      %v1695 = vpop.f32.mrf.mxu0
      %v1696 = vadd.f32 %v1391, %v1695
      %v1697 = vpop.f32.mrf.mxu0
      %1698 = vmatprep.mubr.bf16.mxu0 0
      %1699 = vmatmul.mubr.bf16.gmra.mxu0 %v1558
      %v1700 = vpop.f32.mrf.mxu0
      %v1701 = vadd.f32 %v1396, %v1700
      %v1702 = vpop.f32.mrf.mxu0
      %v1703 = vpop.f32.mrf.mxu0
      %v1704 = vadd.f32 %v1399, %v1703
      %v1705 = vpop.f32.mrf.mxu0
      %1706 = vmatprep.mubr.bf16.mxu0 0
      %1707 = vmatmul.mubr.bf16.gmra.mxu0 %v1559
      %v1708 = vpop.f32.mrf.mxu0
      %v1709 = vadd.f32 %v1404, %v1708
      %v1710 = vpop.f32.mrf.mxu0
      %v1711 = vpop.f32.mrf.mxu0
      %v1712 = vadd.f32 %v1407, %v1711
      %v1713 = vpop.f32.mrf.mxu0
      %1714 = vmatprep.mubr.bf16.mxu0 0
      %1715 = vmatmul.mubr.bf16.gmra.mxu0 %v1560
      %v1716 = vpop.f32.mrf.mxu0
      %v1717 = vadd.f32 %v1412, %v1716
      %v1718 = vpop.f32.mrf.mxu0
      %v1719 = vpop.f32.mrf.mxu0
      %v1720 = vadd.f32 %v1415, %v1719
      %v1721 = vpop.f32.mrf.mxu0
      %1722 = vmatprep.mubr.bf16.mxu0 0
      %1723 = vmatmul.mubr.bf16.gmra.mxu0 %v1561
      %v1724 = vpop.f32.mrf.mxu0
      %v1725 = vadd.f32 %v1420, %v1724
      %v1726 = vpop.f32.mrf.mxu0
      %v1727 = vpop.f32.mrf.mxu0
      %v1728 = vadd.f32 %v1423, %v1727
      %v1729 = vpop.f32.mrf.mxu0
      %1730 = vmatprep.mubr.bf16.mxu0 0
      %1731 = vmatmul.mubr.bf16.gmra.mxu0 %v1562
      %v1732 = vpop.f32.mrf.mxu0
      %v1733 = vadd.f32 %v1428, %v1732
      %v1734 = vpop.f32.mrf.mxu0
      %v1735 = vpop.f32.mrf.mxu0
      %v1736 = vadd.f32 %v1431, %v1735
      %v1737 = vpop.f32.mrf.mxu0
      %1738 = vmatprep.mubr.bf16.mxu0 0
      %1739 = vmatmul.mubr.bf16.gmra.mxu0 %v1563
      %v1740 = vpop.f32.mrf.mxu0
      %v1741 = vadd.f32 %v1436, %v1740
      %v1742 = vpop.f32.mrf.mxu0
      %v1743 = vpop.f32.mrf.mxu0
      %v1744 = vadd.f32 %v1439, %v1743
      %v1745 = vpop.f32.mrf.mxu0
      %1746 = vmatprep.mubr.bf16.mxu0 0
      %1747 = vmatmul.mubr.bf16.gmra.mxu0 %v1564
      %v1748 = vpop.f32.mrf.mxu0
      %v1749 = vadd.f32 %v1444, %v1748
      %v1750 = vpop.f32.mrf.mxu0
      %v1751 = vpop.f32.mrf.mxu0
      %v1752 = vadd.f32 %v1447, %v1751
      %v1753 = vpop.f32.mrf.mxu0
      %1754 = vmatprep.mubr.bf16.mxu0 0
      %1755 = vmatmul.mubr.bf16.gmra.mxu0 %v1565
      %v1756 = vpop.f32.mrf.mxu0
      %v1757 = vadd.f32 %v1452, %v1756
      %v1758 = vpop.f32.mrf.mxu0
      %v1759 = vpop.f32.mrf.mxu0
      %v1760 = vadd.f32 %v1455, %v1759
      %v1761 = vpop.f32.mrf.mxu0
      %1762 = vmatprep.mubr.bf16.mxu0 0
      %1763 = vmatmul.mubr.bf16.gmra.mxu0 %v1566
      %v1764 = vpop.f32.mrf.mxu0
      %v1765 = vadd.f32 %v1460, %v1764
      %v1766 = vpop.f32.mrf.mxu0
      %v1767 = vpop.f32.mrf.mxu0
      %v1768 = vadd.f32 %v1463, %v1767
      %v1769 = vpop.f32.mrf.mxu0
      %1770 = vmatprep.mubr.bf16.mxu0 0
      %1771 = vmatmul.mubr.bf16.gmra.mxu0 %v1567
      %v1772 = vpop.f32.mrf.mxu0
      %v1773 = vadd.f32 %v1468, %v1772
      %v1774 = vpop.f32.mrf.mxu0
      %v1775 = vpop.f32.mrf.mxu0
      %v1776 = vadd.f32 %v1471, %v1775
      %v1777 = vpop.f32.mrf.mxu0
      %1778 = vmatprep.mubr.bf16.mxu0 0
      %1779 = vmatmul.mubr.bf16.gmra.mxu0 %v1568
      %v1780 = vpop.f32.mrf.mxu0
      %v1781 = vadd.f32 %v1476, %v1780
      %v1782 = vpop.f32.mrf.mxu0
      %v1783 = vpop.f32.mrf.mxu0
      %v1784 = vadd.f32 %v1479, %v1783
      %v1785 = vpop.f32.mrf.mxu0
      %1786 = vmatprep.mubr.bf16.mxu0 0
      %1787 = vmatmul.mubr.bf16.gmra.mxu0 %v1569
      %v1788 = vpop.f32.mrf.mxu0
      %v1789 = vadd.f32 %v1484, %v1788
      %v1790 = vpop.f32.mrf.mxu0
      %v1791 = vpop.f32.mrf.mxu0
      %v1792 = vadd.f32 %v1487, %v1791
      %v1793 = vpop.f32.mrf.mxu0
      %1794 = vdwg.mxu0
      %vm1811 = vcmask 1042432
      %vm1812 = vcmask 1046532
      %vm1813 = vmor %vm1811, %vm1812
      %v1814 = vrot.slane %v743, 5
      %v1815 = vrot.slane %v1814, 4
      %v1816 = vrot.slane %v744, 5
      %v1817 = vsel %vm1813, %v1815, %v1816
      %v1818 = vrot.slane %v1816, 4
      %v1819 = vrot.slane %v745, 5
      %v1820 = vsel %vm1813, %v1818, %v1819
      %v1821 = vrot.slane %v746, 5
      %v1822 = vrot.slane %v1821, 4
      %v1823 = vrot.slane %v747, 5
      %v1824 = vsel %vm1813, %v1822, %v1823
      %v1825 = vrot.slane %v1823, 4
      %v1826 = vrot.slane %v748, 5
      %v1827 = vsel %vm1813, %v1825, %v1826
      %v1828 = vrot.slane %v749, 5
      %v1829 = vrot.slane %v1828, 4
      %v1830 = vrot.slane %v750, 5
      %v1831 = vsel %vm1813, %v1829, %v1830
      %v1832 = vrot.slane %v1830, 4
      %v1833 = vrot.slane %v751, 5
      %v1834 = vsel %vm1813, %v1832, %v1833
      %v1835 = vrot.slane %v752, 5
      %v1836 = vrot.slane %v1835, 4
      %v1837 = vrot.slane %v753, 5
      %v1838 = vsel %vm1813, %v1836, %v1837
      %v1839 = vrot.slane %v1837, 4
      %v1840 = vrot.slane %v754, 5
      %v1841 = vsel %vm1813, %v1839, %v1840
      %v1842 = vrot.slane %v755, 5
      %v1843 = vrot.slane %v1842, 4
      %v1844 = vrot.slane %v756, 5
      %v1845 = vsel %vm1813, %v1843, %v1844
      %v1846 = vrot.slane %v1844, 4
      %v1847 = vrot.slane %v757, 5
      %v1848 = vsel %vm1813, %v1846, %v1847
      %v1849 = vrot.slane %v758, 5
      %v1850 = vrot.slane %v1849, 4
      %v1851 = vrot.slane %v759, 5
      %v1852 = vsel %vm1813, %v1850, %v1851
      %v1853 = vrot.slane %v1851, 4
      %v1854 = vrot.slane %v760, 5
      %v1855 = vsel %vm1813, %v1853, %v1854
      %v1856 = vrot.slane %v761, 5
      %v1857 = vrot.slane %v1856, 4
      %v1858 = vrot.slane %v762, 5
      %v1859 = vsel %vm1813, %v1857, %v1858
      %v1860 = vrot.slane %v1858, 4
      %v1861 = vrot.slane %v763, 5
      %v1862 = vsel %vm1813, %v1860, %v1861
      %v1863 = vrot.slane %v764, 5
      %v1864 = vrot.slane %v1863, 4
      %v1865 = vrot.slane %v765, 5
      %v1866 = vsel %vm1813, %v1864, %v1865
      %v1867 = vrot.slane %v1865, 4
      %v1868 = vrot.slane %v766, 5
      %v1869 = vsel %vm1813, %v1867, %v1868
      %v1870 = vrot.slane %v767, 5
      %v1871 = vrot.slane %v1870, 4
      %v1872 = vrot.slane %v768, 5
      %v1873 = vsel %vm1813, %v1871, %v1872
      %v1874 = vrot.slane %v1872, 4
      %v1875 = vrot.slane %v769, 5
      %v1876 = vsel %vm1813, %v1874, %v1875
      %v1877 = vrot.slane %v770, 5
      %v1878 = vrot.slane %v1877, 4
      %v1879 = vrot.slane %v771, 5
      %v1880 = vsel %vm1813, %v1878, %v1879
      %v1881 = vrot.slane %v1879, 4
      %v1882 = vrot.slane %v772, 5
      %v1883 = vsel %vm1813, %v1881, %v1882
      %v1884 = vrot.slane %v773, 5
      %v1885 = vrot.slane %v1884, 4
      %v1886 = vrot.slane %v774, 5
      %v1887 = vsel %vm1813, %v1885, %v1886
      %v1888 = vrot.slane %v1886, 4
      %v1889 = vrot.slane %v775, 5
      %v1890 = vsel %vm1813, %v1888, %v1889
      %v1891 = vrot.slane %v776, 5
      %v1892 = vrot.slane %v1891, 4
      %v1893 = vrot.slane %v777, 5
      %v1894 = vsel %vm1813, %v1892, %v1893
      %v1895 = vrot.slane %v1893, 4
      %v1896 = vrot.slane %v778, 5
      %v1897 = vsel %vm1813, %v1895, %v1896
      %v1898 = vrot.slane %v779, 5
      %v1899 = vrot.slane %v1898, 4
      %v1900 = vrot.slane %v780, 5
      %v1901 = vsel %vm1813, %v1899, %v1900
      %v1902 = vrot.slane %v1900, 4
      %v1903 = vrot.slane %v781, 5
      %v1904 = vsel %vm1813, %v1902, %v1903
      %v1905 = vrot.slane %v782, 5
      %v1906 = vrot.slane %v1905, 4
      %v1907 = vrot.slane %v783, 5
      %v1908 = vsel %vm1813, %v1906, %v1907
      %v1909 = vrot.slane %v1907, 4
      %v1910 = vrot.slane %v784, 5
      %v1911 = vsel %vm1813, %v1909, %v1910
      %v1912 = vrot.slane %v785, 5
      %v1913 = vrot.slane %v1912, 4
      %v1914 = vrot.slane %v786, 5
      %v1915 = vsel %vm1813, %v1913, %v1914
      %v1916 = vrot.slane %v1914, 4
      %v1917 = vrot.slane %v787, 5
      %v1918 = vsel %vm1813, %v1916, %v1917
      %v1919 = vrot.slane %v788, 5
      %v1920 = vrot.slane %v1919, 4
      %v1921 = vrot.slane %v789, 5
      %v1922 = vsel %vm1813, %v1920, %v1921
      %v1923 = vrot.slane %v1921, 4
      %v1924 = vrot.slane %v790, 5
      %v1925 = vsel %vm1813, %v1923, %v1924
      %s1926 = scalar_lea.vmem %s1, 128
      %v1927 = vld [vmem:[%s1926] sm:$0xf]
      %v1928 = vld [vmem:[%s1926 + $0x4] sm:$0xf]
      %v1929 = vld [vmem:[%s1926 + $0x8] sm:$0xf]
      %v1930 = vld [vmem:[%s1926 + $0xc] sm:$0xf]
      %v1931 = vld [vmem:[%s1926 + $0x10] sm:$0xf]
      %v1932 = vld [vmem:[%s1926 + $0x14] sm:$0xf]
      %v1933 = vld [vmem:[%s1926 + $0x18] sm:$0xf]
      %v1934 = vld [vmem:[%s1926 + $0x1c] sm:$0xf]
      %v1935 = vld [vmem:[%s1926 + $0x20] sm:$0xf]
      %v1936 = vld [vmem:[%s1926 + $0x24] sm:$0xf]
      %v1937 = vld [vmem:[%s1926 + $0x28] sm:$0xf]
      %v1938 = vld [vmem:[%s1926 + $0x2c] sm:$0xf]
      %v1939 = vld [vmem:[%s1926 + $0x30] sm:$0xf]
      %v1940 = vld [vmem:[%s1926 + $0x34] sm:$0xf]
      %v1941 = vld [vmem:[%s1926 + $0x38] sm:$0xf]
      %v1942 = vld [vmem:[%s1926 + $0x3c] sm:$0xf]
      %v1943 = vunpack.c.l.b16 %v1817
      %v1944 = vunpack.c.l.b16 %v1820
      %v1945 = vunpack.c.l.b16 %v1824
      %v1946 = vunpack.c.l.b16 %v1827
      %v1947 = vunpack.c.l.b16 %v1831
      %v1948 = vunpack.c.l.b16 %v1834
      %v1949 = vunpack.c.l.b16 %v1838
      %v1950 = vunpack.c.l.b16 %v1841
      %v1951 = vunpack.c.l.b16 %v1845
      %v1952 = vunpack.c.l.b16 %v1848
      %v1953 = vunpack.c.l.b16 %v1852
      %v1954 = vunpack.c.l.b16 %v1855
      %v1955 = vunpack.c.l.b16 %v1859
      %v1956 = vunpack.c.l.b16 %v1862
      %v1957 = vunpack.c.l.b16 %v1866
      %v1958 = vunpack.c.l.b16 %v1869
      %v1959 = vunpack.c.l.b16 %v1873
      %v1960 = vunpack.c.l.b16 %v1876
      %v1961 = vunpack.c.l.b16 %v1880
      %v1962 = vunpack.c.l.b16 %v1883
      %v1963 = vunpack.c.l.b16 %v1887
      %v1964 = vunpack.c.l.b16 %v1890
      %v1965 = vunpack.c.l.b16 %v1894
      %v1966 = vunpack.c.l.b16 %v1897
      %v1967 = vunpack.c.l.b16 %v1901
      %v1968 = vunpack.c.l.b16 %v1904
      %v1969 = vunpack.c.l.b16 %v1908
      %v1970 = vunpack.c.l.b16 %v1911
      %v1971 = vunpack.c.l.b16 %v1915
      %v1972 = vunpack.c.l.b16 %v1918
      %v1973 = vunpack.c.l.b16 %v1922
      %v1974 = vunpack.c.l.b16 %v1925
      %v1975 = vpack.c.b16 %v1944, %v1943
      %v1976 = vpack.c.b16 %v1946, %v1945
      %v1977 = vpack.c.b16 %v1948, %v1947
      %v1978 = vpack.c.b16 %v1950, %v1949
      %v1979 = vpack.c.b16 %v1952, %v1951
      %v1980 = vpack.c.b16 %v1954, %v1953
      %v1981 = vpack.c.b16 %v1956, %v1955
      %v1982 = vpack.c.b16 %v1958, %v1957
      %v1983 = vpack.c.b16 %v1960, %v1959
      %v1984 = vpack.c.b16 %v1962, %v1961
      %v1985 = vpack.c.b16 %v1964, %v1963
      %v1986 = vpack.c.b16 %v1966, %v1965
      %v1987 = vpack.c.b16 %v1968, %v1967
      %v1988 = vpack.c.b16 %v1970, %v1969
      %v1989 = vpack.c.b16 %v1972, %v1971
      %v1990 = vpack.c.b16 %v1974, %v1973
      %v2023 = vunpack.c.l.b16 %v1927
      %v2024 = vunpack.c.l.b16 %v1928
      %v2025 = vunpack.c.l.b16 %v1929
      %v2026 = vunpack.c.l.b16 %v1930
      %v2027 = vunpack.c.l.b16 %v1931
      %v2028 = vunpack.c.l.b16 %v1932
      %v2029 = vunpack.c.l.b16 %v1933
      %v2030 = vunpack.c.l.b16 %v1934
      %v2031 = vunpack.c.l.b16 %v1935
      %v2032 = vunpack.c.l.b16 %v1936
      %v2033 = vunpack.c.l.b16 %v1937
      %v2034 = vunpack.c.l.b16 %v1938
      %v2035 = vunpack.c.l.b16 %v1939
      %v2036 = vunpack.c.l.b16 %v1940
      %v2037 = vunpack.c.l.b16 %v1941
      %v2038 = vunpack.c.l.b16 %v1942
      %v2039 = vpack.c.b16 %v2024, %v2023
      %v2040 = vpack.c.b16 %v2026, %v2025
      %v2041 = vpack.c.b16 %v2028, %v2027
      %v2042 = vpack.c.b16 %v2030, %v2029
      %v2043 = vpack.c.b16 %v2032, %v2031
      %v2044 = vpack.c.b16 %v2034, %v2033
      %v2045 = vpack.c.b16 %v2036, %v2035
      %v2046 = vpack.c.b16 %v2038, %v2037
      %2055 = vmatprep.subr.bf16.mxu0 0
      %2056 = vmatpush1.bf16.msra.mxu0 %v2046
      %2057 = vmatprep.subr.bf16.mxu0 0
      %2058 = vmatpush1.bf16.msra.mxu0 %v2045
      %2059 = vmatprep.subr.bf16.mxu0 0
      %2060 = vmatpush1.bf16.msra.mxu0 %v2044
      %2061 = vmatprep.subr.bf16.mxu0 0
      %2062 = vmatpush1.bf16.msra.mxu0 %v2043
      %2063 = vmatprep.subr.bf16.mxu0 0
      %2064 = vmatpush1.bf16.msra.mxu0 %v2042
      %2065 = vmatprep.subr.bf16.mxu0 0
      %2066 = vmatpush1.bf16.msra.mxu0 %v2041
      %2067 = vmatprep.subr.bf16.mxu0 0
      %2068 = vmatpush1.bf16.msra.mxu0 %v2040
      %2069 = vmatprep.subr.bf16.mxu0 0
      %2070 = vmatpush1.bf16.msra.mxu0 %v2039
      %2071 = vmatprep.subr.bf16.mxu0 0
      %2072 = vmatpush2.bf16.msra.mxu0 0
      %2073 = vmatprep.subr.bf16.mxu0 0
      %2074 = vmatpush2.bf16.msra.mxu0 0
      %2075 = vmatprep.subr.bf16.mxu0 0
      %2076 = vmatpush2.bf16.msra.mxu0 0
      %2077 = vmatprep.subr.bf16.mxu0 0
      %2078 = vmatpush2.bf16.msra.mxu0 0
      %2079 = vmatprep.subr.bf16.mxu0 0
      %2080 = vmatpush2.bf16.msra.mxu0 0
      %2081 = vmatprep.subr.bf16.mxu0 0
      %2082 = vmatpush2.bf16.msra.mxu0 0
      %2083 = vmatprep.subr.bf16.mxu0 0
      %2084 = vmatpush2.bf16.msra.mxu0 0
      %2085 = vmatprep.subr.bf16.mxu0 0
      %2086 = vmatpush2.bf16.msra.mxu0 0
      %2087 = vmatprep.mubr.bf16.mxu0 0
      %2088 = vmatmul.mubr.bf16.gmra.mxu0 %v1975
      %v2089 = vpop.f32.mrf.mxu0
      %v2090 = vadd.f32 0.0, %v2089
      %v2091 = vpop.f32.mrf.mxu0
      %v2092 = vpop.f32.mrf.mxu0
      %v2093 = vadd.f32 0.0, %v2092
      %v2094 = vpop.f32.mrf.mxu0
      %2095 = vmatprep.mubr.bf16.mxu0 0
      %2096 = vmatmul.mubr.bf16.gmra.mxu0 %v1976
      %v2097 = vpop.f32.mrf.mxu0
      %v2098 = vadd.f32 0.0, %v2097
      %v2099 = vpop.f32.mrf.mxu0
      %v2100 = vpop.f32.mrf.mxu0
      %v2101 = vadd.f32 0.0, %v2100
      %v2102 = vpop.f32.mrf.mxu0
      %2103 = vmatprep.mubr.bf16.mxu0 0
      %2104 = vmatmul.mubr.bf16.gmra.mxu0 %v1977
      %v2105 = vpop.f32.mrf.mxu0
      %v2106 = vadd.f32 0.0, %v2105
      %v2107 = vpop.f32.mrf.mxu0
      %v2108 = vpop.f32.mrf.mxu0
      %v2109 = vadd.f32 0.0, %v2108
      %v2110 = vpop.f32.mrf.mxu0
      %2111 = vmatprep.mubr.bf16.mxu0 0
      %2112 = vmatmul.mubr.bf16.gmra.mxu0 %v1978
      %v2113 = vpop.f32.mrf.mxu0
      %v2114 = vadd.f32 0.0, %v2113
      %v2115 = vpop.f32.mrf.mxu0
      %v2116 = vpop.f32.mrf.mxu0
      %v2117 = vadd.f32 0.0, %v2116
      %v2118 = vpop.f32.mrf.mxu0
      %2119 = vmatprep.mubr.bf16.mxu0 0
      %2120 = vmatmul.mubr.bf16.gmra.mxu0 %v1979
      %v2121 = vpop.f32.mrf.mxu0
      %v2122 = vadd.f32 0.0, %v2121
      %v2123 = vpop.f32.mrf.mxu0
      %v2124 = vpop.f32.mrf.mxu0
      %v2125 = vadd.f32 0.0, %v2124
      %v2126 = vpop.f32.mrf.mxu0
      %2127 = vmatprep.mubr.bf16.mxu0 0
      %2128 = vmatmul.mubr.bf16.gmra.mxu0 %v1980
      %v2129 = vpop.f32.mrf.mxu0
      %v2130 = vadd.f32 0.0, %v2129
      %v2131 = vpop.f32.mrf.mxu0
      %v2132 = vpop.f32.mrf.mxu0
      %v2133 = vadd.f32 0.0, %v2132
      %v2134 = vpop.f32.mrf.mxu0
      %2135 = vmatprep.mubr.bf16.mxu0 0
      %2136 = vmatmul.mubr.bf16.gmra.mxu0 %v1981
      %v2137 = vpop.f32.mrf.mxu0
      %v2138 = vadd.f32 0.0, %v2137
      %v2139 = vpop.f32.mrf.mxu0
      %v2140 = vpop.f32.mrf.mxu0
      %v2141 = vadd.f32 0.0, %v2140
      %v2142 = vpop.f32.mrf.mxu0
      %2143 = vmatprep.mubr.bf16.mxu0 0
      %2144 = vmatmul.mubr.bf16.gmra.mxu0 %v1982
      %v2145 = vpop.f32.mrf.mxu0
      %v2146 = vadd.f32 0.0, %v2145
      %v2147 = vpop.f32.mrf.mxu0
      %v2148 = vpop.f32.mrf.mxu0
      %v2149 = vadd.f32 0.0, %v2148
      %v2150 = vpop.f32.mrf.mxu0
      %2151 = vmatprep.mubr.bf16.mxu0 0
      %2152 = vmatmul.mubr.bf16.gmra.mxu0 %v1983
      %v2153 = vpop.f32.mrf.mxu0
      %v2154 = vadd.f32 0.0, %v2153
      %v2155 = vpop.f32.mrf.mxu0
      %v2156 = vpop.f32.mrf.mxu0
      %v2157 = vadd.f32 0.0, %v2156
      %v2158 = vpop.f32.mrf.mxu0
      %2159 = vmatprep.mubr.bf16.mxu0 0
      %2160 = vmatmul.mubr.bf16.gmra.mxu0 %v1984
      %v2161 = vpop.f32.mrf.mxu0
      %v2162 = vadd.f32 0.0, %v2161
      %v2163 = vpop.f32.mrf.mxu0
      %v2164 = vpop.f32.mrf.mxu0
      %v2165 = vadd.f32 0.0, %v2164
      %v2166 = vpop.f32.mrf.mxu0
      %2167 = vmatprep.mubr.bf16.mxu0 0
      %2168 = vmatmul.mubr.bf16.gmra.mxu0 %v1985
      %v2169 = vpop.f32.mrf.mxu0
      %v2170 = vadd.f32 0.0, %v2169
      %v2171 = vpop.f32.mrf.mxu0
      %v2172 = vpop.f32.mrf.mxu0
      %v2173 = vadd.f32 0.0, %v2172
      %v2174 = vpop.f32.mrf.mxu0
      %2175 = vmatprep.mubr.bf16.mxu0 0
      %2176 = vmatmul.mubr.bf16.gmra.mxu0 %v1986
      %v2177 = vpop.f32.mrf.mxu0
      %v2178 = vadd.f32 0.0, %v2177
      %v2179 = vpop.f32.mrf.mxu0
      %v2180 = vpop.f32.mrf.mxu0
      %v2181 = vadd.f32 0.0, %v2180
      %v2182 = vpop.f32.mrf.mxu0
      %2183 = vmatprep.mubr.bf16.mxu0 0
      %2184 = vmatmul.mubr.bf16.gmra.mxu0 %v1987
      %v2185 = vpop.f32.mrf.mxu0
      %v2186 = vadd.f32 0.0, %v2185
      %v2187 = vpop.f32.mrf.mxu0
      %v2188 = vpop.f32.mrf.mxu0
      %v2189 = vadd.f32 0.0, %v2188
      %v2190 = vpop.f32.mrf.mxu0
      %2191 = vmatprep.mubr.bf16.mxu0 0
      %2192 = vmatmul.mubr.bf16.gmra.mxu0 %v1988
      %v2193 = vpop.f32.mrf.mxu0
      %v2194 = vadd.f32 0.0, %v2193
      %v2195 = vpop.f32.mrf.mxu0
      %v2196 = vpop.f32.mrf.mxu0
      %v2197 = vadd.f32 0.0, %v2196
      %v2198 = vpop.f32.mrf.mxu0
      %2199 = vmatprep.mubr.bf16.mxu0 0
      %2200 = vmatmul.mubr.bf16.gmra.mxu0 %v1989
      %v2201 = vpop.f32.mrf.mxu0
      %v2202 = vadd.f32 0.0, %v2201
      %v2203 = vpop.f32.mrf.mxu0
      %v2204 = vpop.f32.mrf.mxu0
      %v2205 = vadd.f32 0.0, %v2204
      %v2206 = vpop.f32.mrf.mxu0
      %2207 = vmatprep.mubr.bf16.mxu0 0
      %2208 = vmatmul.mubr.bf16.gmra.mxu0 %v1990
      %v2209 = vpop.f32.mrf.mxu0
      %v2210 = vadd.f32 0.0, %v2209
      %v2211 = vpop.f32.mrf.mxu0
      %v2212 = vpop.f32.mrf.mxu0
      %v2213 = vadd.f32 0.0, %v2212
      %v2214 = vpop.f32.mrf.mxu0
      %2215 = vdwg.mxu0
      %v2216 = vadd.f32 %v1669, %v2090
      %v2217 = vadd.f32 %v1672, %v2093
      %v2218 = vadd.f32 %v1677, %v2098
      %v2219 = vadd.f32 %v1680, %v2101
      %v2220 = vadd.f32 %v1685, %v2106
      %v2221 = vadd.f32 %v1688, %v2109
      %v2222 = vadd.f32 %v1693, %v2114
      %v2223 = vadd.f32 %v1696, %v2117
      %v2224 = vadd.f32 %v1701, %v2122
      %v2225 = vadd.f32 %v1704, %v2125
      %v2226 = vadd.f32 %v1709, %v2130
      %v2227 = vadd.f32 %v1712, %v2133
      %v2228 = vadd.f32 %v1717, %v2138
      %v2229 = vadd.f32 %v1720, %v2141
      %v2230 = vadd.f32 %v1725, %v2146
      %v2231 = vadd.f32 %v1728, %v2149
      %v2232 = vadd.f32 %v1733, %v2154
      %v2233 = vadd.f32 %v1736, %v2157
      %v2234 = vadd.f32 %v1741, %v2162
      %v2235 = vadd.f32 %v1744, %v2165
      %v2236 = vadd.f32 %v1749, %v2170
      %v2237 = vadd.f32 %v1752, %v2173
      %v2238 = vadd.f32 %v1757, %v2178
      %v2239 = vadd.f32 %v1760, %v2181
      %v2240 = vadd.f32 %v1765, %v2186
      %v2241 = vadd.f32 %v1768, %v2189
      %v2242 = vadd.f32 %v1773, %v2194
      %v2243 = vadd.f32 %v1776, %v2197
      %v2244 = vadd.f32 %v1781, %v2202
      %v2245 = vadd.f32 %v1784, %v2205
      %v2246 = vadd.f32 %v1789, %v2210
      %v2247 = vadd.f32 %v1792, %v2213
      %s2248 = scalar_lea.vmem %s1, 192
      %v2249 = vld [vmem:[%s2248] sm:$0xf]
      %v2250 = vld [vmem:[%s2248 + $0x4] sm:$0xf]
      %v2251 = vld [vmem:[%s2248 + $0x8] sm:$0xf]
      %v2252 = vld [vmem:[%s2248 + $0xc] sm:$0xf]
      %v2253 = vld [vmem:[%s2248 + $0x10] sm:$0xf]
      %v2254 = vld [vmem:[%s2248 + $0x14] sm:$0xf]
      %v2255 = vld [vmem:[%s2248 + $0x18] sm:$0xf]
      %v2256 = vld [vmem:[%s2248 + $0x1c] sm:$0xf]
      %v2257 = vld [vmem:[%s2248 + $0x20] sm:$0xf]
      %v2258 = vld [vmem:[%s2248 + $0x24] sm:$0xf]
      %v2259 = vld [vmem:[%s2248 + $0x28] sm:$0xf]
      %v2260 = vld [vmem:[%s2248 + $0x2c] sm:$0xf]
      %v2261 = vld [vmem:[%s2248 + $0x30] sm:$0xf]
      %v2262 = vld [vmem:[%s2248 + $0x34] sm:$0xf]
      %v2263 = vld [vmem:[%s2248 + $0x38] sm:$0xf]
      %v2264 = vld [vmem:[%s2248 + $0x3c] sm:$0xf]
      %v2267 = vunpack.c.l.b16 %v791
      %v2268 = vunpack.c.l.b16 %v792
      %v2269 = vpack.c.b16 %v2268, %v2267
      %v2287 = vunpack.c.l.b16 %v2249
      %v2288 = vunpack.c.l.b16 %v2250
      %v2289 = vunpack.c.l.b16 %v2251
      %v2290 = vunpack.c.l.b16 %v2252
      %v2291 = vunpack.c.l.b16 %v2253
      %v2292 = vunpack.c.l.b16 %v2254
      %v2293 = vunpack.c.l.b16 %v2255
      %v2294 = vunpack.c.l.b16 %v2256
      %v2295 = vunpack.c.l.b16 %v2257
      %v2296 = vunpack.c.l.b16 %v2258
      %v2297 = vunpack.c.l.b16 %v2259
      %v2298 = vunpack.c.l.b16 %v2260
      %v2299 = vunpack.c.l.b16 %v2261
      %v2300 = vunpack.c.l.b16 %v2262
      %v2301 = vunpack.c.l.b16 %v2263
      %v2302 = vunpack.c.l.b16 %v2264
      %v2303 = vpack.c.b16 %v2288, %v2287
      %v2304 = vpack.c.b16 %v2290, %v2289
      %v2305 = vpack.c.b16 %v2292, %v2291
      %v2306 = vpack.c.b16 %v2294, %v2293
      %v2307 = vpack.c.b16 %v2296, %v2295
      %v2308 = vpack.c.b16 %v2298, %v2297
      %v2309 = vpack.c.b16 %v2300, %v2299
      %v2310 = vpack.c.b16 %v2302, %v2301
      %2319 = vmatprep.subr.bf16.mxu0 0
      %2320 = vmatpush1.bf16.msra.mxu0 %v2310
      %2321 = vmatprep.subr.bf16.mxu0 0
      %2322 = vmatpush1.bf16.msra.mxu0 %v2309
      %2323 = vmatprep.subr.bf16.mxu0 0
      %2324 = vmatpush1.bf16.msra.mxu0 %v2308
      %2325 = vmatprep.subr.bf16.mxu0 0
      %2326 = vmatpush1.bf16.msra.mxu0 %v2307
      %2327 = vmatprep.subr.bf16.mxu0 0
      %2328 = vmatpush1.bf16.msra.mxu0 %v2306
      %2329 = vmatprep.subr.bf16.mxu0 0
      %2330 = vmatpush1.bf16.msra.mxu0 %v2305
      %2331 = vmatprep.subr.bf16.mxu0 0
      %2332 = vmatpush1.bf16.msra.mxu0 %v2304
      %2333 = vmatprep.subr.bf16.mxu0 0
      %2334 = vmatpush1.bf16.msra.mxu0 %v2303
      %2335 = vmatprep.subr.bf16.mxu0 0
      %2336 = vmatpush2.bf16.msra.mxu0 0
      %2337 = vmatprep.subr.bf16.mxu0 0
      %2338 = vmatpush2.bf16.msra.mxu0 0
      %2339 = vmatprep.subr.bf16.mxu0 0
      %2340 = vmatpush2.bf16.msra.mxu0 0
      %2341 = vmatprep.subr.bf16.mxu0 0
      %2342 = vmatpush2.bf16.msra.mxu0 0
      %2343 = vmatprep.subr.bf16.mxu0 0
      %2344 = vmatpush2.bf16.msra.mxu0 0
      %2345 = vmatprep.subr.bf16.mxu0 0
      %2346 = vmatpush2.bf16.msra.mxu0 0
      %2347 = vmatprep.subr.bf16.mxu0 0
      %2348 = vmatpush2.bf16.msra.mxu0 0
      %2349 = vmatprep.subr.bf16.mxu0 0
      %2350 = vmatpush2.bf16.msra.mxu0 0
      %2351 = vmatprep.mubr.bf16.mxu0 0
      %2352 = vmatmul.mubr.bf16.gmra.mxu0 %v1555
      %v2353 = vpop.f32.mrf.mxu0
      %v2354 = vadd.f32 0.0, %v2353
      %v2355 = vpop.f32.mrf.mxu0
      %v2356 = vpop.f32.mrf.mxu0
      %v2357 = vadd.f32 0.0, %v2356
      %v2358 = vpop.f32.mrf.mxu0
      %2359 = vmatprep.mubr.bf16.mxu0 0
      %2360 = vmatmul.mubr.bf16.gmra.mxu0 %v1556
      %v2361 = vpop.f32.mrf.mxu0
      %v2362 = vadd.f32 0.0, %v2361
      %v2363 = vpop.f32.mrf.mxu0
      %v2364 = vpop.f32.mrf.mxu0
      %v2365 = vadd.f32 0.0, %v2364
      %v2366 = vpop.f32.mrf.mxu0
      %2367 = vmatprep.mubr.bf16.mxu0 0
      %2368 = vmatmul.mubr.bf16.gmra.mxu0 %v1557
      %v2369 = vpop.f32.mrf.mxu0
      %v2370 = vadd.f32 0.0, %v2369
      %v2371 = vpop.f32.mrf.mxu0
      %v2372 = vpop.f32.mrf.mxu0
      %v2373 = vadd.f32 0.0, %v2372
      %v2374 = vpop.f32.mrf.mxu0
      %2375 = vmatprep.mubr.bf16.mxu0 0
      %2376 = vmatmul.mubr.bf16.gmra.mxu0 %v1558
      %v2377 = vpop.f32.mrf.mxu0
      %v2378 = vadd.f32 0.0, %v2377
      %v2379 = vpop.f32.mrf.mxu0
      %v2380 = vpop.f32.mrf.mxu0
      %v2381 = vadd.f32 0.0, %v2380
      %v2382 = vpop.f32.mrf.mxu0
      %2383 = vmatprep.mubr.bf16.mxu0 0
      %2384 = vmatmul.mubr.bf16.gmra.mxu0 %v1559
      %v2385 = vpop.f32.mrf.mxu0
      %v2386 = vadd.f32 0.0, %v2385
      %v2387 = vpop.f32.mrf.mxu0
      %v2388 = vpop.f32.mrf.mxu0
      %v2389 = vadd.f32 0.0, %v2388
      %v2390 = vpop.f32.mrf.mxu0
      %2391 = vmatprep.mubr.bf16.mxu0 0
      %2392 = vmatmul.mubr.bf16.gmra.mxu0 %v1560
      %v2393 = vpop.f32.mrf.mxu0
      %v2394 = vadd.f32 0.0, %v2393
      %v2395 = vpop.f32.mrf.mxu0
      %v2396 = vpop.f32.mrf.mxu0
      %v2397 = vadd.f32 0.0, %v2396
      %v2398 = vpop.f32.mrf.mxu0
      %2399 = vmatprep.mubr.bf16.mxu0 0
      %2400 = vmatmul.mubr.bf16.gmra.mxu0 %v1561
      %v2401 = vpop.f32.mrf.mxu0
      %v2402 = vadd.f32 0.0, %v2401
      %v2403 = vpop.f32.mrf.mxu0
      %v2404 = vpop.f32.mrf.mxu0
      %v2405 = vadd.f32 0.0, %v2404
      %v2406 = vpop.f32.mrf.mxu0
      %2407 = vmatprep.mubr.bf16.mxu0 0
      %2408 = vmatmul.mubr.bf16.gmra.mxu0 %v1562
      %v2409 = vpop.f32.mrf.mxu0
      %v2410 = vadd.f32 0.0, %v2409
      %v2411 = vpop.f32.mrf.mxu0
      %v2412 = vpop.f32.mrf.mxu0
      %v2413 = vadd.f32 0.0, %v2412
      %v2414 = vpop.f32.mrf.mxu0
      %2415 = vmatprep.mubr.bf16.mxu0 0
      %2416 = vmatmul.mubr.bf16.gmra.mxu0 %v1563
      %v2417 = vpop.f32.mrf.mxu0
      %v2418 = vadd.f32 0.0, %v2417
      %v2419 = vpop.f32.mrf.mxu0
      %v2420 = vpop.f32.mrf.mxu0
      %v2421 = vadd.f32 0.0, %v2420
      %v2422 = vpop.f32.mrf.mxu0
      %2423 = vmatprep.mubr.bf16.mxu0 0
      %2424 = vmatmul.mubr.bf16.gmra.mxu0 %v1564
      %v2425 = vpop.f32.mrf.mxu0
      %v2426 = vadd.f32 0.0, %v2425
      %v2427 = vpop.f32.mrf.mxu0
      %v2428 = vpop.f32.mrf.mxu0
      %v2429 = vadd.f32 0.0, %v2428
      %v2430 = vpop.f32.mrf.mxu0
      %2431 = vmatprep.mubr.bf16.mxu0 0
      %2432 = vmatmul.mubr.bf16.gmra.mxu0 %v1565
      %v2433 = vpop.f32.mrf.mxu0
      %v2434 = vadd.f32 0.0, %v2433
      %v2435 = vpop.f32.mrf.mxu0
      %v2436 = vpop.f32.mrf.mxu0
      %v2437 = vadd.f32 0.0, %v2436
      %v2438 = vpop.f32.mrf.mxu0
      %2439 = vmatprep.mubr.bf16.mxu0 0
      %2440 = vmatmul.mubr.bf16.gmra.mxu0 %v1566
      %v2441 = vpop.f32.mrf.mxu0
      %v2442 = vadd.f32 0.0, %v2441
      %v2443 = vpop.f32.mrf.mxu0
      %v2444 = vpop.f32.mrf.mxu0
      %v2445 = vadd.f32 0.0, %v2444
      %v2446 = vpop.f32.mrf.mxu0
      %2447 = vmatprep.mubr.bf16.mxu0 0
      %2448 = vmatmul.mubr.bf16.gmra.mxu0 %v1567
      %v2449 = vpop.f32.mrf.mxu0
      %v2450 = vadd.f32 0.0, %v2449
      %v2451 = vpop.f32.mrf.mxu0
      %v2452 = vpop.f32.mrf.mxu0
      %v2453 = vadd.f32 0.0, %v2452
      %v2454 = vpop.f32.mrf.mxu0
      %2455 = vmatprep.mubr.bf16.mxu0 0
      %2456 = vmatmul.mubr.bf16.gmra.mxu0 %v1568
      %v2457 = vpop.f32.mrf.mxu0
      %v2458 = vadd.f32 0.0, %v2457
      %v2459 = vpop.f32.mrf.mxu0
      %v2460 = vpop.f32.mrf.mxu0
      %v2461 = vadd.f32 0.0, %v2460
      %v2462 = vpop.f32.mrf.mxu0
      %2463 = vmatprep.mubr.bf16.mxu0 0
      %2464 = vmatmul.mubr.bf16.gmra.mxu0 %v1569
      %v2465 = vpop.f32.mrf.mxu0
      %v2466 = vadd.f32 0.0, %v2465
      %v2467 = vpop.f32.mrf.mxu0
      %v2468 = vpop.f32.mrf.mxu0
      %v2469 = vadd.f32 0.0, %v2468
      %v2470 = vpop.f32.mrf.mxu0
      %2471 = vmatprep.mubr.bf16.mxu0 0
      %2472 = vmatmul.mubr.bf16.gmra.mxu0 %v2269
      %v2473 = vpop.f32.mrf.mxu0
      %v2474 = vadd.f32 0.0, %v2473
      %v2475 = vpop.f32.mrf.mxu0
      %v2476 = vpop.f32.mrf.mxu0
      %v2477 = vadd.f32 0.0, %v2476
      %v2478 = vpop.f32.mrf.mxu0
      %2479 = vdwg.mxu0
      %v2480 = vadd.f32 %v2216, %v2354
      %v2481 = vadd.f32 %v2217, %v2357
      %v2482 = vadd.f32 %v2218, %v2362
      %v2483 = vadd.f32 %v2219, %v2365
      %v2484 = vadd.f32 %v2220, %v2370
      %v2485 = vadd.f32 %v2221, %v2373
      %v2486 = vadd.f32 %v2222, %v2378
      %v2487 = vadd.f32 %v2223, %v2381
      %v2488 = vadd.f32 %v2224, %v2386
      %v2489 = vadd.f32 %v2225, %v2389
      %v2490 = vadd.f32 %v2226, %v2394
      %v2491 = vadd.f32 %v2227, %v2397
      %v2492 = vadd.f32 %v2228, %v2402
      %v2493 = vadd.f32 %v2229, %v2405
      %v2494 = vadd.f32 %v2230, %v2410
      %v2495 = vadd.f32 %v2231, %v2413
      %v2496 = vadd.f32 %v2232, %v2418
      %v2497 = vadd.f32 %v2233, %v2421
      %v2498 = vadd.f32 %v2234, %v2426
      %v2499 = vadd.f32 %v2235, %v2429
      %v2500 = vadd.f32 %v2236, %v2434
      %v2501 = vadd.f32 %v2237, %v2437
      %v2502 = vadd.f32 %v2238, %v2442
      %v2503 = vadd.f32 %v2239, %v2445
      %v2504 = vadd.f32 %v2240, %v2450
      %v2505 = vadd.f32 %v2241, %v2453
      %v2506 = vadd.f32 %v2242, %v2458
      %v2507 = vadd.f32 %v2243, %v2461
      %v2508 = vadd.f32 %v2244, %v2466
      %v2509 = vadd.f32 %v2245, %v2469
      %v2510 = vadd.f32 %v2246, %v2474
      %v2511 = vadd.f32 %v2247, %v2477
      %v2513 = vshrl.u32 %v791, 16
      %v2515 = vrot.slane %v2513, 4
      %v2516 = vshll.u32 %v791, 16
      %v2518 = vrot.slane %v2516, 5
      %v2519 = vor.u32 %v2515, %v2518
      %v2520 = vrot.slane %v2519, 4
      %v2522 = vshll.u32 %v792, 16
      %v2524 = vrot.slane %v2522, 5
      %v2525 = vsel %vm815, %v2520, %v2524
      %v2526 = vshrl.u32 %v792, 16
      %v2528 = vrot.slane %v2526, 4
      %v2529 = vor.u32 %v2528, %v2524
      %v2530 = vrot.slane %v2529, 4
      %v2532 = vshll.u32 %v793, 16
      %v2534 = vrot.slane %v2532, 5
      %v2535 = vsel %vm815, %v2530, %v2534
      %s2536 = scalar_lea.vmem %s1, 256
      %v2537 = vld [vmem:[%s2536] sm:$0xf]
      %v2538 = vld [vmem:[%s2536 + $0x4] sm:$0xf]
      %v2539 = vld [vmem:[%s2536 + $0x8] sm:$0xf]
      %v2540 = vld [vmem:[%s2536 + $0xc] sm:$0xf]
      %v2541 = vld [vmem:[%s2536 + $0x10] sm:$0xf]
      %v2542 = vld [vmem:[%s2536 + $0x14] sm:$0xf]
      %v2543 = vld [vmem:[%s2536 + $0x18] sm:$0xf]
      %v2544 = vld [vmem:[%s2536 + $0x1c] sm:$0xf]
      %v2545 = vld [vmem:[%s2536 + $0x20] sm:$0xf]
      %v2546 = vld [vmem:[%s2536 + $0x24] sm:$0xf]
      %v2547 = vld [vmem:[%s2536 + $0x28] sm:$0xf]
      %v2548 = vld [vmem:[%s2536 + $0x2c] sm:$0xf]
      %v2549 = vld [vmem:[%s2536 + $0x30] sm:$0xf]
      %v2550 = vld [vmem:[%s2536 + $0x34] sm:$0xf]
      %v2551 = vld [vmem:[%s2536 + $0x38] sm:$0xf]
      %v2552 = vld [vmem:[%s2536 + $0x3c] sm:$0xf]
      %v2553 = vunpack.c.l.b16 %v2525
      %v2554 = vunpack.c.l.b16 %v2535
      %v2555 = vpack.c.b16 %v2554, %v2553
      %v2573 = vunpack.c.l.b16 %v2537
      %v2574 = vunpack.c.l.b16 %v2538
      %v2575 = vunpack.c.l.b16 %v2539
      %v2576 = vunpack.c.l.b16 %v2540
      %v2577 = vunpack.c.l.b16 %v2541
      %v2578 = vunpack.c.l.b16 %v2542
      %v2579 = vunpack.c.l.b16 %v2543
      %v2580 = vunpack.c.l.b16 %v2544
      %v2581 = vunpack.c.l.b16 %v2545
      %v2582 = vunpack.c.l.b16 %v2546
      %v2583 = vunpack.c.l.b16 %v2547
      %v2584 = vunpack.c.l.b16 %v2548
      %v2585 = vunpack.c.l.b16 %v2549
      %v2586 = vunpack.c.l.b16 %v2550
      %v2587 = vunpack.c.l.b16 %v2551
      %v2588 = vunpack.c.l.b16 %v2552
      %v2589 = vpack.c.b16 %v2574, %v2573
      %v2590 = vpack.c.b16 %v2576, %v2575
      %v2591 = vpack.c.b16 %v2578, %v2577
      %v2592 = vpack.c.b16 %v2580, %v2579
      %v2593 = vpack.c.b16 %v2582, %v2581
      %v2594 = vpack.c.b16 %v2584, %v2583
      %v2595 = vpack.c.b16 %v2586, %v2585
      %v2596 = vpack.c.b16 %v2588, %v2587
      %2605 = vmatprep.subr.bf16.mxu0 0
      %2606 = vmatpush1.bf16.msra.mxu0 %v2596
      %2607 = vmatprep.subr.bf16.mxu0 0
      %2608 = vmatpush1.bf16.msra.mxu0 %v2595
      %2609 = vmatprep.subr.bf16.mxu0 0
      %2610 = vmatpush1.bf16.msra.mxu0 %v2594
      %2611 = vmatprep.subr.bf16.mxu0 0
      %2612 = vmatpush1.bf16.msra.mxu0 %v2593
      %2613 = vmatprep.subr.bf16.mxu0 0
      %2614 = vmatpush1.bf16.msra.mxu0 %v2592
      %2615 = vmatprep.subr.bf16.mxu0 0
      %2616 = vmatpush1.bf16.msra.mxu0 %v2591
      %2617 = vmatprep.subr.bf16.mxu0 0
      %2618 = vmatpush1.bf16.msra.mxu0 %v2590
      %2619 = vmatprep.subr.bf16.mxu0 0
      %2620 = vmatpush1.bf16.msra.mxu0 %v2589
      %2621 = vmatprep.subr.bf16.mxu0 0
      %2622 = vmatpush2.bf16.msra.mxu0 0
      %2623 = vmatprep.subr.bf16.mxu0 0
      %2624 = vmatpush2.bf16.msra.mxu0 0
      %2625 = vmatprep.subr.bf16.mxu0 0
      %2626 = vmatpush2.bf16.msra.mxu0 0
      %2627 = vmatprep.subr.bf16.mxu0 0
      %2628 = vmatpush2.bf16.msra.mxu0 0
      %2629 = vmatprep.subr.bf16.mxu0 0
      %2630 = vmatpush2.bf16.msra.mxu0 0
      %2631 = vmatprep.subr.bf16.mxu0 0
      %2632 = vmatpush2.bf16.msra.mxu0 0
      %2633 = vmatprep.subr.bf16.mxu0 0
      %2634 = vmatpush2.bf16.msra.mxu0 0
      %2635 = vmatprep.subr.bf16.mxu0 0
      %2636 = vmatpush2.bf16.msra.mxu0 0
      %2637 = vmatprep.mubr.bf16.mxu0 0
      %2638 = vmatmul.mubr.bf16.gmra.mxu0 %v1250
      %v2639 = vpop.f32.mrf.mxu0
      %v2640 = vadd.f32 0.0, %v2639
      %v2641 = vpop.f32.mrf.mxu0
      %v2642 = vpop.f32.mrf.mxu0
      %v2643 = vadd.f32 0.0, %v2642
      %v2644 = vpop.f32.mrf.mxu0
      %2645 = vmatprep.mubr.bf16.mxu0 0
      %2646 = vmatmul.mubr.bf16.gmra.mxu0 %v1251
      %v2647 = vpop.f32.mrf.mxu0
      %v2648 = vadd.f32 0.0, %v2647
      %v2649 = vpop.f32.mrf.mxu0
      %v2650 = vpop.f32.mrf.mxu0
      %v2651 = vadd.f32 0.0, %v2650
      %v2652 = vpop.f32.mrf.mxu0
      %2653 = vmatprep.mubr.bf16.mxu0 0
      %2654 = vmatmul.mubr.bf16.gmra.mxu0 %v1252
      %v2655 = vpop.f32.mrf.mxu0
      %v2656 = vadd.f32 0.0, %v2655
      %v2657 = vpop.f32.mrf.mxu0
      %v2658 = vpop.f32.mrf.mxu0
      %v2659 = vadd.f32 0.0, %v2658
      %v2660 = vpop.f32.mrf.mxu0
      %2661 = vmatprep.mubr.bf16.mxu0 0
      %2662 = vmatmul.mubr.bf16.gmra.mxu0 %v1253
      %v2663 = vpop.f32.mrf.mxu0
      %v2664 = vadd.f32 0.0, %v2663
      %v2665 = vpop.f32.mrf.mxu0
      %v2666 = vpop.f32.mrf.mxu0
      %v2667 = vadd.f32 0.0, %v2666
      %v2668 = vpop.f32.mrf.mxu0
      %2669 = vmatprep.mubr.bf16.mxu0 0
      %2670 = vmatmul.mubr.bf16.gmra.mxu0 %v1254
      %v2671 = vpop.f32.mrf.mxu0
      %v2672 = vadd.f32 0.0, %v2671
      %v2673 = vpop.f32.mrf.mxu0
      %v2674 = vpop.f32.mrf.mxu0
      %v2675 = vadd.f32 0.0, %v2674
      %v2676 = vpop.f32.mrf.mxu0
      %2677 = vmatprep.mubr.bf16.mxu0 0
      %2678 = vmatmul.mubr.bf16.gmra.mxu0 %v1255
      %v2679 = vpop.f32.mrf.mxu0
      %v2680 = vadd.f32 0.0, %v2679
      %v2681 = vpop.f32.mrf.mxu0
      %v2682 = vpop.f32.mrf.mxu0
      %v2683 = vadd.f32 0.0, %v2682
      %v2684 = vpop.f32.mrf.mxu0
      %2685 = vmatprep.mubr.bf16.mxu0 0
      %2686 = vmatmul.mubr.bf16.gmra.mxu0 %v1256
      %v2687 = vpop.f32.mrf.mxu0
      %v2688 = vadd.f32 0.0, %v2687
      %v2689 = vpop.f32.mrf.mxu0
      %v2690 = vpop.f32.mrf.mxu0
      %v2691 = vadd.f32 0.0, %v2690
      %v2692 = vpop.f32.mrf.mxu0
      %2693 = vmatprep.mubr.bf16.mxu0 0
      %2694 = vmatmul.mubr.bf16.gmra.mxu0 %v1257
      %v2695 = vpop.f32.mrf.mxu0
      %v2696 = vadd.f32 0.0, %v2695
      %v2697 = vpop.f32.mrf.mxu0
      %v2698 = vpop.f32.mrf.mxu0
      %v2699 = vadd.f32 0.0, %v2698
      %v2700 = vpop.f32.mrf.mxu0
      %2701 = vmatprep.mubr.bf16.mxu0 0
      %2702 = vmatmul.mubr.bf16.gmra.mxu0 %v1258
      %v2703 = vpop.f32.mrf.mxu0
      %v2704 = vadd.f32 0.0, %v2703
      %v2705 = vpop.f32.mrf.mxu0
      %v2706 = vpop.f32.mrf.mxu0
      %v2707 = vadd.f32 0.0, %v2706
      %v2708 = vpop.f32.mrf.mxu0
      %2709 = vmatprep.mubr.bf16.mxu0 0
      %2710 = vmatmul.mubr.bf16.gmra.mxu0 %v1259
      %v2711 = vpop.f32.mrf.mxu0
      %v2712 = vadd.f32 0.0, %v2711
      %v2713 = vpop.f32.mrf.mxu0
      %v2714 = vpop.f32.mrf.mxu0
      %v2715 = vadd.f32 0.0, %v2714
      %v2716 = vpop.f32.mrf.mxu0
      %2717 = vmatprep.mubr.bf16.mxu0 0
      %2718 = vmatmul.mubr.bf16.gmra.mxu0 %v1260
      %v2719 = vpop.f32.mrf.mxu0
      %v2720 = vadd.f32 0.0, %v2719
      %v2721 = vpop.f32.mrf.mxu0
      %v2722 = vpop.f32.mrf.mxu0
      %v2723 = vadd.f32 0.0, %v2722
      %v2724 = vpop.f32.mrf.mxu0
      %2725 = vmatprep.mubr.bf16.mxu0 0
      %2726 = vmatmul.mubr.bf16.gmra.mxu0 %v1261
      %v2727 = vpop.f32.mrf.mxu0
      %v2728 = vadd.f32 0.0, %v2727
      %v2729 = vpop.f32.mrf.mxu0
      %v2730 = vpop.f32.mrf.mxu0
      %v2731 = vadd.f32 0.0, %v2730
      %v2732 = vpop.f32.mrf.mxu0
      %2733 = vmatprep.mubr.bf16.mxu0 0
      %2734 = vmatmul.mubr.bf16.gmra.mxu0 %v1262
      %v2735 = vpop.f32.mrf.mxu0
      %v2736 = vadd.f32 0.0, %v2735
      %v2737 = vpop.f32.mrf.mxu0
      %v2738 = vpop.f32.mrf.mxu0
      %v2739 = vadd.f32 0.0, %v2738
      %v2740 = vpop.f32.mrf.mxu0
      %2741 = vmatprep.mubr.bf16.mxu0 0
      %2742 = vmatmul.mubr.bf16.gmra.mxu0 %v1263
      %v2743 = vpop.f32.mrf.mxu0
      %v2744 = vadd.f32 0.0, %v2743
      %v2745 = vpop.f32.mrf.mxu0
      %v2746 = vpop.f32.mrf.mxu0
      %v2747 = vadd.f32 0.0, %v2746
      %v2748 = vpop.f32.mrf.mxu0
      %2749 = vmatprep.mubr.bf16.mxu0 0
      %2750 = vmatmul.mubr.bf16.gmra.mxu0 %v1264
      %v2751 = vpop.f32.mrf.mxu0
      %v2752 = vadd.f32 0.0, %v2751
      %v2753 = vpop.f32.mrf.mxu0
      %v2754 = vpop.f32.mrf.mxu0
      %v2755 = vadd.f32 0.0, %v2754
      %v2756 = vpop.f32.mrf.mxu0
      %2757 = vmatprep.mubr.bf16.mxu0 0
      %2758 = vmatmul.mubr.bf16.gmra.mxu0 %v2555
      %v2759 = vpop.f32.mrf.mxu0
      %v2760 = vadd.f32 0.0, %v2759
      %v2761 = vpop.f32.mrf.mxu0
      %v2762 = vpop.f32.mrf.mxu0
      %v2763 = vadd.f32 0.0, %v2762
      %v2764 = vpop.f32.mrf.mxu0
      %2765 = vdwg.mxu0
      %v2766 = vadd.f32 %v2480, %v2640
      %v2767 = vadd.f32 %v2481, %v2643
      %v2768 = vadd.f32 %v2482, %v2648
      %v2769 = vadd.f32 %v2483, %v2651
      %v2770 = vadd.f32 %v2484, %v2656
      %v2771 = vadd.f32 %v2485, %v2659
      %v2772 = vadd.f32 %v2486, %v2664
      %v2773 = vadd.f32 %v2487, %v2667
      %v2774 = vadd.f32 %v2488, %v2672
      %v2775 = vadd.f32 %v2489, %v2675
      %v2776 = vadd.f32 %v2490, %v2680
      %v2777 = vadd.f32 %v2491, %v2683
      %v2778 = vadd.f32 %v2492, %v2688
      %v2779 = vadd.f32 %v2493, %v2691
      %v2780 = vadd.f32 %v2494, %v2696
      %v2781 = vadd.f32 %v2495, %v2699
      %v2782 = vadd.f32 %v2496, %v2704
      %v2783 = vadd.f32 %v2497, %v2707
      %v2784 = vadd.f32 %v2498, %v2712
      %v2785 = vadd.f32 %v2499, %v2715
      %v2786 = vadd.f32 %v2500, %v2720
      %v2787 = vadd.f32 %v2501, %v2723
      %v2788 = vadd.f32 %v2502, %v2728
      %v2789 = vadd.f32 %v2503, %v2731
      %v2790 = vadd.f32 %v2504, %v2736
      %v2791 = vadd.f32 %v2505, %v2739
      %v2792 = vadd.f32 %v2506, %v2744
      %v2793 = vadd.f32 %v2507, %v2747
      %v2794 = vadd.f32 %v2508, %v2752
      %v2795 = vadd.f32 %v2509, %v2755
      %v2796 = vadd.f32 %v2510, %v2760
      %v2797 = vadd.f32 %v2511, %v2763
      %v2799 = vrot.slane %v791, 5
      %v2800 = vrot.slane %v2799, 4
      %v2801 = vrot.slane %v792, 5
      %v2802 = vsel %vm1813, %v2800, %v2801
      %v2803 = vrot.slane %v2801, 4
      %v2804 = vrot.slane %v793, 5
      %v2805 = vsel %vm1813, %v2803, %v2804
      %s2806 = scalar_lea.vmem %s1, 320
      %v2807 = vld [vmem:[%s2806] sm:$0xf]
      %v2808 = vld [vmem:[%s2806 + $0x4] sm:$0xf]
      %v2809 = vld [vmem:[%s2806 + $0x8] sm:$0xf]
      %v2810 = vld [vmem:[%s2806 + $0xc] sm:$0xf]
      %v2811 = vld [vmem:[%s2806 + $0x10] sm:$0xf]
      %v2812 = vld [vmem:[%s2806 + $0x14] sm:$0xf]
      %v2813 = vld [vmem:[%s2806 + $0x18] sm:$0xf]
      %v2814 = vld [vmem:[%s2806 + $0x1c] sm:$0xf]
      %v2815 = vld [vmem:[%s2806 + $0x20] sm:$0xf]
      %v2816 = vld [vmem:[%s2806 + $0x24] sm:$0xf]
      %v2817 = vld [vmem:[%s2806 + $0x28] sm:$0xf]
      %v2818 = vld [vmem:[%s2806 + $0x2c] sm:$0xf]
      %v2819 = vld [vmem:[%s2806 + $0x30] sm:$0xf]
      %v2820 = vld [vmem:[%s2806 + $0x34] sm:$0xf]
      %v2821 = vld [vmem:[%s2806 + $0x38] sm:$0xf]
      %v2822 = vld [vmem:[%s2806 + $0x3c] sm:$0xf]
      %v2823 = vunpack.c.l.b16 %v2802
      %v2824 = vunpack.c.l.b16 %v2805
      %v2825 = vpack.c.b16 %v2824, %v2823
      %v2843 = vunpack.c.l.b16 %v2807
      %v2844 = vunpack.c.l.b16 %v2808
      %v2845 = vunpack.c.l.b16 %v2809
      %v2846 = vunpack.c.l.b16 %v2810
      %v2847 = vunpack.c.l.b16 %v2811
      %v2848 = vunpack.c.l.b16 %v2812
      %v2849 = vunpack.c.l.b16 %v2813
      %v2850 = vunpack.c.l.b16 %v2814
      %v2851 = vunpack.c.l.b16 %v2815
      %v2852 = vunpack.c.l.b16 %v2816
      %v2853 = vunpack.c.l.b16 %v2817
      %v2854 = vunpack.c.l.b16 %v2818
      %v2855 = vunpack.c.l.b16 %v2819
      %v2856 = vunpack.c.l.b16 %v2820
      %v2857 = vunpack.c.l.b16 %v2821
      %v2858 = vunpack.c.l.b16 %v2822
      %v2859 = vpack.c.b16 %v2844, %v2843
      %v2860 = vpack.c.b16 %v2846, %v2845
      %v2861 = vpack.c.b16 %v2848, %v2847
      %v2862 = vpack.c.b16 %v2850, %v2849
      %v2863 = vpack.c.b16 %v2852, %v2851
      %v2864 = vpack.c.b16 %v2854, %v2853
      %v2865 = vpack.c.b16 %v2856, %v2855
      %v2866 = vpack.c.b16 %v2858, %v2857
      %2875 = vmatprep.subr.bf16.mxu0 0
      %2876 = vmatpush1.bf16.msra.mxu0 %v2866
      %2877 = vmatprep.subr.bf16.mxu0 0
      %2878 = vmatpush1.bf16.msra.mxu0 %v2865
      %2879 = vmatprep.subr.bf16.mxu0 0
      %2880 = vmatpush1.bf16.msra.mxu0 %v2864
      %2881 = vmatprep.subr.bf16.mxu0 0
      %2882 = vmatpush1.bf16.msra.mxu0 %v2863
      %2883 = vmatprep.subr.bf16.mxu0 0
      %2884 = vmatpush1.bf16.msra.mxu0 %v2862
      %2885 = vmatprep.subr.bf16.mxu0 0
      %2886 = vmatpush1.bf16.msra.mxu0 %v2861
      %2887 = vmatprep.subr.bf16.mxu0 0
      %2888 = vmatpush1.bf16.msra.mxu0 %v2860
      %2889 = vmatprep.subr.bf16.mxu0 0
      %2890 = vmatpush1.bf16.msra.mxu0 %v2859
      %2891 = vmatprep.subr.bf16.mxu0 0
      %2892 = vmatpush2.bf16.msra.mxu0 0
      %2893 = vmatprep.subr.bf16.mxu0 0
      %2894 = vmatpush2.bf16.msra.mxu0 0
      %2895 = vmatprep.subr.bf16.mxu0 0
      %2896 = vmatpush2.bf16.msra.mxu0 0
      %2897 = vmatprep.subr.bf16.mxu0 0
      %2898 = vmatpush2.bf16.msra.mxu0 0
      %2899 = vmatprep.subr.bf16.mxu0 0
      %2900 = vmatpush2.bf16.msra.mxu0 0
      %2901 = vmatprep.subr.bf16.mxu0 0
      %2902 = vmatpush2.bf16.msra.mxu0 0
      %2903 = vmatprep.subr.bf16.mxu0 0
      %2904 = vmatpush2.bf16.msra.mxu0 0
      %2905 = vmatprep.subr.bf16.mxu0 0
      %2906 = vmatpush2.bf16.msra.mxu0 0
      %2907 = vmatprep.mubr.bf16.mxu0 0
      %2908 = vmatmul.mubr.bf16.gmra.mxu0 %v1976
      %v2909 = vpop.f32.mrf.mxu0
      %v2910 = vadd.f32 0.0, %v2909
      %v2911 = vpop.f32.mrf.mxu0
      %v2912 = vpop.f32.mrf.mxu0
      %v2913 = vadd.f32 0.0, %v2912
      %v2914 = vpop.f32.mrf.mxu0
      %2915 = vmatprep.mubr.bf16.mxu0 0
      %2916 = vmatmul.mubr.bf16.gmra.mxu0 %v1977
      %v2917 = vpop.f32.mrf.mxu0
      %v2918 = vadd.f32 0.0, %v2917
      %v2919 = vpop.f32.mrf.mxu0
      %v2920 = vpop.f32.mrf.mxu0
      %v2921 = vadd.f32 0.0, %v2920
      %v2922 = vpop.f32.mrf.mxu0
      %2923 = vmatprep.mubr.bf16.mxu0 0
      %2924 = vmatmul.mubr.bf16.gmra.mxu0 %v1978
      %v2925 = vpop.f32.mrf.mxu0
      %v2926 = vadd.f32 0.0, %v2925
      %v2927 = vpop.f32.mrf.mxu0
      %v2928 = vpop.f32.mrf.mxu0
      %v2929 = vadd.f32 0.0, %v2928
      %v2930 = vpop.f32.mrf.mxu0
      %2931 = vmatprep.mubr.bf16.mxu0 0
      %2932 = vmatmul.mubr.bf16.gmra.mxu0 %v1979
      %v2933 = vpop.f32.mrf.mxu0
      %v2934 = vadd.f32 0.0, %v2933
      %v2935 = vpop.f32.mrf.mxu0
      %v2936 = vpop.f32.mrf.mxu0
      %v2937 = vadd.f32 0.0, %v2936
      %v2938 = vpop.f32.mrf.mxu0
      %2939 = vmatprep.mubr.bf16.mxu0 0
      %2940 = vmatmul.mubr.bf16.gmra.mxu0 %v1980
      %v2941 = vpop.f32.mrf.mxu0
      %v2942 = vadd.f32 0.0, %v2941
      %v2943 = vpop.f32.mrf.mxu0
      %v2944 = vpop.f32.mrf.mxu0
      %v2945 = vadd.f32 0.0, %v2944
      %v2946 = vpop.f32.mrf.mxu0
      %2947 = vmatprep.mubr.bf16.mxu0 0
      %2948 = vmatmul.mubr.bf16.gmra.mxu0 %v1981
      %v2949 = vpop.f32.mrf.mxu0
      %v2950 = vadd.f32 0.0, %v2949
      %v2951 = vpop.f32.mrf.mxu0
      %v2952 = vpop.f32.mrf.mxu0
      %v2953 = vadd.f32 0.0, %v2952
      %v2954 = vpop.f32.mrf.mxu0
      %2955 = vmatprep.mubr.bf16.mxu0 0
      %2956 = vmatmul.mubr.bf16.gmra.mxu0 %v1982
      %v2957 = vpop.f32.mrf.mxu0
      %v2958 = vadd.f32 0.0, %v2957
      %v2959 = vpop.f32.mrf.mxu0
      %v2960 = vpop.f32.mrf.mxu0
      %v2961 = vadd.f32 0.0, %v2960
      %v2962 = vpop.f32.mrf.mxu0
      %2963 = vmatprep.mubr.bf16.mxu0 0
      %2964 = vmatmul.mubr.bf16.gmra.mxu0 %v1983
      %v2965 = vpop.f32.mrf.mxu0
      %v2966 = vadd.f32 0.0, %v2965
      %v2967 = vpop.f32.mrf.mxu0
      %v2968 = vpop.f32.mrf.mxu0
      %v2969 = vadd.f32 0.0, %v2968
      %v2970 = vpop.f32.mrf.mxu0
      %2971 = vmatprep.mubr.bf16.mxu0 0
      %2972 = vmatmul.mubr.bf16.gmra.mxu0 %v1984
      %v2973 = vpop.f32.mrf.mxu0
      %v2974 = vadd.f32 0.0, %v2973
      %v2975 = vpop.f32.mrf.mxu0
      %v2976 = vpop.f32.mrf.mxu0
      %v2977 = vadd.f32 0.0, %v2976
      %v2978 = vpop.f32.mrf.mxu0
      %2979 = vmatprep.mubr.bf16.mxu0 0
      %2980 = vmatmul.mubr.bf16.gmra.mxu0 %v1985
      %v2981 = vpop.f32.mrf.mxu0
      %v2982 = vadd.f32 0.0, %v2981
      %v2983 = vpop.f32.mrf.mxu0
      %v2984 = vpop.f32.mrf.mxu0
      %v2985 = vadd.f32 0.0, %v2984
      %v2986 = vpop.f32.mrf.mxu0
      %2987 = vmatprep.mubr.bf16.mxu0 0
      %2988 = vmatmul.mubr.bf16.gmra.mxu0 %v1986
      %v2989 = vpop.f32.mrf.mxu0
      %v2990 = vadd.f32 0.0, %v2989
      %v2991 = vpop.f32.mrf.mxu0
      %v2992 = vpop.f32.mrf.mxu0
      %v2993 = vadd.f32 0.0, %v2992
      %v2994 = vpop.f32.mrf.mxu0
      %2995 = vmatprep.mubr.bf16.mxu0 0
      %2996 = vmatmul.mubr.bf16.gmra.mxu0 %v1987
      %v2997 = vpop.f32.mrf.mxu0
      %v2998 = vadd.f32 0.0, %v2997
      %v2999 = vpop.f32.mrf.mxu0
      %v3000 = vpop.f32.mrf.mxu0
      %v3001 = vadd.f32 0.0, %v3000
      %v3002 = vpop.f32.mrf.mxu0
      %3003 = vmatprep.mubr.bf16.mxu0 0
      %3004 = vmatmul.mubr.bf16.gmra.mxu0 %v1988
      %v3005 = vpop.f32.mrf.mxu0
      %v3006 = vadd.f32 0.0, %v3005
      %v3007 = vpop.f32.mrf.mxu0
      %v3008 = vpop.f32.mrf.mxu0
      %v3009 = vadd.f32 0.0, %v3008
      %v3010 = vpop.f32.mrf.mxu0
      %3011 = vmatprep.mubr.bf16.mxu0 0
      %3012 = vmatmul.mubr.bf16.gmra.mxu0 %v1989
      %v3013 = vpop.f32.mrf.mxu0
      %v3014 = vadd.f32 0.0, %v3013
      %v3015 = vpop.f32.mrf.mxu0
      %v3016 = vpop.f32.mrf.mxu0
      %v3017 = vadd.f32 0.0, %v3016
      %v3018 = vpop.f32.mrf.mxu0
      %3019 = vmatprep.mubr.bf16.mxu0 0
      %3020 = vmatmul.mubr.bf16.gmra.mxu0 %v1990
      %v3021 = vpop.f32.mrf.mxu0
      %v3022 = vadd.f32 0.0, %v3021
      %v3023 = vpop.f32.mrf.mxu0
      %v3024 = vpop.f32.mrf.mxu0
      %v3025 = vadd.f32 0.0, %v3024
      %v3026 = vpop.f32.mrf.mxu0
      %3027 = vmatprep.mubr.bf16.mxu0 0
      %3028 = vmatmul.mubr.bf16.gmra.mxu0 %v2825
      %v3029 = vpop.f32.mrf.mxu0
      %v3030 = vadd.f32 0.0, %v3029
      %v3031 = vpop.f32.mrf.mxu0
      %v3032 = vpop.f32.mrf.mxu0
      %v3033 = vadd.f32 0.0, %v3032
      %v3034 = vpop.f32.mrf.mxu0
      %3035 = vdwg.mxu0
      %v3036 = vadd.f32 %v2766, %v2910
      %v3037 = vadd.f32 %v2767, %v2913
      %v3038 = vadd.f32 %v2768, %v2918
      %v3039 = vadd.f32 %v2769, %v2921
      %v3040 = vadd.f32 %v2770, %v2926
      %v3041 = vadd.f32 %v2771, %v2929
      %v3042 = vadd.f32 %v2772, %v2934
      %v3043 = vadd.f32 %v2773, %v2937
      %v3044 = vadd.f32 %v2774, %v2942
      %v3045 = vadd.f32 %v2775, %v2945
      %v3046 = vadd.f32 %v2776, %v2950
      %v3047 = vadd.f32 %v2777, %v2953
      %v3048 = vadd.f32 %v2778, %v2958
      %v3049 = vadd.f32 %v2779, %v2961
      %v3050 = vadd.f32 %v2780, %v2966
      %v3051 = vadd.f32 %v2781, %v2969
      %v3052 = vadd.f32 %v2782, %v2974
      %v3053 = vadd.f32 %v2783, %v2977
      %v3054 = vadd.f32 %v2784, %v2982
      %v3055 = vadd.f32 %v2785, %v2985
      %v3056 = vadd.f32 %v2786, %v2990
      %v3057 = vadd.f32 %v2787, %v2993
      %v3058 = vadd.f32 %v2788, %v2998
      %v3059 = vadd.f32 %v2789, %v3001
      %v3060 = vadd.f32 %v2790, %v3006
      %v3061 = vadd.f32 %v2791, %v3009
      %v3062 = vadd.f32 %v2792, %v3014
      %v3063 = vadd.f32 %v2793, %v3017
      %v3064 = vadd.f32 %v2794, %v3022
      %v3065 = vadd.f32 %v2795, %v3025
      %v3066 = vadd.f32 %v2796, %v3030
      %v3067 = vadd.f32 %v2797, %v3033
      %s3068 = scalar_lea.vmem %s1, 384
      %v3069 = vld [vmem:[%s3068] sm:$0xf]
      %v3070 = vld [vmem:[%s3068 + $0x4] sm:$0xf]
      %v3071 = vld [vmem:[%s3068 + $0x8] sm:$0xf]
      %v3072 = vld [vmem:[%s3068 + $0xc] sm:$0xf]
      %v3073 = vld [vmem:[%s3068 + $0x10] sm:$0xf]
      %v3074 = vld [vmem:[%s3068 + $0x14] sm:$0xf]
      %v3075 = vld [vmem:[%s3068 + $0x18] sm:$0xf]
      %v3076 = vld [vmem:[%s3068 + $0x1c] sm:$0xf]
      %v3077 = vld [vmem:[%s3068 + $0x20] sm:$0xf]
      %v3078 = vld [vmem:[%s3068 + $0x24] sm:$0xf]
      %v3079 = vld [vmem:[%s3068 + $0x28] sm:$0xf]
      %v3080 = vld [vmem:[%s3068 + $0x2c] sm:$0xf]
      %v3081 = vld [vmem:[%s3068 + $0x30] sm:$0xf]
      %v3082 = vld [vmem:[%s3068 + $0x34] sm:$0xf]
      %v3083 = vld [vmem:[%s3068 + $0x38] sm:$0xf]
      %v3084 = vld [vmem:[%s3068 + $0x3c] sm:$0xf]
      %v3087 = vunpack.c.l.b16 %v794
      %v3088 = vunpack.c.l.b16 %v795
      %v3089 = vpack.c.b16 %v3088, %v3087
      %v3107 = vunpack.c.l.b16 %v3069
      %v3108 = vunpack.c.l.b16 %v3070
      %v3109 = vunpack.c.l.b16 %v3071
      %v3110 = vunpack.c.l.b16 %v3072
      %v3111 = vunpack.c.l.b16 %v3073
      %v3112 = vunpack.c.l.b16 %v3074
      %v3113 = vunpack.c.l.b16 %v3075
      %v3114 = vunpack.c.l.b16 %v3076
      %v3115 = vunpack.c.l.b16 %v3077
      %v3116 = vunpack.c.l.b16 %v3078
      %v3117 = vunpack.c.l.b16 %v3079
      %v3118 = vunpack.c.l.b16 %v3080
      %v3119 = vunpack.c.l.b16 %v3081
      %v3120 = vunpack.c.l.b16 %v3082
      %v3121 = vunpack.c.l.b16 %v3083
      %v3122 = vunpack.c.l.b16 %v3084
      %v3123 = vpack.c.b16 %v3108, %v3107
      %v3124 = vpack.c.b16 %v3110, %v3109
      %v3125 = vpack.c.b16 %v3112, %v3111
      %v3126 = vpack.c.b16 %v3114, %v3113
      %v3127 = vpack.c.b16 %v3116, %v3115
      %v3128 = vpack.c.b16 %v3118, %v3117
      %v3129 = vpack.c.b16 %v3120, %v3119
      %v3130 = vpack.c.b16 %v3122, %v3121
      %3139 = vmatprep.subr.bf16.mxu0 0
      %3140 = vmatpush1.bf16.msra.mxu0 %v3130
      %3141 = vmatprep.subr.bf16.mxu0 0
      %3142 = vmatpush1.bf16.msra.mxu0 %v3129
      %3143 = vmatprep.subr.bf16.mxu0 0
      %3144 = vmatpush1.bf16.msra.mxu0 %v3128
      %3145 = vmatprep.subr.bf16.mxu0 0
      %3146 = vmatpush1.bf16.msra.mxu0 %v3127
      %3147 = vmatprep.subr.bf16.mxu0 0
      %3148 = vmatpush1.bf16.msra.mxu0 %v3126
      %3149 = vmatprep.subr.bf16.mxu0 0
      %3150 = vmatpush1.bf16.msra.mxu0 %v3125
      %3151 = vmatprep.subr.bf16.mxu0 0
      %3152 = vmatpush1.bf16.msra.mxu0 %v3124
      %3153 = vmatprep.subr.bf16.mxu0 0
      %3154 = vmatpush1.bf16.msra.mxu0 %v3123
      %3155 = vmatprep.subr.bf16.mxu0 0
      %3156 = vmatpush2.bf16.msra.mxu0 0
      %3157 = vmatprep.subr.bf16.mxu0 0
      %3158 = vmatpush2.bf16.msra.mxu0 0
      %3159 = vmatprep.subr.bf16.mxu0 0
      %3160 = vmatpush2.bf16.msra.mxu0 0
      %3161 = vmatprep.subr.bf16.mxu0 0
      %3162 = vmatpush2.bf16.msra.mxu0 0
      %3163 = vmatprep.subr.bf16.mxu0 0
      %3164 = vmatpush2.bf16.msra.mxu0 0
      %3165 = vmatprep.subr.bf16.mxu0 0
      %3166 = vmatpush2.bf16.msra.mxu0 0
      %3167 = vmatprep.subr.bf16.mxu0 0
      %3168 = vmatpush2.bf16.msra.mxu0 0
      %3169 = vmatprep.subr.bf16.mxu0 0
      %3170 = vmatpush2.bf16.msra.mxu0 0
      %3171 = vmatprep.mubr.bf16.mxu0 0
      %3172 = vmatmul.mubr.bf16.gmra.mxu0 %v1556
      %v3173 = vpop.f32.mrf.mxu0
      %v3174 = vadd.f32 0.0, %v3173
      %v3175 = vpop.f32.mrf.mxu0
      %v3176 = vpop.f32.mrf.mxu0
      %v3177 = vadd.f32 0.0, %v3176
      %v3178 = vpop.f32.mrf.mxu0
      %3179 = vmatprep.mubr.bf16.mxu0 0
      %3180 = vmatmul.mubr.bf16.gmra.mxu0 %v1557
      %v3181 = vpop.f32.mrf.mxu0
      %v3182 = vadd.f32 0.0, %v3181
      %v3183 = vpop.f32.mrf.mxu0
      %v3184 = vpop.f32.mrf.mxu0
      %v3185 = vadd.f32 0.0, %v3184
      %v3186 = vpop.f32.mrf.mxu0
      %3187 = vmatprep.mubr.bf16.mxu0 0
      %3188 = vmatmul.mubr.bf16.gmra.mxu0 %v1558
      %v3189 = vpop.f32.mrf.mxu0
      %v3190 = vadd.f32 0.0, %v3189
      %v3191 = vpop.f32.mrf.mxu0
      %v3192 = vpop.f32.mrf.mxu0
      %v3193 = vadd.f32 0.0, %v3192
      %v3194 = vpop.f32.mrf.mxu0
      %3195 = vmatprep.mubr.bf16.mxu0 0
      %3196 = vmatmul.mubr.bf16.gmra.mxu0 %v1559
      %v3197 = vpop.f32.mrf.mxu0
      %v3198 = vadd.f32 0.0, %v3197
      %v3199 = vpop.f32.mrf.mxu0
      %v3200 = vpop.f32.mrf.mxu0
      %v3201 = vadd.f32 0.0, %v3200
      %v3202 = vpop.f32.mrf.mxu0
      %3203 = vmatprep.mubr.bf16.mxu0 0
      %3204 = vmatmul.mubr.bf16.gmra.mxu0 %v1560
      %v3205 = vpop.f32.mrf.mxu0
      %v3206 = vadd.f32 0.0, %v3205
      %v3207 = vpop.f32.mrf.mxu0
      %v3208 = vpop.f32.mrf.mxu0
      %v3209 = vadd.f32 0.0, %v3208
      %v3210 = vpop.f32.mrf.mxu0
      %3211 = vmatprep.mubr.bf16.mxu0 0
      %3212 = vmatmul.mubr.bf16.gmra.mxu0 %v1561
      %v3213 = vpop.f32.mrf.mxu0
      %v3214 = vadd.f32 0.0, %v3213
      %v3215 = vpop.f32.mrf.mxu0
      %v3216 = vpop.f32.mrf.mxu0
      %v3217 = vadd.f32 0.0, %v3216
      %v3218 = vpop.f32.mrf.mxu0
      %3219 = vmatprep.mubr.bf16.mxu0 0
      %3220 = vmatmul.mubr.bf16.gmra.mxu0 %v1562
      %v3221 = vpop.f32.mrf.mxu0
      %v3222 = vadd.f32 0.0, %v3221
      %v3223 = vpop.f32.mrf.mxu0
      %v3224 = vpop.f32.mrf.mxu0
      %v3225 = vadd.f32 0.0, %v3224
      %v3226 = vpop.f32.mrf.mxu0
      %3227 = vmatprep.mubr.bf16.mxu0 0
      %3228 = vmatmul.mubr.bf16.gmra.mxu0 %v1563
      %v3229 = vpop.f32.mrf.mxu0
      %v3230 = vadd.f32 0.0, %v3229
      %v3231 = vpop.f32.mrf.mxu0
      %v3232 = vpop.f32.mrf.mxu0
      %v3233 = vadd.f32 0.0, %v3232
      %v3234 = vpop.f32.mrf.mxu0
      %3235 = vmatprep.mubr.bf16.mxu0 0
      %3236 = vmatmul.mubr.bf16.gmra.mxu0 %v1564
      %v3237 = vpop.f32.mrf.mxu0
      %v3238 = vadd.f32 0.0, %v3237
      %v3239 = vpop.f32.mrf.mxu0
      %v3240 = vpop.f32.mrf.mxu0
      %v3241 = vadd.f32 0.0, %v3240
      %v3242 = vpop.f32.mrf.mxu0
      %3243 = vmatprep.mubr.bf16.mxu0 0
      %3244 = vmatmul.mubr.bf16.gmra.mxu0 %v1565
      %v3245 = vpop.f32.mrf.mxu0
      %v3246 = vadd.f32 0.0, %v3245
      %v3247 = vpop.f32.mrf.mxu0
      %v3248 = vpop.f32.mrf.mxu0
      %v3249 = vadd.f32 0.0, %v3248
      %v3250 = vpop.f32.mrf.mxu0
      %3251 = vmatprep.mubr.bf16.mxu0 0
      %3252 = vmatmul.mubr.bf16.gmra.mxu0 %v1566
      %v3253 = vpop.f32.mrf.mxu0
      %v3254 = vadd.f32 0.0, %v3253
      %v3255 = vpop.f32.mrf.mxu0
      %v3256 = vpop.f32.mrf.mxu0
      %v3257 = vadd.f32 0.0, %v3256
      %v3258 = vpop.f32.mrf.mxu0
      %3259 = vmatprep.mubr.bf16.mxu0 0
      %3260 = vmatmul.mubr.bf16.gmra.mxu0 %v1567
      %v3261 = vpop.f32.mrf.mxu0
      %v3262 = vadd.f32 0.0, %v3261
      %v3263 = vpop.f32.mrf.mxu0
      %v3264 = vpop.f32.mrf.mxu0
      %v3265 = vadd.f32 0.0, %v3264
      %v3266 = vpop.f32.mrf.mxu0
      %3267 = vmatprep.mubr.bf16.mxu0 0
      %3268 = vmatmul.mubr.bf16.gmra.mxu0 %v1568
      %v3269 = vpop.f32.mrf.mxu0
      %v3270 = vadd.f32 0.0, %v3269
      %v3271 = vpop.f32.mrf.mxu0
      %v3272 = vpop.f32.mrf.mxu0
      %v3273 = vadd.f32 0.0, %v3272
      %v3274 = vpop.f32.mrf.mxu0
      %3275 = vmatprep.mubr.bf16.mxu0 0
      %3276 = vmatmul.mubr.bf16.gmra.mxu0 %v1569
      %v3277 = vpop.f32.mrf.mxu0
      %v3278 = vadd.f32 0.0, %v3277
      %v3279 = vpop.f32.mrf.mxu0
      %v3280 = vpop.f32.mrf.mxu0
      %v3281 = vadd.f32 0.0, %v3280
      %v3282 = vpop.f32.mrf.mxu0
      %3283 = vmatprep.mubr.bf16.mxu0 0
      %3284 = vmatmul.mubr.bf16.gmra.mxu0 %v2269
      %v3285 = vpop.f32.mrf.mxu0
      %v3286 = vadd.f32 0.0, %v3285
      %v3287 = vpop.f32.mrf.mxu0
      %v3288 = vpop.f32.mrf.mxu0
      %v3289 = vadd.f32 0.0, %v3288
      %v3290 = vpop.f32.mrf.mxu0
      %3291 = vmatprep.mubr.bf16.mxu0 0
      %3292 = vmatmul.mubr.bf16.gmra.mxu0 %v3089
      %v3293 = vpop.f32.mrf.mxu0
      %v3294 = vadd.f32 0.0, %v3293
      %v3295 = vpop.f32.mrf.mxu0
      %v3296 = vpop.f32.mrf.mxu0
      %v3297 = vadd.f32 0.0, %v3296
      %v3298 = vpop.f32.mrf.mxu0
      %3299 = vdwg.mxu0
      %v3300 = vadd.f32 %v3036, %v3174
      %v3301 = vadd.f32 %v3037, %v3177
      %v3302 = vadd.f32 %v3038, %v3182
      %v3303 = vadd.f32 %v3039, %v3185
      %v3304 = vadd.f32 %v3040, %v3190
      %v3305 = vadd.f32 %v3041, %v3193
      %v3306 = vadd.f32 %v3042, %v3198
      %v3307 = vadd.f32 %v3043, %v3201
      %v3308 = vadd.f32 %v3044, %v3206
      %v3309 = vadd.f32 %v3045, %v3209
      %v3310 = vadd.f32 %v3046, %v3214
      %v3311 = vadd.f32 %v3047, %v3217
      %v3312 = vadd.f32 %v3048, %v3222
      %v3313 = vadd.f32 %v3049, %v3225
      %v3314 = vadd.f32 %v3050, %v3230
      %v3315 = vadd.f32 %v3051, %v3233
      %v3316 = vadd.f32 %v3052, %v3238
      %v3317 = vadd.f32 %v3053, %v3241
      %v3318 = vadd.f32 %v3054, %v3246
      %v3319 = vadd.f32 %v3055, %v3249
      %v3320 = vadd.f32 %v3056, %v3254
      %v3321 = vadd.f32 %v3057, %v3257
      %v3322 = vadd.f32 %v3058, %v3262
      %v3323 = vadd.f32 %v3059, %v3265
      %v3324 = vadd.f32 %v3060, %v3270
      %v3325 = vadd.f32 %v3061, %v3273
      %v3326 = vadd.f32 %v3062, %v3278
      %v3327 = vadd.f32 %v3063, %v3281
      %v3328 = vadd.f32 %v3064, %v3286
      %v3329 = vadd.f32 %v3065, %v3289
      %v3330 = vadd.f32 %v3066, %v3294
      %v3331 = vadd.f32 %v3067, %v3297
      %v3333 = vshrl.u32 %v794, 16
      %v3335 = vrot.slane %v3333, 4
      %v3336 = vshll.u32 %v794, 16
      %v3338 = vrot.slane %v3336, 5
      %v3339 = vor.u32 %v3335, %v3338
      %v3340 = vrot.slane %v3339, 4
      %v3342 = vshll.u32 %v795, 16
      %v3344 = vrot.slane %v3342, 5
      %v3345 = vsel %vm815, %v3340, %v3344
      %v3346 = vshrl.u32 %v795, 16
      %v3348 = vrot.slane %v3346, 4
      %v3349 = vor.u32 %v3348, %v3344
      %v3350 = vrot.slane %v3349, 4
      %v3352 = vshll.u32 %v796, 16
      %v3354 = vrot.slane %v3352, 5
      %v3355 = vsel %vm815, %v3350, %v3354
      %s3356 = scalar_lea.vmem %s1, 448
      %v3357 = vld [vmem:[%s3356] sm:$0xf]
      %v3358 = vld [vmem:[%s3356 + $0x4] sm:$0xf]
      %v3359 = vld [vmem:[%s3356 + $0x8] sm:$0xf]
      %v3360 = vld [vmem:[%s3356 + $0xc] sm:$0xf]
      %v3361 = vld [vmem:[%s3356 + $0x10] sm:$0xf]
      %v3362 = vld [vmem:[%s3356 + $0x14] sm:$0xf]
      %v3363 = vld [vmem:[%s3356 + $0x18] sm:$0xf]
      %v3364 = vld [vmem:[%s3356 + $0x1c] sm:$0xf]
      %v3365 = vld [vmem:[%s3356 + $0x20] sm:$0xf]
      %v3366 = vld [vmem:[%s3356 + $0x24] sm:$0xf]
      %v3367 = vld [vmem:[%s3356 + $0x28] sm:$0xf]
      %v3368 = vld [vmem:[%s3356 + $0x2c] sm:$0xf]
      %v3369 = vld [vmem:[%s3356 + $0x30] sm:$0xf]
      %v3370 = vld [vmem:[%s3356 + $0x34] sm:$0xf]
      %v3371 = vld [vmem:[%s3356 + $0x38] sm:$0xf]
      %v3372 = vld [vmem:[%s3356 + $0x3c] sm:$0xf]
      %v3373 = vunpack.c.l.b16 %v3345
      %v3374 = vunpack.c.l.b16 %v3355
      %v3375 = vpack.c.b16 %v3374, %v3373
      %v3393 = vunpack.c.l.b16 %v3357
      %v3394 = vunpack.c.l.b16 %v3358
      %v3395 = vunpack.c.l.b16 %v3359
      %v3396 = vunpack.c.l.b16 %v3360
      %v3397 = vunpack.c.l.b16 %v3361
      %v3398 = vunpack.c.l.b16 %v3362
      %v3399 = vunpack.c.l.b16 %v3363
      %v3400 = vunpack.c.l.b16 %v3364
      %v3401 = vunpack.c.l.b16 %v3365
      %v3402 = vunpack.c.l.b16 %v3366
      %v3403 = vunpack.c.l.b16 %v3367
      %v3404 = vunpack.c.l.b16 %v3368
      %v3405 = vunpack.c.l.b16 %v3369
      %v3406 = vunpack.c.l.b16 %v3370
      %v3407 = vunpack.c.l.b16 %v3371
      %v3408 = vunpack.c.l.b16 %v3372
      %v3409 = vpack.c.b16 %v3394, %v3393
      %v3410 = vpack.c.b16 %v3396, %v3395
      %v3411 = vpack.c.b16 %v3398, %v3397
      %v3412 = vpack.c.b16 %v3400, %v3399
      %v3413 = vpack.c.b16 %v3402, %v3401
      %v3414 = vpack.c.b16 %v3404, %v3403
      %v3415 = vpack.c.b16 %v3406, %v3405
      %v3416 = vpack.c.b16 %v3408, %v3407
      %3425 = vmatprep.subr.bf16.mxu0 0
      %3426 = vmatpush1.bf16.msra.mxu0 %v3416
      %3427 = vmatprep.subr.bf16.mxu0 0
      %3428 = vmatpush1.bf16.msra.mxu0 %v3415
      %3429 = vmatprep.subr.bf16.mxu0 0
      %3430 = vmatpush1.bf16.msra.mxu0 %v3414
      %3431 = vmatprep.subr.bf16.mxu0 0
      %3432 = vmatpush1.bf16.msra.mxu0 %v3413
      %3433 = vmatprep.subr.bf16.mxu0 0
      %3434 = vmatpush1.bf16.msra.mxu0 %v3412
      %3435 = vmatprep.subr.bf16.mxu0 0
      %3436 = vmatpush1.bf16.msra.mxu0 %v3411
      %3437 = vmatprep.subr.bf16.mxu0 0
      %3438 = vmatpush1.bf16.msra.mxu0 %v3410
      %3439 = vmatprep.subr.bf16.mxu0 0
      %3440 = vmatpush1.bf16.msra.mxu0 %v3409
      %3441 = vmatprep.subr.bf16.mxu0 0
      %3442 = vmatpush2.bf16.msra.mxu0 0
      %3443 = vmatprep.subr.bf16.mxu0 0
      %3444 = vmatpush2.bf16.msra.mxu0 0
      %3445 = vmatprep.subr.bf16.mxu0 0
      %3446 = vmatpush2.bf16.msra.mxu0 0
      %3447 = vmatprep.subr.bf16.mxu0 0
      %3448 = vmatpush2.bf16.msra.mxu0 0
      %3449 = vmatprep.subr.bf16.mxu0 0
      %3450 = vmatpush2.bf16.msra.mxu0 0
      %3451 = vmatprep.subr.bf16.mxu0 0
      %3452 = vmatpush2.bf16.msra.mxu0 0
      %3453 = vmatprep.subr.bf16.mxu0 0
      %3454 = vmatpush2.bf16.msra.mxu0 0
      %3455 = vmatprep.subr.bf16.mxu0 0
      %3456 = vmatpush2.bf16.msra.mxu0 0
      %3457 = vmatprep.mubr.bf16.mxu0 0
      %3458 = vmatmul.mubr.bf16.gmra.mxu0 %v1251
      %v3459 = vpop.f32.mrf.mxu0
      %v3460 = vadd.f32 0.0, %v3459
      %v3461 = vpop.f32.mrf.mxu0
      %v3462 = vpop.f32.mrf.mxu0
      %v3463 = vadd.f32 0.0, %v3462
      %v3464 = vpop.f32.mrf.mxu0
      %3465 = vmatprep.mubr.bf16.mxu0 0
      %3466 = vmatmul.mubr.bf16.gmra.mxu0 %v1252
      %v3467 = vpop.f32.mrf.mxu0
      %v3468 = vadd.f32 0.0, %v3467
      %v3469 = vpop.f32.mrf.mxu0
      %v3470 = vpop.f32.mrf.mxu0
      %v3471 = vadd.f32 0.0, %v3470
      %v3472 = vpop.f32.mrf.mxu0
      %3473 = vmatprep.mubr.bf16.mxu0 0
      %3474 = vmatmul.mubr.bf16.gmra.mxu0 %v1253
      %v3475 = vpop.f32.mrf.mxu0
      %v3476 = vadd.f32 0.0, %v3475
      %v3477 = vpop.f32.mrf.mxu0
      %v3478 = vpop.f32.mrf.mxu0
      %v3479 = vadd.f32 0.0, %v3478
      %v3480 = vpop.f32.mrf.mxu0
      %3481 = vmatprep.mubr.bf16.mxu0 0
      %3482 = vmatmul.mubr.bf16.gmra.mxu0 %v1254
      %v3483 = vpop.f32.mrf.mxu0
      %v3484 = vadd.f32 0.0, %v3483
      %v3485 = vpop.f32.mrf.mxu0
      %v3486 = vpop.f32.mrf.mxu0
      %v3487 = vadd.f32 0.0, %v3486
      %v3488 = vpop.f32.mrf.mxu0
      %3489 = vmatprep.mubr.bf16.mxu0 0
      %3490 = vmatmul.mubr.bf16.gmra.mxu0 %v1255
      %v3491 = vpop.f32.mrf.mxu0
      %v3492 = vadd.f32 0.0, %v3491
      %v3493 = vpop.f32.mrf.mxu0
      %v3494 = vpop.f32.mrf.mxu0
      %v3495 = vadd.f32 0.0, %v3494
      %v3496 = vpop.f32.mrf.mxu0
      %3497 = vmatprep.mubr.bf16.mxu0 0
      %3498 = vmatmul.mubr.bf16.gmra.mxu0 %v1256
      %v3499 = vpop.f32.mrf.mxu0
      %v3500 = vadd.f32 0.0, %v3499
      %v3501 = vpop.f32.mrf.mxu0
      %v3502 = vpop.f32.mrf.mxu0
      %v3503 = vadd.f32 0.0, %v3502
      %v3504 = vpop.f32.mrf.mxu0
      %3505 = vmatprep.mubr.bf16.mxu0 0
      %3506 = vmatmul.mubr.bf16.gmra.mxu0 %v1257
      %v3507 = vpop.f32.mrf.mxu0
      %v3508 = vadd.f32 0.0, %v3507
      %v3509 = vpop.f32.mrf.mxu0
      %v3510 = vpop.f32.mrf.mxu0
      %v3511 = vadd.f32 0.0, %v3510
      %v3512 = vpop.f32.mrf.mxu0
      %3513 = vmatprep.mubr.bf16.mxu0 0
      %3514 = vmatmul.mubr.bf16.gmra.mxu0 %v1258
      %v3515 = vpop.f32.mrf.mxu0
      %v3516 = vadd.f32 0.0, %v3515
      %v3517 = vpop.f32.mrf.mxu0
      %v3518 = vpop.f32.mrf.mxu0
      %v3519 = vadd.f32 0.0, %v3518
      %v3520 = vpop.f32.mrf.mxu0
      %3521 = vmatprep.mubr.bf16.mxu0 0
      %3522 = vmatmul.mubr.bf16.gmra.mxu0 %v1259
      %v3523 = vpop.f32.mrf.mxu0
      %v3524 = vadd.f32 0.0, %v3523
      %v3525 = vpop.f32.mrf.mxu0
      %v3526 = vpop.f32.mrf.mxu0
      %v3527 = vadd.f32 0.0, %v3526
      %v3528 = vpop.f32.mrf.mxu0
      %3529 = vmatprep.mubr.bf16.mxu0 0
      %3530 = vmatmul.mubr.bf16.gmra.mxu0 %v1260
      %v3531 = vpop.f32.mrf.mxu0
      %v3532 = vadd.f32 0.0, %v3531
      %v3533 = vpop.f32.mrf.mxu0
      %v3534 = vpop.f32.mrf.mxu0
      %v3535 = vadd.f32 0.0, %v3534
      %v3536 = vpop.f32.mrf.mxu0
      %3537 = vmatprep.mubr.bf16.mxu0 0
      %3538 = vmatmul.mubr.bf16.gmra.mxu0 %v1261
      %v3539 = vpop.f32.mrf.mxu0
      %v3540 = vadd.f32 0.0, %v3539
      %v3541 = vpop.f32.mrf.mxu0
      %v3542 = vpop.f32.mrf.mxu0
      %v3543 = vadd.f32 0.0, %v3542
      %v3544 = vpop.f32.mrf.mxu0
      %3545 = vmatprep.mubr.bf16.mxu0 0
      %3546 = vmatmul.mubr.bf16.gmra.mxu0 %v1262
      %v3547 = vpop.f32.mrf.mxu0
      %v3548 = vadd.f32 0.0, %v3547
      %v3549 = vpop.f32.mrf.mxu0
      %v3550 = vpop.f32.mrf.mxu0
      %v3551 = vadd.f32 0.0, %v3550
      %v3552 = vpop.f32.mrf.mxu0
      %3553 = vmatprep.mubr.bf16.mxu0 0
      %3554 = vmatmul.mubr.bf16.gmra.mxu0 %v1263
      %v3555 = vpop.f32.mrf.mxu0
      %v3556 = vadd.f32 0.0, %v3555
      %v3557 = vpop.f32.mrf.mxu0
      %v3558 = vpop.f32.mrf.mxu0
      %v3559 = vadd.f32 0.0, %v3558
      %v3560 = vpop.f32.mrf.mxu0
      %3561 = vmatprep.mubr.bf16.mxu0 0
      %3562 = vmatmul.mubr.bf16.gmra.mxu0 %v1264
      %v3563 = vpop.f32.mrf.mxu0
      %v3564 = vadd.f32 0.0, %v3563
      %v3565 = vpop.f32.mrf.mxu0
      %v3566 = vpop.f32.mrf.mxu0
      %v3567 = vadd.f32 0.0, %v3566
      %v3568 = vpop.f32.mrf.mxu0
      %3569 = vmatprep.mubr.bf16.mxu0 0
      %3570 = vmatmul.mubr.bf16.gmra.mxu0 %v2555
      %v3571 = vpop.f32.mrf.mxu0
      %v3572 = vadd.f32 0.0, %v3571
      %v3573 = vpop.f32.mrf.mxu0
      %v3574 = vpop.f32.mrf.mxu0
      %v3575 = vadd.f32 0.0, %v3574
      %v3576 = vpop.f32.mrf.mxu0
      %3577 = vmatprep.mubr.bf16.mxu0 0
      %3578 = vmatmul.mubr.bf16.gmra.mxu0 %v3375
      %v3579 = vpop.f32.mrf.mxu0
      %v3580 = vadd.f32 0.0, %v3579
      %v3581 = vpop.f32.mrf.mxu0
      %v3582 = vpop.f32.mrf.mxu0
      %v3583 = vadd.f32 0.0, %v3582
      %v3584 = vpop.f32.mrf.mxu0
      %3585 = vdwg.mxu0
      %v3586 = vadd.f32 %v3300, %v3460
      %v3587 = vadd.f32 %v3301, %v3463
      %v3588 = vadd.f32 %v3302, %v3468
      %v3589 = vadd.f32 %v3303, %v3471
      %v3590 = vadd.f32 %v3304, %v3476
      %v3591 = vadd.f32 %v3305, %v3479
      %v3592 = vadd.f32 %v3306, %v3484
      %v3593 = vadd.f32 %v3307, %v3487
      %v3594 = vadd.f32 %v3308, %v3492
      %v3595 = vadd.f32 %v3309, %v3495
      %v3596 = vadd.f32 %v3310, %v3500
      %v3597 = vadd.f32 %v3311, %v3503
      %v3598 = vadd.f32 %v3312, %v3508
      %v3599 = vadd.f32 %v3313, %v3511
      %v3600 = vadd.f32 %v3314, %v3516
      %v3601 = vadd.f32 %v3315, %v3519
      %v3602 = vadd.f32 %v3316, %v3524
      %v3603 = vadd.f32 %v3317, %v3527
      %v3604 = vadd.f32 %v3318, %v3532
      %v3605 = vadd.f32 %v3319, %v3535
      %v3606 = vadd.f32 %v3320, %v3540
      %v3607 = vadd.f32 %v3321, %v3543
      %v3608 = vadd.f32 %v3322, %v3548
      %v3609 = vadd.f32 %v3323, %v3551
      %v3610 = vadd.f32 %v3324, %v3556
      %v3611 = vadd.f32 %v3325, %v3559
      %v3612 = vadd.f32 %v3326, %v3564
      %v3613 = vadd.f32 %v3327, %v3567
      %v3614 = vadd.f32 %v3328, %v3572
      %v3615 = vadd.f32 %v3329, %v3575
      %v3616 = vadd.f32 %v3330, %v3580
      %v3617 = vadd.f32 %v3331, %v3583
      %v3619 = vrot.slane %v794, 5
      %v3620 = vrot.slane %v3619, 4
      %v3621 = vrot.slane %v795, 5
      %v3622 = vsel %vm1813, %v3620, %v3621
      %v3623 = vrot.slane %v3621, 4
      %v3624 = vrot.slane %v796, 5
      %v3625 = vsel %vm1813, %v3623, %v3624
      %s3626 = scalar_lea.vmem %s1, 512
      %v3627 = vld [vmem:[%s3626] sm:$0xf]
      %v3628 = vld [vmem:[%s3626 + $0x4] sm:$0xf]
      %v3629 = vld [vmem:[%s3626 + $0x8] sm:$0xf]
      %v3630 = vld [vmem:[%s3626 + $0xc] sm:$0xf]
      %v3631 = vld [vmem:[%s3626 + $0x10] sm:$0xf]
      %v3632 = vld [vmem:[%s3626 + $0x14] sm:$0xf]
      %v3633 = vld [vmem:[%s3626 + $0x18] sm:$0xf]
      %v3634 = vld [vmem:[%s3626 + $0x1c] sm:$0xf]
      %v3635 = vld [vmem:[%s3626 + $0x20] sm:$0xf]
      %v3636 = vld [vmem:[%s3626 + $0x24] sm:$0xf]
      %v3637 = vld [vmem:[%s3626 + $0x28] sm:$0xf]
      %v3638 = vld [vmem:[%s3626 + $0x2c] sm:$0xf]
      %v3639 = vld [vmem:[%s3626 + $0x30] sm:$0xf]
      %v3640 = vld [vmem:[%s3626 + $0x34] sm:$0xf]
      %v3641 = vld [vmem:[%s3626 + $0x38] sm:$0xf]
      %v3642 = vld [vmem:[%s3626 + $0x3c] sm:$0xf]
      %v3643 = vunpack.c.l.b16 %v3622
      %v3644 = vunpack.c.l.b16 %v3625
      %v3645 = vpack.c.b16 %v3644, %v3643
      %v3663 = vunpack.c.l.b16 %v3627
      %v3664 = vunpack.c.l.b16 %v3628
      %v3665 = vunpack.c.l.b16 %v3629
      %v3666 = vunpack.c.l.b16 %v3630
      %v3667 = vunpack.c.l.b16 %v3631
      %v3668 = vunpack.c.l.b16 %v3632
      %v3669 = vunpack.c.l.b16 %v3633
      %v3670 = vunpack.c.l.b16 %v3634
      %v3671 = vunpack.c.l.b16 %v3635
      %v3672 = vunpack.c.l.b16 %v3636
      %v3673 = vunpack.c.l.b16 %v3637
      %v3674 = vunpack.c.l.b16 %v3638
      %v3675 = vunpack.c.l.b16 %v3639
      %v3676 = vunpack.c.l.b16 %v3640
      %v3677 = vunpack.c.l.b16 %v3641
      %v3678 = vunpack.c.l.b16 %v3642
      %v3679 = vpack.c.b16 %v3664, %v3663
      %v3680 = vpack.c.b16 %v3666, %v3665
      %v3681 = vpack.c.b16 %v3668, %v3667
      %v3682 = vpack.c.b16 %v3670, %v3669
      %v3683 = vpack.c.b16 %v3672, %v3671
      %v3684 = vpack.c.b16 %v3674, %v3673
      %v3685 = vpack.c.b16 %v3676, %v3675
      %v3686 = vpack.c.b16 %v3678, %v3677
      %3695 = vmatprep.subr.bf16.mxu0 0
      %3696 = vmatpush1.bf16.msra.mxu0 %v3686
      %3697 = vmatprep.subr.bf16.mxu0 0
      %3698 = vmatpush1.bf16.msra.mxu0 %v3685
      %3699 = vmatprep.subr.bf16.mxu0 0
      %3700 = vmatpush1.bf16.msra.mxu0 %v3684
      %3701 = vmatprep.subr.bf16.mxu0 0
      %3702 = vmatpush1.bf16.msra.mxu0 %v3683
      %3703 = vmatprep.subr.bf16.mxu0 0
      %3704 = vmatpush1.bf16.msra.mxu0 %v3682
      %3705 = vmatprep.subr.bf16.mxu0 0
      %3706 = vmatpush1.bf16.msra.mxu0 %v3681
      %3707 = vmatprep.subr.bf16.mxu0 0
      %3708 = vmatpush1.bf16.msra.mxu0 %v3680
      %3709 = vmatprep.subr.bf16.mxu0 0
      %3710 = vmatpush1.bf16.msra.mxu0 %v3679
      %3711 = vmatprep.subr.bf16.mxu0 0
      %3712 = vmatpush2.bf16.msra.mxu0 0
      %3713 = vmatprep.subr.bf16.mxu0 0
      %3714 = vmatpush2.bf16.msra.mxu0 0
      %3715 = vmatprep.subr.bf16.mxu0 0
      %3716 = vmatpush2.bf16.msra.mxu0 0
      %3717 = vmatprep.subr.bf16.mxu0 0
      %3718 = vmatpush2.bf16.msra.mxu0 0
      %3719 = vmatprep.subr.bf16.mxu0 0
      %3720 = vmatpush2.bf16.msra.mxu0 0
      %3721 = vmatprep.subr.bf16.mxu0 0
      %3722 = vmatpush2.bf16.msra.mxu0 0
      %3723 = vmatprep.subr.bf16.mxu0 0
      %3724 = vmatpush2.bf16.msra.mxu0 0
      %3725 = vmatprep.subr.bf16.mxu0 0
      %3726 = vmatpush2.bf16.msra.mxu0 0
      %3727 = vmatprep.mubr.bf16.mxu0 0
      %3728 = vmatmul.mubr.bf16.gmra.mxu0 %v1977
      %v3729 = vpop.f32.mrf.mxu0
      %v3730 = vadd.f32 0.0, %v3729
      %v3731 = vpop.f32.mrf.mxu0
      %v3732 = vpop.f32.mrf.mxu0
      %v3733 = vadd.f32 0.0, %v3732
      %v3734 = vpop.f32.mrf.mxu0
      %3735 = vmatprep.mubr.bf16.mxu0 0
      %3736 = vmatmul.mubr.bf16.gmra.mxu0 %v1978
      %v3737 = vpop.f32.mrf.mxu0
      %v3738 = vadd.f32 0.0, %v3737
      %v3739 = vpop.f32.mrf.mxu0
      %v3740 = vpop.f32.mrf.mxu0
      %v3741 = vadd.f32 0.0, %v3740
      %v3742 = vpop.f32.mrf.mxu0
      %3743 = vmatprep.mubr.bf16.mxu0 0
      %3744 = vmatmul.mubr.bf16.gmra.mxu0 %v1979
      %v3745 = vpop.f32.mrf.mxu0
      %v3746 = vadd.f32 0.0, %v3745
      %v3747 = vpop.f32.mrf.mxu0
      %v3748 = vpop.f32.mrf.mxu0
      %v3749 = vadd.f32 0.0, %v3748
      %v3750 = vpop.f32.mrf.mxu0
      %3751 = vmatprep.mubr.bf16.mxu0 0
      %3752 = vmatmul.mubr.bf16.gmra.mxu0 %v1980
      %v3753 = vpop.f32.mrf.mxu0
      %v3754 = vadd.f32 0.0, %v3753
      %v3755 = vpop.f32.mrf.mxu0
      %v3756 = vpop.f32.mrf.mxu0
      %v3757 = vadd.f32 0.0, %v3756
      %v3758 = vpop.f32.mrf.mxu0
      %3759 = vmatprep.mubr.bf16.mxu0 0
      %3760 = vmatmul.mubr.bf16.gmra.mxu0 %v1981
      %v3761 = vpop.f32.mrf.mxu0
      %v3762 = vadd.f32 0.0, %v3761
      %v3763 = vpop.f32.mrf.mxu0
      %v3764 = vpop.f32.mrf.mxu0
      %v3765 = vadd.f32 0.0, %v3764
      %v3766 = vpop.f32.mrf.mxu0
      %3767 = vmatprep.mubr.bf16.mxu0 0
      %3768 = vmatmul.mubr.bf16.gmra.mxu0 %v1982
      %v3769 = vpop.f32.mrf.mxu0
      %v3770 = vadd.f32 0.0, %v3769
      %v3771 = vpop.f32.mrf.mxu0
      %v3772 = vpop.f32.mrf.mxu0
      %v3773 = vadd.f32 0.0, %v3772
      %v3774 = vpop.f32.mrf.mxu0
      %3775 = vmatprep.mubr.bf16.mxu0 0
      %3776 = vmatmul.mubr.bf16.gmra.mxu0 %v1983
      %v3777 = vpop.f32.mrf.mxu0
      %v3778 = vadd.f32 0.0, %v3777
      %v3779 = vpop.f32.mrf.mxu0
      %v3780 = vpop.f32.mrf.mxu0
      %v3781 = vadd.f32 0.0, %v3780
      %v3782 = vpop.f32.mrf.mxu0
      %3783 = vmatprep.mubr.bf16.mxu0 0
      %3784 = vmatmul.mubr.bf16.gmra.mxu0 %v1984
      %v3785 = vpop.f32.mrf.mxu0
      %v3786 = vadd.f32 0.0, %v3785
      %v3787 = vpop.f32.mrf.mxu0
      %v3788 = vpop.f32.mrf.mxu0
      %v3789 = vadd.f32 0.0, %v3788
      %v3790 = vpop.f32.mrf.mxu0
      %3791 = vmatprep.mubr.bf16.mxu0 0
      %3792 = vmatmul.mubr.bf16.gmra.mxu0 %v1985
      %v3793 = vpop.f32.mrf.mxu0
      %v3794 = vadd.f32 0.0, %v3793
      %v3795 = vpop.f32.mrf.mxu0
      %v3796 = vpop.f32.mrf.mxu0
      %v3797 = vadd.f32 0.0, %v3796
      %v3798 = vpop.f32.mrf.mxu0
      %3799 = vmatprep.mubr.bf16.mxu0 0
      %3800 = vmatmul.mubr.bf16.gmra.mxu0 %v1986
      %v3801 = vpop.f32.mrf.mxu0
      %v3802 = vadd.f32 0.0, %v3801
      %v3803 = vpop.f32.mrf.mxu0
      %v3804 = vpop.f32.mrf.mxu0
      %v3805 = vadd.f32 0.0, %v3804
      %v3806 = vpop.f32.mrf.mxu0
      %3807 = vmatprep.mubr.bf16.mxu0 0
      %3808 = vmatmul.mubr.bf16.gmra.mxu0 %v1987
      %v3809 = vpop.f32.mrf.mxu0
      %v3810 = vadd.f32 0.0, %v3809
      %v3811 = vpop.f32.mrf.mxu0
      %v3812 = vpop.f32.mrf.mxu0
      %v3813 = vadd.f32 0.0, %v3812
      %v3814 = vpop.f32.mrf.mxu0
      %3815 = vmatprep.mubr.bf16.mxu0 0
      %3816 = vmatmul.mubr.bf16.gmra.mxu0 %v1988
      %v3817 = vpop.f32.mrf.mxu0
      %v3818 = vadd.f32 0.0, %v3817
      %v3819 = vpop.f32.mrf.mxu0
      %v3820 = vpop.f32.mrf.mxu0
      %v3821 = vadd.f32 0.0, %v3820
      %v3822 = vpop.f32.mrf.mxu0
      %3823 = vmatprep.mubr.bf16.mxu0 0
      %3824 = vmatmul.mubr.bf16.gmra.mxu0 %v1989
      %v3825 = vpop.f32.mrf.mxu0
      %v3826 = vadd.f32 0.0, %v3825
      %v3827 = vpop.f32.mrf.mxu0
      %v3828 = vpop.f32.mrf.mxu0
      %v3829 = vadd.f32 0.0, %v3828
      %v3830 = vpop.f32.mrf.mxu0
      %3831 = vmatprep.mubr.bf16.mxu0 0
      %3832 = vmatmul.mubr.bf16.gmra.mxu0 %v1990
      %v3833 = vpop.f32.mrf.mxu0
      %v3834 = vadd.f32 0.0, %v3833
      %v3835 = vpop.f32.mrf.mxu0
      %v3836 = vpop.f32.mrf.mxu0
      %v3837 = vadd.f32 0.0, %v3836
      %v3838 = vpop.f32.mrf.mxu0
      %3839 = vmatprep.mubr.bf16.mxu0 0
      %3840 = vmatmul.mubr.bf16.gmra.mxu0 %v2825
      %v3841 = vpop.f32.mrf.mxu0
      %v3842 = vadd.f32 0.0, %v3841
      %v3843 = vpop.f32.mrf.mxu0
      %v3844 = vpop.f32.mrf.mxu0
      %v3845 = vadd.f32 0.0, %v3844
      %v3846 = vpop.f32.mrf.mxu0
      %3847 = vmatprep.mubr.bf16.mxu0 0
      %3848 = vmatmul.mubr.bf16.gmra.mxu0 %v3645
      %v3849 = vpop.f32.mrf.mxu0
      %v3850 = vadd.f32 0.0, %v3849
      %v3851 = vpop.f32.mrf.mxu0
      %v3852 = vpop.f32.mrf.mxu0
      %v3853 = vadd.f32 0.0, %v3852
      %v3854 = vpop.f32.mrf.mxu0
      %3855 = vdwg.mxu0
      %v3856 = vadd.f32 %v3586, %v3730
      %v3857 = vadd.f32 %v3587, %v3733
      %v3858 = vadd.f32 %v3588, %v3738
      %v3859 = vadd.f32 %v3589, %v3741
      %v3860 = vadd.f32 %v3590, %v3746
      %v3861 = vadd.f32 %v3591, %v3749
      %v3862 = vadd.f32 %v3592, %v3754
      %v3863 = vadd.f32 %v3593, %v3757
      %v3864 = vadd.f32 %v3594, %v3762
      %v3865 = vadd.f32 %v3595, %v3765
      %v3866 = vadd.f32 %v3596, %v3770
      %v3867 = vadd.f32 %v3597, %v3773
      %v3868 = vadd.f32 %v3598, %v3778
      %v3869 = vadd.f32 %v3599, %v3781
      %v3870 = vadd.f32 %v3600, %v3786
      %v3871 = vadd.f32 %v3601, %v3789
      %v3872 = vadd.f32 %v3602, %v3794
      %v3873 = vadd.f32 %v3603, %v3797
      %v3874 = vadd.f32 %v3604, %v3802
      %v3875 = vadd.f32 %v3605, %v3805
      %v3876 = vadd.f32 %v3606, %v3810
      %v3877 = vadd.f32 %v3607, %v3813
      %v3878 = vadd.f32 %v3608, %v3818
      %v3879 = vadd.f32 %v3609, %v3821
      %v3880 = vadd.f32 %v3610, %v3826
      %v3881 = vadd.f32 %v3611, %v3829
      %v3882 = vadd.f32 %v3612, %v3834
      %v3883 = vadd.f32 %v3613, %v3837
      %v3884 = vadd.f32 %v3614, %v3842
      %v3885 = vadd.f32 %v3615, %v3845
      %v3886 = vadd.f32 %v3616, %v3850
      %v3887 = vadd.f32 %v3617, %v3853
      %v3888 = vadd.f32 %v3856, %v3857
      %v3889 = vadd.f32 %v3888, %v3858
      %v3890 = vadd.f32 %v3889, %v3859
      %v3891 = vadd.f32 %v3890, %v3860
      %v3892 = vadd.f32 %v3891, %v3861
      %v3893 = vadd.f32 %v3892, %v3862
      %v3894 = vadd.f32 %v3893, %v3863
      %v3895 = vadd.f32 %v3894, %v3864
      %v3896 = vadd.f32 %v3895, %v3865
      %v3897 = vadd.f32 %v3896, %v3866
      %v3898 = vadd.f32 %v3897, %v3867
      %v3899 = vadd.f32 %v3898, %v3868
      %v3900 = vadd.f32 %v3899, %v3869
      %v3901 = vadd.f32 %v3900, %v3870
      %v3902 = vadd.f32 %v3901, %v3871
      %v3903 = vadd.f32 %v3902, %v3872
      %v3904 = vadd.f32 %v3903, %v3873
      %v3905 = vadd.f32 %v3904, %v3874
      %v3906 = vadd.f32 %v3905, %v3875
      %v3907 = vadd.f32 %v3906, %v3876
      %v3908 = vadd.f32 %v3907, %v3877
      %v3909 = vadd.f32 %v3908, %v3878
      %v3910 = vadd.f32 %v3909, %v3879
      %v3911 = vadd.f32 %v3910, %v3880
      %v3912 = vadd.f32 %v3911, %v3881
      %v3913 = vadd.f32 %v3912, %v3882
      %v3914 = vadd.f32 %v3913, %v3883
      %v3915 = vadd.f32 %v3914, %v3884
      %v3916 = vadd.f32 %v3915, %v3885
      %v3917 = vadd.f32 %v3916, %v3886
      %v3918 = vadd.f32 %v3917, %v3887
      %v3919 = vrot.slane %v3918, 4
      %v3920 = vadd.f32 %v3918, %v3919
      %v3921 = vrot.slane %v3920, 2
      %v3922 = vadd.f32 %v3920, %v3921
      %v3923 = vrot.slane %v3922, 1
      %v3924 = vadd.f32 %v3922, %v3923
      %3925 = vst [vmem:[%s211] sm:$0x1] %v3924
      %v3926 = vmul.f32 %v3856, %v3856
      %v3927 = vmul.f32 %v3857, %v3857
      %v3928 = vmul.f32 %v3858, %v3858
      %v3929 = vmul.f32 %v3859, %v3859
      %v3930 = vmul.f32 %v3860, %v3860
      %v3931 = vmul.f32 %v3861, %v3861
      %v3932 = vmul.f32 %v3862, %v3862
      %v3933 = vmul.f32 %v3863, %v3863
      %v3934 = vmul.f32 %v3864, %v3864
      %v3935 = vmul.f32 %v3865, %v3865
      %v3936 = vmul.f32 %v3866, %v3866
      %v3937 = vmul.f32 %v3867, %v3867
      %v3938 = vmul.f32 %v3868, %v3868
      %v3939 = vmul.f32 %v3869, %v3869
      %v3940 = vmul.f32 %v3870, %v3870
      %v3941 = vmul.f32 %v3871, %v3871
      %v3942 = vmul.f32 %v3872, %v3872
      %v3943 = vmul.f32 %v3873, %v3873
      %v3944 = vmul.f32 %v3874, %v3874
      %v3945 = vmul.f32 %v3875, %v3875
      %v3946 = vmul.f32 %v3876, %v3876
      %v3947 = vmul.f32 %v3877, %v3877
      %v3948 = vmul.f32 %v3878, %v3878
      %v3949 = vmul.f32 %v3879, %v3879
      %v3950 = vmul.f32 %v3880, %v3880
      %v3951 = vmul.f32 %v3881, %v3881
      %v3952 = vmul.f32 %v3882, %v3882
      %v3953 = vmul.f32 %v3883, %v3883
      %v3954 = vmul.f32 %v3884, %v3884
      %v3955 = vmul.f32 %v3885, %v3885
      %v3956 = vmul.f32 %v3886, %v3886
      %v3957 = vmul.f32 %v3887, %v3887
      %v3958 = vadd.f32 %v3926, %v3927
      %v3959 = vadd.f32 %v3958, %v3928
      %v3960 = vadd.f32 %v3959, %v3929
      %v3961 = vadd.f32 %v3960, %v3930
      %v3962 = vadd.f32 %v3961, %v3931
      %v3963 = vadd.f32 %v3962, %v3932
      %v3964 = vadd.f32 %v3963, %v3933
      %v3965 = vadd.f32 %v3964, %v3934
      %v3966 = vadd.f32 %v3965, %v3935
      %v3967 = vadd.f32 %v3966, %v3936
      %v3968 = vadd.f32 %v3967, %v3937
      %v3969 = vadd.f32 %v3968, %v3938
      %v3970 = vadd.f32 %v3969, %v3939
      %v3971 = vadd.f32 %v3970, %v3940
      %v3972 = vadd.f32 %v3971, %v3941
      %v3973 = vadd.f32 %v3972, %v3942
      %v3974 = vadd.f32 %v3973, %v3943
      %v3975 = vadd.f32 %v3974, %v3944
      %v3976 = vadd.f32 %v3975, %v3945
      %v3977 = vadd.f32 %v3976, %v3946
      %v3978 = vadd.f32 %v3977, %v3947
      %v3979 = vadd.f32 %v3978, %v3948
      %v3980 = vadd.f32 %v3979, %v3949
      %v3981 = vadd.f32 %v3980, %v3950
      %v3982 = vadd.f32 %v3981, %v3951
      %v3983 = vadd.f32 %v3982, %v3952
      %v3984 = vadd.f32 %v3983, %v3953
      %v3985 = vadd.f32 %v3984, %v3954
      %v3986 = vadd.f32 %v3985, %v3955
      %v3987 = vadd.f32 %v3986, %v3956
      %v3988 = vadd.f32 %v3987, %v3957
      %v3989 = vrot.slane %v3988, 4
      %v3990 = vadd.f32 %v3988, %v3989
      %v3991 = vrot.slane %v3990, 2
      %v3992 = vadd.f32 %v3990, %v3991
      %v3993 = vrot.slane %v3992, 1
      %v3994 = vadd.f32 %v3992, %v3993
      %3995 = vst [vmem:[%s214] sm:$0x1] %v3994
      %v3996 = vpack.c.bf16 %v3857, %v3856
      %v3997 = vpack.c.bf16 %v3859, %v3858
      %v3998 = vpack.c.bf16 %v3861, %v3860
      %v3999 = vpack.c.bf16 %v3863, %v3862
      %v4000 = vpack.c.bf16 %v3865, %v3864
      %v4001 = vpack.c.bf16 %v3867, %v3866
      %v4002 = vpack.c.bf16 %v3869, %v3868
      %v4003 = vpack.c.bf16 %v3871, %v3870
      %v4004 = vpack.c.bf16 %v3873, %v3872
      %v4005 = vpack.c.bf16 %v3875, %v3874
      %v4006 = vpack.c.bf16 %v3877, %v3876
      %v4007 = vpack.c.bf16 %v3879, %v3878
      %v4008 = vpack.c.bf16 %v3881, %v3880
      %v4009 = vpack.c.bf16 %v3883, %v3882
      %v4010 = vpack.c.bf16 %v3885, %v3884
      %v4011 = vpack.c.bf16 %v3887, %v3886
      %v4028 = vunpack.c.l.b16 %v3996
      %v4029 = vunpack.c.h.b16 %v3996
      %v4030 = vunpack.c.l.b16 %v3997
      %v4031 = vunpack.c.h.b16 %v3997
      %v4032 = vunpack.c.l.b16 %v3998
      %v4033 = vunpack.c.h.b16 %v3998
      %v4034 = vunpack.c.l.b16 %v3999
      %v4035 = vunpack.c.h.b16 %v3999
      %v4036 = vunpack.c.l.b16 %v4000
      %v4037 = vunpack.c.h.b16 %v4000
      %v4038 = vunpack.c.l.b16 %v4001
      %v4039 = vunpack.c.h.b16 %v4001
      %v4040 = vunpack.c.l.b16 %v4002
      %v4041 = vunpack.c.h.b16 %v4002
      %v4042 = vunpack.c.l.b16 %v4003
      %v4043 = vunpack.c.h.b16 %v4003
      %v4044 = vunpack.c.l.b16 %v4004
      %v4045 = vunpack.c.h.b16 %v4004
      %v4046 = vunpack.c.l.b16 %v4005
      %v4047 = vunpack.c.h.b16 %v4005
      %v4048 = vunpack.c.l.b16 %v4006
      %v4049 = vunpack.c.h.b16 %v4006
      %v4050 = vunpack.c.l.b16 %v4007
      %v4051 = vunpack.c.h.b16 %v4007
      %v4052 = vunpack.c.l.b16 %v4008
      %v4053 = vunpack.c.h.b16 %v4008
      %v4054 = vunpack.c.l.b16 %v4009
      %v4055 = vunpack.c.h.b16 %v4009
      %v4056 = vunpack.c.l.b16 %v4010
      %v4057 = vunpack.c.h.b16 %v4010
      %v4058 = vunpack.c.l.b16 %v4011
      %v4059 = vunpack.c.h.b16 %v4011
      %v4060 = vpack.c.b16 %v4028, %v4028
      %v4061 = vpack.c.b16 %v4029, %v4029
      %v4062 = vpack.c.b16 %v4030, %v4030
      %v4063 = vpack.c.b16 %v4031, %v4031
      %v4064 = vpack.c.b16 %v4032, %v4032
      %v4065 = vpack.c.b16 %v4033, %v4033
      %v4066 = vpack.c.b16 %v4034, %v4034
      %v4067 = vpack.c.b16 %v4035, %v4035
      %v4068 = vpack.c.b16 %v4036, %v4036
      %v4069 = vpack.c.b16 %v4037, %v4037
      %v4070 = vpack.c.b16 %v4038, %v4038
      %v4071 = vpack.c.b16 %v4039, %v4039
      %v4072 = vpack.c.b16 %v4040, %v4040
      %v4073 = vpack.c.b16 %v4041, %v4041
      %v4074 = vpack.c.b16 %v4042, %v4042
      %v4075 = vpack.c.b16 %v4043, %v4043
      %v4076 = vpack.c.b16 %v4044, %v4044
      %v4077 = vpack.c.b16 %v4045, %v4045
      %v4078 = vpack.c.b16 %v4046, %v4046
      %v4079 = vpack.c.b16 %v4047, %v4047
      %v4080 = vpack.c.b16 %v4048, %v4048
      %v4081 = vpack.c.b16 %v4049, %v4049
      %v4082 = vpack.c.b16 %v4050, %v4050
      %v4083 = vpack.c.b16 %v4051, %v4051
      %v4084 = vpack.c.b16 %v4052, %v4052
      %v4085 = vpack.c.b16 %v4053, %v4053
      %v4086 = vpack.c.b16 %v4054, %v4054
      %v4087 = vpack.c.b16 %v4055, %v4055
      %v4088 = vpack.c.b16 %v4056, %v4056
      %v4089 = vpack.c.b16 %v4057, %v4057
      %v4090 = vpack.c.b16 %v4058, %v4058
      %v4091 = vpack.c.b16 %v4059, %v4059
      %4124 = vst [vmem:[%s208] sm:$0xf] %v4060
      %4125 = vst [vmem:[%s208 + $0x4] sm:$0xf] %v4061
      %4126 = vst [vmem:[%s208 + $0x8] sm:$0xf] %v4062
      %4127 = vst [vmem:[%s208 + $0xc] sm:$0xf] %v4063
      %4128 = vst [vmem:[%s208 + $0x10] sm:$0xf] %v4064
      %4129 = vst [vmem:[%s208 + $0x14] sm:$0xf] %v4065
      %4130 = vst [vmem:[%s208 + $0x18] sm:$0xf] %v4066
      %4131 = vst [vmem:[%s208 + $0x1c] sm:$0xf] %v4067
      %4132 = vst [vmem:[%s208 + $0x20] sm:$0xf] %v4068
      %4133 = vst [vmem:[%s208 + $0x24] sm:$0xf] %v4069
      %4134 = vst [vmem:[%s208 + $0x28] sm:$0xf] %v4070
      %4135 = vst [vmem:[%s208 + $0x2c] sm:$0xf] %v4071
      %4136 = vst [vmem:[%s208 + $0x30] sm:$0xf] %v4072
      %4137 = vst [vmem:[%s208 + $0x34] sm:$0xf] %v4073
      %4138 = vst [vmem:[%s208 + $0x38] sm:$0xf] %v4074
      %4139 = vst [vmem:[%s208 + $0x3c] sm:$0xf] %v4075
      %4140 = vst [vmem:[%s208 + $0x40] sm:$0xf] %v4076
      %4141 = vst [vmem:[%s208 + $0x44] sm:$0xf] %v4077
      %4142 = vst [vmem:[%s208 + $0x48] sm:$0xf] %v4078
      %4143 = vst [vmem:[%s208 + $0x4c] sm:$0xf] %v4079
      %4144 = vst [vmem:[%s208 + $0x50] sm:$0xf] %v4080
      %4145 = vst [vmem:[%s208 + $0x54] sm:$0xf] %v4081
      %4146 = vst [vmem:[%s208 + $0x58] sm:$0xf] %v4082
      %4147 = vst [vmem:[%s208 + $0x5c] sm:$0xf] %v4083
      %4148 = vst [vmem:[%s208 + $0x60] sm:$0xf] %v4084
      %4149 = vst [vmem:[%s208 + $0x64] sm:$0xf] %v4085
      %4150 = vst [vmem:[%s208 + $0x68] sm:$0xf] %v4086
      %4151 = vst [vmem:[%s208 + $0x6c] sm:$0xf] %v4087
      %4152 = vst [vmem:[%s208 + $0x70] sm:$0xf] %v4088
      %4153 = vst [vmem:[%s208 + $0x74] sm:$0xf] %v4089
      %4154 = vst [vmem:[%s208 + $0x78] sm:$0xf] %v4090
      %4155 = vst [vmem:[%s208 + $0x7c] sm:$0xf] %v4091
      %p4156 = scmp.lt.s32.totalorder %s16, 1
      %s4157 = scalar_select %p4156, %s16, 1
      %s4158 = smul.addr %s4157, 32
      %s4159 = smul.addr %s4158, 4
      %s4160 = scalar_lea.vmem %s2, %s4159
      %p4161 = scmp.lt.s32.totalorder %s16, 1
      %s4162 = scalar_select %p4161, %s16, 1
      %s4163 = scalar_lea.vmem %s3, %s4162
      %p4164 = scmp.lt.s32.totalorder %s16, 1
      %s4165 = scalar_select %p4164, %s16, 1
      %s4166 = scalar_lea.vmem %s4, %s4165
      // Predicated region
      $region29: #{basic_block_forward.4} parent=27 // pred_check
        %p4167 = pneg %p81
      $region30: #{basic_block_forward.4} parent=27 // pred_check_branch
        %4169 = sbr.rel (%p4167) target = $region32
      $region31: #{basic_block_forward.4} parent=27 // pred_region
        _
      $region32: #{basic_block_forward.4} parent=27 // pred_fallthru
        _
      // Predicated region
      $region33: #{basic_block_forward.4} parent=27 // pred_check
        %p4170 = pneg %p107
      $region34: #{basic_block_forward.4} parent=27 // pred_check_branch
        %4172 = sbr.rel (%p4170) target = $region36
      $region35: #{basic_block_forward.4} parent=27 // pred_region
        _
      $region36: #{basic_block_forward.4} parent=27 // pred_fallthru
        _
      // Predicated region
      $region37: #{basic_block_forward.4} parent=27 // pred_check
        %p4173 = pneg %p133
      $region38: #{basic_block_forward.4} parent=27 // pred_check_branch
        %4175 = sbr.rel (%p4173) target = $region40
      $region39: #{basic_block_forward.4} parent=27 // pred_region
        _
      $region40: #{basic_block_forward.4} parent=27 // pred_fallthru
        _
    $region28: #{basic_block_forward.4} parent=5 // pred_fallthru
      _
    %p4176 = scmp.le.s32.totalorder 2, %s11
    // Predicated region
    $region41: #{basic_block_forward.4} parent=5 // pred_check
      %p4177 = pneg %p4176
    $region42: #{basic_block_forward.4} parent=5 // pred_check_branch
      %4179 = sbr.rel (%p4177) target = $region44
    $region43: #{basic_block_forward.4} parent=5 // pred_region
      %s4180 = ssub.s32 %s11, 2
      // Predicated region
      $region45: #{basic_block_forward.4} parent=43 // pred_check
        %p4181 = pneg %p87
      $region46: #{basic_block_forward.4} parent=43 // pred_check_branch
        %4183 = sbr.rel (%p4181) target = $region48
      $region47: #{basic_block_forward.4} parent=43 // pred_region
        %p4184 = scmp.lt.s32.totalorder %s17, 1
        %s4185 = scalar_select %p4184, %s17, 1
        %s4186 = smul.addr %s4185, 32
        %s4187 = smul.addr %s4186, 4
        %s4188 = scalar_lea.vmem %s2, %s4187
      $region48: #{basic_block_forward.4} parent=43 // pred_fallthru
        _
      // Predicated region
      $region49: #{basic_block_forward.4} parent=43 // pred_check
        %p4189 = pneg %p113
      $region50: #{basic_block_forward.4} parent=43 // pred_check_branch
        %4191 = sbr.rel (%p4189) target = $region52
      $region51: #{basic_block_forward.4} parent=43 // pred_region
        %p4192 = scmp.lt.s32.totalorder %s17, 1
        %s4193 = scalar_select %p4192, %s17, 1
        %s4194 = scalar_lea.vmem %s3, %s4193
      $region52: #{basic_block_forward.4} parent=43 // pred_fallthru
        _
      // Predicated region
      $region53: #{basic_block_forward.4} parent=43 // pred_check
        %p4195 = pneg %p139
      $region54: #{basic_block_forward.4} parent=43 // pred_check_branch
        %4197 = sbr.rel (%p4195) target = $region56
      $region55: #{basic_block_forward.4} parent=43 // pred_region
        %p4198 = scmp.lt.s32.totalorder %s17, 1
        %s4199 = scalar_select %p4198, %s17, 1
        %s4200 = scalar_lea.vmem %s4, %s4199
      $region56: #{basic_block_forward.4} parent=43 // pred_fallthru
        _
    $region44: #{basic_block_forward.4} parent=5 // pred_fallthru
      _
  $region6: #{basic_block_forward.4} parent=0 // loop_footer
    %s15 = sadd.s32 1, %s11
  $region7: #{basic_block_forward.4} parent=0 // loop_footer_branch
    %10 = sbr.rel target = $region3
  $region8: #{basic_block_forward.4} parent=0 // loop_exit
    _

// kernel: basic_block_forward.5
$region0: #{basic_block_forward.5}
  #allocation0 [shape = 'u32[]', space=smem, size = 0x4, offset = 0x4, fixed_abs, tag = 'smem constant byte address 0x4 - core index']
  #allocation1 [shape = 'u32[144,128]{1,0:T(1,128)}', space=vmem, size = 0x12000, scoped, tag = 'internal scratch']
  #allocation2 [shape = 'bf16[18,18,128]{2,1,0:T(8,128)(2,1)}', space=vmem, size = 0x1b000, scoped, tag = 'scratch operand']
  %s0 = inlined_call_operand.vmem [shape: bf16[2,16,16,128], index: 0, kind: input, shape index: {}]
  %s1 = inlined_call_operand.vmem [shape: bf16[9,128,128], index: 1, kind: input, shape index: {}]
  %s2 = inlined_call_operand.vmem [shape: f32[1,128], index: 2, kind: input, shape index: {}]
  %s3 = inlined_call_operand.vmem [shape: f32[1,128], index: 3, kind: input, shape index: {}]
  %s4 = inlined_call_operand.vmem [shape: bf16[2,16,16,128], index: 4, kind: output, shape index: {0}]
  %s5 = inlined_call_operand.vmem [shape: f32[2,1,128], index: 5, kind: output, shape index: {1}]
  %s6 = inlined_call_operand.vmem [shape: f32[2,1,128], index: 6, kind: output, shape index: {2}]
  %7 = xla_tuple %s4, %s5, %s6
  %s8 = sld [smem:[#allocation0]]
  $region65: #{basic_block_forward.5} parent=0
    _
  %s10 = ssub.s32 1, %s8
  %s11 = scalar_select 0, %s10, %s8
  loop: start=0, step=1, limit=4
  $region2: #{basic_block_forward.5} parent=0 // loop_pre_header
    _
  $region3: #{basic_block_forward.5} parent=0 // loop_header
    %s13 = sphi 0, %s17
    %p14 = scmp.ge.s32.totalorder %s13, 4
    %s23 = sphi 0, %s25
    %s26 = sphi 0, %s23
    %s27 = sphi 0, %s26
    %s43 = sphi 0, %s27
    %s47 = sphi 0, %s47
    %s49 = sphi 0, %s47
    %s50 = sphi 0, %s49
    %s64 = sphi 0, %s50
    %s68 = sphi 0, %s68
    %s70 = sphi 0, %s68
    %s71 = sphi 0, %s70
    %s85 = sphi 0, %s71
    %s89 = sphi 0, %s89
    %s91 = sphi 0, %s89
    %s92 = sphi 0, %s91
    %s106 = sphi 0, %s92
    %s112 = sphi 0, %s114
    %s115 = sphi 0, %s112
    %s116 = sphi 0, %s115
    %s132 = sphi 0, %s116
    %s138 = sphi 0, %s140
    %s141 = sphi 0, %s138
    %s142 = sphi 0, %s141
    %s158 = sphi 0, %s142
    %s164 = sphi 0, %s166
    %s167 = sphi 0, %s164
    %s168 = sphi 0, %s167
    %s184 = sphi 0, %s168
  $region4: #{basic_block_forward.5} parent=0 // loop_header_branch
    %16 = sbr.rel (%p14) target = $region8
  $region5: #{basic_block_forward.5} parent=0 // loop_body
    %s18 = ssub.s32 %s13, 1
    %s19 = ssub.s32 %s13, 2
    %s20 = sadd.s32 %s13, 1
    %s21 = ssub.s32 %s13, %s20
    %p22 = scmp.eq.s32.totalorder %s21, 0
    %s24 = sadd.s32 %s23, 1
    %s25 = scalar_select %p22, %s23, %s24
    %p28 = pneg %p22
    %p29 = scmp.eq.s32.totalorder %s13, 1
    %p30 = por %p28, %p29
    %p31 = scmp.ne.s32.totalorder %s23, %s26
    %p32 = scmp.eq.s32.totalorder %s13, 0
    %p33 = por %p31, %p32
    %p34 = scmp.ne.s32.totalorder %s23, %s26
    %p35 = scmp.eq.s32.totalorder %s18, 1
    %p36 = por %p34, %p35
    %p37 = scmp.ne.s32.totalorder %s26, %s27
    %p38 = scmp.eq.s32.totalorder %s18, 0
    %p39 = por %p37, %p38
    %p40 = scmp.ne.s32.totalorder %s26, %s27
    %p41 = scmp.eq.s32.totalorder %s19, 1
    %p42 = por %p40, %p41
    %p44 = scmp.ne.s32.totalorder %s27, %s43
    %p45 = scmp.eq.s32.totalorder %s19, 0
    %p46 = por %p44, %p45
    %s48 = sadd.s32 %s47, 1
    %p51 = scmp.eq.s32.totalorder %s13, 1
    %p52 = scmp.ne.s32.totalorder %s47, %s49
    %p53 = scmp.eq.s32.totalorder %s13, 0
    %p54 = por %p52, %p53
    %p55 = scmp.ne.s32.totalorder %s47, %s49
    %p56 = scmp.eq.s32.totalorder %s18, 1
    %p57 = por %p55, %p56
    %p58 = scmp.ne.s32.totalorder %s49, %s50
    %p59 = scmp.eq.s32.totalorder %s18, 0
    %p60 = por %p58, %p59
    %p61 = scmp.ne.s32.totalorder %s49, %s50
    %p62 = scmp.eq.s32.totalorder %s19, 1
    %p63 = por %p61, %p62
    %p65 = scmp.ne.s32.totalorder %s50, %s64
    %p66 = scmp.eq.s32.totalorder %s19, 0
    %p67 = por %p65, %p66
    %s69 = sadd.s32 %s68, 1
    %p72 = scmp.eq.s32.totalorder %s13, 1
    %p73 = scmp.ne.s32.totalorder %s68, %s70
    %p74 = scmp.eq.s32.totalorder %s13, 0
    %p75 = por %p73, %p74
    %p76 = scmp.ne.s32.totalorder %s68, %s70
    %p77 = scmp.eq.s32.totalorder %s18, 1
    %p78 = por %p76, %p77
    %p79 = scmp.ne.s32.totalorder %s70, %s71
    %p80 = scmp.eq.s32.totalorder %s18, 0
    %p81 = por %p79, %p80
    %p82 = scmp.ne.s32.totalorder %s70, %s71
    %p83 = scmp.eq.s32.totalorder %s19, 1
    %p84 = por %p82, %p83
    %p86 = scmp.ne.s32.totalorder %s71, %s85
    %p87 = scmp.eq.s32.totalorder %s19, 0
    %p88 = por %p86, %p87
    %s90 = sadd.s32 %s89, 1
    %p93 = scmp.eq.s32.totalorder %s13, 1
    %p94 = scmp.ne.s32.totalorder %s89, %s91
    %p95 = scmp.eq.s32.totalorder %s13, 0
    %p96 = por %p94, %p95
    %p97 = scmp.ne.s32.totalorder %s89, %s91
    %p98 = scmp.eq.s32.totalorder %s18, 1
    %p99 = por %p97, %p98
    %p100 = scmp.ne.s32.totalorder %s91, %s92
    %p101 = scmp.eq.s32.totalorder %s18, 0
    %p102 = por %p100, %p101
    %p103 = scmp.ne.s32.totalorder %s91, %s92
    %p104 = scmp.eq.s32.totalorder %s19, 1
    %p105 = por %p103, %p104
    %p107 = scmp.ne.s32.totalorder %s92, %s106
    %p108 = scmp.eq.s32.totalorder %s19, 0
    %p109 = por %p107, %p108
    %s110 = ssub.s32 %s13, %s20
    %p111 = scmp.eq.s32.totalorder %s110, 0
    %s113 = sadd.s32 %s112, 1
    %s114 = scalar_select %p111, %s112, %s113
    %p117 = pneg %p111
    %p118 = scmp.eq.s32.totalorder %s13, 1
    %p119 = por %p117, %p118
    %p120 = scmp.ne.s32.totalorder %s112, %s115
    %p121 = scmp.eq.s32.totalorder %s13, 0
    %p122 = por %p120, %p121
    %p123 = scmp.ne.s32.totalorder %s112, %s115
    %p124 = scmp.eq.s32.totalorder %s18, 1
    %p125 = por %p123, %p124
    %p126 = scmp.ne.s32.totalorder %s115, %s116
    %p127 = scmp.eq.s32.totalorder %s18, 0
    %p128 = por %p126, %p127
    %p129 = scmp.ne.s32.totalorder %s115, %s116
    %p130 = scmp.eq.s32.totalorder %s19, 1
    %p131 = por %p129, %p130
    %p133 = scmp.ne.s32.totalorder %s116, %s132
    %p134 = scmp.eq.s32.totalorder %s19, 0
    %p135 = por %p133, %p134
    %s136 = ssub.s32 %s13, %s20
    %p137 = scmp.eq.s32.totalorder %s136, 0
    %s139 = sadd.s32 %s138, 1
    %s140 = scalar_select %p137, %s138, %s139
    %p143 = pneg %p137
    %p144 = scmp.eq.s32.totalorder %s13, 1
    %p145 = por %p143, %p144
    %p146 = scmp.ne.s32.totalorder %s138, %s141
    %p147 = scmp.eq.s32.totalorder %s13, 0
    %p148 = por %p146, %p147
    %p149 = scmp.ne.s32.totalorder %s138, %s141
    %p150 = scmp.eq.s32.totalorder %s18, 1
    %p151 = por %p149, %p150
    %p152 = scmp.ne.s32.totalorder %s141, %s142
    %p153 = scmp.eq.s32.totalorder %s18, 0
    %p154 = por %p152, %p153
    %p155 = scmp.ne.s32.totalorder %s141, %s142
    %p156 = scmp.eq.s32.totalorder %s19, 1
    %p157 = por %p155, %p156
    %p159 = scmp.ne.s32.totalorder %s142, %s158
    %p160 = scmp.eq.s32.totalorder %s19, 0
    %p161 = por %p159, %p160
    %s162 = ssub.s32 %s13, %s20
    %p163 = scmp.eq.s32.totalorder %s162, 0
    %s165 = sadd.s32 %s164, 1
    %s166 = scalar_select %p163, %s164, %s165
    %p169 = pneg %p163
    %p170 = scmp.eq.s32.totalorder %s13, 1
    %p171 = por %p169, %p170
    %p172 = scmp.ne.s32.totalorder %s164, %s167
    %p173 = scmp.eq.s32.totalorder %s13, 0
    %p174 = por %p172, %p173
    %p175 = scmp.ne.s32.totalorder %s164, %s167
    %p176 = scmp.eq.s32.totalorder %s18, 1
    %p177 = por %p175, %p176
    %p178 = scmp.ne.s32.totalorder %s167, %s168
    %p179 = scmp.eq.s32.totalorder %s18, 0
    %p180 = por %p178, %p179
    %p181 = scmp.ne.s32.totalorder %s167, %s168
    %p182 = scmp.eq.s32.totalorder %s19, 1
    %p183 = por %p181, %p182
    %p185 = scmp.ne.s32.totalorder %s168, %s184
    %p186 = scmp.eq.s32.totalorder %s19, 0
    %p187 = por %p185, %p186
    %p188 = scmp.le.s32.totalorder 1, %s13
    %p189 = scmp.lt.s32.totalorder %s13, 3
    %p190 = pnand %p188, %p189
    %p191 = pneg %p190
    // Predicated region
    $region9: #{basic_block_forward.5} parent=5 // pred_check
      _
    $region10: #{basic_block_forward.5} parent=5 // pred_check_branch
      %193 = sbr.rel (%p190) target = $region12
    $region11: #{basic_block_forward.5} parent=5 // pred_region
      %s194 = ssub.s32 %s13, 1
      // Predicated region
      $region13: #{basic_block_forward.5} parent=11 // pred_check
        %p195 = pneg %p60
      $region14: #{basic_block_forward.5} parent=11 // pred_check_branch
        %197 = sbr.rel (%p195) target = $region16
      $region15: #{basic_block_forward.5} parent=11 // pred_region
        _
      $region16: #{basic_block_forward.5} parent=11 // pred_fallthru
        _
      // Predicated region
      $region17: #{basic_block_forward.5} parent=11 // pred_check
        %p198 = pneg %p81
      $region18: #{basic_block_forward.5} parent=11 // pred_check_branch
        %200 = sbr.rel (%p198) target = $region20
      $region19: #{basic_block_forward.5} parent=11 // pred_region
        _
      $region20: #{basic_block_forward.5} parent=11 // pred_fallthru
        _
      // Predicated region
      $region21: #{basic_block_forward.5} parent=11 // pred_check
        %p201 = pneg %p102
      $region22: #{basic_block_forward.5} parent=11 // pred_check_branch
        %203 = sbr.rel (%p201) target = $region24
      $region23: #{basic_block_forward.5} parent=11 // pred_region
        _
      $region24: #{basic_block_forward.5} parent=11 // pred_fallthru
        _
    $region12: #{basic_block_forward.5} parent=5 // pred_fallthru
      _
    %p204 = scmp.lt.s32.totalorder %s13, 2
    // Predicated region
    $region25: #{basic_block_forward.5} parent=5 // pred_check
      %p205 = pneg %p204
    $region26: #{basic_block_forward.5} parent=5 // pred_check_branch
      %207 = sbr.rel (%p205) target = $region28
    $region27: #{basic_block_forward.5} parent=5 // pred_region
      // Predicated region
      $region29: #{basic_block_forward.5} parent=27 // pred_check
        %p208 = pneg %p33
      $region30: #{basic_block_forward.5} parent=27 // pred_check_branch
        %210 = sbr.rel (%p208) target = $region32
      $region31: #{basic_block_forward.5} parent=27 // pred_region
        %p211 = scmp.lt.s32.totalorder %s13, 1
        %s212 = scalar_select %p211, %s13, 1
        %s213 = smul.addr %s212, 32
        %s214 = smul.addr %s213, 4
        %s215 = scalar_lea.vmem %s0, %s214
      $region32: #{basic_block_forward.5} parent=27 // pred_fallthru
        _
    $region28: #{basic_block_forward.5} parent=5 // pred_fallthru
      _
    %p216 = scmp.le.s32.totalorder 1, %s13
    %p217 = scmp.lt.s32.totalorder %s13, 3
    %p218 = pnand %p216, %p217
    %p219 = pneg %p218
    // Predicated region
    $region33: #{basic_block_forward.5} parent=5 // pred_check
      _
    $region34: #{basic_block_forward.5} parent=5 // pred_check_branch
      %221 = sbr.rel (%p218) target = $region36
    $region35: #{basic_block_forward.5} parent=5 // pred_region
      %s222 = ssub.s32 %s13, 1
      %p223 = scmp.lt.s32.totalorder %s18, 1
      %s224 = scalar_select %p223, %s18, 1
      %s225 = smul.addr %s224, 32
      %s226 = smul.addr %s225, 4
      %s227 = scalar_lea.vmem %s0, %s226
      %p228 = pneg %p39
      %p229 = pneg %p36
      %p230 = pneg %p60
      %p231 = pneg %p57
      %p232 = pneg %p81
      %p233 = pneg %p78
      %p234 = pneg %p102
      %p235 = pneg %p99
      %p236 = pneg %p128
      %p237 = pneg %p125
      %p238 = scmp.lt.s32.totalorder %s18, 1
      %s239 = scalar_select %p238, %s18, 1
      %s240 = smul.addr %s239, 32
      %s241 = smul.addr %s240, 4
      %s242 = scalar_lea.vmem %s4, %s241
      %p243 = pneg %p154
      %p244 = pneg %p151
      %p245 = scmp.lt.s32.totalorder %s18, 1
      %s246 = scalar_select %p245, %s18, 1
      %s247 = scalar_lea.vmem %s5, %s246
      %p248 = pneg %p180
      %p249 = pneg %p177
      %p250 = scmp.lt.s32.totalorder %s18, 1
      %s251 = scalar_select %p250, %s18, 1
      %s252 = scalar_lea.vmem %s6, %s251
      %p253 = scmp.lt.s32.totalorder %s18, 1
      %s254 = scalar_select %p253, %s18, 1
      %s255 = smul.addr %s254, 32
      %s256 = smul.addr %s255, 4
      %s257 = scalar_lea.vmem %s0, %s256
      %p258 = scmp.lt.s32.totalorder %s18, 1
      %s259 = scalar_select %p258, %s18, 1
      %s260 = smul.addr %s259, 32
      %s261 = smul.addr %s260, 4
      %s262 = scalar_lea.vmem %s4, %s261
      %p263 = scmp.lt.s32.totalorder %s18, 1
      %s264 = scalar_select %p263, %s18, 1
      %s265 = scalar_lea.vmem %s5, %s264
      %p266 = scmp.lt.s32.totalorder %s18, 1
      %s267 = scalar_select %p266, %s18, 1
      %s268 = scalar_lea.vmem %s6, %s267
      %v270 = vld [vmem:[%s257] sm:$0xf]
      %v271 = vld [vmem:[%s257 + $0x4] sm:$0xf]
      %v272 = vld [vmem:[%s257 + $0x8] sm:$0xf]
      %v273 = vld [vmem:[%s257 + $0xc] sm:$0xf]
      %v274 = vld [vmem:[%s257 + $0x10] sm:$0xf]
      %v275 = vld [vmem:[%s257 + $0x14] sm:$0xf]
      %v276 = vld [vmem:[%s257 + $0x18] sm:$0xf]
      %v277 = vld [vmem:[%s257 + $0x1c] sm:$0xf]
      %v278 = vld [vmem:[%s257 + $0x20] sm:$0xf]
      %v279 = vld [vmem:[%s257 + $0x24] sm:$0xf]
      %v280 = vld [vmem:[%s257 + $0x28] sm:$0xf]
      %v281 = vld [vmem:[%s257 + $0x2c] sm:$0xf]
      %v282 = vld [vmem:[%s257 + $0x30] sm:$0xf]
      %v283 = vld [vmem:[%s257 + $0x34] sm:$0xf]
      %v284 = vld [vmem:[%s257 + $0x38] sm:$0xf]
      %v285 = vld [vmem:[%s257 + $0x3c] sm:$0xf]
      %v286 = vld [vmem:[%s257 + $0x40] sm:$0xf]
      %v287 = vld [vmem:[%s257 + $0x44] sm:$0xf]
      %v288 = vld [vmem:[%s257 + $0x48] sm:$0xf]
      %v289 = vld [vmem:[%s257 + $0x4c] sm:$0xf]
      %v290 = vld [vmem:[%s257 + $0x50] sm:$0xf]
      %v291 = vld [vmem:[%s257 + $0x54] sm:$0xf]
      %v292 = vld [vmem:[%s257 + $0x58] sm:$0xf]
      %v293 = vld [vmem:[%s257 + $0x5c] sm:$0xf]
      %v294 = vld [vmem:[%s257 + $0x60] sm:$0xf]
      %v295 = vld [vmem:[%s257 + $0x64] sm:$0xf]
      %v296 = vld [vmem:[%s257 + $0x68] sm:$0xf]
      %v297 = vld [vmem:[%s257 + $0x6c] sm:$0xf]
      %v298 = vld [vmem:[%s257 + $0x70] sm:$0xf]
      %v299 = vld [vmem:[%s257 + $0x74] sm:$0xf]
      %v300 = vld [vmem:[%s257 + $0x78] sm:$0xf]
      %v301 = vld [vmem:[%s257 + $0x7c] sm:$0xf]
      %v302 = vunpack.c.l.bf16 %v270
      %v303 = vunpack.c.l.bf16 %v271
      %v304 = vunpack.c.l.bf16 %v272
      %v305 = vunpack.c.l.bf16 %v273
      %v306 = vunpack.c.l.bf16 %v274
      %v307 = vunpack.c.l.bf16 %v275
      %v308 = vunpack.c.l.bf16 %v276
      %v309 = vunpack.c.l.bf16 %v277
      %v310 = vunpack.c.l.bf16 %v278
      %v311 = vunpack.c.l.bf16 %v279
      %v312 = vunpack.c.l.bf16 %v280
      %v313 = vunpack.c.l.bf16 %v281
      %v314 = vunpack.c.l.bf16 %v282
      %v315 = vunpack.c.l.bf16 %v283
      %v316 = vunpack.c.l.bf16 %v284
      %v317 = vunpack.c.l.bf16 %v285
      %v318 = vunpack.c.l.bf16 %v286
      %v319 = vunpack.c.l.bf16 %v287
      %v320 = vunpack.c.l.bf16 %v288
      %v321 = vunpack.c.l.bf16 %v289
      %v322 = vunpack.c.l.bf16 %v290
      %v323 = vunpack.c.l.bf16 %v291
      %v324 = vunpack.c.l.bf16 %v292
      %v325 = vunpack.c.l.bf16 %v293
      %v326 = vunpack.c.l.bf16 %v294
      %v327 = vunpack.c.l.bf16 %v295
      %v328 = vunpack.c.l.bf16 %v296
      %v329 = vunpack.c.l.bf16 %v297
      %v330 = vunpack.c.l.bf16 %v298
      %v331 = vunpack.c.l.bf16 %v299
      %v332 = vunpack.c.l.bf16 %v300
      %v333 = vunpack.c.l.bf16 %v301
      %v334 = vld [vmem:[%s2] sm:$0x1]
      %v336 = vlaneseq
      %v337 = vshrl.u32 %v336, 7
      %v338 = vsub.s32 0, %v337
      %v339 = vrot.slane %v334, %v338
      %v341 = vmul.f32 %v302, %v339
      %v342 = vmul.f32 %v303, %v339
      %v343 = vmul.f32 %v304, %v339
      %v344 = vmul.f32 %v305, %v339
      %v345 = vmul.f32 %v306, %v339
      %v346 = vmul.f32 %v307, %v339
      %v347 = vmul.f32 %v308, %v339
      %v348 = vmul.f32 %v309, %v339
      %v349 = vmul.f32 %v310, %v339
      %v350 = vmul.f32 %v311, %v339
      %v351 = vmul.f32 %v312, %v339
      %v352 = vmul.f32 %v313, %v339
      %v353 = vmul.f32 %v314, %v339
      %v354 = vmul.f32 %v315, %v339
      %v355 = vmul.f32 %v316, %v339
      %v356 = vmul.f32 %v317, %v339
      %v357 = vmul.f32 %v318, %v339
      %v358 = vmul.f32 %v319, %v339
      %v359 = vmul.f32 %v320, %v339
      %v360 = vmul.f32 %v321, %v339
      %v361 = vmul.f32 %v322, %v339
      %v362 = vmul.f32 %v323, %v339
      %v363 = vmul.f32 %v324, %v339
      %v364 = vmul.f32 %v325, %v339
      %v365 = vmul.f32 %v326, %v339
      %v366 = vmul.f32 %v327, %v339
      %v367 = vmul.f32 %v328, %v339
      %v368 = vmul.f32 %v329, %v339
      %v369 = vmul.f32 %v330, %v339
      %v370 = vmul.f32 %v331, %v339
      %v371 = vmul.f32 %v332, %v339
      %v372 = vmul.f32 %v333, %v339
      %v373 = vld [vmem:[%s3] sm:$0x1]
      %v375 = vlaneseq
      %v376 = vshrl.u32 %v375, 7
      %v377 = vsub.s32 0, %v376
      %v378 = vrot.slane %v373, %v377
      %v380 = vadd.f32 %v341, %v378
      %v381 = vadd.f32 %v342, %v378
      %v382 = vadd.f32 %v343, %v378
      %v383 = vadd.f32 %v344, %v378
      %v384 = vadd.f32 %v345, %v378
      %v385 = vadd.f32 %v346, %v378
      %v386 = vadd.f32 %v347, %v378
      %v387 = vadd.f32 %v348, %v378
      %v388 = vadd.f32 %v349, %v378
      %v389 = vadd.f32 %v350, %v378
      %v390 = vadd.f32 %v351, %v378
      %v391 = vadd.f32 %v352, %v378
      %v392 = vadd.f32 %v353, %v378
      %v393 = vadd.f32 %v354, %v378
      %v394 = vadd.f32 %v355, %v378
      %v395 = vadd.f32 %v356, %v378
      %v396 = vadd.f32 %v357, %v378
      %v397 = vadd.f32 %v358, %v378
      %v398 = vadd.f32 %v359, %v378
      %v399 = vadd.f32 %v360, %v378
      %v400 = vadd.f32 %v361, %v378
      %v401 = vadd.f32 %v362, %v378
      %v402 = vadd.f32 %v363, %v378
      %v403 = vadd.f32 %v364, %v378
      %v404 = vadd.f32 %v365, %v378
      %v405 = vadd.f32 %v366, %v378
      %v406 = vadd.f32 %v367, %v378
      %v407 = vadd.f32 %v368, %v378
      %v408 = vadd.f32 %v369, %v378
      %v409 = vadd.f32 %v370, %v378
      %v410 = vadd.f32 %v371, %v378
      %v411 = vadd.f32 %v372, %v378
      %v412 = vmax.f32 %v380, 0.0
      %v413 = vmax.f32 %v381, 0.0
      %v414 = vmax.f32 %v382, 0.0
      %v415 = vmax.f32 %v383, 0.0
      %v416 = vmax.f32 %v384, 0.0
      %v417 = vmax.f32 %v385, 0.0
      %v418 = vmax.f32 %v386, 0.0
      %v419 = vmax.f32 %v387, 0.0
      %v420 = vmax.f32 %v388, 0.0
      %v421 = vmax.f32 %v389, 0.0
      %v422 = vmax.f32 %v390, 0.0
      %v423 = vmax.f32 %v391, 0.0
      %v424 = vmax.f32 %v392, 0.0
      %v425 = vmax.f32 %v393, 0.0
      %v426 = vmax.f32 %v394, 0.0
      %v427 = vmax.f32 %v395, 0.0
      %v428 = vmax.f32 %v396, 0.0
      %v429 = vmax.f32 %v397, 0.0
      %v430 = vmax.f32 %v398, 0.0
      %v431 = vmax.f32 %v399, 0.0
      %v432 = vmax.f32 %v400, 0.0
      %v433 = vmax.f32 %v401, 0.0
      %v434 = vmax.f32 %v402, 0.0
      %v435 = vmax.f32 %v403, 0.0
      %v436 = vmax.f32 %v404, 0.0
      %v437 = vmax.f32 %v405, 0.0
      %v438 = vmax.f32 %v406, 0.0
      %v439 = vmax.f32 %v407, 0.0
      %v440 = vmax.f32 %v408, 0.0
      %v441 = vmax.f32 %v409, 0.0
      %v442 = vmax.f32 %v410, 0.0
      %v443 = vmax.f32 %v411, 0.0
      %v444 = vpack.c.bf16 %v413, %v412
      %v445 = vpack.c.bf16 %v415, %v414
      %v446 = vpack.c.bf16 %v417, %v416
      %v447 = vpack.c.bf16 %v419, %v418
      %v448 = vpack.c.bf16 %v421, %v420
      %v449 = vpack.c.bf16 %v423, %v422
      %v450 = vpack.c.bf16 %v425, %v424
      %v451 = vpack.c.bf16 %v427, %v426
      %v452 = vpack.c.bf16 %v429, %v428
      %v453 = vpack.c.bf16 %v431, %v430
      %v454 = vpack.c.bf16 %v433, %v432
      %v455 = vpack.c.bf16 %v435, %v434
      %v456 = vpack.c.bf16 %v437, %v436
      %v457 = vpack.c.bf16 %v439, %v438
      %v458 = vpack.c.bf16 %v441, %v440
      %v459 = vpack.c.bf16 %v443, %v442
      %460 = vst [vmem:[#allocation2] sm:$0xf] 0
      %461 = vst [vmem:[#allocation2 + $0x4] sm:$0xf] 0
      %462 = vst [vmem:[#allocation2 + $0x8] sm:$0x1] 0
      %463 = vst [vmem:[#allocation2 + $0xc] sm:$0xf] 0
      %464 = vst [vmem:[#allocation2 + $0x10] sm:$0xf] 0
      %465 = vst [vmem:[#allocation2 + $0x14] sm:$0x1] 0
      %466 = vst [vmem:[#allocation2 + $0x18] sm:$0xf] 0
      %467 = vst [vmem:[#allocation2 + $0x1c] sm:$0xf] 0
      %468 = vst [vmem:[#allocation2 + $0x20] sm:$0x1] 0
      %469 = vst [vmem:[#allocation2 + $0x24] sm:$0xf] 0
      %470 = vst [vmem:[#allocation2 + $0x28] sm:$0xf] 0
      %471 = vst [vmem:[#allocation2 + $0x2c] sm:$0x1] 0
      %472 = vst [vmem:[#allocation2 + $0x30] sm:$0xf] 0
      %473 = vst [vmem:[#allocation2 + $0x34] sm:$0xf] 0
      %474 = vst [vmem:[#allocation2 + $0x38] sm:$0x1] 0
      %475 = vst [vmem:[#allocation2 + $0x3c] sm:$0xf] 0
      %476 = vst [vmem:[#allocation2 + $0x40] sm:$0xf] 0
      %477 = vst [vmem:[#allocation2 + $0x44] sm:$0x1] 0
      %478 = vst [vmem:[#allocation2 + $0x48] sm:$0xf] 0
      %479 = vst [vmem:[#allocation2 + $0x4c] sm:$0xf] 0
      %480 = vst [vmem:[#allocation2 + $0x50] sm:$0x1] 0
      %481 = vst [vmem:[#allocation2 + $0x54] sm:$0xf] 0
      %482 = vst [vmem:[#allocation2 + $0x58] sm:$0xf] 0
      %483 = vst [vmem:[#allocation2 + $0x5c] sm:$0x1] 0
      %484 = vst [vmem:[#allocation2 + $0x60] sm:$0xf] 0
      %485 = vst [vmem:[#allocation2 + $0x64] sm:$0xf] 0
      %486 = vst [vmem:[#allocation2 + $0x68] sm:$0x1] 0
      %487 = vst [vmem:[#allocation2 + $0x6c] sm:$0xf] 0
      %488 = vst [vmem:[#allocation2 + $0x70] sm:$0xf] 0
      %489 = vst [vmem:[#allocation2 + $0x74] sm:$0x1] 0
      %490 = vst [vmem:[#allocation2 + $0x78] sm:$0xf] 0
      %491 = vst [vmem:[#allocation2 + $0x7c] sm:$0xf] 0
      %492 = vst [vmem:[#allocation2 + $0x80] sm:$0x1] 0
      %493 = vst [vmem:[#allocation2 + $0x84] sm:$0xf] 0
      %494 = vst [vmem:[#allocation2 + $0x88] sm:$0xf] 0
      %495 = vst [vmem:[#allocation2 + $0x8c] sm:$0x1] 0
      %496 = vst [vmem:[#allocation2 + $0x90] sm:$0xf] 0
      %497 = vst [vmem:[#allocation2 + $0x94] sm:$0xf] 0
      %498 = vst [vmem:[#allocation2 + $0x98] sm:$0x1] 0
      %499 = vst [vmem:[#allocation2 + $0x9c] sm:$0xf] 0
      %500 = vst [vmem:[#allocation2 + $0xa0] sm:$0xf] 0
      %501 = vst [vmem:[#allocation2 + $0xa4] sm:$0x1] 0
      %502 = vst [vmem:[#allocation2 + $0xa8] sm:$0xf] 0
      %503 = vst [vmem:[#allocation2 + $0xac] sm:$0xf] 0
      %504 = vst [vmem:[#allocation2 + $0xb0] sm:$0x1] 0
      %505 = vst [vmem:[#allocation2 + $0xb4] sm:$0xf] 0
      %506 = vst [vmem:[#allocation2 + $0xb8] sm:$0xf] 0
      %507 = vst [vmem:[#allocation2 + $0xbc] sm:$0x1] 0
      %508 = vst [vmem:[#allocation2 + $0xc0] sm:$0xf] 0
      %509 = vst [vmem:[#allocation2 + $0xc4] sm:$0xf] 0
      %510 = vst [vmem:[#allocation2 + $0xc8] sm:$0x1] 0
      %511 = vst [vmem:[#allocation2 + $0xcc] sm:$0xf] 0
      %512 = vst [vmem:[#allocation2 + $0xd0] sm:$0xf] 0
      %513 = vst [vmem:[#allocation2 + $0xd4] sm:$0x1] 0
      %v530 = vunpack.c.l.b16 %v444
      %v531 = vunpack.c.h.b16 %v444
      %v532 = vunpack.c.l.b16 %v445
      %v533 = vunpack.c.h.b16 %v445
      %v534 = vunpack.c.l.b16 %v446
      %v535 = vunpack.c.h.b16 %v446
      %v536 = vunpack.c.l.b16 %v447
      %v537 = vunpack.c.h.b16 %v447
      %v538 = vunpack.c.l.b16 %v448
      %v539 = vunpack.c.h.b16 %v448
      %v540 = vunpack.c.l.b16 %v449
      %v541 = vunpack.c.h.b16 %v449
      %v542 = vunpack.c.l.b16 %v450
      %v543 = vunpack.c.h.b16 %v450
      %v544 = vunpack.c.l.b16 %v451
      %v545 = vunpack.c.h.b16 %v451
      %v546 = vunpack.c.l.b16 %v452
      %v547 = vunpack.c.h.b16 %v452
      %v548 = vunpack.c.l.b16 %v453
      %v549 = vunpack.c.h.b16 %v453
      %v550 = vunpack.c.l.b16 %v454
      %v551 = vunpack.c.h.b16 %v454
      %v552 = vunpack.c.l.b16 %v455
      %v553 = vunpack.c.h.b16 %v455
      %v554 = vunpack.c.l.b16 %v456
      %v555 = vunpack.c.h.b16 %v456
      %v556 = vunpack.c.l.b16 %v457
      %v557 = vunpack.c.h.b16 %v457
      %v558 = vunpack.c.l.b16 %v458
      %v559 = vunpack.c.h.b16 %v458
      %v560 = vunpack.c.l.b16 %v459
      %v561 = vunpack.c.h.b16 %v459
      %v562 = vpack.c.b16 %v530, %v530
      %v563 = vpack.c.b16 %v531, %v531
      %v564 = vpack.c.b16 %v532, %v532
      %v565 = vpack.c.b16 %v533, %v533
      %v566 = vpack.c.b16 %v534, %v534
      %v567 = vpack.c.b16 %v535, %v535
      %v568 = vpack.c.b16 %v536, %v536
      %v569 = vpack.c.b16 %v537, %v537
      %v570 = vpack.c.b16 %v538, %v538
      %v571 = vpack.c.b16 %v539, %v539
      %v572 = vpack.c.b16 %v540, %v540
      %v573 = vpack.c.b16 %v541, %v541
      %v574 = vpack.c.b16 %v542, %v542
      %v575 = vpack.c.b16 %v543, %v543
      %v576 = vpack.c.b16 %v544, %v544
      %v577 = vpack.c.b16 %v545, %v545
      %v578 = vpack.c.b16 %v546, %v546
      %v579 = vpack.c.b16 %v547, %v547
      %v580 = vpack.c.b16 %v548, %v548
      %v581 = vpack.c.b16 %v549, %v549
      %v582 = vpack.c.b16 %v550, %v550
      %v583 = vpack.c.b16 %v551, %v551
      %v584 = vpack.c.b16 %v552, %v552
      %v585 = vpack.c.b16 %v553, %v553
      %v586 = vpack.c.b16 %v554, %v554
      %v587 = vpack.c.b16 %v555, %v555
      %v588 = vpack.c.b16 %v556, %v556
      %v589 = vpack.c.b16 %v557, %v557
      %v590 = vpack.c.b16 %v558, %v558
      %v591 = vpack.c.b16 %v559, %v559
      %v592 = vpack.c.b16 %v560, %v560
      %v593 = vpack.c.b16 %v561, %v561
      %vm594 = vsmask.f32 256
      %vm595 = vsmask.f32 4368
      %vm596 = vmor %vm594, %vm595
      %v598 = vshrl.u32 %v562, 16
      %v600 = vrot.slane %v598, 7
      %v601 = vshll.u32 %v562, 16
      %v603 = vor.u32 %v600, %v601
      %v604 = vrot.slane %v600, 4
      %v606 = vshrl.u32 %v563, 16
      %v608 = vrot.slane %v606, 7
      %v609 = vshll.u32 %v563, 16
      %v611 = vor.u32 %v608, %v609
      %v612 = vsel %vm596, %v604, %v611
      %v613 = vrot.slane %v608, 4
      %v615 = vshrl.u32 %v564, 16
      %v617 = vrot.slane %v615, 7
      %v618 = vshll.u32 %v564, 16
      %v620 = vor.u32 %v617, %v618
      %v621 = vrot.slane %v617, 4
      %v623 = vshrl.u32 %v565, 16
      %v625 = vrot.slane %v623, 7
      %v626 = vshll.u32 %v565, 16
      %v628 = vor.u32 %v625, %v626
      %v629 = vsel %vm596, %v621, %v628
      %v630 = vrot.slane %v625, 4
      %v632 = vshrl.u32 %v566, 16
      %v634 = vrot.slane %v632, 7
      %v635 = vshll.u32 %v566, 16
      %v637 = vor.u32 %v634, %v635
      %v638 = vrot.slane %v634, 4
      %v640 = vshrl.u32 %v567, 16
      %v642 = vrot.slane %v640, 7
      %v643 = vshll.u32 %v567, 16
      %v645 = vor.u32 %v642, %v643
      %v646 = vsel %vm596, %v638, %v645
      %v647 = vrot.slane %v642, 4
      %v649 = vshrl.u32 %v568, 16
      %v651 = vrot.slane %v649, 7
      %v652 = vshll.u32 %v568, 16
      %v654 = vor.u32 %v651, %v652
      %v655 = vrot.slane %v651, 4
      %v657 = vshrl.u32 %v569, 16
      %v659 = vrot.slane %v657, 7
      %v660 = vshll.u32 %v569, 16
      %v662 = vor.u32 %v659, %v660
      %v663 = vsel %vm596, %v655, %v662
      %v664 = vrot.slane %v659, 4
      %v666 = vshrl.u32 %v570, 16
      %v668 = vrot.slane %v666, 7
      %v669 = vshll.u32 %v570, 16
      %v671 = vor.u32 %v668, %v669
      %v672 = vrot.slane %v668, 4
      %v674 = vshrl.u32 %v571, 16
      %v676 = vrot.slane %v674, 7
      %v677 = vshll.u32 %v571, 16
      %v679 = vor.u32 %v676, %v677
      %v680 = vsel %vm596, %v672, %v679
      %v681 = vrot.slane %v676, 4
      %v683 = vshrl.u32 %v572, 16
      %v685 = vrot.slane %v683, 7
      %v686 = vshll.u32 %v572, 16
      %v688 = vor.u32 %v685, %v686
      %v689 = vrot.slane %v685, 4
      %v691 = vshrl.u32 %v573, 16
      %v693 = vrot.slane %v691, 7
      %v694 = vshll.u32 %v573, 16
      %v696 = vor.u32 %v693, %v694
      %v697 = vsel %vm596, %v689, %v696
      %v698 = vrot.slane %v693, 4
      %v700 = vshrl.u32 %v574, 16
      %v702 = vrot.slane %v700, 7
      %v703 = vshll.u32 %v574, 16
      %v705 = vor.u32 %v702, %v703
      %v706 = vrot.slane %v702, 4
      %v708 = vshrl.u32 %v575, 16
      %v710 = vrot.slane %v708, 7
      %v711 = vshll.u32 %v575, 16
      %v713 = vor.u32 %v710, %v711
      %v714 = vsel %vm596, %v706, %v713
      %v715 = vrot.slane %v710, 4
      %v717 = vshrl.u32 %v576, 16
      %v719 = vrot.slane %v717, 7
      %v720 = vshll.u32 %v576, 16
      %v722 = vor.u32 %v719, %v720
      %v723 = vrot.slane %v719, 4
      %v725 = vshrl.u32 %v577, 16
      %v727 = vrot.slane %v725, 7
      %v728 = vshll.u32 %v577, 16
      %v730 = vor.u32 %v727, %v728
      %v731 = vsel %vm596, %v723, %v730
      %v732 = vrot.slane %v727, 4
      %v734 = vshrl.u32 %v578, 16
      %v736 = vrot.slane %v734, 7
      %v737 = vshll.u32 %v578, 16
      %v739 = vor.u32 %v736, %v737
      %v740 = vrot.slane %v736, 4
      %v742 = vshrl.u32 %v579, 16
      %v744 = vrot.slane %v742, 7
      %v745 = vshll.u32 %v579, 16
      %v747 = vor.u32 %v744, %v745
      %v748 = vsel %vm596, %v740, %v747
      %v749 = vrot.slane %v744, 4
      %v751 = vshrl.u32 %v580, 16
      %v753 = vrot.slane %v751, 7
      %v754 = vshll.u32 %v580, 16
      %v756 = vor.u32 %v753, %v754
      %v757 = vrot.slane %v753, 4
      %v759 = vshrl.u32 %v581, 16
      %v761 = vrot.slane %v759, 7
      %v762 = vshll.u32 %v581, 16
      %v764 = vor.u32 %v761, %v762
      %v765 = vsel %vm596, %v757, %v764
      %v766 = vrot.slane %v761, 4
      %v768 = vshrl.u32 %v582, 16
      %v770 = vrot.slane %v768, 7
      %v771 = vshll.u32 %v582, 16
      %v773 = vor.u32 %v770, %v771
      %v774 = vrot.slane %v770, 4
      %v776 = vshrl.u32 %v583, 16
      %v778 = vrot.slane %v776, 7
      %v779 = vshll.u32 %v583, 16
      %v781 = vor.u32 %v778, %v779
      %v782 = vsel %vm596, %v774, %v781
      %v783 = vrot.slane %v778, 4
      %v785 = vshrl.u32 %v584, 16
      %v787 = vrot.slane %v785, 7
      %v788 = vshll.u32 %v584, 16
      %v790 = vor.u32 %v787, %v788
      %v791 = vrot.slane %v787, 4
      %v793 = vshrl.u32 %v585, 16
      %v795 = vrot.slane %v793, 7
      %v796 = vshll.u32 %v585, 16
      %v798 = vor.u32 %v795, %v796
      %v799 = vsel %vm596, %v791, %v798
      %v800 = vrot.slane %v795, 4
      %v802 = vshrl.u32 %v586, 16
      %v804 = vrot.slane %v802, 7
      %v805 = vshll.u32 %v586, 16
      %v807 = vor.u32 %v804, %v805
      %v808 = vrot.slane %v804, 4
      %v810 = vshrl.u32 %v587, 16
      %v812 = vrot.slane %v810, 7
      %v813 = vshll.u32 %v587, 16
      %v815 = vor.u32 %v812, %v813
      %v816 = vsel %vm596, %v808, %v815
      %v817 = vrot.slane %v812, 4
      %v819 = vshrl.u32 %v588, 16
      %v821 = vrot.slane %v819, 7
      %v822 = vshll.u32 %v588, 16
      %v824 = vor.u32 %v821, %v822
      %v825 = vrot.slane %v821, 4
      %v827 = vshrl.u32 %v589, 16
      %v829 = vrot.slane %v827, 7
      %v830 = vshll.u32 %v589, 16
      %v832 = vor.u32 %v829, %v830
      %v833 = vsel %vm596, %v825, %v832
      %v834 = vrot.slane %v829, 4
      %v836 = vshrl.u32 %v590, 16
      %v838 = vrot.slane %v836, 7
      %v839 = vshll.u32 %v590, 16
      %v841 = vor.u32 %v838, %v839
      %v842 = vrot.slane %v838, 4
      %v844 = vshrl.u32 %v591, 16
      %v846 = vrot.slane %v844, 7
      %v847 = vshll.u32 %v591, 16
      %v849 = vor.u32 %v846, %v847
      %v850 = vsel %vm596, %v842, %v849
      %v851 = vrot.slane %v846, 4
      %v853 = vshrl.u32 %v592, 16
      %v855 = vrot.slane %v853, 7
      %v856 = vshll.u32 %v592, 16
      %v858 = vor.u32 %v855, %v856
      %v859 = vrot.slane %v855, 4
      %v861 = vshrl.u32 %v593, 16
      %v863 = vrot.slane %v861, 7
      %v864 = vshll.u32 %v593, 16
      %v866 = vor.u32 %v863, %v864
      %v867 = vsel %vm596, %v859, %v866
      %v868 = vrot.slane %v863, 4
      %s917 = scalar_lea.vmem [#allocation2], 12
      %vm918 = vcmask 1043456
      %vm919 = vsmask.f32 7938
      %vm920 = vmand %vm918, %vm919
      %v921 = vld [vmem:[%s917] sm:$0xf]
      %v922 = vsel %vm920, %v603, %v921
      %923 = vst [vmem:[%s917] sm:$0xf] %v922
      %924 = vst [vmem:[%s917 + $0x4] sm:$0xf] %v612
      %vm925 = vcmask 1040384
      %vm926 = vmand %vm925, %vm594
      %v927 = vld [vmem:[%s917 + $0x8] sm:$0x1]
      %v928 = vsel %vm926, %v613, %v927
      %929 = vst [vmem:[%s917 + $0x8] sm:$0x1] %v928
      %v930 = vld [vmem:[%s917 + $0xc] sm:$0xf]
      %v931 = vsel %vm920, %v620, %v930
      %932 = vst [vmem:[%s917 + $0xc] sm:$0xf] %v931
      %933 = vst [vmem:[%s917 + $0x10] sm:$0xf] %v629
      %v934 = vld [vmem:[%s917 + $0x14] sm:$0x1]
      %v935 = vsel %vm926, %v630, %v934
      %936 = vst [vmem:[%s917 + $0x14] sm:$0x1] %v935
      %v937 = vld [vmem:[%s917 + $0x18] sm:$0xf]
      %v938 = vsel %vm920, %v637, %v937
      %939 = vst [vmem:[%s917 + $0x18] sm:$0xf] %v938
      %940 = vst [vmem:[%s917 + $0x1c] sm:$0xf] %v646
      %v941 = vld [vmem:[%s917 + $0x20] sm:$0x1]
      %v942 = vsel %vm926, %v647, %v941
      %943 = vst [vmem:[%s917 + $0x20] sm:$0x1] %v942
      %v944 = vld [vmem:[%s917 + $0x24] sm:$0xf]
      %v945 = vsel %vm920, %v654, %v944
      %946 = vst [vmem:[%s917 + $0x24] sm:$0xf] %v945
      %947 = vst [vmem:[%s917 + $0x28] sm:$0xf] %v663
      %v948 = vld [vmem:[%s917 + $0x2c] sm:$0x1]
      %v949 = vsel %vm926, %v664, %v948
      %950 = vst [vmem:[%s917 + $0x2c] sm:$0x1] %v949
      %v951 = vld [vmem:[%s917 + $0x30] sm:$0xf]
      %v952 = vsel %vm920, %v671, %v951
      %953 = vst [vmem:[%s917 + $0x30] sm:$0xf] %v952
      %954 = vst [vmem:[%s917 + $0x34] sm:$0xf] %v680
      %v955 = vld [vmem:[%s917 + $0x38] sm:$0x1]
      %v956 = vsel %vm926, %v681, %v955
      %957 = vst [vmem:[%s917 + $0x38] sm:$0x1] %v956
      %v958 = vld [vmem:[%s917 + $0x3c] sm:$0xf]
      %v959 = vsel %vm920, %v688, %v958
      %960 = vst [vmem:[%s917 + $0x3c] sm:$0xf] %v959
      %961 = vst [vmem:[%s917 + $0x40] sm:$0xf] %v697
      %v962 = vld [vmem:[%s917 + $0x44] sm:$0x1]
      %v963 = vsel %vm926, %v698, %v962
      %964 = vst [vmem:[%s917 + $0x44] sm:$0x1] %v963
      %v965 = vld [vmem:[%s917 + $0x48] sm:$0xf]
      %v966 = vsel %vm920, %v705, %v965
      %967 = vst [vmem:[%s917 + $0x48] sm:$0xf] %v966
      %968 = vst [vmem:[%s917 + $0x4c] sm:$0xf] %v714
      %v969 = vld [vmem:[%s917 + $0x50] sm:$0x1]
      %v970 = vsel %vm926, %v715, %v969
      %971 = vst [vmem:[%s917 + $0x50] sm:$0x1] %v970
      %v972 = vld [vmem:[%s917 + $0x54] sm:$0xf]
      %v973 = vsel %vm920, %v722, %v972
      %974 = vst [vmem:[%s917 + $0x54] sm:$0xf] %v973
      %975 = vst [vmem:[%s917 + $0x58] sm:$0xf] %v731
      %v976 = vld [vmem:[%s917 + $0x5c] sm:$0x1]
      %v977 = vsel %vm926, %v732, %v976
      %978 = vst [vmem:[%s917 + $0x5c] sm:$0x1] %v977
      %v979 = vld [vmem:[%s917 + $0x60] sm:$0xf]
      %v980 = vsel %vm920, %v739, %v979
      %981 = vst [vmem:[%s917 + $0x60] sm:$0xf] %v980
      %982 = vst [vmem:[%s917 + $0x64] sm:$0xf] %v748
      %v983 = vld [vmem:[%s917 + $0x68] sm:$0x1]
      %v984 = vsel %vm926, %v749, %v983
      %985 = vst [vmem:[%s917 + $0x68] sm:$0x1] %v984
      %v986 = vld [vmem:[%s917 + $0x6c] sm:$0xf]
      %v987 = vsel %vm920, %v756, %v986
      %988 = vst [vmem:[%s917 + $0x6c] sm:$0xf] %v987
      %989 = vst [vmem:[%s917 + $0x70] sm:$0xf] %v765
      %v990 = vld [vmem:[%s917 + $0x74] sm:$0x1]
      %v991 = vsel %vm926, %v766, %v990
      %992 = vst [vmem:[%s917 + $0x74] sm:$0x1] %v991
      %v993 = vld [vmem:[%s917 + $0x78] sm:$0xf]
      %v994 = vsel %vm920, %v773, %v993
      %995 = vst [vmem:[%s917 + $0x78] sm:$0xf] %v994
      %996 = vst [vmem:[%s917 + $0x7c] sm:$0xf] %v782
      %v997 = vld [vmem:[%s917 + $0x80] sm:$0x1]
      %v998 = vsel %vm926, %v783, %v997
      %999 = vst [vmem:[%s917 + $0x80] sm:$0x1] %v998
      %v1000 = vld [vmem:[%s917 + $0x84] sm:$0xf]
      %v1001 = vsel %vm920, %v790, %v1000
      %1002 = vst [vmem:[%s917 + $0x84] sm:$0xf] %v1001
      %1003 = vst [vmem:[%s917 + $0x88] sm:$0xf] %v799
      %v1004 = vld [vmem:[%s917 + $0x8c] sm:$0x1]
      %v1005 = vsel %vm926, %v800, %v1004
      %1006 = vst [vmem:[%s917 + $0x8c] sm:$0x1] %v1005
      %v1007 = vld [vmem:[%s917 + $0x90] sm:$0xf]
      %v1008 = vsel %vm920, %v807, %v1007
      %1009 = vst [vmem:[%s917 + $0x90] sm:$0xf] %v1008
      %1010 = vst [vmem:[%s917 + $0x94] sm:$0xf] %v816
      %v1011 = vld [vmem:[%s917 + $0x98] sm:$0x1]
      %v1012 = vsel %vm926, %v817, %v1011
      %1013 = vst [vmem:[%s917 + $0x98] sm:$0x1] %v1012
      %v1014 = vld [vmem:[%s917 + $0x9c] sm:$0xf]
      %v1015 = vsel %vm920, %v824, %v1014
      %1016 = vst [vmem:[%s917 + $0x9c] sm:$0xf] %v1015
      %1017 = vst [vmem:[%s917 + $0xa0] sm:$0xf] %v833
      %v1018 = vld [vmem:[%s917 + $0xa4] sm:$0x1]
      %v1019 = vsel %vm926, %v834, %v1018
      %1020 = vst [vmem:[%s917 + $0xa4] sm:$0x1] %v1019
      %v1021 = vld [vmem:[%s917 + $0xa8] sm:$0xf]
      %v1022 = vsel %vm920, %v841, %v1021
      %1023 = vst [vmem:[%s917 + $0xa8] sm:$0xf] %v1022
      %1024 = vst [vmem:[%s917 + $0xac] sm:$0xf] %v850
      %v1025 = vld [vmem:[%s917 + $0xb0] sm:$0x1]
      %v1026 = vsel %vm926, %v851, %v1025
      %1027 = vst [vmem:[%s917 + $0xb0] sm:$0x1] %v1026
      %v1028 = vld [vmem:[%s917 + $0xb4] sm:$0xf]
      %v1029 = vsel %vm920, %v858, %v1028
      %1030 = vst [vmem:[%s917 + $0xb4] sm:$0xf] %v1029
      %1031 = vst [vmem:[%s917 + $0xb8] sm:$0xf] %v867
      %v1032 = vld [vmem:[%s917 + $0xbc] sm:$0x1]
      %v1033 = vsel %vm926, %v868, %v1032
      %1034 = vst [vmem:[%s917 + $0xbc] sm:$0x1] %v1033
      %v1035 = vld [vmem:[#allocation2] sm:$0xf]
      %v1036 = vld [vmem:[#allocation2 + $0x4] sm:$0xf]
      %v1037 = vld [vmem:[#allocation2 + $0x8] sm:$0x1]
      %v1038 = vld [vmem:[#allocation2 + $0xc] sm:$0xf]
      %v1039 = vld [vmem:[#allocation2 + $0x10] sm:$0xf]
      %v1040 = vld [vmem:[#allocation2 + $0x14] sm:$0x1]
      %v1041 = vld [vmem:[#allocation2 + $0x18] sm:$0xf]
      %v1042 = vld [vmem:[#allocation2 + $0x1c] sm:$0xf]
      %v1043 = vld [vmem:[#allocation2 + $0x20] sm:$0x1]
      %v1044 = vld [vmem:[#allocation2 + $0x24] sm:$0xf]
      %v1045 = vld [vmem:[#allocation2 + $0x28] sm:$0xf]
      %v1046 = vld [vmem:[#allocation2 + $0x2c] sm:$0x1]
      %v1047 = vld [vmem:[#allocation2 + $0x30] sm:$0xf]
      %v1048 = vld [vmem:[#allocation2 + $0x34] sm:$0xf]
      %v1049 = vld [vmem:[#allocation2 + $0x38] sm:$0x1]
      %v1050 = vld [vmem:[#allocation2 + $0x3c] sm:$0xf]
      %v1051 = vld [vmem:[#allocation2 + $0x40] sm:$0xf]
      %v1052 = vld [vmem:[#allocation2 + $0x44] sm:$0x1]
      %v1053 = vld [vmem:[#allocation2 + $0x48] sm:$0xf]
      %v1054 = vld [vmem:[#allocation2 + $0x4c] sm:$0xf]
      %v1055 = vld [vmem:[#allocation2 + $0x50] sm:$0x1]
      %v1056 = vld [vmem:[#allocation2 + $0x54] sm:$0xf]
      %v1057 = vld [vmem:[#allocation2 + $0x58] sm:$0xf]
      %v1058 = vld [vmem:[#allocation2 + $0x5c] sm:$0x1]
      %v1059 = vld [vmem:[#allocation2 + $0x60] sm:$0xf]
      %v1060 = vld [vmem:[#allocation2 + $0x64] sm:$0xf]
      %v1061 = vld [vmem:[#allocation2 + $0x68] sm:$0x1]
      %v1062 = vld [vmem:[#allocation2 + $0x6c] sm:$0xf]
      %v1063 = vld [vmem:[#allocation2 + $0x70] sm:$0xf]
      %v1064 = vld [vmem:[#allocation2 + $0x74] sm:$0x1]
      %v1065 = vld [vmem:[#allocation2 + $0x78] sm:$0xf]
      %v1066 = vld [vmem:[#allocation2 + $0x7c] sm:$0xf]
      %v1067 = vld [vmem:[#allocation2 + $0x80] sm:$0x1]
      %v1068 = vld [vmem:[#allocation2 + $0x84] sm:$0xf]
      %v1069 = vld [vmem:[#allocation2 + $0x88] sm:$0xf]
      %v1070 = vld [vmem:[#allocation2 + $0x8c] sm:$0x1]
      %v1071 = vld [vmem:[#allocation2 + $0x90] sm:$0xf]
      %v1072 = vld [vmem:[#allocation2 + $0x94] sm:$0xf]
      %v1073 = vld [vmem:[#allocation2 + $0x98] sm:$0x1]
      %v1074 = vld [vmem:[#allocation2 + $0x9c] sm:$0xf]
      %v1075 = vld [vmem:[#allocation2 + $0xa0] sm:$0xf]
      %v1076 = vld [vmem:[#allocation2 + $0xa4] sm:$0x1]
      %v1077 = vld [vmem:[#allocation2 + $0xa8] sm:$0xf]
      %v1078 = vld [vmem:[#allocation2 + $0xac] sm:$0xf]
      %v1079 = vld [vmem:[#allocation2 + $0xb0] sm:$0x1]
      %v1080 = vld [vmem:[#allocation2 + $0xb4] sm:$0xf]
      %v1081 = vld [vmem:[#allocation2 + $0xb8] sm:$0xf]
      %v1082 = vld [vmem:[#allocation2 + $0xbc] sm:$0x1]
      %v1083 = vld [vmem:[#allocation2 + $0xc0] sm:$0xf]
      %v1084 = vld [vmem:[#allocation2 + $0xc4] sm:$0xf]
      %v1085 = vld [vmem:[#allocation2 + $0xc8] sm:$0x1]
      %v1086 = vld [vmem:[#allocation2 + $0xcc] sm:$0xf]
      %v1087 = vld [vmem:[#allocation2 + $0xd0] sm:$0xf]
      %v1088 = vld [vmem:[#allocation2 + $0xd4] sm:$0x1]
      %v1089 = vld [vmem:[%s1] sm:$0xf]
      %v1090 = vld [vmem:[%s1 + $0x4] sm:$0xf]
      %v1091 = vld [vmem:[%s1 + $0x8] sm:$0xf]
      %v1092 = vld [vmem:[%s1 + $0xc] sm:$0xf]
      %v1093 = vld [vmem:[%s1 + $0x10] sm:$0xf]
      %v1094 = vld [vmem:[%s1 + $0x14] sm:$0xf]
      %v1095 = vld [vmem:[%s1 + $0x18] sm:$0xf]
      %v1096 = vld [vmem:[%s1 + $0x1c] sm:$0xf]
      %v1097 = vld [vmem:[%s1 + $0x20] sm:$0xf]
      %v1098 = vld [vmem:[%s1 + $0x24] sm:$0xf]
      %v1099 = vld [vmem:[%s1 + $0x28] sm:$0xf]
      %v1100 = vld [vmem:[%s1 + $0x2c] sm:$0xf]
      %v1101 = vld [vmem:[%s1 + $0x30] sm:$0xf]
      %v1102 = vld [vmem:[%s1 + $0x34] sm:$0xf]
      %v1103 = vld [vmem:[%s1 + $0x38] sm:$0xf]
      %v1104 = vld [vmem:[%s1 + $0x3c] sm:$0xf]
      %vm1105 = vsmask.f32 3328
      %vm1106 = vsmask.f32 7440
      %vm1107 = vmor %vm1105, %vm1106
      %v1109 = vshrl.u32 %v1035, 16
      %v1111 = vrot.slane %v1109, 4
      %v1112 = vshll.u32 %v1035, 16
      %v1114 = vrot.slane %v1112, 5
      %v1115 = vor.u32 %v1111, %v1114
      %v1116 = vrot.slane %v1115, 4
      %v1118 = vshll.u32 %v1036, 16
      %v1120 = vrot.slane %v1118, 5
      %v1121 = vsel %vm1107, %v1116, %v1120
      %v1122 = vshrl.u32 %v1036, 16
      %v1124 = vrot.slane %v1122, 4
      %v1125 = vor.u32 %v1124, %v1120
      %v1126 = vrot.slane %v1125, 4
      %v1128 = vshll.u32 %v1037, 16
      %v1130 = vrot.slane %v1128, 5
      %v1131 = vsel %vm1107, %v1126, %v1130
      %v1133 = vshrl.u32 %v1038, 16
      %v1135 = vrot.slane %v1133, 4
      %v1136 = vshll.u32 %v1038, 16
      %v1138 = vrot.slane %v1136, 5
      %v1139 = vor.u32 %v1135, %v1138
      %v1140 = vrot.slane %v1139, 4
      %v1142 = vshll.u32 %v1039, 16
      %v1144 = vrot.slane %v1142, 5
      %v1145 = vsel %vm1107, %v1140, %v1144
      %v1146 = vshrl.u32 %v1039, 16
      %v1148 = vrot.slane %v1146, 4
      %v1149 = vor.u32 %v1148, %v1144
      %v1150 = vrot.slane %v1149, 4
      %v1152 = vshll.u32 %v1040, 16
      %v1154 = vrot.slane %v1152, 5
      %v1155 = vsel %vm1107, %v1150, %v1154
      %v1157 = vshrl.u32 %v1041, 16
      %v1159 = vrot.slane %v1157, 4
      %v1160 = vshll.u32 %v1041, 16
      %v1162 = vrot.slane %v1160, 5
      %v1163 = vor.u32 %v1159, %v1162
      %v1164 = vrot.slane %v1163, 4
      %v1166 = vshll.u32 %v1042, 16
      %v1168 = vrot.slane %v1166, 5
      %v1169 = vsel %vm1107, %v1164, %v1168
      %v1170 = vshrl.u32 %v1042, 16
      %v1172 = vrot.slane %v1170, 4
      %v1173 = vor.u32 %v1172, %v1168
      %v1174 = vrot.slane %v1173, 4
      %v1176 = vshll.u32 %v1043, 16
      %v1178 = vrot.slane %v1176, 5
      %v1179 = vsel %vm1107, %v1174, %v1178
      %v1181 = vshrl.u32 %v1044, 16
      %v1183 = vrot.slane %v1181, 4
      %v1184 = vshll.u32 %v1044, 16
      %v1186 = vrot.slane %v1184, 5
      %v1187 = vor.u32 %v1183, %v1186
      %v1188 = vrot.slane %v1187, 4
      %v1190 = vshll.u32 %v1045, 16
      %v1192 = vrot.slane %v1190, 5
      %v1193 = vsel %vm1107, %v1188, %v1192
      %v1194 = vshrl.u32 %v1045, 16
      %v1196 = vrot.slane %v1194, 4
      %v1197 = vor.u32 %v1196, %v1192
      %v1198 = vrot.slane %v1197, 4
      %v1200 = vshll.u32 %v1046, 16
      %v1202 = vrot.slane %v1200, 5
      %v1203 = vsel %vm1107, %v1198, %v1202
      %v1205 = vshrl.u32 %v1047, 16
      %v1207 = vrot.slane %v1205, 4
      %v1208 = vshll.u32 %v1047, 16
      %v1210 = vrot.slane %v1208, 5
      %v1211 = vor.u32 %v1207, %v1210
      %v1212 = vrot.slane %v1211, 4
      %v1214 = vshll.u32 %v1048, 16
      %v1216 = vrot.slane %v1214, 5
      %v1217 = vsel %vm1107, %v1212, %v1216
      %v1218 = vshrl.u32 %v1048, 16
      %v1220 = vrot.slane %v1218, 4
      %v1221 = vor.u32 %v1220, %v1216
      %v1222 = vrot.slane %v1221, 4
      %v1224 = vshll.u32 %v1049, 16
      %v1226 = vrot.slane %v1224, 5
      %v1227 = vsel %vm1107, %v1222, %v1226
      %v1229 = vshrl.u32 %v1050, 16
      %v1231 = vrot.slane %v1229, 4
      %v1232 = vshll.u32 %v1050, 16
      %v1234 = vrot.slane %v1232, 5
      %v1235 = vor.u32 %v1231, %v1234
      %v1236 = vrot.slane %v1235, 4
      %v1238 = vshll.u32 %v1051, 16
      %v1240 = vrot.slane %v1238, 5
      %v1241 = vsel %vm1107, %v1236, %v1240
      %v1242 = vshrl.u32 %v1051, 16
      %v1244 = vrot.slane %v1242, 4
      %v1245 = vor.u32 %v1244, %v1240
      %v1246 = vrot.slane %v1245, 4
      %v1248 = vshll.u32 %v1052, 16
      %v1250 = vrot.slane %v1248, 5
      %v1251 = vsel %vm1107, %v1246, %v1250
      %v1253 = vshrl.u32 %v1053, 16
      %v1255 = vrot.slane %v1253, 4
      %v1256 = vshll.u32 %v1053, 16
      %v1258 = vrot.slane %v1256, 5
      %v1259 = vor.u32 %v1255, %v1258
      %v1260 = vrot.slane %v1259, 4
      %v1262 = vshll.u32 %v1054, 16
      %v1264 = vrot.slane %v1262, 5
      %v1265 = vsel %vm1107, %v1260, %v1264
      %v1266 = vshrl.u32 %v1054, 16
      %v1268 = vrot.slane %v1266, 4
      %v1269 = vor.u32 %v1268, %v1264
      %v1270 = vrot.slane %v1269, 4
      %v1272 = vshll.u32 %v1055, 16
      %v1274 = vrot.slane %v1272, 5
      %v1275 = vsel %vm1107, %v1270, %v1274
      %v1277 = vshrl.u32 %v1056, 16
      %v1279 = vrot.slane %v1277, 4
      %v1280 = vshll.u32 %v1056, 16
      %v1282 = vrot.slane %v1280, 5
      %v1283 = vor.u32 %v1279, %v1282
      %v1284 = vrot.slane %v1283, 4
      %v1286 = vshll.u32 %v1057, 16
      %v1288 = vrot.slane %v1286, 5
      %v1289 = vsel %vm1107, %v1284, %v1288
      %v1290 = vshrl.u32 %v1057, 16
      %v1292 = vrot.slane %v1290, 4
      %v1293 = vor.u32 %v1292, %v1288
      %v1294 = vrot.slane %v1293, 4
      %v1296 = vshll.u32 %v1058, 16
      %v1298 = vrot.slane %v1296, 5
      %v1299 = vsel %vm1107, %v1294, %v1298
      %v1301 = vshrl.u32 %v1059, 16
      %v1303 = vrot.slane %v1301, 4
      %v1304 = vshll.u32 %v1059, 16
      %v1306 = vrot.slane %v1304, 5
      %v1307 = vor.u32 %v1303, %v1306
      %v1308 = vrot.slane %v1307, 4
      %v1310 = vshll.u32 %v1060, 16
      %v1312 = vrot.slane %v1310, 5
      %v1313 = vsel %vm1107, %v1308, %v1312
      %v1314 = vshrl.u32 %v1060, 16
      %v1316 = vrot.slane %v1314, 4
      %v1317 = vor.u32 %v1316, %v1312
      %v1318 = vrot.slane %v1317, 4
      %v1320 = vshll.u32 %v1061, 16
      %v1322 = vrot.slane %v1320, 5
      %v1323 = vsel %vm1107, %v1318, %v1322
      %v1325 = vshrl.u32 %v1062, 16
      %v1327 = vrot.slane %v1325, 4
      %v1328 = vshll.u32 %v1062, 16
      %v1330 = vrot.slane %v1328, 5
      %v1331 = vor.u32 %v1327, %v1330
      %v1332 = vrot.slane %v1331, 4
      %v1334 = vshll.u32 %v1063, 16
      %v1336 = vrot.slane %v1334, 5
      %v1337 = vsel %vm1107, %v1332, %v1336
      %v1338 = vshrl.u32 %v1063, 16
      %v1340 = vrot.slane %v1338, 4
      %v1341 = vor.u32 %v1340, %v1336
      %v1342 = vrot.slane %v1341, 4
      %v1344 = vshll.u32 %v1064, 16
      %v1346 = vrot.slane %v1344, 5
      %v1347 = vsel %vm1107, %v1342, %v1346
      %v1349 = vshrl.u32 %v1065, 16
      %v1351 = vrot.slane %v1349, 4
      %v1352 = vshll.u32 %v1065, 16
      %v1354 = vrot.slane %v1352, 5
      %v1355 = vor.u32 %v1351, %v1354
      %v1356 = vrot.slane %v1355, 4
      %v1358 = vshll.u32 %v1066, 16
      %v1360 = vrot.slane %v1358, 5
      %v1361 = vsel %vm1107, %v1356, %v1360
      %v1362 = vshrl.u32 %v1066, 16
      %v1364 = vrot.slane %v1362, 4
      %v1365 = vor.u32 %v1364, %v1360
      %v1366 = vrot.slane %v1365, 4
      %v1368 = vshll.u32 %v1067, 16
      %v1370 = vrot.slane %v1368, 5
      %v1371 = vsel %vm1107, %v1366, %v1370
      %v1373 = vshrl.u32 %v1068, 16
      %v1375 = vrot.slane %v1373, 4
      %v1376 = vshll.u32 %v1068, 16
      %v1378 = vrot.slane %v1376, 5
      %v1379 = vor.u32 %v1375, %v1378
      %v1380 = vrot.slane %v1379, 4
      %v1382 = vshll.u32 %v1069, 16
      %v1384 = vrot.slane %v1382, 5
      %v1385 = vsel %vm1107, %v1380, %v1384
      %v1386 = vshrl.u32 %v1069, 16
      %v1388 = vrot.slane %v1386, 4
      %v1389 = vor.u32 %v1388, %v1384
      %v1390 = vrot.slane %v1389, 4
      %v1392 = vshll.u32 %v1070, 16
      %v1394 = vrot.slane %v1392, 5
      %v1395 = vsel %vm1107, %v1390, %v1394
      %v1397 = vshrl.u32 %v1071, 16
      %v1399 = vrot.slane %v1397, 4
      %v1400 = vshll.u32 %v1071, 16
      %v1402 = vrot.slane %v1400, 5
      %v1403 = vor.u32 %v1399, %v1402
      %v1404 = vrot.slane %v1403, 4
      %v1406 = vshll.u32 %v1072, 16
      %v1408 = vrot.slane %v1406, 5
      %v1409 = vsel %vm1107, %v1404, %v1408
      %v1410 = vshrl.u32 %v1072, 16
      %v1412 = vrot.slane %v1410, 4
      %v1413 = vor.u32 %v1412, %v1408
      %v1414 = vrot.slane %v1413, 4
      %v1416 = vshll.u32 %v1073, 16
      %v1418 = vrot.slane %v1416, 5
      %v1419 = vsel %vm1107, %v1414, %v1418
      %v1421 = vshrl.u32 %v1074, 16
      %v1423 = vrot.slane %v1421, 4
      %v1424 = vshll.u32 %v1074, 16
      %v1426 = vrot.slane %v1424, 5
      %v1427 = vor.u32 %v1423, %v1426
      %v1428 = vrot.slane %v1427, 4
      %v1430 = vshll.u32 %v1075, 16
      %v1432 = vrot.slane %v1430, 5
      %v1433 = vsel %vm1107, %v1428, %v1432
      %v1434 = vshrl.u32 %v1075, 16
      %v1436 = vrot.slane %v1434, 4
      %v1437 = vor.u32 %v1436, %v1432
      %v1438 = vrot.slane %v1437, 4
      %v1440 = vshll.u32 %v1076, 16
      %v1442 = vrot.slane %v1440, 5
      %v1443 = vsel %vm1107, %v1438, %v1442
      %v1445 = vshrl.u32 %v1077, 16
      %v1447 = vrot.slane %v1445, 4
      %v1448 = vshll.u32 %v1077, 16
      %v1450 = vrot.slane %v1448, 5
      %v1451 = vor.u32 %v1447, %v1450
      %v1452 = vrot.slane %v1451, 4
      %v1454 = vshll.u32 %v1078, 16
      %v1456 = vrot.slane %v1454, 5
      %v1457 = vsel %vm1107, %v1452, %v1456
      %v1458 = vshrl.u32 %v1078, 16
      %v1460 = vrot.slane %v1458, 4
      %v1461 = vor.u32 %v1460, %v1456
      %v1462 = vrot.slane %v1461, 4
      %v1464 = vshll.u32 %v1079, 16
      %v1466 = vrot.slane %v1464, 5
      %v1467 = vsel %vm1107, %v1462, %v1466
      %v1469 = vshrl.u32 %v1080, 16
      %v1471 = vrot.slane %v1469, 4
      %v1472 = vshll.u32 %v1080, 16
      %v1474 = vrot.slane %v1472, 5
      %v1475 = vor.u32 %v1471, %v1474
      %v1476 = vrot.slane %v1475, 4
      %v1478 = vshll.u32 %v1081, 16
      %v1480 = vrot.slane %v1478, 5
      %v1481 = vsel %vm1107, %v1476, %v1480
      %v1482 = vshrl.u32 %v1081, 16
      %v1484 = vrot.slane %v1482, 4
      %v1485 = vor.u32 %v1484, %v1480
      %v1486 = vrot.slane %v1485, 4
      %v1488 = vshll.u32 %v1082, 16
      %v1490 = vrot.slane %v1488, 5
      %v1491 = vsel %vm1107, %v1486, %v1490
      %s1492 = scalar_lea.vmem %s1, 64
      %v1493 = vld [vmem:[%s1492] sm:$0xf]
      %v1494 = vld [vmem:[%s1492 + $0x4] sm:$0xf]
      %v1495 = vld [vmem:[%s1492 + $0x8] sm:$0xf]
      %v1496 = vld [vmem:[%s1492 + $0xc] sm:$0xf]
      %v1497 = vld [vmem:[%s1492 + $0x10] sm:$0xf]
      %v1498 = vld [vmem:[%s1492 + $0x14] sm:$0xf]
      %v1499 = vld [vmem:[%s1492 + $0x18] sm:$0xf]
      %v1500 = vld [vmem:[%s1492 + $0x1c] sm:$0xf]
      %v1501 = vld [vmem:[%s1492 + $0x20] sm:$0xf]
      %v1502 = vld [vmem:[%s1492 + $0x24] sm:$0xf]
      %v1503 = vld [vmem:[%s1492 + $0x28] sm:$0xf]
      %v1504 = vld [vmem:[%s1492 + $0x2c] sm:$0xf]
      %v1505 = vld [vmem:[%s1492 + $0x30] sm:$0xf]
      %v1506 = vld [vmem:[%s1492 + $0x34] sm:$0xf]
      %v1507 = vld [vmem:[%s1492 + $0x38] sm:$0xf]
      %v1508 = vld [vmem:[%s1492 + $0x3c] sm:$0xf]
      %v1509 = vunpack.c.l.b16 %v1121
      %v1510 = vunpack.c.l.b16 %v1131
      %v1511 = vunpack.c.l.b16 %v1145
      %v1512 = vunpack.c.l.b16 %v1155
      %v1513 = vunpack.c.l.b16 %v1169
      %v1514 = vunpack.c.l.b16 %v1179
      %v1515 = vunpack.c.l.b16 %v1193
      %v1516 = vunpack.c.l.b16 %v1203
      %v1517 = vunpack.c.l.b16 %v1217
      %v1518 = vunpack.c.l.b16 %v1227
      %v1519 = vunpack.c.l.b16 %v1241
      %v1520 = vunpack.c.l.b16 %v1251
      %v1521 = vunpack.c.l.b16 %v1265
      %v1522 = vunpack.c.l.b16 %v1275
      %v1523 = vunpack.c.l.b16 %v1289
      %v1524 = vunpack.c.l.b16 %v1299
      %v1525 = vunpack.c.l.b16 %v1313
      %v1526 = vunpack.c.l.b16 %v1323
      %v1527 = vunpack.c.l.b16 %v1337
      %v1528 = vunpack.c.l.b16 %v1347
      %v1529 = vunpack.c.l.b16 %v1361
      %v1530 = vunpack.c.l.b16 %v1371
      %v1531 = vunpack.c.l.b16 %v1385
      %v1532 = vunpack.c.l.b16 %v1395
      %v1533 = vunpack.c.l.b16 %v1409
      %v1534 = vunpack.c.l.b16 %v1419
      %v1535 = vunpack.c.l.b16 %v1433
      %v1536 = vunpack.c.l.b16 %v1443
      %v1537 = vunpack.c.l.b16 %v1457
      %v1538 = vunpack.c.l.b16 %v1467
      %v1539 = vunpack.c.l.b16 %v1481
      %v1540 = vunpack.c.l.b16 %v1491
      %v1541 = vpack.c.b16 %v1510, %v1509
      %v1542 = vpack.c.b16 %v1512, %v1511
      %v1543 = vpack.c.b16 %v1514, %v1513
      %v1544 = vpack.c.b16 %v1516, %v1515
      %v1545 = vpack.c.b16 %v1518, %v1517
      %v1546 = vpack.c.b16 %v1520, %v1519
      %v1547 = vpack.c.b16 %v1522, %v1521
      %v1548 = vpack.c.b16 %v1524, %v1523
      %v1549 = vpack.c.b16 %v1526, %v1525
      %v1550 = vpack.c.b16 %v1528, %v1527
      %v1551 = vpack.c.b16 %v1530, %v1529
      %v1552 = vpack.c.b16 %v1532, %v1531
      %v1553 = vpack.c.b16 %v1534, %v1533
      %v1554 = vpack.c.b16 %v1536, %v1535
      %v1555 = vpack.c.b16 %v1538, %v1537
      %v1556 = vpack.c.b16 %v1540, %v1539
      %v1589 = vunpack.c.l.b16 %v1493
      %v1590 = vunpack.c.l.b16 %v1494
      %v1591 = vunpack.c.l.b16 %v1495
      %v1592 = vunpack.c.l.b16 %v1496
      %v1593 = vunpack.c.l.b16 %v1497
      %v1594 = vunpack.c.l.b16 %v1498
      %v1595 = vunpack.c.l.b16 %v1499
      %v1596 = vunpack.c.l.b16 %v1500
      %v1597 = vunpack.c.l.b16 %v1501
      %v1598 = vunpack.c.l.b16 %v1502
      %v1599 = vunpack.c.l.b16 %v1503
      %v1600 = vunpack.c.l.b16 %v1504
      %v1601 = vunpack.c.l.b16 %v1505
      %v1602 = vunpack.c.l.b16 %v1506
      %v1603 = vunpack.c.l.b16 %v1507
      %v1604 = vunpack.c.l.b16 %v1508
      %v1605 = vpack.c.b16 %v1590, %v1589
      %v1606 = vpack.c.b16 %v1592, %v1591
      %v1607 = vpack.c.b16 %v1594, %v1593
      %v1608 = vpack.c.b16 %v1596, %v1595
      %v1609 = vpack.c.b16 %v1598, %v1597
      %v1610 = vpack.c.b16 %v1600, %v1599
      %v1611 = vpack.c.b16 %v1602, %v1601
      %v1612 = vpack.c.b16 %v1604, %v1603
      %1621 = vmatprep.subr.bf16.mxu0 0
      %1622 = vmatpush1.bf16.msra.mxu0 %v1612
      %1623 = vmatprep.subr.bf16.mxu0 0
      %1624 = vmatpush1.bf16.msra.mxu0 %v1611
      %1625 = vmatprep.subr.bf16.mxu0 0
      %1626 = vmatpush1.bf16.msra.mxu0 %v1610
      %1627 = vmatprep.subr.bf16.mxu0 0
      %1628 = vmatpush1.bf16.msra.mxu0 %v1609
      %1629 = vmatprep.subr.bf16.mxu0 0
      %1630 = vmatpush1.bf16.msra.mxu0 %v1608
      %1631 = vmatprep.subr.bf16.mxu0 0
      %1632 = vmatpush1.bf16.msra.mxu0 %v1607
      %1633 = vmatprep.subr.bf16.mxu0 0
      %1634 = vmatpush1.bf16.msra.mxu0 %v1606
      %1635 = vmatprep.subr.bf16.mxu0 0
      %1636 = vmatpush1.bf16.msra.mxu0 %v1605
      %1637 = vmatprep.subr.bf16.mxu0 0
      %1638 = vmatpush2.bf16.msra.mxu0 0
      %1639 = vmatprep.subr.bf16.mxu0 0
      %1640 = vmatpush2.bf16.msra.mxu0 0
      %1641 = vmatprep.subr.bf16.mxu0 0
      %1642 = vmatpush2.bf16.msra.mxu0 0
      %1643 = vmatprep.subr.bf16.mxu0 0
      %1644 = vmatpush2.bf16.msra.mxu0 0
      %1645 = vmatprep.subr.bf16.mxu0 0
      %1646 = vmatpush2.bf16.msra.mxu0 0
      %1647 = vmatprep.subr.bf16.mxu0 0
      %1648 = vmatpush2.bf16.msra.mxu0 0
      %1649 = vmatprep.subr.bf16.mxu0 0
      %1650 = vmatpush2.bf16.msra.mxu0 0
      %1651 = vmatprep.subr.bf16.mxu0 0
      %1652 = vmatpush2.bf16.msra.mxu0 0
      %1653 = vmatprep.mubr.bf16.mxu0 0
      %1654 = vmatmul.mubr.bf16.gmra.mxu0 %v1541
      %v1655 = vpop.f32.mrf.mxu0
      %v1656 = vadd.f32 0.0, %v1655
      %v1657 = vpop.f32.mrf.mxu0
      %v1658 = vpop.f32.mrf.mxu0
      %v1659 = vadd.f32 0.0, %v1658
      %v1660 = vpop.f32.mrf.mxu0
      %1661 = vmatprep.mubr.bf16.mxu0 0
      %1662 = vmatmul.mubr.bf16.gmra.mxu0 %v1542
      %v1663 = vpop.f32.mrf.mxu0
      %v1664 = vadd.f32 0.0, %v1663
      %v1665 = vpop.f32.mrf.mxu0
      %v1666 = vpop.f32.mrf.mxu0
      %v1667 = vadd.f32 0.0, %v1666
      %v1668 = vpop.f32.mrf.mxu0
      %1669 = vmatprep.mubr.bf16.mxu0 0
      %1670 = vmatmul.mubr.bf16.gmra.mxu0 %v1543
      %v1671 = vpop.f32.mrf.mxu0
      %v1672 = vadd.f32 0.0, %v1671
      %v1673 = vpop.f32.mrf.mxu0
      %v1674 = vpop.f32.mrf.mxu0
      %v1675 = vadd.f32 0.0, %v1674
      %v1676 = vpop.f32.mrf.mxu0
      %1677 = vmatprep.mubr.bf16.mxu0 0
      %1678 = vmatmul.mubr.bf16.gmra.mxu0 %v1544
      %v1679 = vpop.f32.mrf.mxu0
      %v1680 = vadd.f32 0.0, %v1679
      %v1681 = vpop.f32.mrf.mxu0
      %v1682 = vpop.f32.mrf.mxu0
      %v1683 = vadd.f32 0.0, %v1682
      %v1684 = vpop.f32.mrf.mxu0
      %1685 = vmatprep.mubr.bf16.mxu0 0
      %1686 = vmatmul.mubr.bf16.gmra.mxu0 %v1545
      %v1687 = vpop.f32.mrf.mxu0
      %v1688 = vadd.f32 0.0, %v1687
      %v1689 = vpop.f32.mrf.mxu0
      %v1690 = vpop.f32.mrf.mxu0
      %v1691 = vadd.f32 0.0, %v1690
      %v1692 = vpop.f32.mrf.mxu0
      %1693 = vmatprep.mubr.bf16.mxu0 0
      %1694 = vmatmul.mubr.bf16.gmra.mxu0 %v1546
      %v1695 = vpop.f32.mrf.mxu0
      %v1696 = vadd.f32 0.0, %v1695
      %v1697 = vpop.f32.mrf.mxu0
      %v1698 = vpop.f32.mrf.mxu0
      %v1699 = vadd.f32 0.0, %v1698
      %v1700 = vpop.f32.mrf.mxu0
      %1701 = vmatprep.mubr.bf16.mxu0 0
      %1702 = vmatmul.mubr.bf16.gmra.mxu0 %v1547
      %v1703 = vpop.f32.mrf.mxu0
      %v1704 = vadd.f32 0.0, %v1703
      %v1705 = vpop.f32.mrf.mxu0
      %v1706 = vpop.f32.mrf.mxu0
      %v1707 = vadd.f32 0.0, %v1706
      %v1708 = vpop.f32.mrf.mxu0
      %1709 = vmatprep.mubr.bf16.mxu0 0
      %1710 = vmatmul.mubr.bf16.gmra.mxu0 %v1548
      %v1711 = vpop.f32.mrf.mxu0
      %v1712 = vadd.f32 0.0, %v1711
      %v1713 = vpop.f32.mrf.mxu0
      %v1714 = vpop.f32.mrf.mxu0
      %v1715 = vadd.f32 0.0, %v1714
      %v1716 = vpop.f32.mrf.mxu0
      %1717 = vmatprep.mubr.bf16.mxu0 0
      %1718 = vmatmul.mubr.bf16.gmra.mxu0 %v1549
      %v1719 = vpop.f32.mrf.mxu0
      %v1720 = vadd.f32 0.0, %v1719
      %v1721 = vpop.f32.mrf.mxu0
      %v1722 = vpop.f32.mrf.mxu0
      %v1723 = vadd.f32 0.0, %v1722
      %v1724 = vpop.f32.mrf.mxu0
      %1725 = vmatprep.mubr.bf16.mxu0 0
      %1726 = vmatmul.mubr.bf16.gmra.mxu0 %v1550
      %v1727 = vpop.f32.mrf.mxu0
      %v1728 = vadd.f32 0.0, %v1727
      %v1729 = vpop.f32.mrf.mxu0
      %v1730 = vpop.f32.mrf.mxu0
      %v1731 = vadd.f32 0.0, %v1730
      %v1732 = vpop.f32.mrf.mxu0
      %1733 = vmatprep.mubr.bf16.mxu0 0
      %1734 = vmatmul.mubr.bf16.gmra.mxu0 %v1551
      %v1735 = vpop.f32.mrf.mxu0
      %v1736 = vadd.f32 0.0, %v1735
      %v1737 = vpop.f32.mrf.mxu0
      %v1738 = vpop.f32.mrf.mxu0
      %v1739 = vadd.f32 0.0, %v1738
      %v1740 = vpop.f32.mrf.mxu0
      %1741 = vmatprep.mubr.bf16.mxu0 0
      %1742 = vmatmul.mubr.bf16.gmra.mxu0 %v1552
      %v1743 = vpop.f32.mrf.mxu0
      %v1744 = vadd.f32 0.0, %v1743
      %v1745 = vpop.f32.mrf.mxu0
      %v1746 = vpop.f32.mrf.mxu0
      %v1747 = vadd.f32 0.0, %v1746
      %v1748 = vpop.f32.mrf.mxu0
      %1749 = vmatprep.mubr.bf16.mxu0 0
      %1750 = vmatmul.mubr.bf16.gmra.mxu0 %v1553
      %v1751 = vpop.f32.mrf.mxu0
      %v1752 = vadd.f32 0.0, %v1751
      %v1753 = vpop.f32.mrf.mxu0
      %v1754 = vpop.f32.mrf.mxu0
      %v1755 = vadd.f32 0.0, %v1754
      %v1756 = vpop.f32.mrf.mxu0
      %1757 = vmatprep.mubr.bf16.mxu0 0
      %1758 = vmatmul.mubr.bf16.gmra.mxu0 %v1554
      %v1759 = vpop.f32.mrf.mxu0
      %v1760 = vadd.f32 0.0, %v1759
      %v1761 = vpop.f32.mrf.mxu0
      %v1762 = vpop.f32.mrf.mxu0
      %v1763 = vadd.f32 0.0, %v1762
      %v1764 = vpop.f32.mrf.mxu0
      %1765 = vmatprep.mubr.bf16.mxu0 0
      %1766 = vmatmul.mubr.bf16.gmra.mxu0 %v1555
      %v1767 = vpop.f32.mrf.mxu0
      %v1768 = vadd.f32 0.0, %v1767
      %v1769 = vpop.f32.mrf.mxu0
      %v1770 = vpop.f32.mrf.mxu0
      %v1771 = vadd.f32 0.0, %v1770
      %v1772 = vpop.f32.mrf.mxu0
      %1773 = vmatprep.mubr.bf16.mxu0 0
      %1774 = vmatmul.mubr.bf16.gmra.mxu0 %v1556
      %v1775 = vpop.f32.mrf.mxu0
      %v1776 = vadd.f32 0.0, %v1775
      %v1777 = vpop.f32.mrf.mxu0
      %v1778 = vpop.f32.mrf.mxu0
      %v1779 = vadd.f32 0.0, %v1778
      %v1780 = vpop.f32.mrf.mxu0
      %1781 = vdwg.mxu0
      %v1814 = vunpack.c.l.b16 %v1035
      %v1815 = vunpack.c.l.b16 %v1036
      %v1816 = vunpack.c.l.b16 %v1038
      %v1817 = vunpack.c.l.b16 %v1039
      %v1818 = vunpack.c.l.b16 %v1041
      %v1819 = vunpack.c.l.b16 %v1042
      %v1820 = vunpack.c.l.b16 %v1044
      %v1821 = vunpack.c.l.b16 %v1045
      %v1822 = vunpack.c.l.b16 %v1047
      %v1823 = vunpack.c.l.b16 %v1048
      %v1824 = vunpack.c.l.b16 %v1050
      %v1825 = vunpack.c.l.b16 %v1051
      %v1826 = vunpack.c.l.b16 %v1053
      %v1827 = vunpack.c.l.b16 %v1054
      %v1828 = vunpack.c.l.b16 %v1056
      %v1829 = vunpack.c.l.b16 %v1057
      %v1830 = vunpack.c.l.b16 %v1059
      %v1831 = vunpack.c.l.b16 %v1060
      %v1832 = vunpack.c.l.b16 %v1062
      %v1833 = vunpack.c.l.b16 %v1063
      %v1834 = vunpack.c.l.b16 %v1065
      %v1835 = vunpack.c.l.b16 %v1066
      %v1836 = vunpack.c.l.b16 %v1068
      %v1837 = vunpack.c.l.b16 %v1069
      %v1838 = vunpack.c.l.b16 %v1071
      %v1839 = vunpack.c.l.b16 %v1072
      %v1840 = vunpack.c.l.b16 %v1074
      %v1841 = vunpack.c.l.b16 %v1075
      %v1842 = vunpack.c.l.b16 %v1077
      %v1843 = vunpack.c.l.b16 %v1078
      %v1844 = vunpack.c.l.b16 %v1080
      %v1845 = vunpack.c.l.b16 %v1081
      %v1846 = vpack.c.b16 %v1815, %v1814
      %v1847 = vpack.c.b16 %v1817, %v1816
      %v1848 = vpack.c.b16 %v1819, %v1818
      %v1849 = vpack.c.b16 %v1821, %v1820
      %v1850 = vpack.c.b16 %v1823, %v1822
      %v1851 = vpack.c.b16 %v1825, %v1824
      %v1852 = vpack.c.b16 %v1827, %v1826
      %v1853 = vpack.c.b16 %v1829, %v1828
      %v1854 = vpack.c.b16 %v1831, %v1830
      %v1855 = vpack.c.b16 %v1833, %v1832
      %v1856 = vpack.c.b16 %v1835, %v1834
      %v1857 = vpack.c.b16 %v1837, %v1836
      %v1858 = vpack.c.b16 %v1839, %v1838
      %v1859 = vpack.c.b16 %v1841, %v1840
      %v1860 = vpack.c.b16 %v1843, %v1842
      %v1861 = vpack.c.b16 %v1845, %v1844
      %v1894 = vunpack.c.l.b16 %v1089
      %v1895 = vunpack.c.l.b16 %v1090
      %v1896 = vunpack.c.l.b16 %v1091
      %v1897 = vunpack.c.l.b16 %v1092
      %v1898 = vunpack.c.l.b16 %v1093
      %v1899 = vunpack.c.l.b16 %v1094
      %v1900 = vunpack.c.l.b16 %v1095
      %v1901 = vunpack.c.l.b16 %v1096
      %v1902 = vunpack.c.l.b16 %v1097
      %v1903 = vunpack.c.l.b16 %v1098
      %v1904 = vunpack.c.l.b16 %v1099
      %v1905 = vunpack.c.l.b16 %v1100
      %v1906 = vunpack.c.l.b16 %v1101
      %v1907 = vunpack.c.l.b16 %v1102
      %v1908 = vunpack.c.l.b16 %v1103
      %v1909 = vunpack.c.l.b16 %v1104
      %v1910 = vpack.c.b16 %v1895, %v1894
      %v1911 = vpack.c.b16 %v1897, %v1896
      %v1912 = vpack.c.b16 %v1899, %v1898
      %v1913 = vpack.c.b16 %v1901, %v1900
      %v1914 = vpack.c.b16 %v1903, %v1902
      %v1915 = vpack.c.b16 %v1905, %v1904
      %v1916 = vpack.c.b16 %v1907, %v1906
      %v1917 = vpack.c.b16 %v1909, %v1908
      %1926 = vmatprep.subr.bf16.mxu0 0
      %1927 = vmatpush1.bf16.msra.mxu0 %v1917
      %1928 = vmatprep.subr.bf16.mxu0 0
      %1929 = vmatpush1.bf16.msra.mxu0 %v1916
      %1930 = vmatprep.subr.bf16.mxu0 0
      %1931 = vmatpush1.bf16.msra.mxu0 %v1915
      %1932 = vmatprep.subr.bf16.mxu0 0
      %1933 = vmatpush1.bf16.msra.mxu0 %v1914
      %1934 = vmatprep.subr.bf16.mxu0 0
      %1935 = vmatpush1.bf16.msra.mxu0 %v1913
      %1936 = vmatprep.subr.bf16.mxu0 0
      %1937 = vmatpush1.bf16.msra.mxu0 %v1912
      %1938 = vmatprep.subr.bf16.mxu0 0
      %1939 = vmatpush1.bf16.msra.mxu0 %v1911
      %1940 = vmatprep.subr.bf16.mxu0 0
      %1941 = vmatpush1.bf16.msra.mxu0 %v1910
      %1942 = vmatprep.subr.bf16.mxu0 0
      %1943 = vmatpush2.bf16.msra.mxu0 0
      %1944 = vmatprep.subr.bf16.mxu0 0
      %1945 = vmatpush2.bf16.msra.mxu0 0
      %1946 = vmatprep.subr.bf16.mxu0 0
      %1947 = vmatpush2.bf16.msra.mxu0 0
      %1948 = vmatprep.subr.bf16.mxu0 0
      %1949 = vmatpush2.bf16.msra.mxu0 0
      %1950 = vmatprep.subr.bf16.mxu0 0
      %1951 = vmatpush2.bf16.msra.mxu0 0
      %1952 = vmatprep.subr.bf16.mxu0 0
      %1953 = vmatpush2.bf16.msra.mxu0 0
      %1954 = vmatprep.subr.bf16.mxu0 0
      %1955 = vmatpush2.bf16.msra.mxu0 0
      %1956 = vmatprep.subr.bf16.mxu0 0
      %1957 = vmatpush2.bf16.msra.mxu0 0
      %1958 = vmatprep.mubr.bf16.mxu0 0
      %1959 = vmatmul.mubr.bf16.gmra.mxu0 %v1846
      %v1960 = vpop.f32.mrf.mxu0
      %v1961 = vadd.f32 %v1656, %v1960
      %v1962 = vpop.f32.mrf.mxu0
      %v1963 = vpop.f32.mrf.mxu0
      %v1964 = vadd.f32 %v1659, %v1963
      %v1965 = vpop.f32.mrf.mxu0
      %1966 = vmatprep.mubr.bf16.mxu0 0
      %1967 = vmatmul.mubr.bf16.gmra.mxu0 %v1847
      %v1968 = vpop.f32.mrf.mxu0
      %v1969 = vadd.f32 %v1664, %v1968
      %v1970 = vpop.f32.mrf.mxu0
      %v1971 = vpop.f32.mrf.mxu0
      %v1972 = vadd.f32 %v1667, %v1971
      %v1973 = vpop.f32.mrf.mxu0
      %1974 = vmatprep.mubr.bf16.mxu0 0
      %1975 = vmatmul.mubr.bf16.gmra.mxu0 %v1848
      %v1976 = vpop.f32.mrf.mxu0
      %v1977 = vadd.f32 %v1672, %v1976
      %v1978 = vpop.f32.mrf.mxu0
      %v1979 = vpop.f32.mrf.mxu0
      %v1980 = vadd.f32 %v1675, %v1979
      %v1981 = vpop.f32.mrf.mxu0
      %1982 = vmatprep.mubr.bf16.mxu0 0
      %1983 = vmatmul.mubr.bf16.gmra.mxu0 %v1849
      %v1984 = vpop.f32.mrf.mxu0
      %v1985 = vadd.f32 %v1680, %v1984
      %v1986 = vpop.f32.mrf.mxu0
      %v1987 = vpop.f32.mrf.mxu0
      %v1988 = vadd.f32 %v1683, %v1987
      %v1989 = vpop.f32.mrf.mxu0
      %1990 = vmatprep.mubr.bf16.mxu0 0
      %1991 = vmatmul.mubr.bf16.gmra.mxu0 %v1850
      %v1992 = vpop.f32.mrf.mxu0
      %v1993 = vadd.f32 %v1688, %v1992
      %v1994 = vpop.f32.mrf.mxu0
      %v1995 = vpop.f32.mrf.mxu0
      %v1996 = vadd.f32 %v1691, %v1995
      %v1997 = vpop.f32.mrf.mxu0
      %1998 = vmatprep.mubr.bf16.mxu0 0
      %1999 = vmatmul.mubr.bf16.gmra.mxu0 %v1851
      %v2000 = vpop.f32.mrf.mxu0
      %v2001 = vadd.f32 %v1696, %v2000
      %v2002 = vpop.f32.mrf.mxu0
      %v2003 = vpop.f32.mrf.mxu0
      %v2004 = vadd.f32 %v1699, %v2003
      %v2005 = vpop.f32.mrf.mxu0
      %2006 = vmatprep.mubr.bf16.mxu0 0
      %2007 = vmatmul.mubr.bf16.gmra.mxu0 %v1852
      %v2008 = vpop.f32.mrf.mxu0
      %v2009 = vadd.f32 %v1704, %v2008
      %v2010 = vpop.f32.mrf.mxu0
      %v2011 = vpop.f32.mrf.mxu0
      %v2012 = vadd.f32 %v1707, %v2011
      %v2013 = vpop.f32.mrf.mxu0
      %2014 = vmatprep.mubr.bf16.mxu0 0
      %2015 = vmatmul.mubr.bf16.gmra.mxu0 %v1853
      %v2016 = vpop.f32.mrf.mxu0
      %v2017 = vadd.f32 %v1712, %v2016
      %v2018 = vpop.f32.mrf.mxu0
      %v2019 = vpop.f32.mrf.mxu0
      %v2020 = vadd.f32 %v1715, %v2019
      %v2021 = vpop.f32.mrf.mxu0
      %2022 = vmatprep.mubr.bf16.mxu0 0
      %2023 = vmatmul.mubr.bf16.gmra.mxu0 %v1854
      %v2024 = vpop.f32.mrf.mxu0
      %v2025 = vadd.f32 %v1720, %v2024
      %v2026 = vpop.f32.mrf.mxu0
      %v2027 = vpop.f32.mrf.mxu0
      %v2028 = vadd.f32 %v1723, %v2027
      %v2029 = vpop.f32.mrf.mxu0
      %2030 = vmatprep.mubr.bf16.mxu0 0
      %2031 = vmatmul.mubr.bf16.gmra.mxu0 %v1855
      %v2032 = vpop.f32.mrf.mxu0
      %v2033 = vadd.f32 %v1728, %v2032
      %v2034 = vpop.f32.mrf.mxu0
      %v2035 = vpop.f32.mrf.mxu0
      %v2036 = vadd.f32 %v1731, %v2035
      %v2037 = vpop.f32.mrf.mxu0
      %2038 = vmatprep.mubr.bf16.mxu0 0
      %2039 = vmatmul.mubr.bf16.gmra.mxu0 %v1856
      %v2040 = vpop.f32.mrf.mxu0
      %v2041 = vadd.f32 %v1736, %v2040
      %v2042 = vpop.f32.mrf.mxu0
      %v2043 = vpop.f32.mrf.mxu0
      %v2044 = vadd.f32 %v1739, %v2043
      %v2045 = vpop.f32.mrf.mxu0
      %2046 = vmatprep.mubr.bf16.mxu0 0
      %2047 = vmatmul.mubr.bf16.gmra.mxu0 %v1857
      %v2048 = vpop.f32.mrf.mxu0
      %v2049 = vadd.f32 %v1744, %v2048
      %v2050 = vpop.f32.mrf.mxu0
      %v2051 = vpop.f32.mrf.mxu0
      %v2052 = vadd.f32 %v1747, %v2051
      %v2053 = vpop.f32.mrf.mxu0
      %2054 = vmatprep.mubr.bf16.mxu0 0
      %2055 = vmatmul.mubr.bf16.gmra.mxu0 %v1858
      %v2056 = vpop.f32.mrf.mxu0
      %v2057 = vadd.f32 %v1752, %v2056
      %v2058 = vpop.f32.mrf.mxu0
      %v2059 = vpop.f32.mrf.mxu0
      %v2060 = vadd.f32 %v1755, %v2059
      %v2061 = vpop.f32.mrf.mxu0
      %2062 = vmatprep.mubr.bf16.mxu0 0
      %2063 = vmatmul.mubr.bf16.gmra.mxu0 %v1859
      %v2064 = vpop.f32.mrf.mxu0
      %v2065 = vadd.f32 %v1760, %v2064
      %v2066 = vpop.f32.mrf.mxu0
      %v2067 = vpop.f32.mrf.mxu0
      %v2068 = vadd.f32 %v1763, %v2067
      %v2069 = vpop.f32.mrf.mxu0
      %2070 = vmatprep.mubr.bf16.mxu0 0
      %2071 = vmatmul.mubr.bf16.gmra.mxu0 %v1860
      %v2072 = vpop.f32.mrf.mxu0
      %v2073 = vadd.f32 %v1768, %v2072
      %v2074 = vpop.f32.mrf.mxu0
      %v2075 = vpop.f32.mrf.mxu0
      %v2076 = vadd.f32 %v1771, %v2075
      %v2077 = vpop.f32.mrf.mxu0
      %2078 = vmatprep.mubr.bf16.mxu0 0
      %2079 = vmatmul.mubr.bf16.gmra.mxu0 %v1861
      %v2080 = vpop.f32.mrf.mxu0
      %v2081 = vadd.f32 %v1776, %v2080
      %v2082 = vpop.f32.mrf.mxu0
      %v2083 = vpop.f32.mrf.mxu0
      %v2084 = vadd.f32 %v1779, %v2083
      %v2085 = vpop.f32.mrf.mxu0
      %2086 = vdwg.mxu0
      %vm2103 = vcmask 1042432
      %vm2104 = vcmask 1046532
      %vm2105 = vmor %vm2103, %vm2104
      %v2106 = vrot.slane %v1035, 5
      %v2107 = vrot.slane %v2106, 4
      %v2108 = vrot.slane %v1036, 5
      %v2109 = vsel %vm2105, %v2107, %v2108
      %v2110 = vrot.slane %v2108, 4
      %v2111 = vrot.slane %v1037, 5
      %v2112 = vsel %vm2105, %v2110, %v2111
      %v2113 = vrot.slane %v1038, 5
      %v2114 = vrot.slane %v2113, 4
      %v2115 = vrot.slane %v1039, 5
      %v2116 = vsel %vm2105, %v2114, %v2115
      %v2117 = vrot.slane %v2115, 4
      %v2118 = vrot.slane %v1040, 5
      %v2119 = vsel %vm2105, %v2117, %v2118
      %v2120 = vrot.slane %v1041, 5
      %v2121 = vrot.slane %v2120, 4
      %v2122 = vrot.slane %v1042, 5
      %v2123 = vsel %vm2105, %v2121, %v2122
      %v2124 = vrot.slane %v2122, 4
      %v2125 = vrot.slane %v1043, 5
      %v2126 = vsel %vm2105, %v2124, %v2125
      %v2127 = vrot.slane %v1044, 5
      %v2128 = vrot.slane %v2127, 4
      %v2129 = vrot.slane %v1045, 5
      %v2130 = vsel %vm2105, %v2128, %v2129
      %v2131 = vrot.slane %v2129, 4
      %v2132 = vrot.slane %v1046, 5
      %v2133 = vsel %vm2105, %v2131, %v2132
      %v2134 = vrot.slane %v1047, 5
      %v2135 = vrot.slane %v2134, 4
      %v2136 = vrot.slane %v1048, 5
      %v2137 = vsel %vm2105, %v2135, %v2136
      %v2138 = vrot.slane %v2136, 4
      %v2139 = vrot.slane %v1049, 5
      %v2140 = vsel %vm2105, %v2138, %v2139
      %v2141 = vrot.slane %v1050, 5
      %v2142 = vrot.slane %v2141, 4
      %v2143 = vrot.slane %v1051, 5
      %v2144 = vsel %vm2105, %v2142, %v2143
      %v2145 = vrot.slane %v2143, 4
      %v2146 = vrot.slane %v1052, 5
      %v2147 = vsel %vm2105, %v2145, %v2146
      %v2148 = vrot.slane %v1053, 5
      %v2149 = vrot.slane %v2148, 4
      %v2150 = vrot.slane %v1054, 5
      %v2151 = vsel %vm2105, %v2149, %v2150
      %v2152 = vrot.slane %v2150, 4
      %v2153 = vrot.slane %v1055, 5
      %v2154 = vsel %vm2105, %v2152, %v2153
      %v2155 = vrot.slane %v1056, 5
      %v2156 = vrot.slane %v2155, 4
      %v2157 = vrot.slane %v1057, 5
      %v2158 = vsel %vm2105, %v2156, %v2157
      %v2159 = vrot.slane %v2157, 4
      %v2160 = vrot.slane %v1058, 5
      %v2161 = vsel %vm2105, %v2159, %v2160
      %v2162 = vrot.slane %v1059, 5
      %v2163 = vrot.slane %v2162, 4
      %v2164 = vrot.slane %v1060, 5
      %v2165 = vsel %vm2105, %v2163, %v2164
      %v2166 = vrot.slane %v2164, 4
      %v2167 = vrot.slane %v1061, 5
      %v2168 = vsel %vm2105, %v2166, %v2167
      %v2169 = vrot.slane %v1062, 5
      %v2170 = vrot.slane %v2169, 4
      %v2171 = vrot.slane %v1063, 5
      %v2172 = vsel %vm2105, %v2170, %v2171
      %v2173 = vrot.slane %v2171, 4
      %v2174 = vrot.slane %v1064, 5
      %v2175 = vsel %vm2105, %v2173, %v2174
      %v2176 = vrot.slane %v1065, 5
      %v2177 = vrot.slane %v2176, 4
      %v2178 = vrot.slane %v1066, 5
      %v2179 = vsel %vm2105, %v2177, %v2178
      %v2180 = vrot.slane %v2178, 4
      %v2181 = vrot.slane %v1067, 5
      %v2182 = vsel %vm2105, %v2180, %v2181
      %v2183 = vrot.slane %v1068, 5
      %v2184 = vrot.slane %v2183, 4
      %v2185 = vrot.slane %v1069, 5
      %v2186 = vsel %vm2105, %v2184, %v2185
      %v2187 = vrot.slane %v2185, 4
      %v2188 = vrot.slane %v1070, 5
      %v2189 = vsel %vm2105, %v2187, %v2188
      %v2190 = vrot.slane %v1071, 5
      %v2191 = vrot.slane %v2190, 4
      %v2192 = vrot.slane %v1072, 5
      %v2193 = vsel %vm2105, %v2191, %v2192
      %v2194 = vrot.slane %v2192, 4
      %v2195 = vrot.slane %v1073, 5
      %v2196 = vsel %vm2105, %v2194, %v2195
      %v2197 = vrot.slane %v1074, 5
      %v2198 = vrot.slane %v2197, 4
      %v2199 = vrot.slane %v1075, 5
      %v2200 = vsel %vm2105, %v2198, %v2199
      %v2201 = vrot.slane %v2199, 4
      %v2202 = vrot.slane %v1076, 5
      %v2203 = vsel %vm2105, %v2201, %v2202
      %v2204 = vrot.slane %v1077, 5
      %v2205 = vrot.slane %v2204, 4
      %v2206 = vrot.slane %v1078, 5
      %v2207 = vsel %vm2105, %v2205, %v2206
      %v2208 = vrot.slane %v2206, 4
      %v2209 = vrot.slane %v1079, 5
      %v2210 = vsel %vm2105, %v2208, %v2209
      %v2211 = vrot.slane %v1080, 5
      %v2212 = vrot.slane %v2211, 4
      %v2213 = vrot.slane %v1081, 5
      %v2214 = vsel %vm2105, %v2212, %v2213
      %v2215 = vrot.slane %v2213, 4
      %v2216 = vrot.slane %v1082, 5
      %v2217 = vsel %vm2105, %v2215, %v2216
      %s2218 = scalar_lea.vmem %s1, 128
      %v2219 = vld [vmem:[%s2218] sm:$0xf]
      %v2220 = vld [vmem:[%s2218 + $0x4] sm:$0xf]
      %v2221 = vld [vmem:[%s2218 + $0x8] sm:$0xf]
      %v2222 = vld [vmem:[%s2218 + $0xc] sm:$0xf]
      %v2223 = vld [vmem:[%s2218 + $0x10] sm:$0xf]
      %v2224 = vld [vmem:[%s2218 + $0x14] sm:$0xf]
      %v2225 = vld [vmem:[%s2218 + $0x18] sm:$0xf]
      %v2226 = vld [vmem:[%s2218 + $0x1c] sm:$0xf]
      %v2227 = vld [vmem:[%s2218 + $0x20] sm:$0xf]
      %v2228 = vld [vmem:[%s2218 + $0x24] sm:$0xf]
      %v2229 = vld [vmem:[%s2218 + $0x28] sm:$0xf]
      %v2230 = vld [vmem:[%s2218 + $0x2c] sm:$0xf]
      %v2231 = vld [vmem:[%s2218 + $0x30] sm:$0xf]
      %v2232 = vld [vmem:[%s2218 + $0x34] sm:$0xf]
      %v2233 = vld [vmem:[%s2218 + $0x38] sm:$0xf]
      %v2234 = vld [vmem:[%s2218 + $0x3c] sm:$0xf]
      %v2235 = vunpack.c.l.b16 %v2109
      %v2236 = vunpack.c.l.b16 %v2112
      %v2237 = vunpack.c.l.b16 %v2116
      %v2238 = vunpack.c.l.b16 %v2119
      %v2239 = vunpack.c.l.b16 %v2123
      %v2240 = vunpack.c.l.b16 %v2126
      %v2241 = vunpack.c.l.b16 %v2130
      %v2242 = vunpack.c.l.b16 %v2133
      %v2243 = vunpack.c.l.b16 %v2137
      %v2244 = vunpack.c.l.b16 %v2140
      %v2245 = vunpack.c.l.b16 %v2144
      %v2246 = vunpack.c.l.b16 %v2147
      %v2247 = vunpack.c.l.b16 %v2151
      %v2248 = vunpack.c.l.b16 %v2154
      %v2249 = vunpack.c.l.b16 %v2158
      %v2250 = vunpack.c.l.b16 %v2161
      %v2251 = vunpack.c.l.b16 %v2165
      %v2252 = vunpack.c.l.b16 %v2168
      %v2253 = vunpack.c.l.b16 %v2172
      %v2254 = vunpack.c.l.b16 %v2175
      %v2255 = vunpack.c.l.b16 %v2179
      %v2256 = vunpack.c.l.b16 %v2182
      %v2257 = vunpack.c.l.b16 %v2186
      %v2258 = vunpack.c.l.b16 %v2189
      %v2259 = vunpack.c.l.b16 %v2193
      %v2260 = vunpack.c.l.b16 %v2196
      %v2261 = vunpack.c.l.b16 %v2200
      %v2262 = vunpack.c.l.b16 %v2203
      %v2263 = vunpack.c.l.b16 %v2207
      %v2264 = vunpack.c.l.b16 %v2210
      %v2265 = vunpack.c.l.b16 %v2214
      %v2266 = vunpack.c.l.b16 %v2217
      %v2267 = vpack.c.b16 %v2236, %v2235
      %v2268 = vpack.c.b16 %v2238, %v2237
      %v2269 = vpack.c.b16 %v2240, %v2239
      %v2270 = vpack.c.b16 %v2242, %v2241
      %v2271 = vpack.c.b16 %v2244, %v2243
      %v2272 = vpack.c.b16 %v2246, %v2245
      %v2273 = vpack.c.b16 %v2248, %v2247
      %v2274 = vpack.c.b16 %v2250, %v2249
      %v2275 = vpack.c.b16 %v2252, %v2251
      %v2276 = vpack.c.b16 %v2254, %v2253
      %v2277 = vpack.c.b16 %v2256, %v2255
      %v2278 = vpack.c.b16 %v2258, %v2257
      %v2279 = vpack.c.b16 %v2260, %v2259
      %v2280 = vpack.c.b16 %v2262, %v2261
      %v2281 = vpack.c.b16 %v2264, %v2263
      %v2282 = vpack.c.b16 %v2266, %v2265
      %v2315 = vunpack.c.l.b16 %v2219
      %v2316 = vunpack.c.l.b16 %v2220
      %v2317 = vunpack.c.l.b16 %v2221
      %v2318 = vunpack.c.l.b16 %v2222
      %v2319 = vunpack.c.l.b16 %v2223
      %v2320 = vunpack.c.l.b16 %v2224
      %v2321 = vunpack.c.l.b16 %v2225
      %v2322 = vunpack.c.l.b16 %v2226
      %v2323 = vunpack.c.l.b16 %v2227
      %v2324 = vunpack.c.l.b16 %v2228
      %v2325 = vunpack.c.l.b16 %v2229
      %v2326 = vunpack.c.l.b16 %v2230
      %v2327 = vunpack.c.l.b16 %v2231
      %v2328 = vunpack.c.l.b16 %v2232
      %v2329 = vunpack.c.l.b16 %v2233
      %v2330 = vunpack.c.l.b16 %v2234
      %v2331 = vpack.c.b16 %v2316, %v2315
      %v2332 = vpack.c.b16 %v2318, %v2317
      %v2333 = vpack.c.b16 %v2320, %v2319
      %v2334 = vpack.c.b16 %v2322, %v2321
      %v2335 = vpack.c.b16 %v2324, %v2323
      %v2336 = vpack.c.b16 %v2326, %v2325
      %v2337 = vpack.c.b16 %v2328, %v2327
      %v2338 = vpack.c.b16 %v2330, %v2329
      %2347 = vmatprep.subr.bf16.mxu0 0
      %2348 = vmatpush1.bf16.msra.mxu0 %v2338
      %2349 = vmatprep.subr.bf16.mxu0 0
      %2350 = vmatpush1.bf16.msra.mxu0 %v2337
      %2351 = vmatprep.subr.bf16.mxu0 0
      %2352 = vmatpush1.bf16.msra.mxu0 %v2336
      %2353 = vmatprep.subr.bf16.mxu0 0
      %2354 = vmatpush1.bf16.msra.mxu0 %v2335
      %2355 = vmatprep.subr.bf16.mxu0 0
      %2356 = vmatpush1.bf16.msra.mxu0 %v2334
      %2357 = vmatprep.subr.bf16.mxu0 0
      %2358 = vmatpush1.bf16.msra.mxu0 %v2333
      %2359 = vmatprep.subr.bf16.mxu0 0
      %2360 = vmatpush1.bf16.msra.mxu0 %v2332
      %2361 = vmatprep.subr.bf16.mxu0 0
      %2362 = vmatpush1.bf16.msra.mxu0 %v2331
      %2363 = vmatprep.subr.bf16.mxu0 0
      %2364 = vmatpush2.bf16.msra.mxu0 0
      %2365 = vmatprep.subr.bf16.mxu0 0
      %2366 = vmatpush2.bf16.msra.mxu0 0
      %2367 = vmatprep.subr.bf16.mxu0 0
      %2368 = vmatpush2.bf16.msra.mxu0 0
      %2369 = vmatprep.subr.bf16.mxu0 0
      %2370 = vmatpush2.bf16.msra.mxu0 0
      %2371 = vmatprep.subr.bf16.mxu0 0
      %2372 = vmatpush2.bf16.msra.mxu0 0
      %2373 = vmatprep.subr.bf16.mxu0 0
      %2374 = vmatpush2.bf16.msra.mxu0 0
      %2375 = vmatprep.subr.bf16.mxu0 0
      %2376 = vmatpush2.bf16.msra.mxu0 0
      %2377 = vmatprep.subr.bf16.mxu0 0
      %2378 = vmatpush2.bf16.msra.mxu0 0
      %2379 = vmatprep.mubr.bf16.mxu0 0
      %2380 = vmatmul.mubr.bf16.gmra.mxu0 %v2267
      %v2381 = vpop.f32.mrf.mxu0
      %v2382 = vadd.f32 0.0, %v2381
      %v2383 = vpop.f32.mrf.mxu0
      %v2384 = vpop.f32.mrf.mxu0
      %v2385 = vadd.f32 0.0, %v2384
      %v2386 = vpop.f32.mrf.mxu0
      %2387 = vmatprep.mubr.bf16.mxu0 0
      %2388 = vmatmul.mubr.bf16.gmra.mxu0 %v2268
      %v2389 = vpop.f32.mrf.mxu0
      %v2390 = vadd.f32 0.0, %v2389
      %v2391 = vpop.f32.mrf.mxu0
      %v2392 = vpop.f32.mrf.mxu0
      %v2393 = vadd.f32 0.0, %v2392
      %v2394 = vpop.f32.mrf.mxu0
      %2395 = vmatprep.mubr.bf16.mxu0 0
      %2396 = vmatmul.mubr.bf16.gmra.mxu0 %v2269
      %v2397 = vpop.f32.mrf.mxu0
      %v2398 = vadd.f32 0.0, %v2397
      %v2399 = vpop.f32.mrf.mxu0
      %v2400 = vpop.f32.mrf.mxu0
      %v2401 = vadd.f32 0.0, %v2400
      %v2402 = vpop.f32.mrf.mxu0
      %2403 = vmatprep.mubr.bf16.mxu0 0
      %2404 = vmatmul.mubr.bf16.gmra.mxu0 %v2270
      %v2405 = vpop.f32.mrf.mxu0
      %v2406 = vadd.f32 0.0, %v2405
      %v2407 = vpop.f32.mrf.mxu0
      %v2408 = vpop.f32.mrf.mxu0
      %v2409 = vadd.f32 0.0, %v2408
      %v2410 = vpop.f32.mrf.mxu0
      %2411 = vmatprep.mubr.bf16.mxu0 0
      %2412 = vmatmul.mubr.bf16.gmra.mxu0 %v2271
      %v2413 = vpop.f32.mrf.mxu0
      %v2414 = vadd.f32 0.0, %v2413
      %v2415 = vpop.f32.mrf.mxu0
      %v2416 = vpop.f32.mrf.mxu0
      %v2417 = vadd.f32 0.0, %v2416
      %v2418 = vpop.f32.mrf.mxu0
      %2419 = vmatprep.mubr.bf16.mxu0 0
      %2420 = vmatmul.mubr.bf16.gmra.mxu0 %v2272
      %v2421 = vpop.f32.mrf.mxu0
      %v2422 = vadd.f32 0.0, %v2421
      %v2423 = vpop.f32.mrf.mxu0
      %v2424 = vpop.f32.mrf.mxu0
      %v2425 = vadd.f32 0.0, %v2424
      %v2426 = vpop.f32.mrf.mxu0
      %2427 = vmatprep.mubr.bf16.mxu0 0
      %2428 = vmatmul.mubr.bf16.gmra.mxu0 %v2273
      %v2429 = vpop.f32.mrf.mxu0
      %v2430 = vadd.f32 0.0, %v2429
      %v2431 = vpop.f32.mrf.mxu0
      %v2432 = vpop.f32.mrf.mxu0
      %v2433 = vadd.f32 0.0, %v2432
      %v2434 = vpop.f32.mrf.mxu0
      %2435 = vmatprep.mubr.bf16.mxu0 0
      %2436 = vmatmul.mubr.bf16.gmra.mxu0 %v2274
      %v2437 = vpop.f32.mrf.mxu0
      %v2438 = vadd.f32 0.0, %v2437
      %v2439 = vpop.f32.mrf.mxu0
      %v2440 = vpop.f32.mrf.mxu0
      %v2441 = vadd.f32 0.0, %v2440
      %v2442 = vpop.f32.mrf.mxu0
      %2443 = vmatprep.mubr.bf16.mxu0 0
      %2444 = vmatmul.mubr.bf16.gmra.mxu0 %v2275
      %v2445 = vpop.f32.mrf.mxu0
      %v2446 = vadd.f32 0.0, %v2445
      %v2447 = vpop.f32.mrf.mxu0
      %v2448 = vpop.f32.mrf.mxu0
      %v2449 = vadd.f32 0.0, %v2448
      %v2450 = vpop.f32.mrf.mxu0
      %2451 = vmatprep.mubr.bf16.mxu0 0
      %2452 = vmatmul.mubr.bf16.gmra.mxu0 %v2276
      %v2453 = vpop.f32.mrf.mxu0
      %v2454 = vadd.f32 0.0, %v2453
      %v2455 = vpop.f32.mrf.mxu0
      %v2456 = vpop.f32.mrf.mxu0
      %v2457 = vadd.f32 0.0, %v2456
      %v2458 = vpop.f32.mrf.mxu0
      %2459 = vmatprep.mubr.bf16.mxu0 0
      %2460 = vmatmul.mubr.bf16.gmra.mxu0 %v2277
      %v2461 = vpop.f32.mrf.mxu0
      %v2462 = vadd.f32 0.0, %v2461
      %v2463 = vpop.f32.mrf.mxu0
      %v2464 = vpop.f32.mrf.mxu0
      %v2465 = vadd.f32 0.0, %v2464
      %v2466 = vpop.f32.mrf.mxu0
      %2467 = vmatprep.mubr.bf16.mxu0 0
      %2468 = vmatmul.mubr.bf16.gmra.mxu0 %v2278
      %v2469 = vpop.f32.mrf.mxu0
      %v2470 = vadd.f32 0.0, %v2469
      %v2471 = vpop.f32.mrf.mxu0
      %v2472 = vpop.f32.mrf.mxu0
      %v2473 = vadd.f32 0.0, %v2472
      %v2474 = vpop.f32.mrf.mxu0
      %2475 = vmatprep.mubr.bf16.mxu0 0
      %2476 = vmatmul.mubr.bf16.gmra.mxu0 %v2279
      %v2477 = vpop.f32.mrf.mxu0
      %v2478 = vadd.f32 0.0, %v2477
      %v2479 = vpop.f32.mrf.mxu0
      %v2480 = vpop.f32.mrf.mxu0
      %v2481 = vadd.f32 0.0, %v2480
      %v2482 = vpop.f32.mrf.mxu0
      %2483 = vmatprep.mubr.bf16.mxu0 0
      %2484 = vmatmul.mubr.bf16.gmra.mxu0 %v2280
      %v2485 = vpop.f32.mrf.mxu0
      %v2486 = vadd.f32 0.0, %v2485
      %v2487 = vpop.f32.mrf.mxu0
      %v2488 = vpop.f32.mrf.mxu0
      %v2489 = vadd.f32 0.0, %v2488
      %v2490 = vpop.f32.mrf.mxu0
      %2491 = vmatprep.mubr.bf16.mxu0 0
      %2492 = vmatmul.mubr.bf16.gmra.mxu0 %v2281
      %v2493 = vpop.f32.mrf.mxu0
      %v2494 = vadd.f32 0.0, %v2493
      %v2495 = vpop.f32.mrf.mxu0
      %v2496 = vpop.f32.mrf.mxu0
      %v2497 = vadd.f32 0.0, %v2496
      %v2498 = vpop.f32.mrf.mxu0
      %2499 = vmatprep.mubr.bf16.mxu0 0
      %2500 = vmatmul.mubr.bf16.gmra.mxu0 %v2282
      %v2501 = vpop.f32.mrf.mxu0
      %v2502 = vadd.f32 0.0, %v2501
      %v2503 = vpop.f32.mrf.mxu0
      %v2504 = vpop.f32.mrf.mxu0
      %v2505 = vadd.f32 0.0, %v2504
      %v2506 = vpop.f32.mrf.mxu0
      %2507 = vdwg.mxu0
      %v2508 = vadd.f32 %v1961, %v2382
      %v2509 = vadd.f32 %v1964, %v2385
      %v2510 = vadd.f32 %v1969, %v2390
      %v2511 = vadd.f32 %v1972, %v2393
      %v2512 = vadd.f32 %v1977, %v2398
      %v2513 = vadd.f32 %v1980, %v2401
      %v2514 = vadd.f32 %v1985, %v2406
      %v2515 = vadd.f32 %v1988, %v2409
      %v2516 = vadd.f32 %v1993, %v2414
      %v2517 = vadd.f32 %v1996, %v2417
      %v2518 = vadd.f32 %v2001, %v2422
      %v2519 = vadd.f32 %v2004, %v2425
      %v2520 = vadd.f32 %v2009, %v2430
      %v2521 = vadd.f32 %v2012, %v2433
      %v2522 = vadd.f32 %v2017, %v2438
      %v2523 = vadd.f32 %v2020, %v2441
      %v2524 = vadd.f32 %v2025, %v2446
      %v2525 = vadd.f32 %v2028, %v2449
      %v2526 = vadd.f32 %v2033, %v2454
      %v2527 = vadd.f32 %v2036, %v2457
      %v2528 = vadd.f32 %v2041, %v2462
      %v2529 = vadd.f32 %v2044, %v2465
      %v2530 = vadd.f32 %v2049, %v2470
      %v2531 = vadd.f32 %v2052, %v2473
      %v2532 = vadd.f32 %v2057, %v2478
      %v2533 = vadd.f32 %v2060, %v2481
      %v2534 = vadd.f32 %v2065, %v2486
      %v2535 = vadd.f32 %v2068, %v2489
      %v2536 = vadd.f32 %v2073, %v2494
      %v2537 = vadd.f32 %v2076, %v2497
      %v2538 = vadd.f32 %v2081, %v2502
      %v2539 = vadd.f32 %v2084, %v2505
      %s2540 = scalar_lea.vmem %s1, 192
      %v2541 = vld [vmem:[%s2540] sm:$0xf]
      %v2542 = vld [vmem:[%s2540 + $0x4] sm:$0xf]
      %v2543 = vld [vmem:[%s2540 + $0x8] sm:$0xf]
      %v2544 = vld [vmem:[%s2540 + $0xc] sm:$0xf]
      %v2545 = vld [vmem:[%s2540 + $0x10] sm:$0xf]
      %v2546 = vld [vmem:[%s2540 + $0x14] sm:$0xf]
      %v2547 = vld [vmem:[%s2540 + $0x18] sm:$0xf]
      %v2548 = vld [vmem:[%s2540 + $0x1c] sm:$0xf]
      %v2549 = vld [vmem:[%s2540 + $0x20] sm:$0xf]
      %v2550 = vld [vmem:[%s2540 + $0x24] sm:$0xf]
      %v2551 = vld [vmem:[%s2540 + $0x28] sm:$0xf]
      %v2552 = vld [vmem:[%s2540 + $0x2c] sm:$0xf]
      %v2553 = vld [vmem:[%s2540 + $0x30] sm:$0xf]
      %v2554 = vld [vmem:[%s2540 + $0x34] sm:$0xf]
      %v2555 = vld [vmem:[%s2540 + $0x38] sm:$0xf]
      %v2556 = vld [vmem:[%s2540 + $0x3c] sm:$0xf]
      %v2559 = vunpack.c.l.b16 %v1083
      %v2560 = vunpack.c.l.b16 %v1084
      %v2561 = vpack.c.b16 %v2560, %v2559
      %v2579 = vunpack.c.l.b16 %v2541
      %v2580 = vunpack.c.l.b16 %v2542
      %v2581 = vunpack.c.l.b16 %v2543
      %v2582 = vunpack.c.l.b16 %v2544
      %v2583 = vunpack.c.l.b16 %v2545
      %v2584 = vunpack.c.l.b16 %v2546
      %v2585 = vunpack.c.l.b16 %v2547
      %v2586 = vunpack.c.l.b16 %v2548
      %v2587 = vunpack.c.l.b16 %v2549
      %v2588 = vunpack.c.l.b16 %v2550
      %v2589 = vunpack.c.l.b16 %v2551
      %v2590 = vunpack.c.l.b16 %v2552
      %v2591 = vunpack.c.l.b16 %v2553
      %v2592 = vunpack.c.l.b16 %v2554
      %v2593 = vunpack.c.l.b16 %v2555
      %v2594 = vunpack.c.l.b16 %v2556
      %v2595 = vpack.c.b16 %v2580, %v2579
      %v2596 = vpack.c.b16 %v2582, %v2581
      %v2597 = vpack.c.b16 %v2584, %v2583
      %v2598 = vpack.c.b16 %v2586, %v2585
      %v2599 = vpack.c.b16 %v2588, %v2587
      %v2600 = vpack.c.b16 %v2590, %v2589
      %v2601 = vpack.c.b16 %v2592, %v2591
      %v2602 = vpack.c.b16 %v2594, %v2593
      %2611 = vmatprep.subr.bf16.mxu0 0
      %2612 = vmatpush1.bf16.msra.mxu0 %v2602
      %2613 = vmatprep.subr.bf16.mxu0 0
      %2614 = vmatpush1.bf16.msra.mxu0 %v2601
      %2615 = vmatprep.subr.bf16.mxu0 0
      %2616 = vmatpush1.bf16.msra.mxu0 %v2600
      %2617 = vmatprep.subr.bf16.mxu0 0
      %2618 = vmatpush1.bf16.msra.mxu0 %v2599
      %2619 = vmatprep.subr.bf16.mxu0 0
      %2620 = vmatpush1.bf16.msra.mxu0 %v2598
      %2621 = vmatprep.subr.bf16.mxu0 0
      %2622 = vmatpush1.bf16.msra.mxu0 %v2597
      %2623 = vmatprep.subr.bf16.mxu0 0
      %2624 = vmatpush1.bf16.msra.mxu0 %v2596
      %2625 = vmatprep.subr.bf16.mxu0 0
      %2626 = vmatpush1.bf16.msra.mxu0 %v2595
      %2627 = vmatprep.subr.bf16.mxu0 0
      %2628 = vmatpush2.bf16.msra.mxu0 0
      %2629 = vmatprep.subr.bf16.mxu0 0
      %2630 = vmatpush2.bf16.msra.mxu0 0
      %2631 = vmatprep.subr.bf16.mxu0 0
      %2632 = vmatpush2.bf16.msra.mxu0 0
      %2633 = vmatprep.subr.bf16.mxu0 0
      %2634 = vmatpush2.bf16.msra.mxu0 0
      %2635 = vmatprep.subr.bf16.mxu0 0
      %2636 = vmatpush2.bf16.msra.mxu0 0
      %2637 = vmatprep.subr.bf16.mxu0 0
      %2638 = vmatpush2.bf16.msra.mxu0 0
      %2639 = vmatprep.subr.bf16.mxu0 0
      %2640 = vmatpush2.bf16.msra.mxu0 0
      %2641 = vmatprep.subr.bf16.mxu0 0
      %2642 = vmatpush2.bf16.msra.mxu0 0
      %2643 = vmatprep.mubr.bf16.mxu0 0
      %2644 = vmatmul.mubr.bf16.gmra.mxu0 %v1847
      %v2645 = vpop.f32.mrf.mxu0
      %v2646 = vadd.f32 0.0, %v2645
      %v2647 = vpop.f32.mrf.mxu0
      %v2648 = vpop.f32.mrf.mxu0
      %v2649 = vadd.f32 0.0, %v2648
      %v2650 = vpop.f32.mrf.mxu0
      %2651 = vmatprep.mubr.bf16.mxu0 0
      %2652 = vmatmul.mubr.bf16.gmra.mxu0 %v1848
      %v2653 = vpop.f32.mrf.mxu0
      %v2654 = vadd.f32 0.0, %v2653
      %v2655 = vpop.f32.mrf.mxu0
      %v2656 = vpop.f32.mrf.mxu0
      %v2657 = vadd.f32 0.0, %v2656
      %v2658 = vpop.f32.mrf.mxu0
      %2659 = vmatprep.mubr.bf16.mxu0 0
      %2660 = vmatmul.mubr.bf16.gmra.mxu0 %v1849
      %v2661 = vpop.f32.mrf.mxu0
      %v2662 = vadd.f32 0.0, %v2661
      %v2663 = vpop.f32.mrf.mxu0
      %v2664 = vpop.f32.mrf.mxu0
      %v2665 = vadd.f32 0.0, %v2664
      %v2666 = vpop.f32.mrf.mxu0
      %2667 = vmatprep.mubr.bf16.mxu0 0
      %2668 = vmatmul.mubr.bf16.gmra.mxu0 %v1850
      %v2669 = vpop.f32.mrf.mxu0
      %v2670 = vadd.f32 0.0, %v2669
      %v2671 = vpop.f32.mrf.mxu0
      %v2672 = vpop.f32.mrf.mxu0
      %v2673 = vadd.f32 0.0, %v2672
      %v2674 = vpop.f32.mrf.mxu0
      %2675 = vmatprep.mubr.bf16.mxu0 0
      %2676 = vmatmul.mubr.bf16.gmra.mxu0 %v1851
      %v2677 = vpop.f32.mrf.mxu0
      %v2678 = vadd.f32 0.0, %v2677
      %v2679 = vpop.f32.mrf.mxu0
      %v2680 = vpop.f32.mrf.mxu0
      %v2681 = vadd.f32 0.0, %v2680
      %v2682 = vpop.f32.mrf.mxu0
      %2683 = vmatprep.mubr.bf16.mxu0 0
      %2684 = vmatmul.mubr.bf16.gmra.mxu0 %v1852
      %v2685 = vpop.f32.mrf.mxu0
      %v2686 = vadd.f32 0.0, %v2685
      %v2687 = vpop.f32.mrf.mxu0
      %v2688 = vpop.f32.mrf.mxu0
      %v2689 = vadd.f32 0.0, %v2688
      %v2690 = vpop.f32.mrf.mxu0
      %2691 = vmatprep.mubr.bf16.mxu0 0
      %2692 = vmatmul.mubr.bf16.gmra.mxu0 %v1853
      %v2693 = vpop.f32.mrf.mxu0
      %v2694 = vadd.f32 0.0, %v2693
      %v2695 = vpop.f32.mrf.mxu0
      %v2696 = vpop.f32.mrf.mxu0
      %v2697 = vadd.f32 0.0, %v2696
      %v2698 = vpop.f32.mrf.mxu0
      %2699 = vmatprep.mubr.bf16.mxu0 0
      %2700 = vmatmul.mubr.bf16.gmra.mxu0 %v1854
      %v2701 = vpop.f32.mrf.mxu0
      %v2702 = vadd.f32 0.0, %v2701
      %v2703 = vpop.f32.mrf.mxu0
      %v2704 = vpop.f32.mrf.mxu0
      %v2705 = vadd.f32 0.0, %v2704
      %v2706 = vpop.f32.mrf.mxu0
      %2707 = vmatprep.mubr.bf16.mxu0 0
      %2708 = vmatmul.mubr.bf16.gmra.mxu0 %v1855
      %v2709 = vpop.f32.mrf.mxu0
      %v2710 = vadd.f32 0.0, %v2709
      %v2711 = vpop.f32.mrf.mxu0
      %v2712 = vpop.f32.mrf.mxu0
      %v2713 = vadd.f32 0.0, %v2712
      %v2714 = vpop.f32.mrf.mxu0
      %2715 = vmatprep.mubr.bf16.mxu0 0
      %2716 = vmatmul.mubr.bf16.gmra.mxu0 %v1856
      %v2717 = vpop.f32.mrf.mxu0
      %v2718 = vadd.f32 0.0, %v2717
      %v2719 = vpop.f32.mrf.mxu0
      %v2720 = vpop.f32.mrf.mxu0
      %v2721 = vadd.f32 0.0, %v2720
      %v2722 = vpop.f32.mrf.mxu0
      %2723 = vmatprep.mubr.bf16.mxu0 0
      %2724 = vmatmul.mubr.bf16.gmra.mxu0 %v1857
      %v2725 = vpop.f32.mrf.mxu0
      %v2726 = vadd.f32 0.0, %v2725
      %v2727 = vpop.f32.mrf.mxu0
      %v2728 = vpop.f32.mrf.mxu0
      %v2729 = vadd.f32 0.0, %v2728
      %v2730 = vpop.f32.mrf.mxu0
      %2731 = vmatprep.mubr.bf16.mxu0 0
      %2732 = vmatmul.mubr.bf16.gmra.mxu0 %v1858
      %v2733 = vpop.f32.mrf.mxu0
      %v2734 = vadd.f32 0.0, %v2733
      %v2735 = vpop.f32.mrf.mxu0
      %v2736 = vpop.f32.mrf.mxu0
      %v2737 = vadd.f32 0.0, %v2736
      %v2738 = vpop.f32.mrf.mxu0
      %2739 = vmatprep.mubr.bf16.mxu0 0
      %2740 = vmatmul.mubr.bf16.gmra.mxu0 %v1859
      %v2741 = vpop.f32.mrf.mxu0
      %v2742 = vadd.f32 0.0, %v2741
      %v2743 = vpop.f32.mrf.mxu0
      %v2744 = vpop.f32.mrf.mxu0
      %v2745 = vadd.f32 0.0, %v2744
      %v2746 = vpop.f32.mrf.mxu0
      %2747 = vmatprep.mubr.bf16.mxu0 0
      %2748 = vmatmul.mubr.bf16.gmra.mxu0 %v1860
      %v2749 = vpop.f32.mrf.mxu0
      %v2750 = vadd.f32 0.0, %v2749
      %v2751 = vpop.f32.mrf.mxu0
      %v2752 = vpop.f32.mrf.mxu0
      %v2753 = vadd.f32 0.0, %v2752
      %v2754 = vpop.f32.mrf.mxu0
      %2755 = vmatprep.mubr.bf16.mxu0 0
      %2756 = vmatmul.mubr.bf16.gmra.mxu0 %v1861
      %v2757 = vpop.f32.mrf.mxu0
      %v2758 = vadd.f32 0.0, %v2757
      %v2759 = vpop.f32.mrf.mxu0
      %v2760 = vpop.f32.mrf.mxu0
      %v2761 = vadd.f32 0.0, %v2760
      %v2762 = vpop.f32.mrf.mxu0
      %2763 = vmatprep.mubr.bf16.mxu0 0
      %2764 = vmatmul.mubr.bf16.gmra.mxu0 %v2561
      %v2765 = vpop.f32.mrf.mxu0
      %v2766 = vadd.f32 0.0, %v2765
      %v2767 = vpop.f32.mrf.mxu0
      %v2768 = vpop.f32.mrf.mxu0
      %v2769 = vadd.f32 0.0, %v2768
      %v2770 = vpop.f32.mrf.mxu0
      %2771 = vdwg.mxu0
      %v2772 = vadd.f32 %v2508, %v2646
      %v2773 = vadd.f32 %v2509, %v2649
      %v2774 = vadd.f32 %v2510, %v2654
      %v2775 = vadd.f32 %v2511, %v2657
      %v2776 = vadd.f32 %v2512, %v2662
      %v2777 = vadd.f32 %v2513, %v2665
      %v2778 = vadd.f32 %v2514, %v2670
      %v2779 = vadd.f32 %v2515, %v2673
      %v2780 = vadd.f32 %v2516, %v2678
      %v2781 = vadd.f32 %v2517, %v2681
      %v2782 = vadd.f32 %v2518, %v2686
      %v2783 = vadd.f32 %v2519, %v2689
      %v2784 = vadd.f32 %v2520, %v2694
      %v2785 = vadd.f32 %v2521, %v2697
      %v2786 = vadd.f32 %v2522, %v2702
      %v2787 = vadd.f32 %v2523, %v2705
      %v2788 = vadd.f32 %v2524, %v2710
      %v2789 = vadd.f32 %v2525, %v2713
      %v2790 = vadd.f32 %v2526, %v2718
      %v2791 = vadd.f32 %v2527, %v2721
      %v2792 = vadd.f32 %v2528, %v2726
      %v2793 = vadd.f32 %v2529, %v2729
      %v2794 = vadd.f32 %v2530, %v2734
      %v2795 = vadd.f32 %v2531, %v2737
      %v2796 = vadd.f32 %v2532, %v2742
      %v2797 = vadd.f32 %v2533, %v2745
      %v2798 = vadd.f32 %v2534, %v2750
      %v2799 = vadd.f32 %v2535, %v2753
      %v2800 = vadd.f32 %v2536, %v2758
      %v2801 = vadd.f32 %v2537, %v2761
      %v2802 = vadd.f32 %v2538, %v2766
      %v2803 = vadd.f32 %v2539, %v2769
      %v2805 = vshrl.u32 %v1083, 16
      %v2807 = vrot.slane %v2805, 4
      %v2808 = vshll.u32 %v1083, 16
      %v2810 = vrot.slane %v2808, 5
      %v2811 = vor.u32 %v2807, %v2810
      %v2812 = vrot.slane %v2811, 4
      %v2814 = vshll.u32 %v1084, 16
      %v2816 = vrot.slane %v2814, 5
      %v2817 = vsel %vm1107, %v2812, %v2816
      %v2818 = vshrl.u32 %v1084, 16
      %v2820 = vrot.slane %v2818, 4
      %v2821 = vor.u32 %v2820, %v2816
      %v2822 = vrot.slane %v2821, 4
      %v2824 = vshll.u32 %v1085, 16
      %v2826 = vrot.slane %v2824, 5
      %v2827 = vsel %vm1107, %v2822, %v2826
      %s2828 = scalar_lea.vmem %s1, 256
      %v2829 = vld [vmem:[%s2828] sm:$0xf]
      %v2830 = vld [vmem:[%s2828 + $0x4] sm:$0xf]
      %v2831 = vld [vmem:[%s2828 + $0x8] sm:$0xf]
      %v2832 = vld [vmem:[%s2828 + $0xc] sm:$0xf]
      %v2833 = vld [vmem:[%s2828 + $0x10] sm:$0xf]
      %v2834 = vld [vmem:[%s2828 + $0x14] sm:$0xf]
      %v2835 = vld [vmem:[%s2828 + $0x18] sm:$0xf]
      %v2836 = vld [vmem:[%s2828 + $0x1c] sm:$0xf]
      %v2837 = vld [vmem:[%s2828 + $0x20] sm:$0xf]
      %v2838 = vld [vmem:[%s2828 + $0x24] sm:$0xf]
      %v2839 = vld [vmem:[%s2828 + $0x28] sm:$0xf]
      %v2840 = vld [vmem:[%s2828 + $0x2c] sm:$0xf]
      %v2841 = vld [vmem:[%s2828 + $0x30] sm:$0xf]
      %v2842 = vld [vmem:[%s2828 + $0x34] sm:$0xf]
      %v2843 = vld [vmem:[%s2828 + $0x38] sm:$0xf]
      %v2844 = vld [vmem:[%s2828 + $0x3c] sm:$0xf]
      %v2845 = vunpack.c.l.b16 %v2817
      %v2846 = vunpack.c.l.b16 %v2827
      %v2847 = vpack.c.b16 %v2846, %v2845
      %v2865 = vunpack.c.l.b16 %v2829
      %v2866 = vunpack.c.l.b16 %v2830
      %v2867 = vunpack.c.l.b16 %v2831
      %v2868 = vunpack.c.l.b16 %v2832
      %v2869 = vunpack.c.l.b16 %v2833
      %v2870 = vunpack.c.l.b16 %v2834
      %v2871 = vunpack.c.l.b16 %v2835
      %v2872 = vunpack.c.l.b16 %v2836
      %v2873 = vunpack.c.l.b16 %v2837
      %v2874 = vunpack.c.l.b16 %v2838
      %v2875 = vunpack.c.l.b16 %v2839
      %v2876 = vunpack.c.l.b16 %v2840
      %v2877 = vunpack.c.l.b16 %v2841
      %v2878 = vunpack.c.l.b16 %v2842
      %v2879 = vunpack.c.l.b16 %v2843
      %v2880 = vunpack.c.l.b16 %v2844
      %v2881 = vpack.c.b16 %v2866, %v2865
      %v2882 = vpack.c.b16 %v2868, %v2867
      %v2883 = vpack.c.b16 %v2870, %v2869
      %v2884 = vpack.c.b16 %v2872, %v2871
      %v2885 = vpack.c.b16 %v2874, %v2873
      %v2886 = vpack.c.b16 %v2876, %v2875
      %v2887 = vpack.c.b16 %v2878, %v2877
      %v2888 = vpack.c.b16 %v2880, %v2879
      %2897 = vmatprep.subr.bf16.mxu0 0
      %2898 = vmatpush1.bf16.msra.mxu0 %v2888
      %2899 = vmatprep.subr.bf16.mxu0 0
      %2900 = vmatpush1.bf16.msra.mxu0 %v2887
      %2901 = vmatprep.subr.bf16.mxu0 0
      %2902 = vmatpush1.bf16.msra.mxu0 %v2886
      %2903 = vmatprep.subr.bf16.mxu0 0
      %2904 = vmatpush1.bf16.msra.mxu0 %v2885
      %2905 = vmatprep.subr.bf16.mxu0 0
      %2906 = vmatpush1.bf16.msra.mxu0 %v2884
      %2907 = vmatprep.subr.bf16.mxu0 0
      %2908 = vmatpush1.bf16.msra.mxu0 %v2883
      %2909 = vmatprep.subr.bf16.mxu0 0
      %2910 = vmatpush1.bf16.msra.mxu0 %v2882
      %2911 = vmatprep.subr.bf16.mxu0 0
      %2912 = vmatpush1.bf16.msra.mxu0 %v2881
      %2913 = vmatprep.subr.bf16.mxu0 0
      %2914 = vmatpush2.bf16.msra.mxu0 0
      %2915 = vmatprep.subr.bf16.mxu0 0
      %2916 = vmatpush2.bf16.msra.mxu0 0
      %2917 = vmatprep.subr.bf16.mxu0 0
      %2918 = vmatpush2.bf16.msra.mxu0 0
      %2919 = vmatprep.subr.bf16.mxu0 0
      %2920 = vmatpush2.bf16.msra.mxu0 0
      %2921 = vmatprep.subr.bf16.mxu0 0
      %2922 = vmatpush2.bf16.msra.mxu0 0
      %2923 = vmatprep.subr.bf16.mxu0 0
      %2924 = vmatpush2.bf16.msra.mxu0 0
      %2925 = vmatprep.subr.bf16.mxu0 0
      %2926 = vmatpush2.bf16.msra.mxu0 0
      %2927 = vmatprep.subr.bf16.mxu0 0
      %2928 = vmatpush2.bf16.msra.mxu0 0
      %2929 = vmatprep.mubr.bf16.mxu0 0
      %2930 = vmatmul.mubr.bf16.gmra.mxu0 %v1542
      %v2931 = vpop.f32.mrf.mxu0
      %v2932 = vadd.f32 0.0, %v2931
      %v2933 = vpop.f32.mrf.mxu0
      %v2934 = vpop.f32.mrf.mxu0
      %v2935 = vadd.f32 0.0, %v2934
      %v2936 = vpop.f32.mrf.mxu0
      %2937 = vmatprep.mubr.bf16.mxu0 0
      %2938 = vmatmul.mubr.bf16.gmra.mxu0 %v1543
      %v2939 = vpop.f32.mrf.mxu0
      %v2940 = vadd.f32 0.0, %v2939
      %v2941 = vpop.f32.mrf.mxu0
      %v2942 = vpop.f32.mrf.mxu0
      %v2943 = vadd.f32 0.0, %v2942
      %v2944 = vpop.f32.mrf.mxu0
      %2945 = vmatprep.mubr.bf16.mxu0 0
      %2946 = vmatmul.mubr.bf16.gmra.mxu0 %v1544
      %v2947 = vpop.f32.mrf.mxu0
      %v2948 = vadd.f32 0.0, %v2947
      %v2949 = vpop.f32.mrf.mxu0
      %v2950 = vpop.f32.mrf.mxu0
      %v2951 = vadd.f32 0.0, %v2950
      %v2952 = vpop.f32.mrf.mxu0
      %2953 = vmatprep.mubr.bf16.mxu0 0
      %2954 = vmatmul.mubr.bf16.gmra.mxu0 %v1545
      %v2955 = vpop.f32.mrf.mxu0
      %v2956 = vadd.f32 0.0, %v2955
      %v2957 = vpop.f32.mrf.mxu0
      %v2958 = vpop.f32.mrf.mxu0
      %v2959 = vadd.f32 0.0, %v2958
      %v2960 = vpop.f32.mrf.mxu0
      %2961 = vmatprep.mubr.bf16.mxu0 0
      %2962 = vmatmul.mubr.bf16.gmra.mxu0 %v1546
      %v2963 = vpop.f32.mrf.mxu0
      %v2964 = vadd.f32 0.0, %v2963
      %v2965 = vpop.f32.mrf.mxu0
      %v2966 = vpop.f32.mrf.mxu0
      %v2967 = vadd.f32 0.0, %v2966
      %v2968 = vpop.f32.mrf.mxu0
      %2969 = vmatprep.mubr.bf16.mxu0 0
      %2970 = vmatmul.mubr.bf16.gmra.mxu0 %v1547
      %v2971 = vpop.f32.mrf.mxu0
      %v2972 = vadd.f32 0.0, %v2971
      %v2973 = vpop.f32.mrf.mxu0
      %v2974 = vpop.f32.mrf.mxu0
      %v2975 = vadd.f32 0.0, %v2974
      %v2976 = vpop.f32.mrf.mxu0
      %2977 = vmatprep.mubr.bf16.mxu0 0
      %2978 = vmatmul.mubr.bf16.gmra.mxu0 %v1548
      %v2979 = vpop.f32.mrf.mxu0
      %v2980 = vadd.f32 0.0, %v2979
      %v2981 = vpop.f32.mrf.mxu0
      %v2982 = vpop.f32.mrf.mxu0
      %v2983 = vadd.f32 0.0, %v2982
      %v2984 = vpop.f32.mrf.mxu0
      %2985 = vmatprep.mubr.bf16.mxu0 0
      %2986 = vmatmul.mubr.bf16.gmra.mxu0 %v1549
      %v2987 = vpop.f32.mrf.mxu0
      %v2988 = vadd.f32 0.0, %v2987
      %v2989 = vpop.f32.mrf.mxu0
      %v2990 = vpop.f32.mrf.mxu0
      %v2991 = vadd.f32 0.0, %v2990
      %v2992 = vpop.f32.mrf.mxu0
      %2993 = vmatprep.mubr.bf16.mxu0 0
      %2994 = vmatmul.mubr.bf16.gmra.mxu0 %v1550
      %v2995 = vpop.f32.mrf.mxu0
      %v2996 = vadd.f32 0.0, %v2995
      %v2997 = vpop.f32.mrf.mxu0
      %v2998 = vpop.f32.mrf.mxu0
      %v2999 = vadd.f32 0.0, %v2998
      %v3000 = vpop.f32.mrf.mxu0
      %3001 = vmatprep.mubr.bf16.mxu0 0
      %3002 = vmatmul.mubr.bf16.gmra.mxu0 %v1551
      %v3003 = vpop.f32.mrf.mxu0
      %v3004 = vadd.f32 0.0, %v3003
      %v3005 = vpop.f32.mrf.mxu0
      %v3006 = vpop.f32.mrf.mxu0
      %v3007 = vadd.f32 0.0, %v3006
      %v3008 = vpop.f32.mrf.mxu0
      %3009 = vmatprep.mubr.bf16.mxu0 0
      %3010 = vmatmul.mubr.bf16.gmra.mxu0 %v1552
      %v3011 = vpop.f32.mrf.mxu0
      %v3012 = vadd.f32 0.0, %v3011
      %v3013 = vpop.f32.mrf.mxu0
      %v3014 = vpop.f32.mrf.mxu0
      %v3015 = vadd.f32 0.0, %v3014
      %v3016 = vpop.f32.mrf.mxu0
      %3017 = vmatprep.mubr.bf16.mxu0 0
      %3018 = vmatmul.mubr.bf16.gmra.mxu0 %v1553
      %v3019 = vpop.f32.mrf.mxu0
      %v3020 = vadd.f32 0.0, %v3019
      %v3021 = vpop.f32.mrf.mxu0
      %v3022 = vpop.f32.mrf.mxu0
      %v3023 = vadd.f32 0.0, %v3022
      %v3024 = vpop.f32.mrf.mxu0
      %3025 = vmatprep.mubr.bf16.mxu0 0
      %3026 = vmatmul.mubr.bf16.gmra.mxu0 %v1554
      %v3027 = vpop.f32.mrf.mxu0
      %v3028 = vadd.f32 0.0, %v3027
      %v3029 = vpop.f32.mrf.mxu0
      %v3030 = vpop.f32.mrf.mxu0
      %v3031 = vadd.f32 0.0, %v3030
      %v3032 = vpop.f32.mrf.mxu0
      %3033 = vmatprep.mubr.bf16.mxu0 0
      %3034 = vmatmul.mubr.bf16.gmra.mxu0 %v1555
      %v3035 = vpop.f32.mrf.mxu0
      %v3036 = vadd.f32 0.0, %v3035
      %v3037 = vpop.f32.mrf.mxu0
      %v3038 = vpop.f32.mrf.mxu0
      %v3039 = vadd.f32 0.0, %v3038
      %v3040 = vpop.f32.mrf.mxu0
      %3041 = vmatprep.mubr.bf16.mxu0 0
      %3042 = vmatmul.mubr.bf16.gmra.mxu0 %v1556
      %v3043 = vpop.f32.mrf.mxu0
      %v3044 = vadd.f32 0.0, %v3043
      %v3045 = vpop.f32.mrf.mxu0
      %v3046 = vpop.f32.mrf.mxu0
      %v3047 = vadd.f32 0.0, %v3046
      %v3048 = vpop.f32.mrf.mxu0
      %3049 = vmatprep.mubr.bf16.mxu0 0
      %3050 = vmatmul.mubr.bf16.gmra.mxu0 %v2847
      %v3051 = vpop.f32.mrf.mxu0
      %v3052 = vadd.f32 0.0, %v3051
      %v3053 = vpop.f32.mrf.mxu0
      %v3054 = vpop.f32.mrf.mxu0
      %v3055 = vadd.f32 0.0, %v3054
      %v3056 = vpop.f32.mrf.mxu0
      %3057 = vdwg.mxu0
      %v3058 = vadd.f32 %v2772, %v2932
      %v3059 = vadd.f32 %v2773, %v2935
      %v3060 = vadd.f32 %v2774, %v2940
      %v3061 = vadd.f32 %v2775, %v2943
      %v3062 = vadd.f32 %v2776, %v2948
      %v3063 = vadd.f32 %v2777, %v2951
      %v3064 = vadd.f32 %v2778, %v2956
      %v3065 = vadd.f32 %v2779, %v2959
      %v3066 = vadd.f32 %v2780, %v2964
      %v3067 = vadd.f32 %v2781, %v2967
      %v3068 = vadd.f32 %v2782, %v2972
      %v3069 = vadd.f32 %v2783, %v2975
      %v3070 = vadd.f32 %v2784, %v2980
      %v3071 = vadd.f32 %v2785, %v2983
      %v3072 = vadd.f32 %v2786, %v2988
      %v3073 = vadd.f32 %v2787, %v2991
      %v3074 = vadd.f32 %v2788, %v2996
      %v3075 = vadd.f32 %v2789, %v2999
      %v3076 = vadd.f32 %v2790, %v3004
      %v3077 = vadd.f32 %v2791, %v3007
      %v3078 = vadd.f32 %v2792, %v3012
      %v3079 = vadd.f32 %v2793, %v3015
      %v3080 = vadd.f32 %v2794, %v3020
      %v3081 = vadd.f32 %v2795, %v3023
      %v3082 = vadd.f32 %v2796, %v3028
      %v3083 = vadd.f32 %v2797, %v3031
      %v3084 = vadd.f32 %v2798, %v3036
      %v3085 = vadd.f32 %v2799, %v3039
      %v3086 = vadd.f32 %v2800, %v3044
      %v3087 = vadd.f32 %v2801, %v3047
      %v3088 = vadd.f32 %v2802, %v3052
      %v3089 = vadd.f32 %v2803, %v3055
      %v3091 = vrot.slane %v1083, 5
      %v3092 = vrot.slane %v3091, 4
      %v3093 = vrot.slane %v1084, 5
      %v3094 = vsel %vm2105, %v3092, %v3093
      %v3095 = vrot.slane %v3093, 4
      %v3096 = vrot.slane %v1085, 5
      %v3097 = vsel %vm2105, %v3095, %v3096
      %s3098 = scalar_lea.vmem %s1, 320
      %v3099 = vld [vmem:[%s3098] sm:$0xf]
      %v3100 = vld [vmem:[%s3098 + $0x4] sm:$0xf]
      %v3101 = vld [vmem:[%s3098 + $0x8] sm:$0xf]
      %v3102 = vld [vmem:[%s3098 + $0xc] sm:$0xf]
      %v3103 = vld [vmem:[%s3098 + $0x10] sm:$0xf]
      %v3104 = vld [vmem:[%s3098 + $0x14] sm:$0xf]
      %v3105 = vld [vmem:[%s3098 + $0x18] sm:$0xf]
      %v3106 = vld [vmem:[%s3098 + $0x1c] sm:$0xf]
      %v3107 = vld [vmem:[%s3098 + $0x20] sm:$0xf]
      %v3108 = vld [vmem:[%s3098 + $0x24] sm:$0xf]
      %v3109 = vld [vmem:[%s3098 + $0x28] sm:$0xf]
      %v3110 = vld [vmem:[%s3098 + $0x2c] sm:$0xf]
      %v3111 = vld [vmem:[%s3098 + $0x30] sm:$0xf]
      %v3112 = vld [vmem:[%s3098 + $0x34] sm:$0xf]
      %v3113 = vld [vmem:[%s3098 + $0x38] sm:$0xf]
      %v3114 = vld [vmem:[%s3098 + $0x3c] sm:$0xf]
      %v3115 = vunpack.c.l.b16 %v3094
      %v3116 = vunpack.c.l.b16 %v3097
      %v3117 = vpack.c.b16 %v3116, %v3115
      %v3135 = vunpack.c.l.b16 %v3099
      %v3136 = vunpack.c.l.b16 %v3100
      %v3137 = vunpack.c.l.b16 %v3101
      %v3138 = vunpack.c.l.b16 %v3102
      %v3139 = vunpack.c.l.b16 %v3103
      %v3140 = vunpack.c.l.b16 %v3104
      %v3141 = vunpack.c.l.b16 %v3105
      %v3142 = vunpack.c.l.b16 %v3106
      %v3143 = vunpack.c.l.b16 %v3107
      %v3144 = vunpack.c.l.b16 %v3108
      %v3145 = vunpack.c.l.b16 %v3109
      %v3146 = vunpack.c.l.b16 %v3110
      %v3147 = vunpack.c.l.b16 %v3111
      %v3148 = vunpack.c.l.b16 %v3112
      %v3149 = vunpack.c.l.b16 %v3113
      %v3150 = vunpack.c.l.b16 %v3114
      %v3151 = vpack.c.b16 %v3136, %v3135
      %v3152 = vpack.c.b16 %v3138, %v3137
      %v3153 = vpack.c.b16 %v3140, %v3139
      %v3154 = vpack.c.b16 %v3142, %v3141
      %v3155 = vpack.c.b16 %v3144, %v3143
      %v3156 = vpack.c.b16 %v3146, %v3145
      %v3157 = vpack.c.b16 %v3148, %v3147
      %v3158 = vpack.c.b16 %v3150, %v3149
      %3167 = vmatprep.subr.bf16.mxu0 0
      %3168 = vmatpush1.bf16.msra.mxu0 %v3158
      %3169 = vmatprep.subr.bf16.mxu0 0
      %3170 = vmatpush1.bf16.msra.mxu0 %v3157
      %3171 = vmatprep.subr.bf16.mxu0 0
      %3172 = vmatpush1.bf16.msra.mxu0 %v3156
      %3173 = vmatprep.subr.bf16.mxu0 0
      %3174 = vmatpush1.bf16.msra.mxu0 %v3155
      %3175 = vmatprep.subr.bf16.mxu0 0
      %3176 = vmatpush1.bf16.msra.mxu0 %v3154
      %3177 = vmatprep.subr.bf16.mxu0 0
      %3178 = vmatpush1.bf16.msra.mxu0 %v3153
      %3179 = vmatprep.subr.bf16.mxu0 0
      %3180 = vmatpush1.bf16.msra.mxu0 %v3152
      %3181 = vmatprep.subr.bf16.mxu0 0
      %3182 = vmatpush1.bf16.msra.mxu0 %v3151
      %3183 = vmatprep.subr.bf16.mxu0 0
      %3184 = vmatpush2.bf16.msra.mxu0 0
      %3185 = vmatprep.subr.bf16.mxu0 0
      %3186 = vmatpush2.bf16.msra.mxu0 0
      %3187 = vmatprep.subr.bf16.mxu0 0
      %3188 = vmatpush2.bf16.msra.mxu0 0
      %3189 = vmatprep.subr.bf16.mxu0 0
      %3190 = vmatpush2.bf16.msra.mxu0 0
      %3191 = vmatprep.subr.bf16.mxu0 0
      %3192 = vmatpush2.bf16.msra.mxu0 0
      %3193 = vmatprep.subr.bf16.mxu0 0
      %3194 = vmatpush2.bf16.msra.mxu0 0
      %3195 = vmatprep.subr.bf16.mxu0 0
      %3196 = vmatpush2.bf16.msra.mxu0 0
      %3197 = vmatprep.subr.bf16.mxu0 0
      %3198 = vmatpush2.bf16.msra.mxu0 0
      %3199 = vmatprep.mubr.bf16.mxu0 0
      %3200 = vmatmul.mubr.bf16.gmra.mxu0 %v2268
      %v3201 = vpop.f32.mrf.mxu0
      %v3202 = vadd.f32 0.0, %v3201
      %v3203 = vpop.f32.mrf.mxu0
      %v3204 = vpop.f32.mrf.mxu0
      %v3205 = vadd.f32 0.0, %v3204
      %v3206 = vpop.f32.mrf.mxu0
      %3207 = vmatprep.mubr.bf16.mxu0 0
      %3208 = vmatmul.mubr.bf16.gmra.mxu0 %v2269
      %v3209 = vpop.f32.mrf.mxu0
      %v3210 = vadd.f32 0.0, %v3209
      %v3211 = vpop.f32.mrf.mxu0
      %v3212 = vpop.f32.mrf.mxu0
      %v3213 = vadd.f32 0.0, %v3212
      %v3214 = vpop.f32.mrf.mxu0
      %3215 = vmatprep.mubr.bf16.mxu0 0
      %3216 = vmatmul.mubr.bf16.gmra.mxu0 %v2270
      %v3217 = vpop.f32.mrf.mxu0
      %v3218 = vadd.f32 0.0, %v3217
      %v3219 = vpop.f32.mrf.mxu0
      %v3220 = vpop.f32.mrf.mxu0
      %v3221 = vadd.f32 0.0, %v3220
      %v3222 = vpop.f32.mrf.mxu0
      %3223 = vmatprep.mubr.bf16.mxu0 0
      %3224 = vmatmul.mubr.bf16.gmra.mxu0 %v2271
      %v3225 = vpop.f32.mrf.mxu0
      %v3226 = vadd.f32 0.0, %v3225
      %v3227 = vpop.f32.mrf.mxu0
      %v3228 = vpop.f32.mrf.mxu0
      %v3229 = vadd.f32 0.0, %v3228
      %v3230 = vpop.f32.mrf.mxu0
      %3231 = vmatprep.mubr.bf16.mxu0 0
      %3232 = vmatmul.mubr.bf16.gmra.mxu0 %v2272
      %v3233 = vpop.f32.mrf.mxu0
      %v3234 = vadd.f32 0.0, %v3233
      %v3235 = vpop.f32.mrf.mxu0
      %v3236 = vpop.f32.mrf.mxu0
      %v3237 = vadd.f32 0.0, %v3236
      %v3238 = vpop.f32.mrf.mxu0
      %3239 = vmatprep.mubr.bf16.mxu0 0
      %3240 = vmatmul.mubr.bf16.gmra.mxu0 %v2273
      %v3241 = vpop.f32.mrf.mxu0
      %v3242 = vadd.f32 0.0, %v3241
      %v3243 = vpop.f32.mrf.mxu0
      %v3244 = vpop.f32.mrf.mxu0
      %v3245 = vadd.f32 0.0, %v3244
      %v3246 = vpop.f32.mrf.mxu0
      %3247 = vmatprep.mubr.bf16.mxu0 0
      %3248 = vmatmul.mubr.bf16.gmra.mxu0 %v2274
      %v3249 = vpop.f32.mrf.mxu0
      %v3250 = vadd.f32 0.0, %v3249
      %v3251 = vpop.f32.mrf.mxu0
      %v3252 = vpop.f32.mrf.mxu0
      %v3253 = vadd.f32 0.0, %v3252
      %v3254 = vpop.f32.mrf.mxu0
      %3255 = vmatprep.mubr.bf16.mxu0 0
      %3256 = vmatmul.mubr.bf16.gmra.mxu0 %v2275
      %v3257 = vpop.f32.mrf.mxu0
      %v3258 = vadd.f32 0.0, %v3257
      %v3259 = vpop.f32.mrf.mxu0
      %v3260 = vpop.f32.mrf.mxu0
      %v3261 = vadd.f32 0.0, %v3260
      %v3262 = vpop.f32.mrf.mxu0
      %3263 = vmatprep.mubr.bf16.mxu0 0
      %3264 = vmatmul.mubr.bf16.gmra.mxu0 %v2276
      %v3265 = vpop.f32.mrf.mxu0
      %v3266 = vadd.f32 0.0, %v3265
      %v3267 = vpop.f32.mrf.mxu0
      %v3268 = vpop.f32.mrf.mxu0
      %v3269 = vadd.f32 0.0, %v3268
      %v3270 = vpop.f32.mrf.mxu0
      %3271 = vmatprep.mubr.bf16.mxu0 0
      %3272 = vmatmul.mubr.bf16.gmra.mxu0 %v2277
      %v3273 = vpop.f32.mrf.mxu0
      %v3274 = vadd.f32 0.0, %v3273
      %v3275 = vpop.f32.mrf.mxu0
      %v3276 = vpop.f32.mrf.mxu0
      %v3277 = vadd.f32 0.0, %v3276
      %v3278 = vpop.f32.mrf.mxu0
      %3279 = vmatprep.mubr.bf16.mxu0 0
      %3280 = vmatmul.mubr.bf16.gmra.mxu0 %v2278
      %v3281 = vpop.f32.mrf.mxu0
      %v3282 = vadd.f32 0.0, %v3281
      %v3283 = vpop.f32.mrf.mxu0
      %v3284 = vpop.f32.mrf.mxu0
      %v3285 = vadd.f32 0.0, %v3284
      %v3286 = vpop.f32.mrf.mxu0
      %3287 = vmatprep.mubr.bf16.mxu0 0
      %3288 = vmatmul.mubr.bf16.gmra.mxu0 %v2279
      %v3289 = vpop.f32.mrf.mxu0
      %v3290 = vadd.f32 0.0, %v3289
      %v3291 = vpop.f32.mrf.mxu0
      %v3292 = vpop.f32.mrf.mxu0
      %v3293 = vadd.f32 0.0, %v3292
      %v3294 = vpop.f32.mrf.mxu0
      %3295 = vmatprep.mubr.bf16.mxu0 0
      %3296 = vmatmul.mubr.bf16.gmra.mxu0 %v2280
      %v3297 = vpop.f32.mrf.mxu0
      %v3298 = vadd.f32 0.0, %v3297
      %v3299 = vpop.f32.mrf.mxu0
      %v3300 = vpop.f32.mrf.mxu0
      %v3301 = vadd.f32 0.0, %v3300
      %v3302 = vpop.f32.mrf.mxu0
      %3303 = vmatprep.mubr.bf16.mxu0 0
      %3304 = vmatmul.mubr.bf16.gmra.mxu0 %v2281
      %v3305 = vpop.f32.mrf.mxu0
      %v3306 = vadd.f32 0.0, %v3305
      %v3307 = vpop.f32.mrf.mxu0
      %v3308 = vpop.f32.mrf.mxu0
      %v3309 = vadd.f32 0.0, %v3308
      %v3310 = vpop.f32.mrf.mxu0
      %3311 = vmatprep.mubr.bf16.mxu0 0
      %3312 = vmatmul.mubr.bf16.gmra.mxu0 %v2282
      %v3313 = vpop.f32.mrf.mxu0
      %v3314 = vadd.f32 0.0, %v3313
      %v3315 = vpop.f32.mrf.mxu0
      %v3316 = vpop.f32.mrf.mxu0
      %v3317 = vadd.f32 0.0, %v3316
      %v3318 = vpop.f32.mrf.mxu0
      %3319 = vmatprep.mubr.bf16.mxu0 0
      %3320 = vmatmul.mubr.bf16.gmra.mxu0 %v3117
      %v3321 = vpop.f32.mrf.mxu0
      %v3322 = vadd.f32 0.0, %v3321
      %v3323 = vpop.f32.mrf.mxu0
      %v3324 = vpop.f32.mrf.mxu0
      %v3325 = vadd.f32 0.0, %v3324
      %v3326 = vpop.f32.mrf.mxu0
      %3327 = vdwg.mxu0
      %v3328 = vadd.f32 %v3058, %v3202
      %v3329 = vadd.f32 %v3059, %v3205
      %v3330 = vadd.f32 %v3060, %v3210
      %v3331 = vadd.f32 %v3061, %v3213
      %v3332 = vadd.f32 %v3062, %v3218
      %v3333 = vadd.f32 %v3063, %v3221
      %v3334 = vadd.f32 %v3064, %v3226
      %v3335 = vadd.f32 %v3065, %v3229
      %v3336 = vadd.f32 %v3066, %v3234
      %v3337 = vadd.f32 %v3067, %v3237
      %v3338 = vadd.f32 %v3068, %v3242
      %v3339 = vadd.f32 %v3069, %v3245
      %v3340 = vadd.f32 %v3070, %v3250
      %v3341 = vadd.f32 %v3071, %v3253
      %v3342 = vadd.f32 %v3072, %v3258
      %v3343 = vadd.f32 %v3073, %v3261
      %v3344 = vadd.f32 %v3074, %v3266
      %v3345 = vadd.f32 %v3075, %v3269
      %v3346 = vadd.f32 %v3076, %v3274
      %v3347 = vadd.f32 %v3077, %v3277
      %v3348 = vadd.f32 %v3078, %v3282
      %v3349 = vadd.f32 %v3079, %v3285
      %v3350 = vadd.f32 %v3080, %v3290
      %v3351 = vadd.f32 %v3081, %v3293
      %v3352 = vadd.f32 %v3082, %v3298
      %v3353 = vadd.f32 %v3083, %v3301
      %v3354 = vadd.f32 %v3084, %v3306
      %v3355 = vadd.f32 %v3085, %v3309
      %v3356 = vadd.f32 %v3086, %v3314
      %v3357 = vadd.f32 %v3087, %v3317
      %v3358 = vadd.f32 %v3088, %v3322
      %v3359 = vadd.f32 %v3089, %v3325
      %s3360 = scalar_lea.vmem %s1, 384
      %v3361 = vld [vmem:[%s3360] sm:$0xf]
      %v3362 = vld [vmem:[%s3360 + $0x4] sm:$0xf]
      %v3363 = vld [vmem:[%s3360 + $0x8] sm:$0xf]
      %v3364 = vld [vmem:[%s3360 + $0xc] sm:$0xf]
      %v3365 = vld [vmem:[%s3360 + $0x10] sm:$0xf]
      %v3366 = vld [vmem:[%s3360 + $0x14] sm:$0xf]
      %v3367 = vld [vmem:[%s3360 + $0x18] sm:$0xf]
      %v3368 = vld [vmem:[%s3360 + $0x1c] sm:$0xf]
      %v3369 = vld [vmem:[%s3360 + $0x20] sm:$0xf]
      %v3370 = vld [vmem:[%s3360 + $0x24] sm:$0xf]
      %v3371 = vld [vmem:[%s3360 + $0x28] sm:$0xf]
      %v3372 = vld [vmem:[%s3360 + $0x2c] sm:$0xf]
      %v3373 = vld [vmem:[%s3360 + $0x30] sm:$0xf]
      %v3374 = vld [vmem:[%s3360 + $0x34] sm:$0xf]
      %v3375 = vld [vmem:[%s3360 + $0x38] sm:$0xf]
      %v3376 = vld [vmem:[%s3360 + $0x3c] sm:$0xf]
      %v3379 = vunpack.c.l.b16 %v1086
      %v3380 = vunpack.c.l.b16 %v1087
      %v3381 = vpack.c.b16 %v3380, %v3379
      %v3399 = vunpack.c.l.b16 %v3361
      %v3400 = vunpack.c.l.b16 %v3362
      %v3401 = vunpack.c.l.b16 %v3363
      %v3402 = vunpack.c.l.b16 %v3364
      %v3403 = vunpack.c.l.b16 %v3365
      %v3404 = vunpack.c.l.b16 %v3366
      %v3405 = vunpack.c.l.b16 %v3367
      %v3406 = vunpack.c.l.b16 %v3368
      %v3407 = vunpack.c.l.b16 %v3369
      %v3408 = vunpack.c.l.b16 %v3370
      %v3409 = vunpack.c.l.b16 %v3371
      %v3410 = vunpack.c.l.b16 %v3372
      %v3411 = vunpack.c.l.b16 %v3373
      %v3412 = vunpack.c.l.b16 %v3374
      %v3413 = vunpack.c.l.b16 %v3375
      %v3414 = vunpack.c.l.b16 %v3376
      %v3415 = vpack.c.b16 %v3400, %v3399
      %v3416 = vpack.c.b16 %v3402, %v3401
      %v3417 = vpack.c.b16 %v3404, %v3403
      %v3418 = vpack.c.b16 %v3406, %v3405
      %v3419 = vpack.c.b16 %v3408, %v3407
      %v3420 = vpack.c.b16 %v3410, %v3409
      %v3421 = vpack.c.b16 %v3412, %v3411
      %v3422 = vpack.c.b16 %v3414, %v3413
      %3431 = vmatprep.subr.bf16.mxu0 0
      %3432 = vmatpush1.bf16.msra.mxu0 %v3422
      %3433 = vmatprep.subr.bf16.mxu0 0
      %3434 = vmatpush1.bf16.msra.mxu0 %v3421
      %3435 = vmatprep.subr.bf16.mxu0 0
      %3436 = vmatpush1.bf16.msra.mxu0 %v3420
      %3437 = vmatprep.subr.bf16.mxu0 0
      %3438 = vmatpush1.bf16.msra.mxu0 %v3419
      %3439 = vmatprep.subr.bf16.mxu0 0
      %3440 = vmatpush1.bf16.msra.mxu0 %v3418
      %3441 = vmatprep.subr.bf16.mxu0 0
      %3442 = vmatpush1.bf16.msra.mxu0 %v3417
      %3443 = vmatprep.subr.bf16.mxu0 0
      %3444 = vmatpush1.bf16.msra.mxu0 %v3416
      %3445 = vmatprep.subr.bf16.mxu0 0
      %3446 = vmatpush1.bf16.msra.mxu0 %v3415
      %3447 = vmatprep.subr.bf16.mxu0 0
      %3448 = vmatpush2.bf16.msra.mxu0 0
      %3449 = vmatprep.subr.bf16.mxu0 0
      %3450 = vmatpush2.bf16.msra.mxu0 0
      %3451 = vmatprep.subr.bf16.mxu0 0
      %3452 = vmatpush2.bf16.msra.mxu0 0
      %3453 = vmatprep.subr.bf16.mxu0 0
      %3454 = vmatpush2.bf16.msra.mxu0 0
      %3455 = vmatprep.subr.bf16.mxu0 0
      %3456 = vmatpush2.bf16.msra.mxu0 0
      %3457 = vmatprep.subr.bf16.mxu0 0
      %3458 = vmatpush2.bf16.msra.mxu0 0
      %3459 = vmatprep.subr.bf16.mxu0 0
      %3460 = vmatpush2.bf16.msra.mxu0 0
      %3461 = vmatprep.subr.bf16.mxu0 0
      %3462 = vmatpush2.bf16.msra.mxu0 0
      %3463 = vmatprep.mubr.bf16.mxu0 0
      %3464 = vmatmul.mubr.bf16.gmra.mxu0 %v1848
      %v3465 = vpop.f32.mrf.mxu0
      %v3466 = vadd.f32 0.0, %v3465
      %v3467 = vpop.f32.mrf.mxu0
      %v3468 = vpop.f32.mrf.mxu0
      %v3469 = vadd.f32 0.0, %v3468
      %v3470 = vpop.f32.mrf.mxu0
      %3471 = vmatprep.mubr.bf16.mxu0 0
      %3472 = vmatmul.mubr.bf16.gmra.mxu0 %v1849
      %v3473 = vpop.f32.mrf.mxu0
      %v3474 = vadd.f32 0.0, %v3473
      %v3475 = vpop.f32.mrf.mxu0
      %v3476 = vpop.f32.mrf.mxu0
      %v3477 = vadd.f32 0.0, %v3476
      %v3478 = vpop.f32.mrf.mxu0
      %3479 = vmatprep.mubr.bf16.mxu0 0
      %3480 = vmatmul.mubr.bf16.gmra.mxu0 %v1850
      %v3481 = vpop.f32.mrf.mxu0
      %v3482 = vadd.f32 0.0, %v3481
      %v3483 = vpop.f32.mrf.mxu0
      %v3484 = vpop.f32.mrf.mxu0
      %v3485 = vadd.f32 0.0, %v3484
      %v3486 = vpop.f32.mrf.mxu0
      %3487 = vmatprep.mubr.bf16.mxu0 0
      %3488 = vmatmul.mubr.bf16.gmra.mxu0 %v1851
      %v3489 = vpop.f32.mrf.mxu0
      %v3490 = vadd.f32 0.0, %v3489
      %v3491 = vpop.f32.mrf.mxu0
      %v3492 = vpop.f32.mrf.mxu0
      %v3493 = vadd.f32 0.0, %v3492
      %v3494 = vpop.f32.mrf.mxu0
      %3495 = vmatprep.mubr.bf16.mxu0 0
      %3496 = vmatmul.mubr.bf16.gmra.mxu0 %v1852
      %v3497 = vpop.f32.mrf.mxu0
      %v3498 = vadd.f32 0.0, %v3497
      %v3499 = vpop.f32.mrf.mxu0
      %v3500 = vpop.f32.mrf.mxu0
      %v3501 = vadd.f32 0.0, %v3500
      %v3502 = vpop.f32.mrf.mxu0
      %3503 = vmatprep.mubr.bf16.mxu0 0
      %3504 = vmatmul.mubr.bf16.gmra.mxu0 %v1853
      %v3505 = vpop.f32.mrf.mxu0
      %v3506 = vadd.f32 0.0, %v3505
      %v3507 = vpop.f32.mrf.mxu0
      %v3508 = vpop.f32.mrf.mxu0
      %v3509 = vadd.f32 0.0, %v3508
      %v3510 = vpop.f32.mrf.mxu0
      %3511 = vmatprep.mubr.bf16.mxu0 0
      %3512 = vmatmul.mubr.bf16.gmra.mxu0 %v1854
      %v3513 = vpop.f32.mrf.mxu0
      %v3514 = vadd.f32 0.0, %v3513
      %v3515 = vpop.f32.mrf.mxu0
      %v3516 = vpop.f32.mrf.mxu0
      %v3517 = vadd.f32 0.0, %v3516
      %v3518 = vpop.f32.mrf.mxu0
      %3519 = vmatprep.mubr.bf16.mxu0 0
      %3520 = vmatmul.mubr.bf16.gmra.mxu0 %v1855
      %v3521 = vpop.f32.mrf.mxu0
      %v3522 = vadd.f32 0.0, %v3521
      %v3523 = vpop.f32.mrf.mxu0
      %v3524 = vpop.f32.mrf.mxu0
      %v3525 = vadd.f32 0.0, %v3524
      %v3526 = vpop.f32.mrf.mxu0
      %3527 = vmatprep.mubr.bf16.mxu0 0
      %3528 = vmatmul.mubr.bf16.gmra.mxu0 %v1856
      %v3529 = vpop.f32.mrf.mxu0
      %v3530 = vadd.f32 0.0, %v3529
      %v3531 = vpop.f32.mrf.mxu0
      %v3532 = vpop.f32.mrf.mxu0
      %v3533 = vadd.f32 0.0, %v3532
      %v3534 = vpop.f32.mrf.mxu0
      %3535 = vmatprep.mubr.bf16.mxu0 0
      %3536 = vmatmul.mubr.bf16.gmra.mxu0 %v1857
      %v3537 = vpop.f32.mrf.mxu0
      %v3538 = vadd.f32 0.0, %v3537
      %v3539 = vpop.f32.mrf.mxu0
      %v3540 = vpop.f32.mrf.mxu0
      %v3541 = vadd.f32 0.0, %v3540
      %v3542 = vpop.f32.mrf.mxu0
      %3543 = vmatprep.mubr.bf16.mxu0 0
      %3544 = vmatmul.mubr.bf16.gmra.mxu0 %v1858
      %v3545 = vpop.f32.mrf.mxu0
      %v3546 = vadd.f32 0.0, %v3545
      %v3547 = vpop.f32.mrf.mxu0
      %v3548 = vpop.f32.mrf.mxu0
      %v3549 = vadd.f32 0.0, %v3548
      %v3550 = vpop.f32.mrf.mxu0
      %3551 = vmatprep.mubr.bf16.mxu0 0
      %3552 = vmatmul.mubr.bf16.gmra.mxu0 %v1859
      %v3553 = vpop.f32.mrf.mxu0
      %v3554 = vadd.f32 0.0, %v3553
      %v3555 = vpop.f32.mrf.mxu0
      %v3556 = vpop.f32.mrf.mxu0
      %v3557 = vadd.f32 0.0, %v3556
      %v3558 = vpop.f32.mrf.mxu0
      %3559 = vmatprep.mubr.bf16.mxu0 0
      %3560 = vmatmul.mubr.bf16.gmra.mxu0 %v1860
      %v3561 = vpop.f32.mrf.mxu0
      %v3562 = vadd.f32 0.0, %v3561
      %v3563 = vpop.f32.mrf.mxu0
      %v3564 = vpop.f32.mrf.mxu0
      %v3565 = vadd.f32 0.0, %v3564
      %v3566 = vpop.f32.mrf.mxu0
      %3567 = vmatprep.mubr.bf16.mxu0 0
      %3568 = vmatmul.mubr.bf16.gmra.mxu0 %v1861
      %v3569 = vpop.f32.mrf.mxu0
      %v3570 = vadd.f32 0.0, %v3569
      %v3571 = vpop.f32.mrf.mxu0
      %v3572 = vpop.f32.mrf.mxu0
      %v3573 = vadd.f32 0.0, %v3572
      %v3574 = vpop.f32.mrf.mxu0
      %3575 = vmatprep.mubr.bf16.mxu0 0
      %3576 = vmatmul.mubr.bf16.gmra.mxu0 %v2561
      %v3577 = vpop.f32.mrf.mxu0
      %v3578 = vadd.f32 0.0, %v3577
      %v3579 = vpop.f32.mrf.mxu0
      %v3580 = vpop.f32.mrf.mxu0
      %v3581 = vadd.f32 0.0, %v3580
      %v3582 = vpop.f32.mrf.mxu0
      %3583 = vmatprep.mubr.bf16.mxu0 0
      %3584 = vmatmul.mubr.bf16.gmra.mxu0 %v3381
      %v3585 = vpop.f32.mrf.mxu0
      %v3586 = vadd.f32 0.0, %v3585
      %v3587 = vpop.f32.mrf.mxu0
      %v3588 = vpop.f32.mrf.mxu0
      %v3589 = vadd.f32 0.0, %v3588
      %v3590 = vpop.f32.mrf.mxu0
      %3591 = vdwg.mxu0
      %v3592 = vadd.f32 %v3328, %v3466
      %v3593 = vadd.f32 %v3329, %v3469
      %v3594 = vadd.f32 %v3330, %v3474
      %v3595 = vadd.f32 %v3331, %v3477
      %v3596 = vadd.f32 %v3332, %v3482
      %v3597 = vadd.f32 %v3333, %v3485
      %v3598 = vadd.f32 %v3334, %v3490
      %v3599 = vadd.f32 %v3335, %v3493
      %v3600 = vadd.f32 %v3336, %v3498
      %v3601 = vadd.f32 %v3337, %v3501
      %v3602 = vadd.f32 %v3338, %v3506
      %v3603 = vadd.f32 %v3339, %v3509
      %v3604 = vadd.f32 %v3340, %v3514
      %v3605 = vadd.f32 %v3341, %v3517
      %v3606 = vadd.f32 %v3342, %v3522
      %v3607 = vadd.f32 %v3343, %v3525
      %v3608 = vadd.f32 %v3344, %v3530
      %v3609 = vadd.f32 %v3345, %v3533
      %v3610 = vadd.f32 %v3346, %v3538
      %v3611 = vadd.f32 %v3347, %v3541
      %v3612 = vadd.f32 %v3348, %v3546
      %v3613 = vadd.f32 %v3349, %v3549
      %v3614 = vadd.f32 %v3350, %v3554
      %v3615 = vadd.f32 %v3351, %v3557
      %v3616 = vadd.f32 %v3352, %v3562
      %v3617 = vadd.f32 %v3353, %v3565
      %v3618 = vadd.f32 %v3354, %v3570
      %v3619 = vadd.f32 %v3355, %v3573
      %v3620 = vadd.f32 %v3356, %v3578
      %v3621 = vadd.f32 %v3357, %v3581
      %v3622 = vadd.f32 %v3358, %v3586
      %v3623 = vadd.f32 %v3359, %v3589
      %v3625 = vshrl.u32 %v1086, 16
      %v3627 = vrot.slane %v3625, 4
      %v3628 = vshll.u32 %v1086, 16
      %v3630 = vrot.slane %v3628, 5
      %v3631 = vor.u32 %v3627, %v3630
      %v3632 = vrot.slane %v3631, 4
      %v3634 = vshll.u32 %v1087, 16
      %v3636 = vrot.slane %v3634, 5
      %v3637 = vsel %vm1107, %v3632, %v3636
      %v3638 = vshrl.u32 %v1087, 16
      %v3640 = vrot.slane %v3638, 4
      %v3641 = vor.u32 %v3640, %v3636
      %v3642 = vrot.slane %v3641, 4
      %v3644 = vshll.u32 %v1088, 16
      %v3646 = vrot.slane %v3644, 5
      %v3647 = vsel %vm1107, %v3642, %v3646
      %s3648 = scalar_lea.vmem %s1, 448
      %v3649 = vld [vmem:[%s3648] sm:$0xf]
      %v3650 = vld [vmem:[%s3648 + $0x4] sm:$0xf]
      %v3651 = vld [vmem:[%s3648 + $0x8] sm:$0xf]
      %v3652 = vld [vmem:[%s3648 + $0xc] sm:$0xf]
      %v3653 = vld [vmem:[%s3648 + $0x10] sm:$0xf]
      %v3654 = vld [vmem:[%s3648 + $0x14] sm:$0xf]
      %v3655 = vld [vmem:[%s3648 + $0x18] sm:$0xf]
      %v3656 = vld [vmem:[%s3648 + $0x1c] sm:$0xf]
      %v3657 = vld [vmem:[%s3648 + $0x20] sm:$0xf]
      %v3658 = vld [vmem:[%s3648 + $0x24] sm:$0xf]
      %v3659 = vld [vmem:[%s3648 + $0x28] sm:$0xf]
      %v3660 = vld [vmem:[%s3648 + $0x2c] sm:$0xf]
      %v3661 = vld [vmem:[%s3648 + $0x30] sm:$0xf]
      %v3662 = vld [vmem:[%s3648 + $0x34] sm:$0xf]
      %v3663 = vld [vmem:[%s3648 + $0x38] sm:$0xf]
      %v3664 = vld [vmem:[%s3648 + $0x3c] sm:$0xf]
      %v3665 = vunpack.c.l.b16 %v3637
      %v3666 = vunpack.c.l.b16 %v3647
      %v3667 = vpack.c.b16 %v3666, %v3665
      %v3685 = vunpack.c.l.b16 %v3649
      %v3686 = vunpack.c.l.b16 %v3650
      %v3687 = vunpack.c.l.b16 %v3651
      %v3688 = vunpack.c.l.b16 %v3652
      %v3689 = vunpack.c.l.b16 %v3653
      %v3690 = vunpack.c.l.b16 %v3654
      %v3691 = vunpack.c.l.b16 %v3655
      %v3692 = vunpack.c.l.b16 %v3656
      %v3693 = vunpack.c.l.b16 %v3657
      %v3694 = vunpack.c.l.b16 %v3658
      %v3695 = vunpack.c.l.b16 %v3659
      %v3696 = vunpack.c.l.b16 %v3660
      %v3697 = vunpack.c.l.b16 %v3661
      %v3698 = vunpack.c.l.b16 %v3662
      %v3699 = vunpack.c.l.b16 %v3663
      %v3700 = vunpack.c.l.b16 %v3664
      %v3701 = vpack.c.b16 %v3686, %v3685
      %v3702 = vpack.c.b16 %v3688, %v3687
      %v3703 = vpack.c.b16 %v3690, %v3689
      %v3704 = vpack.c.b16 %v3692, %v3691
      %v3705 = vpack.c.b16 %v3694, %v3693
      %v3706 = vpack.c.b16 %v3696, %v3695
      %v3707 = vpack.c.b16 %v3698, %v3697
      %v3708 = vpack.c.b16 %v3700, %v3699
      %3717 = vmatprep.subr.bf16.mxu0 0
      %3718 = vmatpush1.bf16.msra.mxu0 %v3708
      %3719 = vmatprep.subr.bf16.mxu0 0
      %3720 = vmatpush1.bf16.msra.mxu0 %v3707
      %3721 = vmatprep.subr.bf16.mxu0 0
      %3722 = vmatpush1.bf16.msra.mxu0 %v3706
      %3723 = vmatprep.subr.bf16.mxu0 0
      %3724 = vmatpush1.bf16.msra.mxu0 %v3705
      %3725 = vmatprep.subr.bf16.mxu0 0
      %3726 = vmatpush1.bf16.msra.mxu0 %v3704
      %3727 = vmatprep.subr.bf16.mxu0 0
      %3728 = vmatpush1.bf16.msra.mxu0 %v3703
      %3729 = vmatprep.subr.bf16.mxu0 0
      %3730 = vmatpush1.bf16.msra.mxu0 %v3702
      %3731 = vmatprep.subr.bf16.mxu0 0
      %3732 = vmatpush1.bf16.msra.mxu0 %v3701
      %3733 = vmatprep.subr.bf16.mxu0 0
      %3734 = vmatpush2.bf16.msra.mxu0 0
      %3735 = vmatprep.subr.bf16.mxu0 0
      %3736 = vmatpush2.bf16.msra.mxu0 0
      %3737 = vmatprep.subr.bf16.mxu0 0
      %3738 = vmatpush2.bf16.msra.mxu0 0
      %3739 = vmatprep.subr.bf16.mxu0 0
      %3740 = vmatpush2.bf16.msra.mxu0 0
      %3741 = vmatprep.subr.bf16.mxu0 0
      %3742 = vmatpush2.bf16.msra.mxu0 0
      %3743 = vmatprep.subr.bf16.mxu0 0
      %3744 = vmatpush2.bf16.msra.mxu0 0
      %3745 = vmatprep.subr.bf16.mxu0 0
      %3746 = vmatpush2.bf16.msra.mxu0 0
      %3747 = vmatprep.subr.bf16.mxu0 0
      %3748 = vmatpush2.bf16.msra.mxu0 0
      %3749 = vmatprep.mubr.bf16.mxu0 0
      %3750 = vmatmul.mubr.bf16.gmra.mxu0 %v1543
      %v3751 = vpop.f32.mrf.mxu0
      %v3752 = vadd.f32 0.0, %v3751
      %v3753 = vpop.f32.mrf.mxu0
      %v3754 = vpop.f32.mrf.mxu0
      %v3755 = vadd.f32 0.0, %v3754
      %v3756 = vpop.f32.mrf.mxu0
      %3757 = vmatprep.mubr.bf16.mxu0 0
      %3758 = vmatmul.mubr.bf16.gmra.mxu0 %v1544
      %v3759 = vpop.f32.mrf.mxu0
      %v3760 = vadd.f32 0.0, %v3759
      %v3761 = vpop.f32.mrf.mxu0
      %v3762 = vpop.f32.mrf.mxu0
      %v3763 = vadd.f32 0.0, %v3762
      %v3764 = vpop.f32.mrf.mxu0
      %3765 = vmatprep.mubr.bf16.mxu0 0
      %3766 = vmatmul.mubr.bf16.gmra.mxu0 %v1545
      %v3767 = vpop.f32.mrf.mxu0
      %v3768 = vadd.f32 0.0, %v3767
      %v3769 = vpop.f32.mrf.mxu0
      %v3770 = vpop.f32.mrf.mxu0
      %v3771 = vadd.f32 0.0, %v3770
      %v3772 = vpop.f32.mrf.mxu0
      %3773 = vmatprep.mubr.bf16.mxu0 0
      %3774 = vmatmul.mubr.bf16.gmra.mxu0 %v1546
      %v3775 = vpop.f32.mrf.mxu0
      %v3776 = vadd.f32 0.0, %v3775
      %v3777 = vpop.f32.mrf.mxu0
      %v3778 = vpop.f32.mrf.mxu0
      %v3779 = vadd.f32 0.0, %v3778
      %v3780 = vpop.f32.mrf.mxu0
      %3781 = vmatprep.mubr.bf16.mxu0 0
      %3782 = vmatmul.mubr.bf16.gmra.mxu0 %v1547
      %v3783 = vpop.f32.mrf.mxu0
      %v3784 = vadd.f32 0.0, %v3783
      %v3785 = vpop.f32.mrf.mxu0
      %v3786 = vpop.f32.mrf.mxu0
      %v3787 = vadd.f32 0.0, %v3786
      %v3788 = vpop.f32.mrf.mxu0
      %3789 = vmatprep.mubr.bf16.mxu0 0
      %3790 = vmatmul.mubr.bf16.gmra.mxu0 %v1548
      %v3791 = vpop.f32.mrf.mxu0
      %v3792 = vadd.f32 0.0, %v3791
      %v3793 = vpop.f32.mrf.mxu0
      %v3794 = vpop.f32.mrf.mxu0
      %v3795 = vadd.f32 0.0, %v3794
      %v3796 = vpop.f32.mrf.mxu0
      %3797 = vmatprep.mubr.bf16.mxu0 0
      %3798 = vmatmul.mubr.bf16.gmra.mxu0 %v1549
      %v3799 = vpop.f32.mrf.mxu0
      %v3800 = vadd.f32 0.0, %v3799
      %v3801 = vpop.f32.mrf.mxu0
      %v3802 = vpop.f32.mrf.mxu0
      %v3803 = vadd.f32 0.0, %v3802
      %v3804 = vpop.f32.mrf.mxu0
      %3805 = vmatprep.mubr.bf16.mxu0 0
      %3806 = vmatmul.mubr.bf16.gmra.mxu0 %v1550
      %v3807 = vpop.f32.mrf.mxu0
      %v3808 = vadd.f32 0.0, %v3807
      %v3809 = vpop.f32.mrf.mxu0
      %v3810 = vpop.f32.mrf.mxu0
      %v3811 = vadd.f32 0.0, %v3810
      %v3812 = vpop.f32.mrf.mxu0
      %3813 = vmatprep.mubr.bf16.mxu0 0
      %3814 = vmatmul.mubr.bf16.gmra.mxu0 %v1551
      %v3815 = vpop.f32.mrf.mxu0
      %v3816 = vadd.f32 0.0, %v3815
      %v3817 = vpop.f32.mrf.mxu0
      %v3818 = vpop.f32.mrf.mxu0
      %v3819 = vadd.f32 0.0, %v3818
      %v3820 = vpop.f32.mrf.mxu0
      %3821 = vmatprep.mubr.bf16.mxu0 0
      %3822 = vmatmul.mubr.bf16.gmra.mxu0 %v1552
      %v3823 = vpop.f32.mrf.mxu0
      %v3824 = vadd.f32 0.0, %v3823
      %v3825 = vpop.f32.mrf.mxu0
      %v3826 = vpop.f32.mrf.mxu0
      %v3827 = vadd.f32 0.0, %v3826
      %v3828 = vpop.f32.mrf.mxu0
      %3829 = vmatprep.mubr.bf16.mxu0 0
      %3830 = vmatmul.mubr.bf16.gmra.mxu0 %v1553
      %v3831 = vpop.f32.mrf.mxu0
      %v3832 = vadd.f32 0.0, %v3831
      %v3833 = vpop.f32.mrf.mxu0
      %v3834 = vpop.f32.mrf.mxu0
      %v3835 = vadd.f32 0.0, %v3834
      %v3836 = vpop.f32.mrf.mxu0
      %3837 = vmatprep.mubr.bf16.mxu0 0
      %3838 = vmatmul.mubr.bf16.gmra.mxu0 %v1554
      %v3839 = vpop.f32.mrf.mxu0
      %v3840 = vadd.f32 0.0, %v3839
      %v3841 = vpop.f32.mrf.mxu0
      %v3842 = vpop.f32.mrf.mxu0
      %v3843 = vadd.f32 0.0, %v3842
      %v3844 = vpop.f32.mrf.mxu0
      %3845 = vmatprep.mubr.bf16.mxu0 0
      %3846 = vmatmul.mubr.bf16.gmra.mxu0 %v1555
      %v3847 = vpop.f32.mrf.mxu0
      %v3848 = vadd.f32 0.0, %v3847
      %v3849 = vpop.f32.mrf.mxu0
      %v3850 = vpop.f32.mrf.mxu0
      %v3851 = vadd.f32 0.0, %v3850
      %v3852 = vpop.f32.mrf.mxu0
      %3853 = vmatprep.mubr.bf16.mxu0 0
      %3854 = vmatmul.mubr.bf16.gmra.mxu0 %v1556
      %v3855 = vpop.f32.mrf.mxu0
      %v3856 = vadd.f32 0.0, %v3855
      %v3857 = vpop.f32.mrf.mxu0
      %v3858 = vpop.f32.mrf.mxu0
      %v3859 = vadd.f32 0.0, %v3858
      %v3860 = vpop.f32.mrf.mxu0
      %3861 = vmatprep.mubr.bf16.mxu0 0
      %3862 = vmatmul.mubr.bf16.gmra.mxu0 %v2847
      %v3863 = vpop.f32.mrf.mxu0
      %v3864 = vadd.f32 0.0, %v3863
      %v3865 = vpop.f32.mrf.mxu0
      %v3866 = vpop.f32.mrf.mxu0
      %v3867 = vadd.f32 0.0, %v3866
      %v3868 = vpop.f32.mrf.mxu0
      %3869 = vmatprep.mubr.bf16.mxu0 0
      %3870 = vmatmul.mubr.bf16.gmra.mxu0 %v3667
      %v3871 = vpop.f32.mrf.mxu0
      %v3872 = vadd.f32 0.0, %v3871
      %v3873 = vpop.f32.mrf.mxu0
      %v3874 = vpop.f32.mrf.mxu0
      %v3875 = vadd.f32 0.0, %v3874
      %v3876 = vpop.f32.mrf.mxu0
      %3877 = vdwg.mxu0
      %v3878 = vadd.f32 %v3592, %v3752
      %v3879 = vadd.f32 %v3593, %v3755
      %v3880 = vadd.f32 %v3594, %v3760
      %v3881 = vadd.f32 %v3595, %v3763
      %v3882 = vadd.f32 %v3596, %v3768
      %v3883 = vadd.f32 %v3597, %v3771
      %v3884 = vadd.f32 %v3598, %v3776
      %v3885 = vadd.f32 %v3599, %v3779
      %v3886 = vadd.f32 %v3600, %v3784
      %v3887 = vadd.f32 %v3601, %v3787
      %v3888 = vadd.f32 %v3602, %v3792
      %v3889 = vadd.f32 %v3603, %v3795
      %v3890 = vadd.f32 %v3604, %v3800
      %v3891 = vadd.f32 %v3605, %v3803
      %v3892 = vadd.f32 %v3606, %v3808
      %v3893 = vadd.f32 %v3607, %v3811
      %v3894 = vadd.f32 %v3608, %v3816
      %v3895 = vadd.f32 %v3609, %v3819
      %v3896 = vadd.f32 %v3610, %v3824
      %v3897 = vadd.f32 %v3611, %v3827
      %v3898 = vadd.f32 %v3612, %v3832
      %v3899 = vadd.f32 %v3613, %v3835
      %v3900 = vadd.f32 %v3614, %v3840
      %v3901 = vadd.f32 %v3615, %v3843
      %v3902 = vadd.f32 %v3616, %v3848
      %v3903 = vadd.f32 %v3617, %v3851
      %v3904 = vadd.f32 %v3618, %v3856
      %v3905 = vadd.f32 %v3619, %v3859
      %v3906 = vadd.f32 %v3620, %v3864
      %v3907 = vadd.f32 %v3621, %v3867
      %v3908 = vadd.f32 %v3622, %v3872
      %v3909 = vadd.f32 %v3623, %v3875
      %v3911 = vrot.slane %v1086, 5
      %v3912 = vrot.slane %v3911, 4
      %v3913 = vrot.slane %v1087, 5
      %v3914 = vsel %vm2105, %v3912, %v3913
      %v3915 = vrot.slane %v3913, 4
      %v3916 = vrot.slane %v1088, 5
      %v3917 = vsel %vm2105, %v3915, %v3916
      %s3918 = scalar_lea.vmem %s1, 512
      %v3919 = vld [vmem:[%s3918] sm:$0xf]
      %v3920 = vld [vmem:[%s3918 + $0x4] sm:$0xf]
      %v3921 = vld [vmem:[%s3918 + $0x8] sm:$0xf]
      %v3922 = vld [vmem:[%s3918 + $0xc] sm:$0xf]
      %v3923 = vld [vmem:[%s3918 + $0x10] sm:$0xf]
      %v3924 = vld [vmem:[%s3918 + $0x14] sm:$0xf]
      %v3925 = vld [vmem:[%s3918 + $0x18] sm:$0xf]
      %v3926 = vld [vmem:[%s3918 + $0x1c] sm:$0xf]
      %v3927 = vld [vmem:[%s3918 + $0x20] sm:$0xf]
      %v3928 = vld [vmem:[%s3918 + $0x24] sm:$0xf]
      %v3929 = vld [vmem:[%s3918 + $0x28] sm:$0xf]
      %v3930 = vld [vmem:[%s3918 + $0x2c] sm:$0xf]
      %v3931 = vld [vmem:[%s3918 + $0x30] sm:$0xf]
      %v3932 = vld [vmem:[%s3918 + $0x34] sm:$0xf]
      %v3933 = vld [vmem:[%s3918 + $0x38] sm:$0xf]
      %v3934 = vld [vmem:[%s3918 + $0x3c] sm:$0xf]
      %v3935 = vunpack.c.l.b16 %v3914
      %v3936 = vunpack.c.l.b16 %v3917
      %v3937 = vpack.c.b16 %v3936, %v3935
      %v3955 = vunpack.c.l.b16 %v3919
      %v3956 = vunpack.c.l.b16 %v3920
      %v3957 = vunpack.c.l.b16 %v3921
      %v3958 = vunpack.c.l.b16 %v3922
      %v3959 = vunpack.c.l.b16 %v3923
      %v3960 = vunpack.c.l.b16 %v3924
      %v3961 = vunpack.c.l.b16 %v3925
      %v3962 = vunpack.c.l.b16 %v3926
      %v3963 = vunpack.c.l.b16 %v3927
      %v3964 = vunpack.c.l.b16 %v3928
      %v3965 = vunpack.c.l.b16 %v3929
      %v3966 = vunpack.c.l.b16 %v3930
      %v3967 = vunpack.c.l.b16 %v3931
      %v3968 = vunpack.c.l.b16 %v3932
      %v3969 = vunpack.c.l.b16 %v3933
      %v3970 = vunpack.c.l.b16 %v3934
      %v3971 = vpack.c.b16 %v3956, %v3955
      %v3972 = vpack.c.b16 %v3958, %v3957
      %v3973 = vpack.c.b16 %v3960, %v3959
      %v3974 = vpack.c.b16 %v3962, %v3961
      %v3975 = vpack.c.b16 %v3964, %v3963
      %v3976 = vpack.c.b16 %v3966, %v3965
      %v3977 = vpack.c.b16 %v3968, %v3967
      %v3978 = vpack.c.b16 %v3970, %v3969
      %3987 = vmatprep.subr.bf16.mxu0 0
      %3988 = vmatpush1.bf16.msra.mxu0 %v3978
      %3989 = vmatprep.subr.bf16.mxu0 0
      %3990 = vmatpush1.bf16.msra.mxu0 %v3977
      %3991 = vmatprep.subr.bf16.mxu0 0
      %3992 = vmatpush1.bf16.msra.mxu0 %v3976
      %3993 = vmatprep.subr.bf16.mxu0 0
      %3994 = vmatpush1.bf16.msra.mxu0 %v3975
      %3995 = vmatprep.subr.bf16.mxu0 0
      %3996 = vmatpush1.bf16.msra.mxu0 %v3974
      %3997 = vmatprep.subr.bf16.mxu0 0
      %3998 = vmatpush1.bf16.msra.mxu0 %v3973
      %3999 = vmatprep.subr.bf16.mxu0 0
      %4000 = vmatpush1.bf16.msra.mxu0 %v3972
      %4001 = vmatprep.subr.bf16.mxu0 0
      %4002 = vmatpush1.bf16.msra.mxu0 %v3971
      %4003 = vmatprep.subr.bf16.mxu0 0
      %4004 = vmatpush2.bf16.msra.mxu0 0
      %4005 = vmatprep.subr.bf16.mxu0 0
      %4006 = vmatpush2.bf16.msra.mxu0 0
      %4007 = vmatprep.subr.bf16.mxu0 0
      %4008 = vmatpush2.bf16.msra.mxu0 0
      %4009 = vmatprep.subr.bf16.mxu0 0
      %4010 = vmatpush2.bf16.msra.mxu0 0
      %4011 = vmatprep.subr.bf16.mxu0 0
      %4012 = vmatpush2.bf16.msra.mxu0 0
      %4013 = vmatprep.subr.bf16.mxu0 0
      %4014 = vmatpush2.bf16.msra.mxu0 0
      %4015 = vmatprep.subr.bf16.mxu0 0
      %4016 = vmatpush2.bf16.msra.mxu0 0
      %4017 = vmatprep.subr.bf16.mxu0 0
      %4018 = vmatpush2.bf16.msra.mxu0 0
      %4019 = vmatprep.mubr.bf16.mxu0 0
      %4020 = vmatmul.mubr.bf16.gmra.mxu0 %v2269
      %v4021 = vpop.f32.mrf.mxu0
      %v4022 = vadd.f32 0.0, %v4021
      %v4023 = vpop.f32.mrf.mxu0
      %v4024 = vpop.f32.mrf.mxu0
      %v4025 = vadd.f32 0.0, %v4024
      %v4026 = vpop.f32.mrf.mxu0
      %4027 = vmatprep.mubr.bf16.mxu0 0
      %4028 = vmatmul.mubr.bf16.gmra.mxu0 %v2270
      %v4029 = vpop.f32.mrf.mxu0
      %v4030 = vadd.f32 0.0, %v4029
      %v4031 = vpop.f32.mrf.mxu0
      %v4032 = vpop.f32.mrf.mxu0
      %v4033 = vadd.f32 0.0, %v4032
      %v4034 = vpop.f32.mrf.mxu0
      %4035 = vmatprep.mubr.bf16.mxu0 0
      %4036 = vmatmul.mubr.bf16.gmra.mxu0 %v2271
      %v4037 = vpop.f32.mrf.mxu0
      %v4038 = vadd.f32 0.0, %v4037
      %v4039 = vpop.f32.mrf.mxu0
      %v4040 = vpop.f32.mrf.mxu0
      %v4041 = vadd.f32 0.0, %v4040
      %v4042 = vpop.f32.mrf.mxu0
      %4043 = vmatprep.mubr.bf16.mxu0 0
      %4044 = vmatmul.mubr.bf16.gmra.mxu0 %v2272
      %v4045 = vpop.f32.mrf.mxu0
      %v4046 = vadd.f32 0.0, %v4045
      %v4047 = vpop.f32.mrf.mxu0
      %v4048 = vpop.f32.mrf.mxu0
      %v4049 = vadd.f32 0.0, %v4048
      %v4050 = vpop.f32.mrf.mxu0
      %4051 = vmatprep.mubr.bf16.mxu0 0
      %4052 = vmatmul.mubr.bf16.gmra.mxu0 %v2273
      %v4053 = vpop.f32.mrf.mxu0
      %v4054 = vadd.f32 0.0, %v4053
      %v4055 = vpop.f32.mrf.mxu0
      %v4056 = vpop.f32.mrf.mxu0
      %v4057 = vadd.f32 0.0, %v4056
      %v4058 = vpop.f32.mrf.mxu0
      %4059 = vmatprep.mubr.bf16.mxu0 0
      %4060 = vmatmul.mubr.bf16.gmra.mxu0 %v2274
      %v4061 = vpop.f32.mrf.mxu0
      %v4062 = vadd.f32 0.0, %v4061
      %v4063 = vpop.f32.mrf.mxu0
      %v4064 = vpop.f32.mrf.mxu0
      %v4065 = vadd.f32 0.0, %v4064
      %v4066 = vpop.f32.mrf.mxu0
      %4067 = vmatprep.mubr.bf16.mxu0 0
      %4068 = vmatmul.mubr.bf16.gmra.mxu0 %v2275
      %v4069 = vpop.f32.mrf.mxu0
      %v4070 = vadd.f32 0.0, %v4069
      %v4071 = vpop.f32.mrf.mxu0
      %v4072 = vpop.f32.mrf.mxu0
      %v4073 = vadd.f32 0.0, %v4072
      %v4074 = vpop.f32.mrf.mxu0
      %4075 = vmatprep.mubr.bf16.mxu0 0
      %4076 = vmatmul.mubr.bf16.gmra.mxu0 %v2276
      %v4077 = vpop.f32.mrf.mxu0
      %v4078 = vadd.f32 0.0, %v4077
      %v4079 = vpop.f32.mrf.mxu0
      %v4080 = vpop.f32.mrf.mxu0
      %v4081 = vadd.f32 0.0, %v4080
      %v4082 = vpop.f32.mrf.mxu0
      %4083 = vmatprep.mubr.bf16.mxu0 0
      %4084 = vmatmul.mubr.bf16.gmra.mxu0 %v2277
      %v4085 = vpop.f32.mrf.mxu0
      %v4086 = vadd.f32 0.0, %v4085
      %v4087 = vpop.f32.mrf.mxu0
      %v4088 = vpop.f32.mrf.mxu0
      %v4089 = vadd.f32 0.0, %v4088
      %v4090 = vpop.f32.mrf.mxu0
      %4091 = vmatprep.mubr.bf16.mxu0 0
      %4092 = vmatmul.mubr.bf16.gmra.mxu0 %v2278
      %v4093 = vpop.f32.mrf.mxu0
      %v4094 = vadd.f32 0.0, %v4093
      %v4095 = vpop.f32.mrf.mxu0
      %v4096 = vpop.f32.mrf.mxu0
      %v4097 = vadd.f32 0.0, %v4096
      %v4098 = vpop.f32.mrf.mxu0
      %4099 = vmatprep.mubr.bf16.mxu0 0
      %4100 = vmatmul.mubr.bf16.gmra.mxu0 %v2279
      %v4101 = vpop.f32.mrf.mxu0
      %v4102 = vadd.f32 0.0, %v4101
      %v4103 = vpop.f32.mrf.mxu0
      %v4104 = vpop.f32.mrf.mxu0
      %v4105 = vadd.f32 0.0, %v4104
      %v4106 = vpop.f32.mrf.mxu0
      %4107 = vmatprep.mubr.bf16.mxu0 0
      %4108 = vmatmul.mubr.bf16.gmra.mxu0 %v2280
      %v4109 = vpop.f32.mrf.mxu0
      %v4110 = vadd.f32 0.0, %v4109
      %v4111 = vpop.f32.mrf.mxu0
      %v4112 = vpop.f32.mrf.mxu0
      %v4113 = vadd.f32 0.0, %v4112
      %v4114 = vpop.f32.mrf.mxu0
      %4115 = vmatprep.mubr.bf16.mxu0 0
      %4116 = vmatmul.mubr.bf16.gmra.mxu0 %v2281
      %v4117 = vpop.f32.mrf.mxu0
      %v4118 = vadd.f32 0.0, %v4117
      %v4119 = vpop.f32.mrf.mxu0
      %v4120 = vpop.f32.mrf.mxu0
      %v4121 = vadd.f32 0.0, %v4120
      %v4122 = vpop.f32.mrf.mxu0
      %4123 = vmatprep.mubr.bf16.mxu0 0
      %4124 = vmatmul.mubr.bf16.gmra.mxu0 %v2282
      %v4125 = vpop.f32.mrf.mxu0
      %v4126 = vadd.f32 0.0, %v4125
      %v4127 = vpop.f32.mrf.mxu0
      %v4128 = vpop.f32.mrf.mxu0
      %v4129 = vadd.f32 0.0, %v4128
      %v4130 = vpop.f32.mrf.mxu0
      %4131 = vmatprep.mubr.bf16.mxu0 0
      %4132 = vmatmul.mubr.bf16.gmra.mxu0 %v3117
      %v4133 = vpop.f32.mrf.mxu0
      %v4134 = vadd.f32 0.0, %v4133
      %v4135 = vpop.f32.mrf.mxu0
      %v4136 = vpop.f32.mrf.mxu0
      %v4137 = vadd.f32 0.0, %v4136
      %v4138 = vpop.f32.mrf.mxu0
      %4139 = vmatprep.mubr.bf16.mxu0 0
      %4140 = vmatmul.mubr.bf16.gmra.mxu0 %v3937
      %v4141 = vpop.f32.mrf.mxu0
      %v4142 = vadd.f32 0.0, %v4141
      %v4143 = vpop.f32.mrf.mxu0
      %v4144 = vpop.f32.mrf.mxu0
      %v4145 = vadd.f32 0.0, %v4144
      %v4146 = vpop.f32.mrf.mxu0
      %4147 = vdwg.mxu0
      %v4148 = vadd.f32 %v3878, %v4022
      %v4149 = vadd.f32 %v3879, %v4025
      %v4150 = vadd.f32 %v3880, %v4030
      %v4151 = vadd.f32 %v3881, %v4033
      %v4152 = vadd.f32 %v3882, %v4038
      %v4153 = vadd.f32 %v3883, %v4041
      %v4154 = vadd.f32 %v3884, %v4046
      %v4155 = vadd.f32 %v3885, %v4049
      %v4156 = vadd.f32 %v3886, %v4054
      %v4157 = vadd.f32 %v3887, %v4057
      %v4158 = vadd.f32 %v3888, %v4062
      %v4159 = vadd.f32 %v3889, %v4065
      %v4160 = vadd.f32 %v3890, %v4070
      %v4161 = vadd.f32 %v3891, %v4073
      %v4162 = vadd.f32 %v3892, %v4078
      %v4163 = vadd.f32 %v3893, %v4081
      %v4164 = vadd.f32 %v3894, %v4086
      %v4165 = vadd.f32 %v3895, %v4089
      %v4166 = vadd.f32 %v3896, %v4094
      %v4167 = vadd.f32 %v3897, %v4097
      %v4168 = vadd.f32 %v3898, %v4102
      %v4169 = vadd.f32 %v3899, %v4105
      %v4170 = vadd.f32 %v3900, %v4110
      %v4171 = vadd.f32 %v3901, %v4113
      %v4172 = vadd.f32 %v3902, %v4118
      %v4173 = vadd.f32 %v3903, %v4121
      %v4174 = vadd.f32 %v3904, %v4126
      %v4175 = vadd.f32 %v3905, %v4129
      %v4176 = vadd.f32 %v3906, %v4134
      %v4177 = vadd.f32 %v3907, %v4137
      %v4178 = vadd.f32 %v3908, %v4142
      %v4179 = vadd.f32 %v3909, %v4145
      %v4180 = vadd.f32 %v4148, %v4149
      %v4181 = vadd.f32 %v4180, %v4150
      %v4182 = vadd.f32 %v4181, %v4151
      %v4183 = vadd.f32 %v4182, %v4152
      %v4184 = vadd.f32 %v4183, %v4153
      %v4185 = vadd.f32 %v4184, %v4154
      %v4186 = vadd.f32 %v4185, %v4155
      %v4187 = vadd.f32 %v4186, %v4156
      %v4188 = vadd.f32 %v4187, %v4157
      %v4189 = vadd.f32 %v4188, %v4158
      %v4190 = vadd.f32 %v4189, %v4159
      %v4191 = vadd.f32 %v4190, %v4160
      %v4192 = vadd.f32 %v4191, %v4161
      %v4193 = vadd.f32 %v4192, %v4162
      %v4194 = vadd.f32 %v4193, %v4163
      %v4195 = vadd.f32 %v4194, %v4164
      %v4196 = vadd.f32 %v4195, %v4165
      %v4197 = vadd.f32 %v4196, %v4166
      %v4198 = vadd.f32 %v4197, %v4167
      %v4199 = vadd.f32 %v4198, %v4168
      %v4200 = vadd.f32 %v4199, %v4169
      %v4201 = vadd.f32 %v4200, %v4170
      %v4202 = vadd.f32 %v4201, %v4171
      %v4203 = vadd.f32 %v4202, %v4172
      %v4204 = vadd.f32 %v4203, %v4173
      %v4205 = vadd.f32 %v4204, %v4174
      %v4206 = vadd.f32 %v4205, %v4175
      %v4207 = vadd.f32 %v4206, %v4176
      %v4208 = vadd.f32 %v4207, %v4177
      %v4209 = vadd.f32 %v4208, %v4178
      %v4210 = vadd.f32 %v4209, %v4179
      %v4211 = vrot.slane %v4210, 4
      %v4212 = vadd.f32 %v4210, %v4211
      %v4213 = vrot.slane %v4212, 2
      %v4214 = vadd.f32 %v4212, %v4213
      %v4215 = vrot.slane %v4214, 1
      %v4216 = vadd.f32 %v4214, %v4215
      %4217 = vst [vmem:[%s265] sm:$0x1] %v4216
      %v4218 = vmul.f32 %v4148, %v4148
      %v4219 = vmul.f32 %v4149, %v4149
      %v4220 = vmul.f32 %v4150, %v4150
      %v4221 = vmul.f32 %v4151, %v4151
      %v4222 = vmul.f32 %v4152, %v4152
      %v4223 = vmul.f32 %v4153, %v4153
      %v4224 = vmul.f32 %v4154, %v4154
      %v4225 = vmul.f32 %v4155, %v4155
      %v4226 = vmul.f32 %v4156, %v4156
      %v4227 = vmul.f32 %v4157, %v4157
      %v4228 = vmul.f32 %v4158, %v4158
      %v4229 = vmul.f32 %v4159, %v4159
      %v4230 = vmul.f32 %v4160, %v4160
      %v4231 = vmul.f32 %v4161, %v4161
      %v4232 = vmul.f32 %v4162, %v4162
      %v4233 = vmul.f32 %v4163, %v4163
      %v4234 = vmul.f32 %v4164, %v4164
      %v4235 = vmul.f32 %v4165, %v4165
      %v4236 = vmul.f32 %v4166, %v4166
      %v4237 = vmul.f32 %v4167, %v4167
      %v4238 = vmul.f32 %v4168, %v4168
      %v4239 = vmul.f32 %v4169, %v4169
      %v4240 = vmul.f32 %v4170, %v4170
      %v4241 = vmul.f32 %v4171, %v4171
      %v4242 = vmul.f32 %v4172, %v4172
      %v4243 = vmul.f32 %v4173, %v4173
      %v4244 = vmul.f32 %v4174, %v4174
      %v4245 = vmul.f32 %v4175, %v4175
      %v4246 = vmul.f32 %v4176, %v4176
      %v4247 = vmul.f32 %v4177, %v4177
      %v4248 = vmul.f32 %v4178, %v4178
      %v4249 = vmul.f32 %v4179, %v4179
      %v4250 = vadd.f32 %v4218, %v4219
      %v4251 = vadd.f32 %v4250, %v4220
      %v4252 = vadd.f32 %v4251, %v4221
      %v4253 = vadd.f32 %v4252, %v4222
      %v4254 = vadd.f32 %v4253, %v4223
      %v4255 = vadd.f32 %v4254, %v4224
      %v4256 = vadd.f32 %v4255, %v4225
      %v4257 = vadd.f32 %v4256, %v4226
      %v4258 = vadd.f32 %v4257, %v4227
      %v4259 = vadd.f32 %v4258, %v4228
      %v4260 = vadd.f32 %v4259, %v4229
      %v4261 = vadd.f32 %v4260, %v4230
      %v4262 = vadd.f32 %v4261, %v4231
      %v4263 = vadd.f32 %v4262, %v4232
      %v4264 = vadd.f32 %v4263, %v4233
      %v4265 = vadd.f32 %v4264, %v4234
      %v4266 = vadd.f32 %v4265, %v4235
      %v4267 = vadd.f32 %v4266, %v4236
      %v4268 = vadd.f32 %v4267, %v4237
      %v4269 = vadd.f32 %v4268, %v4238
      %v4270 = vadd.f32 %v4269, %v4239
      %v4271 = vadd.f32 %v4270, %v4240
      %v4272 = vadd.f32 %v4271, %v4241
      %v4273 = vadd.f32 %v4272, %v4242
      %v4274 = vadd.f32 %v4273, %v4243
      %v4275 = vadd.f32 %v4274, %v4244
      %v4276 = vadd.f32 %v4275, %v4245
      %v4277 = vadd.f32 %v4276, %v4246
      %v4278 = vadd.f32 %v4277, %v4247
      %v4279 = vadd.f32 %v4278, %v4248
      %v4280 = vadd.f32 %v4279, %v4249
      %v4281 = vrot.slane %v4280, 4
      %v4282 = vadd.f32 %v4280, %v4281
      %v4283 = vrot.slane %v4282, 2
      %v4284 = vadd.f32 %v4282, %v4283
      %v4285 = vrot.slane %v4284, 1
      %v4286 = vadd.f32 %v4284, %v4285
      %4287 = vst [vmem:[%s268] sm:$0x1] %v4286
      %v4288 = vpack.c.bf16 %v4149, %v4148
      %v4289 = vpack.c.bf16 %v4151, %v4150
      %v4290 = vpack.c.bf16 %v4153, %v4152
      %v4291 = vpack.c.bf16 %v4155, %v4154
      %v4292 = vpack.c.bf16 %v4157, %v4156
      %v4293 = vpack.c.bf16 %v4159, %v4158
      %v4294 = vpack.c.bf16 %v4161, %v4160
      %v4295 = vpack.c.bf16 %v4163, %v4162
      %v4296 = vpack.c.bf16 %v4165, %v4164
      %v4297 = vpack.c.bf16 %v4167, %v4166
      %v4298 = vpack.c.bf16 %v4169, %v4168
      %v4299 = vpack.c.bf16 %v4171, %v4170
      %v4300 = vpack.c.bf16 %v4173, %v4172
      %v4301 = vpack.c.bf16 %v4175, %v4174
      %v4302 = vpack.c.bf16 %v4177, %v4176
      %v4303 = vpack.c.bf16 %v4179, %v4178
      %v4320 = vunpack.c.l.b16 %v4288
      %v4321 = vunpack.c.h.b16 %v4288
      %v4322 = vunpack.c.l.b16 %v4289
      %v4323 = vunpack.c.h.b16 %v4289
      %v4324 = vunpack.c.l.b16 %v4290
      %v4325 = vunpack.c.h.b16 %v4290
      %v4326 = vunpack.c.l.b16 %v4291
      %v4327 = vunpack.c.h.b16 %v4291
      %v4328 = vunpack.c.l.b16 %v4292
      %v4329 = vunpack.c.h.b16 %v4292
      %v4330 = vunpack.c.l.b16 %v4293
      %v4331 = vunpack.c.h.b16 %v4293
      %v4332 = vunpack.c.l.b16 %v4294
      %v4333 = vunpack.c.h.b16 %v4294
      %v4334 = vunpack.c.l.b16 %v4295
      %v4335 = vunpack.c.h.b16 %v4295
      %v4336 = vunpack.c.l.b16 %v4296
      %v4337 = vunpack.c.h.b16 %v4296
      %v4338 = vunpack.c.l.b16 %v4297
      %v4339 = vunpack.c.h.b16 %v4297
      %v4340 = vunpack.c.l.b16 %v4298
      %v4341 = vunpack.c.h.b16 %v4298
      %v4342 = vunpack.c.l.b16 %v4299
      %v4343 = vunpack.c.h.b16 %v4299
      %v4344 = vunpack.c.l.b16 %v4300
      %v4345 = vunpack.c.h.b16 %v4300
      %v4346 = vunpack.c.l.b16 %v4301
      %v4347 = vunpack.c.h.b16 %v4301
      %v4348 = vunpack.c.l.b16 %v4302
      %v4349 = vunpack.c.h.b16 %v4302
      %v4350 = vunpack.c.l.b16 %v4303
      %v4351 = vunpack.c.h.b16 %v4303
      %v4352 = vpack.c.b16 %v4320, %v4320
      %v4353 = vpack.c.b16 %v4321, %v4321
      %v4354 = vpack.c.b16 %v4322, %v4322
      %v4355 = vpack.c.b16 %v4323, %v4323
      %v4356 = vpack.c.b16 %v4324, %v4324
      %v4357 = vpack.c.b16 %v4325, %v4325
      %v4358 = vpack.c.b16 %v4326, %v4326
      %v4359 = vpack.c.b16 %v4327, %v4327
      %v4360 = vpack.c.b16 %v4328, %v4328
      %v4361 = vpack.c.b16 %v4329, %v4329
      %v4362 = vpack.c.b16 %v4330, %v4330
      %v4363 = vpack.c.b16 %v4331, %v4331
      %v4364 = vpack.c.b16 %v4332, %v4332
      %v4365 = vpack.c.b16 %v4333, %v4333
      %v4366 = vpack.c.b16 %v4334, %v4334
      %v4367 = vpack.c.b16 %v4335, %v4335
      %v4368 = vpack.c.b16 %v4336, %v4336
      %v4369 = vpack.c.b16 %v4337, %v4337
      %v4370 = vpack.c.b16 %v4338, %v4338
      %v4371 = vpack.c.b16 %v4339, %v4339
      %v4372 = vpack.c.b16 %v4340, %v4340
      %v4373 = vpack.c.b16 %v4341, %v4341
      %v4374 = vpack.c.b16 %v4342, %v4342
      %v4375 = vpack.c.b16 %v4343, %v4343
      %v4376 = vpack.c.b16 %v4344, %v4344
      %v4377 = vpack.c.b16 %v4345, %v4345
      %v4378 = vpack.c.b16 %v4346, %v4346
      %v4379 = vpack.c.b16 %v4347, %v4347
      %v4380 = vpack.c.b16 %v4348, %v4348
      %v4381 = vpack.c.b16 %v4349, %v4349
      %v4382 = vpack.c.b16 %v4350, %v4350
      %v4383 = vpack.c.b16 %v4351, %v4351
      %4416 = vst [vmem:[%s262] sm:$0xf] %v4352
      %4417 = vst [vmem:[%s262 + $0x4] sm:$0xf] %v4353
      %4418 = vst [vmem:[%s262 + $0x8] sm:$0xf] %v4354
      %4419 = vst [vmem:[%s262 + $0xc] sm:$0xf] %v4355
      %4420 = vst [vmem:[%s262 + $0x10] sm:$0xf] %v4356
      %4421 = vst [vmem:[%s262 + $0x14] sm:$0xf] %v4357
      %4422 = vst [vmem:[%s262 + $0x18] sm:$0xf] %v4358
      %4423 = vst [vmem:[%s262 + $0x1c] sm:$0xf] %v4359
      %4424 = vst [vmem:[%s262 + $0x20] sm:$0xf] %v4360
      %4425 = vst [vmem:[%s262 + $0x24] sm:$0xf] %v4361
      %4426 = vst [vmem:[%s262 + $0x28] sm:$0xf] %v4362
      %4427 = vst [vmem:[%s262 + $0x2c] sm:$0xf] %v4363
      %4428 = vst [vmem:[%s262 + $0x30] sm:$0xf] %v4364
      %4429 = vst [vmem:[%s262 + $0x34] sm:$0xf] %v4365
      %4430 = vst [vmem:[%s262 + $0x38] sm:$0xf] %v4366
      %4431 = vst [vmem:[%s262 + $0x3c] sm:$0xf] %v4367
      %4432 = vst [vmem:[%s262 + $0x40] sm:$0xf] %v4368
      %4433 = vst [vmem:[%s262 + $0x44] sm:$0xf] %v4369
      %4434 = vst [vmem:[%s262 + $0x48] sm:$0xf] %v4370
      %4435 = vst [vmem:[%s262 + $0x4c] sm:$0xf] %v4371
      %4436 = vst [vmem:[%s262 + $0x50] sm:$0xf] %v4372
      %4437 = vst [vmem:[%s262 + $0x54] sm:$0xf] %v4373
      %4438 = vst [vmem:[%s262 + $0x58] sm:$0xf] %v4374
      %4439 = vst [vmem:[%s262 + $0x5c] sm:$0xf] %v4375
      %4440 = vst [vmem:[%s262 + $0x60] sm:$0xf] %v4376
      %4441 = vst [vmem:[%s262 + $0x64] sm:$0xf] %v4377
      %4442 = vst [vmem:[%s262 + $0x68] sm:$0xf] %v4378
      %4443 = vst [vmem:[%s262 + $0x6c] sm:$0xf] %v4379
      %4444 = vst [vmem:[%s262 + $0x70] sm:$0xf] %v4380
      %4445 = vst [vmem:[%s262 + $0x74] sm:$0xf] %v4381
      %4446 = vst [vmem:[%s262 + $0x78] sm:$0xf] %v4382
      %4447 = vst [vmem:[%s262 + $0x7c] sm:$0xf] %v4383
      %p4448 = scmp.lt.s32.totalorder %s18, 1
      %s4449 = scalar_select %p4448, %s18, 1
      %s4450 = smul.addr %s4449, 32
      %s4451 = smul.addr %s4450, 4
      %s4452 = scalar_lea.vmem %s4, %s4451
      %p4453 = scmp.lt.s32.totalorder %s18, 1
      %s4454 = scalar_select %p4453, %s18, 1
      %s4455 = scalar_lea.vmem %s5, %s4454
      %p4456 = scmp.lt.s32.totalorder %s18, 1
      %s4457 = scalar_select %p4456, %s18, 1
      %s4458 = scalar_lea.vmem %s6, %s4457
      // Predicated region
      $region37: #{basic_block_forward.5} parent=35 // pred_check
        %p4459 = pneg %p125
      $region38: #{basic_block_forward.5} parent=35 // pred_check_branch
        %4461 = sbr.rel (%p4459) target = $region40
      $region39: #{basic_block_forward.5} parent=35 // pred_region
        _
      $region40: #{basic_block_forward.5} parent=35 // pred_fallthru
        _
      // Predicated region
      $region41: #{basic_block_forward.5} parent=35 // pred_check
        %p4462 = pneg %p151
      $region42: #{basic_block_forward.5} parent=35 // pred_check_branch
        %4464 = sbr.rel (%p4462) target = $region44
      $region43: #{basic_block_forward.5} parent=35 // pred_region
        _
      $region44: #{basic_block_forward.5} parent=35 // pred_fallthru
        _
      // Predicated region
      $region45: #{basic_block_forward.5} parent=35 // pred_check
        %p4465 = pneg %p177
      $region46: #{basic_block_forward.5} parent=35 // pred_check_branch
        %4467 = sbr.rel (%p4465) target = $region48
      $region47: #{basic_block_forward.5} parent=35 // pred_region
        _
      $region48: #{basic_block_forward.5} parent=35 // pred_fallthru
        _
    $region36: #{basic_block_forward.5} parent=5 // pred_fallthru
      _
    %p4468 = scmp.le.s32.totalorder 2, %s13
    // Predicated region
    $region49: #{basic_block_forward.5} parent=5 // pred_check
      %p4469 = pneg %p4468
    $region50: #{basic_block_forward.5} parent=5 // pred_check_branch
      %4471 = sbr.rel (%p4469) target = $region52
    $region51: #{basic_block_forward.5} parent=5 // pred_region
      %s4472 = ssub.s32 %s13, 2
      // Predicated region
      $region53: #{basic_block_forward.5} parent=51 // pred_check
        %p4473 = pneg %p131
      $region54: #{basic_block_forward.5} parent=51 // pred_check_branch
        %4475 = sbr.rel (%p4473) target = $region56
      $region55: #{basic_block_forward.5} parent=51 // pred_region
        %p4476 = scmp.lt.s32.totalorder %s19, 1
        %s4477 = scalar_select %p4476, %s19, 1
        %s4478 = smul.addr %s4477, 32
        %s4479 = smul.addr %s4478, 4
        %s4480 = scalar_lea.vmem %s4, %s4479
      $region56: #{basic_block_forward.5} parent=51 // pred_fallthru
        _
      // Predicated region
      $region57: #{basic_block_forward.5} parent=51 // pred_check
        %p4481 = pneg %p157
      $region58: #{basic_block_forward.5} parent=51 // pred_check_branch
        %4483 = sbr.rel (%p4481) target = $region60
      $region59: #{basic_block_forward.5} parent=51 // pred_region
        %p4484 = scmp.lt.s32.totalorder %s19, 1
        %s4485 = scalar_select %p4484, %s19, 1
        %s4486 = scalar_lea.vmem %s5, %s4485
      $region60: #{basic_block_forward.5} parent=51 // pred_fallthru
        _
      // Predicated region
      $region61: #{basic_block_forward.5} parent=51 // pred_check
        %p4487 = pneg %p183
      $region62: #{basic_block_forward.5} parent=51 // pred_check_branch
        %4489 = sbr.rel (%p4487) target = $region64
      $region63: #{basic_block_forward.5} parent=51 // pred_region
        %p4490 = scmp.lt.s32.totalorder %s19, 1
        %s4491 = scalar_select %p4490, %s19, 1
        %s4492 = scalar_lea.vmem %s6, %s4491
      $region64: #{basic_block_forward.5} parent=51 // pred_fallthru
        _
    $region52: #{basic_block_forward.5} parent=5 // pred_fallthru
      _
  $region6: #{basic_block_forward.5} parent=0 // loop_footer
    %s17 = sadd.s32 1, %s13
  $region7: #{basic_block_forward.5} parent=0 // loop_footer_branch
    %12 = sbr.rel target = $region3
  $region8: #{basic_block_forward.5} parent=0 // loop_exit
    _

</llo_original>
